<compile_context>
chip_gen: v7x
topology: tpu7x:2x2x1
jax: 0.10.0
libtpu: 0.0.40
codegen_flags: <defaults>
</compile_context>

<pallas_src>
import functools
import math

import jax
import jax.numpy as jnp
from jax import lax
from jax.experimental import pallas as pl
from jax.experimental.pallas import tpu as pltpu


_ROW_TILES = (512, 256, 128)                 # sublane (row) tiles, >= 128
_LANE_TILES = (768, 512, 384, 256, 128)      # lane / contraction tiles
_VMEM_LIMIT = 32 * 1024 * 1024               # safe on v5e / v6e / v7x


def _pick_tile(dim, candidates, min_blocks=1):
    """Largest candidate dividing `dim`, preferring >= min_blocks blocks."""
    for c in candidates:
        if dim % c == 0 and dim // c >= min_blocks:
            return c
    for c in candidates:
        if dim % c == 0:
            return c
    return dim  # full dimension is always a legal block


def _seq_tile_and_pad(T):
    """Sequence tile >= 128; pad T up rather than falling back to tiny tiles."""
    for t in (512, 256, 128):
        if T % t == 0:
            return t, T
    t = 256 if T > 1024 else 128
    Tp = ((T + t - 1) // t) * t
    return t, Tp


# ----------------------------------------------------------------------------
# Fused QKV projection: q/k/v = x @ Wq/Wk/Wv + b   (x tile reused 3x per step)
# ----------------------------------------------------------------------------
def _qkv_kernel(x_ref, wq_ref, wk_ref, wv_ref, bq_ref, bk_ref, bv_ref,
                q_ref, k_ref, v_ref, accq, acck, accv):
    kstep = pl.program_id(2)

    @pl.when(kstep == 0)
    def _init():
        accq[...] = jnp.zeros_like(accq)
        acck[...] = jnp.zeros_like(acck)
        accv[...] = jnp.zeros_like(accv)

    x = x_ref[...].astype(jnp.bfloat16)   # in-kernel cast: no wrapper HBM pass
    accq[...] += jnp.dot(x, wq_ref[...], preferred_element_type=jnp.float32)
    acck[...] += jnp.dot(x, wk_ref[...], preferred_element_type=jnp.float32)
    accv[...] += jnp.dot(x, wv_ref[...], preferred_element_type=jnp.float32)

    @pl.when(kstep == pl.num_programs(2) - 1)
    def _finalize():
        q_ref[...] = (accq[...] + bq_ref[...]).astype(q_ref.dtype)
        k_ref[...] = (acck[...] + bk_ref[...]).astype(k_ref.dtype)
        v_ref[...] = (accv[...] + bv_ref[...]).astype(v_ref.dtype)


def qkv_projection(x2d, wq, wk, wv, bq, bk, bv):
    """x2d: [M, C] f32; weights [C, C] bf16; biases [1, C] f32 -> 3x [M, C] bf16."""
    M, K = x2d.shape
    N = wq.shape[1]
    tm = _pick_tile(M, _ROW_TILES, min_blocks=2)
    tn = _pick_tile(N, _LANE_TILES)
    tk = _pick_tile(K, _LANE_TILES)
    grid = (M // tm, N // tn, K // tk)
    out = jax.ShapeDtypeStruct((M, N), jnp.bfloat16)
    return pl.pallas_call(
        _qkv_kernel,
        out_shape=(out, out, out),
        grid=grid,
        in_specs=[
            pl.BlockSpec((tm, tk), lambda i, j, k: (i, k)),
            pl.BlockSpec((tk, tn), lambda i, j, k: (k, j)),
            pl.BlockSpec((tk, tn), lambda i, j, k: (k, j)),
            pl.BlockSpec((tk, tn), lambda i, j, k: (k, j)),
            pl.BlockSpec((1, tn), lambda i, j, k: (0, j)),
            pl.BlockSpec((1, tn), lambda i, j, k: (0, j)),
            pl.BlockSpec((1, tn), lambda i, j, k: (0, j)),
        ],
        out_specs=(
            pl.BlockSpec((tm, tn), lambda i, j, k: (i, j)),
            pl.BlockSpec((tm, tn), lambda i, j, k: (i, j)),
            pl.BlockSpec((tm, tn), lambda i, j, k: (i, j)),
        ),
        scratch_shapes=[
            pltpu.VMEM((tm, tn), jnp.float32),
            pltpu.VMEM((tm, tn), jnp.float32),
            pltpu.VMEM((tm, tn), jnp.float32),
        ],
        compiler_params=pltpu.CompilerParams(
            dimension_semantics=("parallel", "parallel", "arbitrary"),
            vmem_limit_bytes=_VMEM_LIMIT,
        ),
    )(x2d, wq, wk, wv, bq, bk, bv)


# ----------------------------------------------------------------------------
# Output projection: out = y @ W + b
# ----------------------------------------------------------------------------
def _linear_kernel(x_ref, w_ref, b_ref, o_ref, acc_ref):
    @pl.when(pl.program_id(2) == 0)
    def _init():
        acc_ref[...] = jnp.zeros_like(acc_ref)

    acc_ref[...] += jnp.dot(x_ref[...].astype(jnp.bfloat16), w_ref[...],
                            preferred_element_type=jnp.float32)

    @pl.when(pl.program_id(2) == pl.num_programs(2) - 1)
    def _finalize():
        o_ref[...] = (acc_ref[...] + b_ref[...]).astype(o_ref.dtype)


def plinear(x2d, w, b, out_dtype=jnp.float32):
    """x2d: [M, K]; w: [K, N] bf16; b: [1, N] f32 -> [M, N] out_dtype."""
    M, K = x2d.shape
    N = w.shape[1]
    tm = _pick_tile(M, _ROW_TILES, min_blocks=2)
    tn = _pick_tile(N, _LANE_TILES)
    tk = _pick_tile(K, _LANE_TILES)
    grid = (M // tm, N // tn, K // tk)
    return pl.pallas_call(
        _linear_kernel,
        out_shape=jax.ShapeDtypeStruct((M, N), out_dtype),
        grid=grid,
        in_specs=[
            pl.BlockSpec((tm, tk), lambda i, j, k: (i, k)),
            pl.BlockSpec((tk, tn), lambda i, j, k: (k, j)),
            pl.BlockSpec((1, tn), lambda i, j, k: (0, j)),
        ],
        out_specs=pl.BlockSpec((tm, tn), lambda i, j, k: (i, j)),
        scratch_shapes=[pltpu.VMEM((tm, tn), jnp.float32)],
        compiler_params=pltpu.CompilerParams(
            dimension_semantics=("parallel", "parallel", "arbitrary"),
            vmem_limit_bytes=_VMEM_LIMIT,
        ),
    )(x2d, w, b)


# ----------------------------------------------------------------------------
# Flash-style causal attention over fused [M, C] Q/K/V (heads handled in-kernel)
# ----------------------------------------------------------------------------
def _flash_kernel(q_ref, k_ref, v_ref, o_ref, m_sc, l_sc, acc_sc, *,
                  scale, t_seq, n_head, dh):
    qi = pl.program_id(1)
    ki = pl.program_id(2)
    q_start = qi * t_seq
    k_start = ki * t_seq

    @pl.when(ki == 0)
    def _init():
        m_sc[...] = jnp.full_like(m_sc, -jnp.inf)
        l_sc[...] = jnp.zeros_like(l_sc)
        acc_sc[...] = jnp.zeros_like(acc_sc)

    # kv tiles strictly above the causal diagonal contribute nothing; compute
    # is skipped here and their DMA is deduped by the clamped k/v index_map.
    @pl.when(ki <= qi)
    def _update():
        rows = q_start + lax.broadcasted_iota(jnp.int32, (t_seq, t_seq), 0)
        cols = k_start + lax.broadcasted_iota(jnp.int32, (t_seq, t_seq), 1)
        causal = rows >= cols

        q = q_ref[...]          # (t_seq, C) bf16
        k = k_ref[...]          # (t_seq, C) bf16
        v = v_ref[...]          # (t_seq, C) bf16

        for h in range(n_head):
            hsl = slice(h * dh, (h + 1) * dh)
            s = lax.dot_general(
                q[:, hsl], k[:, hsl],
                dimension_numbers=(((1,), (1,)), ((), ())),
                preferred_element_type=jnp.float32,
            ) * scale                                        # (t_seq, t_seq) f32
            s = jnp.where(causal, s, -1e30)

            m_prev = m_sc[h]                                 # (t_seq, 1)
            m_new = jnp.maximum(m_prev, jnp.max(s, axis=-1, keepdims=True))
            alpha = jnp.exp(m_prev - m_new)
            p = jnp.exp(s - m_new)
            l_sc[h] = alpha * l_sc[h] + jnp.sum(p, axis=-1, keepdims=True)
            acc_sc[:, hsl] = alpha * acc_sc[:, hsl] + jnp.dot(
                p.astype(v.dtype), v[:, hsl],
                preferred_element_type=jnp.float32)
            m_sc[h] = m_new

    @pl.when(ki == pl.num_programs(2) - 1)
    def _finalize():
        outs = []
        for h in range(n_head):
            hsl = slice(h * dh, (h + 1) * dh)
            inv = pl.reciprocal(l_sc[h], approx=True)        # EUP slot, ~free
            outs.append(acc_sc[:, hsl] * inv)
        # single lane-dense (t_seq, C) store in the merged-head layout
        o_ref[...] = jnp.concatenate(outs, axis=-1).astype(o_ref.dtype)


def flash_causal_attention(q, k, v, *, batch, seq, n_head, t_seq):
    """q/k/v: [batch*seq, C] bf16 (heads packed along lanes) -> [batch*seq, C] bf16."""
    M, C = q.shape
    dh = C // n_head
    scale = 1.0 / math.sqrt(dh)
    nq = seq // t_seq

    kernel = functools.partial(_flash_kernel, scale=scale, t_seq=t_seq,
                               n_head=n_head, dh=dh)
    row_map = lambda b, iq, ik: (b * nq + iq, 0)
    # Clamp masked kv block indices to the previous valid block so the pipeline
    # dedupes the fetch (valid because t_q == t_kv == t_seq).
    kv_map = lambda b, iq, ik: (b * nq + jnp.minimum(ik, iq), 0)

    return pl.pallas_call(
        kernel,
        out_shape=jax.ShapeDtypeStruct((M, C), jnp.bfloat16),
        grid=(batch, nq, nq),
        in_specs=[
            pl.BlockSpec((t_seq, C), row_map),
            pl.BlockSpec((t_seq, C), kv_map),
            pl.BlockSpec((t_seq, C), kv_map),
        ],
        out_specs=pl.BlockSpec((t_seq, C), row_map),
        scratch_shapes=[
            pltpu.VMEM((n_head, t_seq, 1), jnp.float32),   # running max (per head)
            pltpu.VMEM((n_head, t_seq, 1), jnp.float32),   # running denom (per head)
            pltpu.VMEM((t_seq, C), jnp.float32),           # running accumulator
        ],
        compiler_params=pltpu.CompilerParams(
            dimension_semantics=("parallel", "parallel", "arbitrary"),
            vmem_limit_bytes=_VMEM_LIMIT,
        ),
    )(q, k, v)


# ----------------------------------------------------------------------------
# Attention module forward (matches PyTorch `Attention.forward`)
# ----------------------------------------------------------------------------
def attention_forward(params, x, *, n_head):
    B, T, C = x.shape
    assert C % n_head == 0

    t_seq, Tp = _seq_tile_and_pad(T)
    if Tp != T:
        # Padded kv positions come after every real row, so the causal mask
        # already excludes them; padded q rows are sliced off at the end.
        x = jnp.pad(x, ((0, 0), (0, Tp - T), (0, 0)))
    M = B * Tp
    x2 = x.reshape(M, C)

    q, k, v = qkv_projection(x2, params["wq"], params["wk"], params["wv"],
                             params["bq"], params["bk"], params["bv"])

    y = flash_causal_attention(q, k, v, batch=B, seq=Tp,
                               n_head=n_head, t_seq=t_seq)          # [M, C] bf16

    out = plinear(y, params["c_proj_w"], params["c_proj_b"],
                  out_dtype=jnp.float32)                            # [M, C] f32
    out = out.reshape(B, Tp, C)
    if Tp != T:
        out = out[:, :T]
    return out


# ----------------------------------------------------------------------------
# Parameters (weights stored [in, out] = W^T of PyTorch, bf16 once at init)
# ----------------------------------------------------------------------------
def init_params(key, n_embd):
    k0, k1, k2, k3 = jax.random.split(key, 4)
    w_attn = jax.random.normal(k0, (n_embd, 3 * n_embd), jnp.float32) * 0.02
    b_attn = jax.random.normal(k1, (1, 3 * n_embd), jnp.float32) * 0.02
    w_proj = jax.random.normal(k2, (n_embd, n_embd), jnp.float32) * 0.02
    b_proj = jax.random.normal(k3, (1, n_embd), jnp.float32) * 0.02
    wq, wk, wv = jnp.split(w_attn, 3, axis=1)
    bq, bk, bv = jnp.split(b_attn, 3, axis=1)
    return {
        "wq": wq.astype(jnp.bfloat16),
        "wk": wk.astype(jnp.bfloat16),
        "wv": wv.astype(jnp.bfloat16),
        "bq": bq, "bk": bk, "bv": bv,
        "c_proj_w": w_proj.astype(jnp.bfloat16),
        "c_proj_b": b_proj,
    }


def reference_forward(params, x, *, n_head):
    """Pure-JAX f32 reference (same bf16-rounded weights), for sanity checking."""
    B, T, C = x.shape
    dh = C // n_head
    f32 = jnp.float32
    q = x @ params["wq"].astype(f32) + params["bq"][0]
    k = x @ params["wk"].astype(f32) + params["bk"][0]
    v = x @ params["wv"].astype(f32) + params["bv"][0]

    def heads(z):
        return z.reshape(B, T, n_head, dh).transpose(0, 2, 1, 3)

    qh, kh, vh = heads(q), heads(k), heads(v)
    att = jnp.einsum("bhqd,bhkd->bhqk", qh, kh) / math.sqrt(dh)
    mask = jnp.tril(jnp.ones((T, T), dtype=bool))
    att = jnp.where(mask[None, None], att, -jnp.inf)
    att = jax.nn.softmax(att, axis=-1)
    y = jnp.einsum("bhqk,bhkd->bhqd", att, vh).transpose(0, 2, 1, 3).reshape(B, T, C)
    return y @ params["c_proj_w"].astype(f32) + params["c_proj_b"][0]


# ----------------------------------------------------------------------------
# Main
# ----------------------------------------------------------------------------
if __name__ == "__main__":
    # cfg: n_embd=32, n_head=4, block_size>=8 ; batch=2, seq=8
    n_embd, n_head = 32, 4
    B, T = 2, 8

    key = jax.random.PRNGKey(0)
    kx, kp = jax.random.split(key)
    x = jax.random.normal(kx, (B, T, n_embd), jnp.float32)
    params = init_params(kp, n_embd)

    fwd = jax.jit(functools.partial(attention_forward, n_head=n_head))
    out = fwd(params, x)
    jax.block_until_ready(out)
    assert out.shape == (B, T, n_embd)

    ref = reference_forward(params, x, n_head=n_head)
    err = float(jnp.max(jnp.abs(out - ref)))
    if not bool(jnp.allclose(out, ref, atol=5e-2, rtol=5e-2)):
        raise AssertionError(f"kernel mismatch vs reference, max abs err={err}")

    print("KERNEL_OK")
</pallas_src>

<mosaic_0001>
module attributes {stable_mosaic.version = 11 : i64} {
  func.func @_linear_kernel(%arg0: i32, %arg1: i32, %arg2: i32, %arg3: memref<128x32xbf16, #tpu.memory_space<vmem>>, %arg4: memref<32x32xbf16, #tpu.memory_space<vmem>>, %arg5: memref<1x32xf32, #tpu.memory_space<vmem>>, %arg6: memref<128x32xf32, #tpu.memory_space<vmem>>, %arg7: memref<128x32xf32, #tpu.memory_space<vmem>>) attributes {dimension_semantics = [#tpu.dimension_semantics<parallel>, #tpu.dimension_semantics<parallel>, #tpu.dimension_semantics<arbitrary>], iteration_bounds = array<i64: 2, 1, 1>, scalar_prefetch = 0 : i64, scratch_operands = 1 : i64, tpu.core_type = #tpu.core_type<tc>, window_params = [{transform_indices = @transform_0, window_bounds = array<i64: 128, 32>}, {transform_indices = @transform_1, window_bounds = array<i64: 32, 32>}, {transform_indices = @transform_2, window_bounds = array<i64: 1, 32>}, {transform_indices = @transform_3, window_bounds = array<i64: 128, 32>}]} {
    %c0_i32 = arith.constant 0 : i32
    %0 = arith.cmpi eq, %arg2, %c0_i32 : i32
    %1 = arith.extui %0 : i1 to i32
    %c0_i32_0 = arith.constant 0 : i32
    %2 = arith.cmpi ne, %1, %c0_i32_0 : i32
    scf.if %2 {
      %cst_10 = arith.constant 0.000000e+00 : f32
      %12 = vector.broadcast %cst_10 : f32 to vector<128x32xf32>
      %c0_11 = arith.constant 0 : index
      %c0_12 = arith.constant 0 : index
      %13 = vector.load %arg7[%c0_11, %c0_12] : memref<128x32xf32, #tpu.memory_space<vmem>>, vector<128x32xf32>
      tpu.vector_store %arg7[%c0_11, %c0_12], %12 {strides = array<i32>} : memref<128x32xf32, #tpu.memory_space<vmem>>, vector<128x32xf32>,
    } else {
    }
    %c0 = arith.constant 0 : index
    %c0_1 = arith.constant 0 : index
    %3 = vector.load %arg7[%c0, %c0_1] : memref<128x32xf32, #tpu.memory_space<vmem>>, vector<128x32xf32>
    %c0_2 = arith.constant 0 : index
    %c0_3 = arith.constant 0 : index
    %4 = vector.load %arg3[%c0_2, %c0_3] : memref<128x32xbf16, #tpu.memory_space<vmem>>, vector<128x32xbf16>
    %c0_4 = arith.constant 0 : index
    %c0_5 = arith.constant 0 : index
    %5 = vector.load %arg4[%c0_4, %c0_5] : memref<32x32xbf16, #tpu.memory_space<vmem>>, vector<32x32xbf16>
    %cst = arith.constant dense<0.000000e+00> : vector<128x32xf32>
    %6 = tpu.matmul %4, %5, %cst {dimension_numbers = #tpu.dot_dimension_numbers<[1], [0], [0], [1], [0, 0, 1, 1], [], []>} : vector<128x32xbf16>, vector<32x32xbf16>, vector<128x32xf32> -> vector<128x32xf32>
    %7 = arith.addf %3, %6 : vector<128x32xf32>
    %c0_6 = arith.constant 0 : index
    %c0_7 = arith.constant 0 : index
    %8 = vector.load %arg7[%c0_6, %c0_7] : memref<128x32xf32, #tpu.memory_space<vmem>>, vector<128x32xf32>
    tpu.vector_store %arg7[%c0_6, %c0_7], %7 {strides = array<i32>} : memref<128x32xf32, #tpu.memory_space<vmem>>, vector<128x32xf32>,
    %c0_i32_8 = arith.constant 0 : i32
    %9 = arith.cmpi eq, %arg2, %c0_i32_8 : i32
    %10 = arith.extui %9 : i1 to i32
    %c0_i32_9 = arith.constant 0 : i32
    %11 = arith.cmpi ne, %10, %c0_i32_9 : i32
    scf.if %11 {
      %c0_10 = arith.constant 0 : index
      %c0_11 = arith.constant 0 : index
      %12 = vector.load %arg7[%c0_10, %c0_11] : memref<128x32xf32, #tpu.memory_space<vmem>>, vector<128x32xf32>
      %c0_12 = arith.constant 0 : index
      %c0_13 = arith.constant 0 : index
      %13 = vector.load %arg5[%c0_12, %c0_13] : memref<1x32xf32, #tpu.memory_space<vmem>>, vector<1x32xf32>
      %14 = vector.broadcast %13 : vector<1x32xf32> to vector<128x32xf32>
      %15 = arith.addf %12, %14 : vector<128x32xf32>
      %c0_14 = arith.constant 0 : index
      %c0_15 = arith.constant 0 : index
      %16 = vector.load %arg6[%c0_14, %c0_15] : memref<128x32xf32, #tpu.memory_space<vmem>>, vector<128x32xf32>
      tpu.vector_store %arg6[%c0_14, %c0_15], %15 {strides = array<i32>} : memref<128x32xf32, #tpu.memory_space<vmem>>, vector<128x32xf32>,
    } else {
    }
    return
  }
  func.func @transform_0(%arg0: i32, %arg1: i32, %arg2: i32) -> (i32, i32) {
    %c0_i32 = arith.constant 0 : i32
    return %arg0, %arg2 : i32, i32
  }
  func.func @transform_1(%arg0: i32, %arg1: i32, %arg2: i32) -> (i32, i32) {
    %c0_i32 = arith.constant 0 : i32
    return %arg2, %arg1 : i32, i32
  }
  func.func @transform_2(%arg0: i32, %arg1: i32, %arg2: i32) -> (i32, i32) {
    %c0_i32 = arith.constant 0 : i32
    %c0_i32_0 = arith.constant 0 : i32
    return %c0_i32, %arg1 : i32, i32
  }
  func.func @transform_3(%arg0: i32, %arg1: i32, %arg2: i32) -> (i32, i32) {
    %c0_i32 = arith.constant 0 : i32
    return %arg0, %arg1 : i32, i32
  }
}

module attributes {stable_mosaic.version = 11 : i64} {
  func.func @_qkv_kernel(%arg0: i32, %arg1: i32, %arg2: i32, %arg3: memref<128x32xf32, #tpu.memory_space<vmem>>, %arg4: memref<32x32xbf16, #tpu.memory_space<vmem>>, %arg5: memref<32x32xbf16, #tpu.memory_space<vmem>>, %arg6: memref<32x32xbf16, #tpu.memory_space<vmem>>, %arg7: memref<1x32xf32, #tpu.memory_space<vmem>>, %arg8: memref<1x32xf32, #tpu.memory_space<vmem>>, %arg9: memref<1x32xf32, #tpu.memory_space<vmem>>, %arg10: memref<128x32xbf16, #tpu.memory_space<vmem>>, %arg11: memref<128x32xbf16, #tpu.memory_space<vmem>>, %arg12: memref<128x32xbf16, #tpu.memory_space<vmem>>, %arg13: memref<128x32xf32, #tpu.memory_space<vmem>>, %arg14: memref<128x32xf32, #tpu.memory_space<vmem>>, %arg15: memref<128x32xf32, #tpu.memory_space<vmem>>) attributes {dimension_semantics = [#tpu.dimension_semantics<parallel>, #tpu.dimension_semantics<parallel>, #tpu.dimension_semantics<arbitrary>], iteration_bounds = array<i64: 2, 1, 1>, scalar_prefetch = 0 : i64, scratch_operands = 3 : i64, tpu.core_type = #tpu.core_type<tc>, window_params = [{transform_indices = @transform_0, window_bounds = array<i64: 128, 32>}, {transform_indices = @transform_1, window_bounds = array<i64: 32, 32>}, {transform_indices = @transform_2, window_bounds = array<i64: 32, 32>}, {transform_indices = @transform_3, window_bounds = array<i64: 32, 32>}, {transform_indices = @transform_4, window_bounds = array<i64: 1, 32>}, {transform_indices = @transform_5, window_bounds = array<i64: 1, 32>}, {transform_indices = @transform_6, window_bounds = array<i64: 1, 32>}, {transform_indices = @transform_7, window_bounds = array<i64: 128, 32>}, {transform_indices = @transform_8, window_bounds = array<i64: 128, 32>}, {transform_indices = @transform_9, window_bounds = array<i64: 128, 32>}]} {
    %c0_i32 = arith.constant 0 : i32
    %0 = arith.cmpi eq, %arg2, %c0_i32 : i32
    %1 = arith.extui %0 : i1 to i32
    %c0_i32_0 = arith.constant 0 : i32
    %2 = arith.cmpi ne, %1, %c0_i32_0 : i32
    scf.if %2 {
      %cst_24 = arith.constant 0.000000e+00 : f32
      %23 = vector.broadcast %cst_24 : f32 to vector<128x32xf32>
      %c0_25 = arith.constant 0 : index
      %c0_26 = arith.constant 0 : index
      %24 = vector.load %arg13[%c0_25, %c0_26] : memref<128x32xf32, #tpu.memory_space<vmem>>, vector<128x32xf32>
      tpu.vector_store %arg13[%c0_25, %c0_26], %23 {strides = array<i32>} : memref<128x32xf32, #tpu.memory_space<vmem>>, vector<128x32xf32>,
      %cst_27 = arith.constant 0.000000e+00 : f32
      %25 = vector.broadcast %cst_27 : f32 to vector<128x32xf32>
      %c0_28 = arith.constant 0 : index
      %c0_29 = arith.constant 0 : index
      %26 = vector.load %arg14[%c0_28, %c0_29] : memref<128x32xf32, #tpu.memory_space<vmem>>, vector<128x32xf32>
      tpu.vector_store %arg14[%c0_28, %c0_29], %25 {strides = array<i32>} : memref<128x32xf32, #tpu.memory_space<vmem>>, vector<128x32xf32>,
      %cst_30 = arith.constant 0.000000e+00 : f32
      %27 = vector.broadcast %cst_30 : f32 to vector<128x32xf32>
      %c0_31 = arith.constant 0 : index
      %c0_32 = arith.constant 0 : index
      %28 = vector.load %arg15[%c0_31, %c0_32] : memref<128x32xf32, #tpu.memory_space<vmem>>, vector<128x32xf32>
      tpu.vector_store %arg15[%c0_31, %c0_32], %27 {strides = array<i32>} : memref<128x32xf32, #tpu.memory_space<vmem>>, vector<128x32xf32>,
    } else {
    }
    %c0 = arith.constant 0 : index
    %c0_1 = arith.constant 0 : index
    %3 = vector.load %arg3[%c0, %c0_1] : memref<128x32xf32, #tpu.memory_space<vmem>>, vector<128x32xf32>
    %4 = arith.truncf %3 : vector<128x32xf32> to vector<128x32xbf16>
    %c0_2 = arith.constant 0 : index
    %c0_3 = arith.constant 0 : index
    %5 = vector.load %arg13[%c0_2, %c0_3] : memref<128x32xf32, #tpu.memory_space<vmem>>, vector<128x32xf32>
    %c0_4 = arith.constant 0 : index
    %c0_5 = arith.constant 0 : index
    %6 = vector.load %arg4[%c0_4, %c0_5] : memref<32x32xbf16, #tpu.memory_space<vmem>>, vector<32x32xbf16>
    %cst = arith.constant dense<0.000000e+00> : vector<128x32xf32>
    %7 = tpu.matmul %4, %6, %cst {dimension_numbers = #tpu.dot_dimension_numbers<[1], [0], [0], [1], [0, 0, 1, 1], [], []>} : vector<128x32xbf16>, vector<32x32xbf16>, vector<128x32xf32> -> vector<128x32xf32>
    %8 = arith.addf %5, %7 : vector<128x32xf32>
    %c0_6 = arith.constant 0 : index
    %c0_7 = arith.constant 0 : index
    %9 = vector.load %arg13[%c0_6, %c0_7] : memref<128x32xf32, #tpu.memory_space<vmem>>, vector<128x32xf32>
    tpu.vector_store %arg13[%c0_6, %c0_7], %8 {strides = array<i32>} : memref<128x32xf32, #tpu.memory_space<vmem>>, vector<128x32xf32>,
    %c0_8 = arith.constant 0 : index
    %c0_9 = arith.constant 0 : index
    %10 = vector.load %arg14[%c0_8, %c0_9] : memref<128x32xf32, #tpu.memory_space<vmem>>, vector<128x32xf32>
    %c0_10 = arith.constant 0 : index
    %c0_11 = arith.constant 0 : index
    %11 = vector.load %arg5[%c0_10, %c0_11] : memref<32x32xbf16, #tpu.memory_space<vmem>>, vector<32x32xbf16>
    %cst_12 = arith.constant dense<0.000000e+00> : vector<128x32xf32>
    %12 = tpu.matmul %4, %11, %cst_12 {dimension_numbers = #tpu.dot_dimension_numbers<[1], [0], [0], [1], [0, 0, 1, 1], [], []>} : vector<128x32xbf16>, vector<32x32xbf16>, vector<128x32xf32> -> vector<128x32xf32>
    %13 = arith.addf %10, %12 : vector<128x32xf32>
    %c0_13 = arith.constant 0 : index
    %c0_14 = arith.constant 0 : index
    %14 = vector.load %arg14[%c0_13, %c0_14] : memref<128x32xf32, #tpu.memory_space<vmem>>, vector<128x32xf32>
    tpu.vector_store %arg14[%c0_13, %c0_14], %13 {strides = array<i32>} : memref<128x32xf32, #tpu.memory_space<vmem>>, vector<128x32xf32>,
    %c0_15 = arith.constant 0 : index
    %c0_16 = arith.constant 0 : index
    %15 = vector.load %arg15[%c0_15, %c0_16] : memref<128x32xf32, #tpu.memory_space<vmem>>, vector<128x32xf32>
    %c0_17 = arith.constant 0 : index
    %c0_18 = arith.constant 0 : index
    %16 = vector.load %arg6[%c0_17, %c0_18] : memref<32x32xbf16, #tpu.memory_space<vmem>>, vector<32x32xbf16>
    %cst_19 = arith.constant dense<0.000000e+00> : vector<128x32xf32>
    %17 = tpu.matmul %4, %16, %cst_19 {dimension_numbers = #tpu.dot_dimension_numbers<[1], [0], [0], [1], [0, 0, 1, 1], [], []>} : vector<128x32xbf16>, vector<32x32xbf16>, vector<128x32xf32> -> vector<128x32xf32>
    %18 = arith.addf %15, %17 : vector<128x32xf32>
    %c0_20 = arith.constant 0 : index
    %c0_21 = arith.constant 0 : index
    %19 = vector.load %arg15[%c0_20, %c0_21] : memref<128x32xf32, #tpu.memory_space<vmem>>, vector<128x32xf32>
    tpu.vector_store %arg15[%c0_20, %c0_21], %18 {strides = array<i32>} : memref<128x32xf32, #tpu.memory_space<vmem>>, vector<128x32xf32>,
    %c0_i32_22 = arith.constant 0 : i32
    %20 = arith.cmpi eq, %arg2, %c0_i32_22 : i32
    %21 = arith.extui %20 : i1 to i32
    %c0_i32_23 = arith.constant 0 : i32
    %22 = arith.cmpi ne, %21, %c0_i32_23 : i32
    scf.if %22 {
      %c0_24 = arith.constant 0 : index
      %c0_25 = arith.constant 0 : index
      %23 = vector.load %arg13[%c0_24, %c0_25] : memref<128x32xf32, #tpu.memory_space<vmem>>, vector<128x32xf32>
      %c0_26 = arith.constant 0 : index
      %c0_27 = arith.constant 0 : index
      %24 = vector.load %arg7[%c0_26, %c0_27] : memref<1x32xf32, #tpu.memory_space<vmem>>, vector<1x32xf32>
      %25 = vector.broadcast %24 : vector<1x32xf32> to vector<128x32xf32>
      %26 = arith.addf %23, %25 : vector<128x32xf32>
      %27 = arith.truncf %26 : vector<128x32xf32> to vector<128x32xbf16>
      %c0_28 = arith.constant 0 : index
      %c0_29 = arith.constant 0 : index
      %28 = vector.load %arg10[%c0_28, %c0_29] : memref<128x32xbf16, #tpu.memory_space<vmem>>, vector<128x32xbf16>
      tpu.vector_store %arg10[%c0_28, %c0_29], %27 {strides = array<i32>} : memref<128x32xbf16, #tpu.memory_space<vmem>>, vector<128x32xbf16>,
      %c0_30 = arith.constant 0 : index
      %c0_31 = arith.constant 0 : index
      %29 = vector.load %arg14[%c0_30, %c0_31] : memref<128x32xf32, #tpu.memory_space<vmem>>, vector<128x32xf32>
      %c0_32 = arith.constant 0 : index
      %c0_33 = arith.constant 0 : index
      %30 = vector.load %arg8[%c0_32, %c0_33] : memref<1x32xf32, #tpu.memory_space<vmem>>, vector<1x32xf32>
      %31 = vector.broadcast %30 : vector<1x32xf32> to vector<128x32xf32>
      %32 = arith.addf %29, %31 : vector<128x32xf32>
      %33 = arith.truncf %32 : vector<128x32xf32> to vector<128x32xbf16>
      %c0_34 = arith.constant 0 : index
      %c0_35 = arith.constant 0 : index
      %34 = vector.load %arg11[%c0_34, %c0_35] : memref<128x32xbf16, #tpu.memory_space<vmem>>, vector<128x32xbf16>
      tpu.vector_store %arg11[%c0_34, %c0_35], %33 {strides = array<i32>} : memref<128x32xbf16, #tpu.memory_space<vmem>>, vector<128x32xbf16>,
      %c0_36 = arith.constant 0 : index
      %c0_37 = arith.constant 0 : index
      %35 = vector.load %arg15[%c0_36, %c0_37] : memref<128x32xf32, #tpu.memory_space<vmem>>, vector<128x32xf32>
      %c0_38 = arith.constant 0 : index
      %c0_39 = arith.constant 0 : index
      %36 = vector.load %arg9[%c0_38, %c0_39] : memref<1x32xf32, #tpu.memory_space<vmem>>, vector<1x32xf32>
      %37 = vector.broadcast %36 : vector<1x32xf32> to vector<128x32xf32>
      %38 = arith.addf %35, %37 : vector<128x32xf32>
      %39 = arith.truncf %38 : vector<128x32xf32> to vector<128x32xbf16>
      %c0_40 = arith.constant 0 : index
      %c0_41 = arith.constant 0 : index
      %40 = vector.load %arg12[%c0_40, %c0_41] : memref<128x32xbf16, #tpu.memory_space<vmem>>, vector<128x32xbf16>
      tpu.vector_store %arg12[%c0_40, %c0_41], %39 {strides = array<i32>} : memref<128x32xbf16, #tpu.memory_space<vmem>>, vector<128x32xbf16>,
    } else {
    }
    return
  }
  func.func @transform_0(%arg0: i32, %arg1: i32, %arg2: i32) -> (i32, i32) {
    %c0_i32 = arith.constant 0 : i32
    return %arg0, %arg2 : i32, i32
  }
  func.func @transform_1(%arg0: i32, %arg1: i32, %arg2: i32) -> (i32, i32) {
    %c0_i32 = arith.constant 0 : i32
    return %arg2, %arg1 : i32, i32
  }
  func.func @transform_2(%arg0: i32, %arg1: i32, %arg2: i32) -> (i32, i32) {
    %c0_i32 = arith.constant 0 : i32
    return %arg2, %arg1 : i32, i32
  }
  func.func @transform_3(%arg0: i32, %arg1: i32, %arg2: i32) -> (i32, i32) {
    %c0_i32 = arith.constant 0 : i32
    return %arg2, %arg1 : i32, i32
  }
  func.func @transform_4(%arg0: i32, %arg1: i32, %arg2: i32) -> (i32, i32) {
    %c0_i32 = arith.constant 0 : i32
    %c0_i32_0 = arith.constant 0 : i32
    return %c0_i32, %arg1 : i32, i32
  }
  func.func @transform_5(%arg0: i32, %arg1: i32, %arg2: i32) -> (i32, i32) {
    %c0_i32 = arith.constant 0 : i32
    %c0_i32_0 = arith.constant 0 : i32
    return %c0_i32, %arg1 : i32, i32
  }
  func.func @transform_6(%arg0: i32, %arg1: i32, %arg2: i32) -> (i32, i32) {
    %c0_i32 = arith.constant 0 : i32
    %c0_i32_0 = arith.constant 0 : i32
    return %c0_i32, %arg1 : i32, i32
  }
  func.func @transform_7(%arg0: i32, %arg1: i32, %arg2: i32) -> (i32, i32) {
    %c0_i32 = arith.constant 0 : i32
    return %arg0, %arg1 : i32, i32
  }
  func.func @transform_8(%arg0: i32, %arg1: i32, %arg2: i32) -> (i32, i32) {
    %c0_i32 = arith.constant 0 : i32
    return %arg0, %arg1 : i32, i32
  }
  func.func @transform_9(%arg0: i32, %arg1: i32, %arg2: i32) -> (i32, i32) {
    %c0_i32 = arith.constant 0 : i32
    return %arg0, %arg1 : i32, i32
  }
}

module attributes {stable_mosaic.version = 11 : i64} {
  func.func @_flash_kernel(%arg0: i32, %arg1: i32, %arg2: i32, %arg3: memref<128x32xbf16, #tpu.memory_space<vmem>>, %arg4: memref<128x32xbf16, #tpu.memory_space<vmem>>, %arg5: memref<128x32xbf16, #tpu.memory_space<vmem>>, %arg6: memref<128x32xbf16, #tpu.memory_space<vmem>>, %arg7: memref<4x128x1xf32, #tpu.memory_space<vmem>>, %arg8: memref<4x128x1xf32, #tpu.memory_space<vmem>>, %arg9: memref<128x32xf32, #tpu.memory_space<vmem>>) attributes {dimension_semantics = [#tpu.dimension_semantics<parallel>, #tpu.dimension_semantics<parallel>, #tpu.dimension_semantics<arbitrary>], iteration_bounds = array<i64: 2, 1, 1>, scalar_prefetch = 0 : i64, scratch_operands = 3 : i64, tpu.core_type = #tpu.core_type<tc>, window_params = [{transform_indices = @transform_0, window_bounds = array<i64: 128, 32>}, {transform_indices = @transform_1, window_bounds = array<i64: 128, 32>}, {transform_indices = @transform_2, window_bounds = array<i64: 128, 32>}, {transform_indices = @transform_3, window_bounds = array<i64: 128, 32>}]} {
    %c128_i32 = arith.constant 128 : i32
    %0 = arith.muli %arg1, %c128_i32 : i32
    %c128_i32_0 = arith.constant 128 : i32
    %1 = arith.muli %arg2, %c128_i32_0 : i32
    %c0_i32 = arith.constant 0 : i32
    %2 = arith.cmpi eq, %arg2, %c0_i32 : i32
    %3 = arith.extui %2 : i1 to i32
    %c0_i32_1 = arith.constant 0 : i32
    %4 = arith.cmpi ne, %3, %c0_i32_1 : i32
    scf.if %4 {
      %cst = arith.constant 0xFF800000 : f32
      %11 = vector.broadcast %cst : f32 to vector<4x128x1xf32>
      %c0 = arith.constant 0 : index
      %c0_5 = arith.constant 0 : index
      %c0_6 = arith.constant 0 : index
      %12 = vector.load %arg7[%c0, %c0_5, %c0_6] : memref<4x128x1xf32, #tpu.memory_space<vmem>>, vector<4x128x1xf32>
      tpu.vector_store %arg7[%c0, %c0_5, %c0_6], %11 {strides = array<i32>} : memref<4x128x1xf32, #tpu.memory_space<vmem>>, vector<4x128x1xf32>,
      %cst_7 = arith.constant 0.000000e+00 : f32
      %13 = vector.broadcast %cst_7 : f32 to vector<4x128x1xf32>
      %c0_8 = arith.constant 0 : index
      %c0_9 = arith.constant 0 : index
      %c0_10 = arith.constant 0 : index
      %14 = vector.load %arg8[%c0_8, %c0_9, %c0_10] : memref<4x128x1xf32, #tpu.memory_space<vmem>>, vector<4x128x1xf32>
      tpu.vector_store %arg8[%c0_8, %c0_9, %c0_10], %13 {strides = array<i32>} : memref<4x128x1xf32, #tpu.memory_space<vmem>>, vector<4x128x1xf32>,
      %cst_11 = arith.constant 0.000000e+00 : f32
      %15 = vector.broadcast %cst_11 : f32 to vector<128x32xf32>
      %c0_12 = arith.constant 0 : index
      %c0_13 = arith.constant 0 : index
      %16 = vector.load %arg9[%c0_12, %c0_13] : memref<128x32xf32, #tpu.memory_space<vmem>>, vector<128x32xf32>
      tpu.vector_store %arg9[%c0_12, %c0_13], %15 {strides = array<i32>} : memref<128x32xf32, #tpu.memory_space<vmem>>, vector<128x32xf32>,
    } else {
    }
    %5 = arith.cmpi sle, %arg2, %arg1 : i32
    %6 = arith.extui %5 : i1 to i32
    %c0_i32_2 = arith.constant 0 : i32
    %7 = arith.cmpi ne, %6, %c0_i32_2 : i32
    scf.if %7 {
      %11 = tpu.iota {dimensions = array<i32: 0>} : vector<128x128xi32>
      %12 = vector.broadcast %0 : i32 to vector<128x128xi32>
      %13 = arith.addi %12, %11 : vector<128x128xi32>
      %14 = tpu.iota {dimensions = array<i32: 1>} : vector<128x128xi32>
      %15 = vector.broadcast %1 : i32 to vector<128x128xi32>
      %16 = arith.addi %15, %14 : vector<128x128xi32>
      %17 = arith.cmpi sge, %13, %16 : vector<128x128xi32>
      %c0 = arith.constant 0 : index
      %c0_5 = arith.constant 0 : index
      %18 = vector.load %arg3[%c0, %c0_5] : memref<128x32xbf16, #tpu.memory_space<vmem>>, vector<128x32xbf16>
      %c0_6 = arith.constant 0 : index
      %c0_7 = arith.constant 0 : index
      %19 = vector.load %arg4[%c0_6, %c0_7] : memref<128x32xbf16, #tpu.memory_space<vmem>>, vector<128x32xbf16>
      %c0_8 = arith.constant 0 : index
      %c0_9 = arith.constant 0 : index
      %20 = vector.load %arg5[%c0_8, %c0_9] : memref<128x32xbf16, #tpu.memory_space<vmem>>, vector<128x32xbf16>
      %21 = vector.extract_strided_slice %18 {offsets = [0, 0], sizes = [128, 8], strides = [1, 1]} : vector<128x32xbf16> to vector<128x8xbf16>
      %22 = vector.extract_strided_slice %19 {offsets = [0, 0], sizes = [128, 8], strides = [1, 1]} : vector<128x32xbf16> to vector<128x8xbf16>
      %cst = arith.constant dense<0.000000e+00> : vector<128x128xf32>
      %23 = tpu.matmul %21, %22, %cst {dimension_numbers = #tpu.dot_dimension_numbers<[1], [1], [0], [0], [0, 0, 1, 0], [], []>} : vector<128x8xbf16>, vector<128x8xbf16>, vector<128x128xf32> -> vector<128x128xf32>
      %cst_10 = arith.constant 0.353553385 : f32
      %24 = vector.broadcast %cst_10 : f32 to vector<128x128xf32>
      %25 = arith.mulf %23, %24 : vector<128x128xf32>
      %cst_11 = arith.constant -1.000000e+30 : f32
      %26 = vector.broadcast %cst_11 : f32 to vector<128x128xf32>
      %27 = arith.select %17, %25, %26 : vector<128x128xi1>, vector<128x128xf32>
      %c0_12 = arith.constant 0 : index
      %c0_13 = arith.constant 0 : index
      %c0_14 = arith.constant 0 : index
      %28 = vector.load %arg7[%c0_12, %c0_13, %c0_14] : memref<4x128x1xf32, #tpu.memory_space<vmem>>, vector<1x128x1xf32>
      %29 = vector.shape_cast %28 : vector<1x128x1xf32> to vector<128x1xf32>
      %cst_15 = arith.constant dense<0xFF800000> : vector<128xf32>
      %30 = vector.multi_reduction <maximumf>, %27, %cst_15 [1] : vector<128x128xf32> to vector<128xf32>
      %31 = vector.shape_cast %30 : vector<128xf32> to vector<128x1xf32>
      %32 = arith.maximumf %29, %31 : vector<128x1xf32>
      %33 = arith.subf %29, %32 : vector<128x1xf32>
      %34 = math.exp %33 : vector<128x1xf32>
      %35 = vector.broadcast %32 : vector<128x1xf32> to vector<128x128xf32>
      %36 = arith.subf %27, %35 : vector<128x128xf32>
      %37 = math.exp %36 : vector<128x128xf32>
      %c0_16 = arith.constant 0 : index
      %c0_17 = arith.constant 0 : index
      %c0_18 = arith.constant 0 : index
      %38 = vector.load %arg8[%c0_16, %c0_17, %c0_18] : memref<4x128x1xf32, #tpu.memory_space<vmem>>, vector<1x128x1xf32>
      %39 = vector.shape_cast %38 : vector<1x128x1xf32> to vector<128x1xf32>
      %40 = arith.mulf %34, %39 : vector<128x1xf32>
      %cst_19 = arith.constant dense<0.000000e+00> : vector<128xf32>
      %41 = vector.multi_reduction <add>, %37, %cst_19 [1] : vector<128x128xf32> to vector<128xf32>
      %42 = vector.shape_cast %41 : vector<128xf32> to vector<128x1xf32>
      %43 = arith.addf %40, %42 : vector<128x1xf32>
      %c0_20 = arith.constant 0 : index
      %c0_21 = arith.constant 0 : index
      %c0_22 = arith.constant 0 : index
      %44 = vector.load %arg8[%c0_20, %c0_21, %c0_22] : memref<4x128x1xf32, #tpu.memory_space<vmem>>, vector<1x128x1xf32>
      %45 = vector.shape_cast %44 : vector<1x128x1xf32> to vector<128x1xf32>
      %46 = vector.shape_cast %43 : vector<128x1xf32> to vector<1x128x1xf32>
      tpu.vector_store %arg8[%c0_20, %c0_21, %c0_22], %46 {strides = array<i32>} : memref<4x128x1xf32, #tpu.memory_space<vmem>>, vector<1x128x1xf32>,
      %c0_23 = arith.constant 0 : index
      %c0_24 = arith.constant 0 : index
      %47 = vector.load %arg9[%c0_23, %c0_24] : memref<128x32xf32, #tpu.memory_space<vmem>>, vector<128x8xf32>
      %48 = vector.broadcast %34 : vector<128x1xf32> to vector<128x8xf32>
      %49 = arith.mulf %48, %47 : vector<128x8xf32>
      %50 = arith.truncf %37 : vector<128x128xf32> to vector<128x128xbf16>
      %51 = vector.extract_strided_slice %20 {offsets = [0, 0], sizes = [128, 8], strides = [1, 1]} : vector<128x32xbf16> to vector<128x8xbf16>
      %cst_25 = arith.constant dense<0.000000e+00> : vector<128x8xf32>
      %52 = tpu.matmul %50, %51, %cst_25 {dimension_numbers = #tpu.dot_dimension_numbers<[1], [0], [0], [1], [0, 0, 1, 1], [], []>} : vector<128x128xbf16>, vector<128x8xbf16>, vector<128x8xf32> -> vector<128x8xf32>
      %53 = arith.addf %49, %52 : vector<128x8xf32>
      %c0_26 = arith.constant 0 : index
      %c0_27 = arith.constant 0 : index
      %54 = vector.load %arg9[%c0_26, %c0_27] : memref<128x32xf32, #tpu.memory_space<vmem>>, vector<128x8xf32>
      tpu.vector_store %arg9[%c0_26, %c0_27], %53 {strides = array<i32>} : memref<128x32xf32, #tpu.memory_space<vmem>>, vector<128x8xf32>,
      %c0_28 = arith.constant 0 : index
      %c0_29 = arith.constant 0 : index
      %c0_30 = arith.constant 0 : index
      %55 = vector.load %arg7[%c0_28, %c0_29, %c0_30] : memref<4x128x1xf32, #tpu.memory_space<vmem>>, vector<1x128x1xf32>
      %56 = vector.shape_cast %55 : vector<1x128x1xf32> to vector<128x1xf32>
      %57 = vector.shape_cast %32 : vector<128x1xf32> to vector<1x128x1xf32>
      tpu.vector_store %arg7[%c0_28, %c0_29, %c0_30], %57 {strides = array<i32>} : memref<4x128x1xf32, #tpu.memory_space<vmem>>, vector<1x128x1xf32>,
      %58 = vector.extract_strided_slice %18 {offsets = [0, 8], sizes = [128, 8], strides = [1, 1]} : vector<128x32xbf16> to vector<128x8xbf16>
      %59 = vector.extract_strided_slice %19 {offsets = [0, 8], sizes = [128, 8], strides = [1, 1]} : vector<128x32xbf16> to vector<128x8xbf16>
      %cst_31 = arith.constant dense<0.000000e+00> : vector<128x128xf32>
      %60 = tpu.matmul %58, %59, %cst_31 {dimension_numbers = #tpu.dot_dimension_numbers<[1], [1], [0], [0], [0, 0, 1, 0], [], []>} : vector<128x8xbf16>, vector<128x8xbf16>, vector<128x128xf32> -> vector<128x128xf32>
      %cst_32 = arith.constant 0.353553385 : f32
      %61 = vector.broadcast %cst_32 : f32 to vector<128x128xf32>
      %62 = arith.mulf %60, %61 : vector<128x128xf32>
      %cst_33 = arith.constant -1.000000e+30 : f32
      %63 = vector.broadcast %cst_33 : f32 to vector<128x128xf32>
      %64 = arith.select %17, %62, %63 : vector<128x128xi1>, vector<128x128xf32>
      %c1 = arith.constant 1 : index
      %c0_34 = arith.constant 0 : index
      %c0_35 = arith.constant 0 : index
      %65 = vector.load %arg7[%c1, %c0_34, %c0_35] : memref<4x128x1xf32, #tpu.memory_space<vmem>>, vector<1x128x1xf32>
      %66 = vector.shape_cast %65 : vector<1x128x1xf32> to vector<128x1xf32>
      %cst_36 = arith.constant dense<0xFF800000> : vector<128xf32>
      %67 = vector.multi_reduction <maximumf>, %64, %cst_36 [1] : vector<128x128xf32> to vector<128xf32>
      %68 = vector.shape_cast %67 : vector<128xf32> to vector<128x1xf32>
      %69 = arith.maximumf %66, %68 : vector<128x1xf32>
      %70 = arith.subf %66, %69 : vector<128x1xf32>
      %71 = math.exp %70 : vector<128x1xf32>
      %72 = vector.broadcast %69 : vector<128x1xf32> to vector<128x128xf32>
      %73 = arith.subf %64, %72 : vector<128x128xf32>
      %74 = math.exp %73 : vector<128x128xf32>
      %c1_37 = arith.constant 1 : index
      %c0_38 = arith.constant 0 : index
      %c0_39 = arith.constant 0 : index
      %75 = vector.load %arg8[%c1_37, %c0_38, %c0_39] : memref<4x128x1xf32, #tpu.memory_space<vmem>>, vector<1x128x1xf32>
      %76 = vector.shape_cast %75 : vector<1x128x1xf32> to vector<128x1xf32>
      %77 = arith.mulf %71, %76 : vector<128x1xf32>
      %cst_40 = arith.constant dense<0.000000e+00> : vector<128xf32>
      %78 = vector.multi_reduction <add>, %74, %cst_40 [1] : vector<128x128xf32> to vector<128xf32>
      %79 = vector.shape_cast %78 : vector<128xf32> to vector<128x1xf32>
      %80 = arith.addf %77, %79 : vector<128x1xf32>
      %c1_41 = arith.constant 1 : index
      %c0_42 = arith.constant 0 : index
      %c0_43 = arith.constant 0 : index
      %81 = vector.load %arg8[%c1_41, %c0_42, %c0_43] : memref<4x128x1xf32, #tpu.memory_space<vmem>>, vector<1x128x1xf32>
      %82 = vector.shape_cast %81 : vector<1x128x1xf32> to vector<128x1xf32>
      %83 = vector.shape_cast %80 : vector<128x1xf32> to vector<1x128x1xf32>
      tpu.vector_store %arg8[%c1_41, %c0_42, %c0_43], %83 {strides = array<i32>} : memref<4x128x1xf32, #tpu.memory_space<vmem>>, vector<1x128x1xf32>,
      %c0_44 = arith.constant 0 : index
      %c8 = arith.constant 8 : index
      %84 = vector.load %arg9[%c0_44, %c8] : memref<128x32xf32, #tpu.memory_space<vmem>>, vector<128x8xf32>
      %85 = vector.broadcast %71 : vector<128x1xf32> to vector<128x8xf32>
      %86 = arith.mulf %85, %84 : vector<128x8xf32>
      %87 = arith.truncf %74 : vector<128x128xf32> to vector<128x128xbf16>
      %88 = vector.extract_strided_slice %20 {offsets = [0, 8], sizes = [128, 8], strides = [1, 1]} : vector<128x32xbf16> to vector<128x8xbf16>
      %cst_45 = arith.constant dense<0.000000e+00> : vector<128x8xf32>
      %89 = tpu.matmul %87, %88, %cst_45 {dimension_numbers = #tpu.dot_dimension_numbers<[1], [0], [0], [1], [0, 0, 1, 1], [], []>} : vector<128x128xbf16>, vector<128x8xbf16>, vector<128x8xf32> -> vector<128x8xf32>
      %90 = arith.addf %86, %89 : vector<128x8xf32>
      %c0_46 = arith.constant 0 : index
      %c8_47 = arith.constant 8 : index
      %91 = vector.load %arg9[%c0_46, %c8_47] : memref<128x32xf32, #tpu.memory_space<vmem>>, vector<128x8xf32>
      tpu.vector_store %arg9[%c0_46, %c8_47], %90 {strides = array<i32>} : memref<128x32xf32, #tpu.memory_space<vmem>>, vector<128x8xf32>,
      %c1_48 = arith.constant 1 : index
      %c0_49 = arith.constant 0 : index
      %c0_50 = arith.constant 0 : index
      %92 = vector.load %arg7[%c1_48, %c0_49, %c0_50] : memref<4x128x1xf32, #tpu.memory_space<vmem>>, vector<1x128x1xf32>
      %93 = vector.shape_cast %92 : vector<1x128x1xf32> to vector<128x1xf32>
      %94 = vector.shape_cast %69 : vector<128x1xf32> to vector<1x128x1xf32>
      tpu.vector_store %arg7[%c1_48, %c0_49, %c0_50], %94 {strides = array<i32>} : memref<4x128x1xf32, #tpu.memory_space<vmem>>, vector<1x128x1xf32>,
      %95 = vector.extract_strided_slice %18 {offsets = [0, 16], sizes = [128, 8], strides = [1, 1]} : vector<128x32xbf16> to vector<128x8xbf16>
      %96 = vector.extract_strided_slice %19 {offsets = [0, 16], sizes = [128, 8], strides = [1, 1]} : vector<128x32xbf16> to vector<128x8xbf16>
      %cst_51 = arith.constant dense<0.000000e+00> : vector<128x128xf32>
      %97 = tpu.matmul %95, %96, %cst_51 {dimension_numbers = #tpu.dot_dimension_numbers<[1], [1], [0], [0], [0, 0, 1, 0], [], []>} : vector<128x8xbf16>, vector<128x8xbf16>, vector<128x128xf32> -> vector<128x128xf32>
      %cst_52 = arith.constant 0.353553385 : f32
      %98 = vector.broadcast %cst_52 : f32 to vector<128x128xf32>
      %99 = arith.mulf %97, %98 : vector<128x128xf32>
      %cst_53 = arith.constant -1.000000e+30 : f32
      %100 = vector.broadcast %cst_53 : f32 to vector<128x128xf32>
      %101 = arith.select %17, %99, %100 : vector<128x128xi1>, vector<128x128xf32>
      %c2 = arith.constant 2 : index
      %c0_54 = arith.constant 0 : index
      %c0_55 = arith.constant 0 : index
      %102 = vector.load %arg7[%c2, %c0_54, %c0_55] : memref<4x128x1xf32, #tpu.memory_space<vmem>>, vector<1x128x1xf32>
      %103 = vector.shape_cast %102 : vector<1x128x1xf32> to vector<128x1xf32>
      %cst_56 = arith.constant dense<0xFF800000> : vector<128xf32>
      %104 = vector.multi_reduction <maximumf>, %101, %cst_56 [1] : vector<128x128xf32> to vector<128xf32>
      %105 = vector.shape_cast %104 : vector<128xf32> to vector<128x1xf32>
      %106 = arith.maximumf %103, %105 : vector<128x1xf32>
      %107 = arith.subf %103, %106 : vector<128x1xf32>
      %108 = math.exp %107 : vector<128x1xf32>
      %109 = vector.broadcast %106 : vector<128x1xf32> to vector<128x128xf32>
      %110 = arith.subf %101, %109 : vector<128x128xf32>
      %111 = math.exp %110 : vector<128x128xf32>
      %c2_57 = arith.constant 2 : index
      %c0_58 = arith.constant 0 : index
      %c0_59 = arith.constant 0 : index
      %112 = vector.load %arg8[%c2_57, %c0_58, %c0_59] : memref<4x128x1xf32, #tpu.memory_space<vmem>>, vector<1x128x1xf32>
      %113 = vector.shape_cast %112 : vector<1x128x1xf32> to vector<128x1xf32>
      %114 = arith.mulf %108, %113 : vector<128x1xf32>
      %cst_60 = arith.constant dense<0.000000e+00> : vector<128xf32>
      %115 = vector.multi_reduction <add>, %111, %cst_60 [1] : vector<128x128xf32> to vector<128xf32>
      %116 = vector.shape_cast %115 : vector<128xf32> to vector<128x1xf32>
      %117 = arith.addf %114, %116 : vector<128x1xf32>
      %c2_61 = arith.constant 2 : index
      %c0_62 = arith.constant 0 : index
      %c0_63 = arith.constant 0 : index
      %118 = vector.load %arg8[%c2_61, %c0_62, %c0_63] : memref<4x128x1xf32, #tpu.memory_space<vmem>>, vector<1x128x1xf32>
      %119 = vector.shape_cast %118 : vector<1x128x1xf32> to vector<128x1xf32>
      %120 = vector.shape_cast %117 : vector<128x1xf32> to vector<1x128x1xf32>
      tpu.vector_store %arg8[%c2_61, %c0_62, %c0_63], %120 {strides = array<i32>} : memref<4x128x1xf32, #tpu.memory_space<vmem>>, vector<1x128x1xf32>,
      %c0_64 = arith.constant 0 : index
      %c16 = arith.constant 16 : index
      %121 = vector.load %arg9[%c0_64, %c16] : memref<128x32xf32, #tpu.memory_space<vmem>>, vector<128x8xf32>
      %122 = vector.broadcast %108 : vector<128x1xf32> to vector<128x8xf32>
      %123 = arith.mulf %122, %121 : vector<128x8xf32>
      %124 = arith.truncf %111 : vector<128x128xf32> to vector<128x128xbf16>
      %125 = vector.extract_strided_slice %20 {offsets = [0, 16], sizes = [128, 8], strides = [1, 1]} : vector<128x32xbf16> to vector<128x8xbf16>
      %cst_65 = arith.constant dense<0.000000e+00> : vector<128x8xf32>
      %126 = tpu.matmul %124, %125, %cst_65 {dimension_numbers = #tpu.dot_dimension_numbers<[1], [0], [0], [1], [0, 0, 1, 1], [], []>} : vector<128x128xbf16>, vector<128x8xbf16>, vector<128x8xf32> -> vector<128x8xf32>
      %127 = arith.addf %123, %126 : vector<128x8xf32>
      %c0_66 = arith.constant 0 : index
      %c16_67 = arith.constant 16 : index
      %128 = vector.load %arg9[%c0_66, %c16_67] : memref<128x32xf32, #tpu.memory_space<vmem>>, vector<128x8xf32>
      tpu.vector_store %arg9[%c0_66, %c16_67], %127 {strides = array<i32>} : memref<128x32xf32, #tpu.memory_space<vmem>>, vector<128x8xf32>,
      %c2_68 = arith.constant 2 : index
      %c0_69 = arith.constant 0 : index
      %c0_70 = arith.constant 0 : index
      %129 = vector.load %arg7[%c2_68, %c0_69, %c0_70] : memref<4x128x1xf32, #tpu.memory_space<vmem>>, vector<1x128x1xf32>
      %130 = vector.shape_cast %129 : vector<1x128x1xf32> to vector<128x1xf32>
      %131 = vector.shape_cast %106 : vector<128x1xf32> to vector<1x128x1xf32>
      tpu.vector_store %arg7[%c2_68, %c0_69, %c0_70], %131 {strides = array<i32>} : memref<4x128x1xf32, #tpu.memory_space<vmem>>, vector<1x128x1xf32>,
      %132 = vector.extract_strided_slice %18 {offsets = [0, 24], sizes = [128, 8], strides = [1, 1]} : vector<128x32xbf16> to vector<128x8xbf16>
      %133 = vector.extract_strided_slice %19 {offsets = [0, 24], sizes = [128, 8], strides = [1, 1]} : vector<128x32xbf16> to vector<128x8xbf16>
      %cst_71 = arith.constant dense<0.000000e+00> : vector<128x128xf32>
      %134 = tpu.matmul %132, %133, %cst_71 {dimension_numbers = #tpu.dot_dimension_numbers<[1], [1], [0], [0], [0, 0, 1, 0], [], []>} : vector<128x8xbf16>, vector<128x8xbf16>, vector<128x128xf32> -> vector<128x128xf32>
      %cst_72 = arith.constant 0.353553385 : f32
      %135 = vector.broadcast %cst_72 : f32 to vector<128x128xf32>
      %136 = arith.mulf %134, %135 : vector<128x128xf32>
      %cst_73 = arith.constant -1.000000e+30 : f32
      %137 = vector.broadcast %cst_73 : f32 to vector<128x128xf32>
      %138 = arith.select %17, %136, %137 : vector<128x128xi1>, vector<128x128xf32>
      %c3 = arith.constant 3 : index
      %c0_74 = arith.constant 0 : index
      %c0_75 = arith.constant 0 : index
      %139 = vector.load %arg7[%c3, %c0_74, %c0_75] : memref<4x128x1xf32, #tpu.memory_space<vmem>>, vector<1x128x1xf32>
      %140 = vector.shape_cast %139 : vector<1x128x1xf32> to vector<128x1xf32>
      %cst_76 = arith.constant dense<0xFF800000> : vector<128xf32>
      %141 = vector.multi_reduction <maximumf>, %138, %cst_76 [1] : vector<128x128xf32> to vector<128xf32>
      %142 = vector.shape_cast %141 : vector<128xf32> to vector<128x1xf32>
      %143 = arith.maximumf %140, %142 : vector<128x1xf32>
      %144 = arith.subf %140, %143 : vector<128x1xf32>
      %145 = math.exp %144 : vector<128x1xf32>
      %146 = vector.broadcast %143 : vector<128x1xf32> to vector<128x128xf32>
      %147 = arith.subf %138, %146 : vector<128x128xf32>
      %148 = math.exp %147 : vector<128x128xf32>
      %c3_77 = arith.constant 3 : index
      %c0_78 = arith.constant 0 : index
      %c0_79 = arith.constant 0 : index
      %149 = vector.load %arg8[%c3_77, %c0_78, %c0_79] : memref<4x128x1xf32, #tpu.memory_space<vmem>>, vector<1x128x1xf32>
      %150 = vector.shape_cast %149 : vector<1x128x1xf32> to vector<128x1xf32>
      %151 = arith.mulf %145, %150 : vector<128x1xf32>
      %cst_80 = arith.constant dense<0.000000e+00> : vector<128xf32>
      %152 = vector.multi_reduction <add>, %148, %cst_80 [1] : vector<128x128xf32> to vector<128xf32>
      %153 = vector.shape_cast %152 : vector<128xf32> to vector<128x1xf32>
      %154 = arith.addf %151, %153 : vector<128x1xf32>
      %c3_81 = arith.constant 3 : index
      %c0_82 = arith.constant 0 : index
      %c0_83 = arith.constant 0 : index
      %155 = vector.load %arg8[%c3_81, %c0_82, %c0_83] : memref<4x128x1xf32, #tpu.memory_space<vmem>>, vector<1x128x1xf32>
      %156 = vector.shape_cast %155 : vector<1x128x1xf32> to vector<128x1xf32>
      %157 = vector.shape_cast %154 : vector<128x1xf32> to vector<1x128x1xf32>
      tpu.vector_store %arg8[%c3_81, %c0_82, %c0_83], %157 {strides = array<i32>} : memref<4x128x1xf32, #tpu.memory_space<vmem>>, vector<1x128x1xf32>,
      %c0_84 = arith.constant 0 : index
      %c24 = arith.constant 24 : index
      %158 = vector.load %arg9[%c0_84, %c24] : memref<128x32xf32, #tpu.memory_space<vmem>>, vector<128x8xf32>
      %159 = vector.broadcast %145 : vector<128x1xf32> to vector<128x8xf32>
      %160 = arith.mulf %159, %158 : vector<128x8xf32>
      %161 = arith.truncf %148 : vector<128x128xf32> to vector<128x128xbf16>
      %162 = vector.extract_strided_slice %20 {offsets = [0, 24], sizes = [128, 8], strides = [1, 1]} : vector<128x32xbf16> to vector<128x8xbf16>
      %cst_85 = arith.constant dense<0.000000e+00> : vector<128x8xf32>
      %163 = tpu.matmul %161, %162, %cst_85 {dimension_numbers = #tpu.dot_dimension_numbers<[1], [0], [0], [1], [0, 0, 1, 1], [], []>} : vector<128x128xbf16>, vector<128x8xbf16>, vector<128x8xf32> -> vector<128x8xf32>
      %164 = arith.addf %160, %163 : vector<128x8xf32>
      %c0_86 = arith.constant 0 : index
      %c24_87 = arith.constant 24 : index
      %165 = vector.load %arg9[%c0_86, %c24_87] : memref<128x32xf32, #tpu.memory_space<vmem>>, vector<128x8xf32>
      tpu.vector_store %arg9[%c0_86, %c24_87], %164 {strides = array<i32>} : memref<128x32xf32, #tpu.memory_space<vmem>>, vector<128x8xf32>,
      %c3_88 = arith.constant 3 : index
      %c0_89 = arith.constant 0 : index
      %c0_90 = arith.constant 0 : index
      %166 = vector.load %arg7[%c3_88, %c0_89, %c0_90] : memref<4x128x1xf32, #tpu.memory_space<vmem>>, vector<1x128x1xf32>
      %167 = vector.shape_cast %166 : vector<1x128x1xf32> to vector<128x1xf32>
      %168 = vector.shape_cast %143 : vector<128x1xf32> to vector<1x128x1xf32>
      tpu.vector_store %arg7[%c3_88, %c0_89, %c0_90], %168 {strides = array<i32>} : memref<4x128x1xf32, #tpu.memory_space<vmem>>, vector<1x128x1xf32>,
    } else {
    }
    %c0_i32_3 = arith.constant 0 : i32
    %8 = arith.cmpi eq, %arg2, %c0_i32_3 : i32
    %9 = arith.extui %8 : i1 to i32
    %c0_i32_4 = arith.constant 0 : i32
    %10 = arith.cmpi ne, %9, %c0_i32_4 : i32
    scf.if %10 {
      %c0 = arith.constant 0 : index
      %c0_5 = arith.constant 0 : index
      %c0_6 = arith.constant 0 : index
      %11 = vector.load %arg8[%c0, %c0_5, %c0_6] : memref<4x128x1xf32, #tpu.memory_space<vmem>>, vector<1x128x1xf32>
      %12 = vector.shape_cast %11 : vector<1x128x1xf32> to vector<128x1xf32>
      %13 = tpu.reciprocal %12 {approx = true} : vector<128x1xf32> -> vector<128x1xf32>
      %c0_7 = arith.constant 0 : index
      %c0_8 = arith.constant 0 : index
      %14 = vector.load %arg9[%c0_7, %c0_8] : memref<128x32xf32, #tpu.memory_space<vmem>>, vector<128x8xf32>
      %15 = vector.broadcast %13 : vector<128x1xf32> to vector<128x8xf32>
      %16 = arith.mulf %14, %15 : vector<128x8xf32>
      %c1 = arith.constant 1 : index
      %c0_9 = arith.constant 0 : index
      %c0_10 = arith.constant 0 : index
      %17 = vector.load %arg8[%c1, %c0_9, %c0_10] : memref<4x128x1xf32, #tpu.memory_space<vmem>>, vector<1x128x1xf32>
      %18 = vector.shape_cast %17 : vector<1x128x1xf32> to vector<128x1xf32>
      %19 = tpu.reciprocal %18 {approx = true} : vector<128x1xf32> -> vector<128x1xf32>
      %c0_11 = arith.constant 0 : index
      %c8 = arith.constant 8 : index
      %20 = vector.load %arg9[%c0_11, %c8] : memref<128x32xf32, #tpu.memory_space<vmem>>, vector<128x8xf32>
      %21 = vector.broadcast %19 : vector<128x1xf32> to vector<128x8xf32>
      %22 = arith.mulf %20, %21 : vector<128x8xf32>
      %c2 = arith.constant 2 : index
      %c0_12 = arith.constant 0 : index
      %c0_13 = arith.constant 0 : index
      %23 = vector.load %arg8[%c2, %c0_12, %c0_13] : memref<4x128x1xf32, #tpu.memory_space<vmem>>, vector<1x128x1xf32>
      %24 = vector.shape_cast %23 : vector<1x128x1xf32> to vector<128x1xf32>
      %25 = tpu.reciprocal %24 {approx = true} : vector<128x1xf32> -> vector<128x1xf32>
      %c0_14 = arith.constant 0 : index
      %c16 = arith.constant 16 : index
      %26 = vector.load %arg9[%c0_14, %c16] : memref<128x32xf32, #tpu.memory_space<vmem>>, vector<128x8xf32>
      %27 = vector.broadcast %25 : vector<128x1xf32> to vector<128x8xf32>
      %28 = arith.mulf %26, %27 : vector<128x8xf32>
      %c3 = arith.constant 3 : index
      %c0_15 = arith.constant 0 : index
      %c0_16 = arith.constant 0 : index
      %29 = vector.load %arg8[%c3, %c0_15, %c0_16] : memref<4x128x1xf32, #tpu.memory_space<vmem>>, vector<1x128x1xf32>
      %30 = vector.shape_cast %29 : vector<1x128x1xf32> to vector<128x1xf32>
      %31 = tpu.reciprocal %30 {approx = true} : vector<128x1xf32> -> vector<128x1xf32>
      %c0_17 = arith.constant 0 : index
      %c24 = arith.constant 24 : index
      %32 = vector.load %arg9[%c0_17, %c24] : memref<128x32xf32, #tpu.memory_space<vmem>>, vector<128x8xf32>
      %33 = vector.broadcast %31 : vector<128x1xf32> to vector<128x8xf32>
      %34 = arith.mulf %32, %33 : vector<128x8xf32>
      %35 = tpu.concatenate %16, %22, %28, %34 in 1 : vector<128x8xf32>, vector<128x8xf32>, vector<128x8xf32>, vector<128x8xf32> -> vector<128x32xf32>
      %36 = arith.truncf %35 : vector<128x32xf32> to vector<128x32xbf16>
      %c0_18 = arith.constant 0 : index
      %c0_19 = arith.constant 0 : index
      %37 = vector.load %arg6[%c0_18, %c0_19] : memref<128x32xbf16, #tpu.memory_space<vmem>>, vector<128x32xbf16>
      tpu.vector_store %arg6[%c0_18, %c0_19], %36 {strides = array<i32>} : memref<128x32xbf16, #tpu.memory_space<vmem>>, vector<128x32xbf16>,
    } else {
    }
    return
  }
  func.func @transform_0(%arg0: i32, %arg1: i32, %arg2: i32) -> (i32, i32) {
    %c1_i32 = arith.constant 1 : i32
    %0 = arith.muli %arg0, %c1_i32 : i32
    %1 = arith.addi %0, %arg1 : i32
    %c0_i32 = arith.constant 0 : i32
    %c0_i32_0 = arith.constant 0 : i32
    return %1, %c0_i32 : i32, i32
  }
  func.func @transform_1(%arg0: i32, %arg1: i32, %arg2: i32) -> (i32, i32) {
    %c1_i32 = arith.constant 1 : i32
    %0 = arith.muli %arg0, %c1_i32 : i32
    %1 = arith.minsi %arg2, %arg1 : i32
    %2 = arith.addi %0, %1 : i32
    %c0_i32 = arith.constant 0 : i32
    %c0_i32_0 = arith.constant 0 : i32
    return %2, %c0_i32 : i32, i32
  }
  func.func @transform_2(%arg0: i32, %arg1: i32, %arg2: i32) -> (i32, i32) {
    %c1_i32 = arith.constant 1 : i32
    %0 = arith.muli %arg0, %c1_i32 : i32
    %1 = arith.minsi %arg2, %arg1 : i32
    %2 = arith.addi %0, %1 : i32
    %c0_i32 = arith.constant 0 : i32
    %c0_i32_0 = arith.constant 0 : i32
    return %2, %c0_i32 : i32, i32
  }
  func.func @transform_3(%arg0: i32, %arg1: i32, %arg2: i32) -> (i32, i32) {
    %c1_i32 = arith.constant 1 : i32
    %0 = arith.muli %arg0, %c1_i32 : i32
    %1 = arith.addi %0, %arg1 : i32
    %c0_i32 = arith.constant 0 : i32
    %c0_i32_0 = arith.constant 0 : i32
    return %1, %c0_i32 : i32, i32
  }
}

</mosaic_0001>

<llo_original>
// kernel: attention_forward.5
$region0: #{attention_forward.5}
  #allocation0 [shape = 'u32[]', space=smem, size = 0x4, offset = 0x4, fixed_abs, tag = 'smem constant byte address 0x4 - core index']
  #allocation1 [shape = 'u32[144,128]{1,0:T(1,128)}', space=vmem, size = 0x12000, scoped, tag = 'internal scratch']
  #allocation2 [shape = 'f32[128,32]{1,0:T(8,128)}', space=vmem, size = 0x10000, scoped, tag = 'scratch operand']
  %s0 = inlined_call_operand.vmem [shape: bf16[256,32], index: 0, kind: input, shape index: {}]
  %s1 = inlined_call_operand.vmem [shape: bf16[32,32], index: 1, kind: input, shape index: {}]
  %s2 = inlined_call_operand.vmem [shape: f32[1,32], index: 2, kind: input, shape index: {}]
  %s3 = inlined_call_operand.vmem [shape: f32[256,32], index: 3, kind: output, shape index: {}]
  %s4 = sld [smem:[#allocation0]]
  $region53: #{attention_forward.5} parent=0
    _
  %s6 = ssub.s32 1, %s4
  %s7 = scalar_select 0, %s6, %s4
  loop: start=0, step=1, limit=4
  $region2: #{attention_forward.5} parent=0 // loop_pre_header
    _
  $region3: #{attention_forward.5} parent=0 // loop_header
    %s9 = sphi 0, %s13
    %p10 = scmp.ge.s32.totalorder %s9, 4
    %s16 = sphi 0, %s35
    %s17 = sphi 0, %s31
    %s18 = sphi 0, %s27
    %s19 = sphi 0, %s16
    %s20 = sphi 0, %s17
    %s21 = sphi 0, %s18
    %s22 = sphi 0, %s19
    %s23 = sphi 0, %s20
    %s24 = sphi 0, %s21
    %s40 = sphi 0, %s42
    %s43 = sphi 0, %s40
    %s44 = sphi 0, %s43
    %s60 = sphi 0, %s44
    %s68 = sphi 0, %s70
    %s71 = sphi 0, %s68
    %s72 = sphi 0, %s71
    %s88 = sphi 0, %s72
    %s94 = sphi 0, %s96
    %s97 = sphi 0, %s94
    %s98 = sphi 0, %s97
    %s114 = sphi 0, %s98
    %s122 = sphi 0, %s124
    %s125 = sphi 0, %s122
    %s126 = sphi 0, %s125
    %s142 = sphi 0, %s126
  $region4: #{attention_forward.5} parent=0 // loop_header_branch
    %12 = sbr.rel (%p10) target = $region8
  $region5: #{attention_forward.5} parent=0 // loop_body
    %s14 = ssub.s32 %s9, 1
    %s15 = ssub.s32 %s9, 2
    %s25 = sadd.s32 1, %s18
    %p26 = scmp.ge.s32.totalorder %s25, 1
    %s27 = scalar_select %p26, 0, %s25
    %s28 = sadd.s32 1, %s17
    %s29 = scalar_select %p26, %s28, %s17
    %p30 = scmp.ge.s32.totalorder %s29, 1
    %s31 = scalar_select %p30, 0, %s29
    %s32 = sadd.s32 1, %s16
    %s33 = scalar_select %p30, %s32, %s16
    %p34 = scmp.ge.s32.totalorder %s33, 2
    %s35 = scalar_select %p34, 0, %s33
    %s36 = ssub.s32 %s16, %s35
    %s37 = ssub.s32 %s18, %s27
    %s38 = sor.u32 %s36, %s37
    %p39 = scmp.eq.s32.totalorder %s38, 0
    %s41 = sadd.s32 %s40, 1
    %s42 = scalar_select %p39, %s40, %s41
    %p45 = pneg %p39
    %p46 = scmp.eq.s32.totalorder %s9, 1
    %p47 = por %p45, %p46
    %p48 = scmp.ne.s32.totalorder %s40, %s43
    %p49 = scmp.eq.s32.totalorder %s9, 0
    %p50 = por %p48, %p49
    %p51 = scmp.ne.s32.totalorder %s40, %s43
    %p52 = scmp.eq.s32.totalorder %s14, 1
    %p53 = por %p51, %p52
    %p54 = scmp.ne.s32.totalorder %s43, %s44
    %p55 = scmp.eq.s32.totalorder %s14, 0
    %p56 = por %p54, %p55
    %p57 = scmp.ne.s32.totalorder %s43, %s44
    %p58 = scmp.eq.s32.totalorder %s15, 1
    %p59 = por %p57, %p58
    %p61 = scmp.ne.s32.totalorder %s44, %s60
    %p62 = scmp.eq.s32.totalorder %s15, 0
    %p63 = por %p61, %p62
    %s64 = ssub.s32 %s18, %s27
    %s65 = ssub.s32 %s17, %s31
    %s66 = sor.u32 %s64, %s65
    %p67 = scmp.eq.s32.totalorder %s66, 0
    %s69 = sadd.s32 %s68, 1
    %s70 = scalar_select %p67, %s68, %s69
    %p73 = pneg %p67
    %p74 = scmp.eq.s32.totalorder %s9, 1
    %p75 = por %p73, %p74
    %p76 = scmp.ne.s32.totalorder %s68, %s71
    %p77 = scmp.eq.s32.totalorder %s9, 0
    %p78 = por %p76, %p77
    %p79 = scmp.ne.s32.totalorder %s68, %s71
    %p80 = scmp.eq.s32.totalorder %s14, 1
    %p81 = por %p79, %p80
    %p82 = scmp.ne.s32.totalorder %s71, %s72
    %p83 = scmp.eq.s32.totalorder %s14, 0
    %p84 = por %p82, %p83
    %p85 = scmp.ne.s32.totalorder %s71, %s72
    %p86 = scmp.eq.s32.totalorder %s15, 1
    %p87 = por %p85, %p86
    %p89 = scmp.ne.s32.totalorder %s72, %s88
    %p90 = scmp.eq.s32.totalorder %s15, 0
    %p91 = por %p89, %p90
    %s92 = ssub.s32 %s17, %s31
    %p93 = scmp.eq.s32.totalorder %s92, 0
    %s95 = sadd.s32 %s94, 1
    %s96 = scalar_select %p93, %s94, %s95
    %p99 = pneg %p93
    %p100 = scmp.eq.s32.totalorder %s9, 1
    %p101 = por %p99, %p100
    %p102 = scmp.ne.s32.totalorder %s94, %s97
    %p103 = scmp.eq.s32.totalorder %s9, 0
    %p104 = por %p102, %p103
    %p105 = scmp.ne.s32.totalorder %s94, %s97
    %p106 = scmp.eq.s32.totalorder %s14, 1
    %p107 = por %p105, %p106
    %p108 = scmp.ne.s32.totalorder %s97, %s98
    %p109 = scmp.eq.s32.totalorder %s14, 0
    %p110 = por %p108, %p109
    %p111 = scmp.ne.s32.totalorder %s97, %s98
    %p112 = scmp.eq.s32.totalorder %s15, 1
    %p113 = por %p111, %p112
    %p115 = scmp.ne.s32.totalorder %s98, %s114
    %p116 = scmp.eq.s32.totalorder %s15, 0
    %p117 = por %p115, %p116
    %s118 = ssub.s32 %s16, %s35
    %s119 = ssub.s32 %s17, %s31
    %s120 = sor.u32 %s118, %s119
    %p121 = scmp.eq.s32.totalorder %s120, 0
    %s123 = sadd.s32 %s122, 1
    %s124 = scalar_select %p121, %s122, %s123
    %p127 = pneg %p121
    %p128 = scmp.eq.s32.totalorder %s9, 1
    %p129 = por %p127, %p128
    %p130 = scmp.ne.s32.totalorder %s122, %s125
    %p131 = scmp.eq.s32.totalorder %s9, 0
    %p132 = por %p130, %p131
    %p133 = scmp.ne.s32.totalorder %s122, %s125
    %p134 = scmp.eq.s32.totalorder %s14, 1
    %p135 = por %p133, %p134
    %p136 = scmp.ne.s32.totalorder %s125, %s126
    %p137 = scmp.eq.s32.totalorder %s14, 0
    %p138 = por %p136, %p137
    %p139 = scmp.ne.s32.totalorder %s125, %s126
    %p140 = scmp.eq.s32.totalorder %s15, 1
    %p141 = por %p139, %p140
    %p143 = scmp.ne.s32.totalorder %s126, %s142
    %p144 = scmp.eq.s32.totalorder %s15, 0
    %p145 = por %p143, %p144
    %p146 = scmp.le.s32.totalorder 1, %s9
    %p147 = scmp.lt.s32.totalorder %s9, 3
    %p148 = pnand %p146, %p147
    %p149 = pneg %p148
    // Predicated region
    $region9: #{attention_forward.5} parent=5 // pred_check
      _
    $region10: #{attention_forward.5} parent=5 // pred_check_branch
      %151 = sbr.rel (%p148) target = $region12
    $region11: #{attention_forward.5} parent=5 // pred_region
      %s152 = ssub.s32 %s9, 1
      // Predicated region
      $region13: #{attention_forward.5} parent=11 // pred_check
        %p153 = pneg %p84
      $region14: #{attention_forward.5} parent=11 // pred_check_branch
        %155 = sbr.rel (%p153) target = $region16
      $region15: #{attention_forward.5} parent=11 // pred_region
        %s156 = smul.u32 4, %s21
        %p157 = scmp.lt.s32.totalorder %s156, 3
        %s158 = scalar_select %p157, %s156, 3
        %p159 = scmp.lt.s32.totalorder %s20, 0
        %s160 = scalar_select %p159, %s20, 0
        %s161 = sadd.s32 %s160, %s158
        %s162 = smul.addr %s161, 4
        %s163 = scalar_lea.vmem %s1, %s162
        %s164 = smul.u32 4, %s21
      $region16: #{attention_forward.5} parent=11 // pred_fallthru
        _
      // Predicated region
      $region17: #{attention_forward.5} parent=11 // pred_check
        %p165 = pneg %p110
      $region18: #{attention_forward.5} parent=11 // pred_check_branch
        %167 = sbr.rel (%p165) target = $region20
      $region19: #{attention_forward.5} parent=11 // pred_region
        %p168 = scmp.lt.s32.totalorder %s20, 0
        %s169 = scalar_select %p168, %s20, 0
        %s170 = scalar_lea.vmem %s2, %s169
      $region20: #{attention_forward.5} parent=11 // pred_fallthru
        _
    $region12: #{attention_forward.5} parent=5 // pred_fallthru
      _
    %p171 = scmp.lt.s32.totalorder %s9, 2
    // Predicated region
    $region21: #{attention_forward.5} parent=5 // pred_check
      %p172 = pneg %p171
    $region22: #{attention_forward.5} parent=5 // pred_check_branch
      %174 = sbr.rel (%p172) target = $region24
    $region23: #{attention_forward.5} parent=5 // pred_region
      // Predicated region
      $region25: #{attention_forward.5} parent=23 // pred_check
        %p175 = pneg %p50
      $region26: #{attention_forward.5} parent=23 // pred_check_branch
        %177 = sbr.rel (%p175) target = $region28
      $region27: #{attention_forward.5} parent=23 // pred_region
        %s178 = smul.u32 16, %s16
        %p179 = scmp.lt.s32.totalorder %s178, 31
        %s180 = scalar_select %p179, %s178, 31
        %p181 = scmp.lt.s32.totalorder %s18, 0
        %s182 = scalar_select %p181, %s18, 0
        %s183 = sadd.s32 %s182, %s180
        %s184 = smul.addr %s183, 4
        %s185 = scalar_lea.vmem %s0, %s184
        %s186 = smul.u32 16, %s16
      $region28: #{attention_forward.5} parent=23 // pred_fallthru
        _
    $region24: #{attention_forward.5} parent=5 // pred_fallthru
      _
    %p187 = scmp.le.s32.totalorder 1, %s9
    %p188 = scmp.lt.s32.totalorder %s9, 3
    %p189 = pnand %p187, %p188
    %p190 = pneg %p189
    // Predicated region
    $region29: #{attention_forward.5} parent=5 // pred_check
      _
    $region30: #{attention_forward.5} parent=5 // pred_check_branch
      %192 = sbr.rel (%p189) target = $region32
    $region31: #{attention_forward.5} parent=5 // pred_region
      %s193 = ssub.s32 %s9, 1
      %s194 = smul.u32 16, %s19
      %p195 = scmp.lt.s32.totalorder %s194, 31
      %s196 = scalar_select %p195, %s194, 31
      %p197 = scmp.lt.s32.totalorder %s21, 0
      %s198 = scalar_select %p197, %s21, 0
      %s199 = sadd.s32 %s198, %s196
      %s200 = smul.addr %s199, 4
      %s201 = scalar_lea.vmem %s0, %s200
      %p202 = pneg %p56
      %p203 = pneg %p53
      %s204 = smul.u32 4, %s21
      %p205 = scmp.lt.s32.totalorder %s204, 3
      %s206 = scalar_select %p205, %s204, 3
      %p207 = scmp.lt.s32.totalorder %s20, 0
      %s208 = scalar_select %p207, %s20, 0
      %s209 = sadd.s32 %s208, %s206
      %s210 = smul.addr %s209, 4
      %s211 = scalar_lea.vmem %s1, %s210
      %p212 = pneg %p84
      %p213 = pneg %p81
      %p214 = scmp.lt.s32.totalorder %s20, 0
      %s215 = scalar_select %p214, %s20, 0
      %s216 = scalar_lea.vmem %s2, %s215
      %p217 = pneg %p110
      %p218 = pneg %p107
      %p219 = pneg %p138
      %p220 = pneg %p135
      %s221 = smul.u32 16, %s19
      %p222 = scmp.lt.s32.totalorder %s221, 31
      %s223 = scalar_select %p222, %s221, 31
      %p224 = scmp.lt.s32.totalorder %s20, 0
      %s225 = scalar_select %p224, %s20, 0
      %s226 = sadd.s32 %s225, %s223
      %s227 = smul.addr %s226, 8
      %s228 = scalar_lea.vmem %s3, %s227
      %s229 = smul.u32 16, %s19
      %p230 = scmp.lt.s32.totalorder %s229, 31
      %s231 = scalar_select %p230, %s229, 31
      %p232 = scmp.lt.s32.totalorder %s21, 0
      %s233 = scalar_select %p232, %s21, 0
      %s234 = sadd.s32 %s233, %s231
      %s235 = smul.addr %s234, 4
      %s236 = scalar_lea.vmem %s0, %s235
      %s237 = smul.u32 16, %s19
      %s238 = smul.u32 4, %s21
      %p239 = scmp.lt.s32.totalorder %s238, 3
      %s240 = scalar_select %p239, %s238, 3
      %p241 = scmp.lt.s32.totalorder %s20, 0
      %s242 = scalar_select %p241, %s20, 0
      %s243 = sadd.s32 %s242, %s240
      %s244 = smul.addr %s243, 4
      %s245 = scalar_lea.vmem %s1, %s244
      %s246 = smul.u32 4, %s21
      %p247 = scmp.lt.s32.totalorder %s20, 0
      %s248 = scalar_select %p247, %s20, 0
      %s249 = scalar_lea.vmem %s2, %s248
      %s250 = smul.u32 16, %s19
      %p251 = scmp.lt.s32.totalorder %s250, 31
      %s252 = scalar_select %p251, %s250, 31
      %p253 = scmp.lt.s32.totalorder %s20, 0
      %s254 = scalar_select %p253, %s20, 0
      %s255 = sadd.s32 %s254, %s252
      %s256 = smul.addr %s255, 8
      %s257 = scalar_lea.vmem %s3, %s256
      %s258 = smul.u32 16, %s19
      %p260 = scmp.eq.s32.totalorder %s21, 0
      // Predicated region
      $region33: #{attention_forward.5} parent=31 // pred_check
        %p261 = pneg %p260
      $region34: #{attention_forward.5} parent=31 // pred_check_branch
        %263 = sbr.rel (%p261) target = $region36
      $region35: #{attention_forward.5} parent=31 // pred_region
        %vm264 = vcmask 261120
        %265 = vst.msk [vmem:[#allocation2] sm:$0xff] %vm264, 0.0
        %266 = vst.msk [vmem:[#allocation2 + $0x8] sm:$0xff] %vm264, 0.0
        %267 = vst.msk [vmem:[#allocation2 + $0x10] sm:$0xff] %vm264, 0.0
        %268 = vst.msk [vmem:[#allocation2 + $0x18] sm:$0xff] %vm264, 0.0
        %269 = vst.msk [vmem:[#allocation2 + $0x20] sm:$0xff] %vm264, 0.0
        %270 = vst.msk [vmem:[#allocation2 + $0x28] sm:$0xff] %vm264, 0.0
        %271 = vst.msk [vmem:[#allocation2 + $0x30] sm:$0xff] %vm264, 0.0
        %272 = vst.msk [vmem:[#allocation2 + $0x38] sm:$0xff] %vm264, 0.0
        %273 = vst.msk [vmem:[#allocation2 + $0x40] sm:$0xff] %vm264, 0.0
        %274 = vst.msk [vmem:[#allocation2 + $0x48] sm:$0xff] %vm264, 0.0
        %275 = vst.msk [vmem:[#allocation2 + $0x50] sm:$0xff] %vm264, 0.0
        %276 = vst.msk [vmem:[#allocation2 + $0x58] sm:$0xff] %vm264, 0.0
        %277 = vst.msk [vmem:[#allocation2 + $0x60] sm:$0xff] %vm264, 0.0
        %278 = vst.msk [vmem:[#allocation2 + $0x68] sm:$0xff] %vm264, 0.0
        %279 = vst.msk [vmem:[#allocation2 + $0x70] sm:$0xff] %vm264, 0.0
        %280 = vst.msk [vmem:[#allocation2 + $0x78] sm:$0xff] %vm264, 0.0
      $region36: #{attention_forward.5} parent=31 // pred_fallthru
        _
      %v281 = vld [vmem:[#allocation2] sm:$0xff]
      %v282 = vld [vmem:[#allocation2 + $0x8] sm:$0xff]
      %v283 = vld [vmem:[#allocation2 + $0x10] sm:$0xff]
      %v284 = vld [vmem:[#allocation2 + $0x18] sm:$0xff]
      %v285 = vld [vmem:[#allocation2 + $0x20] sm:$0xff]
      %v286 = vld [vmem:[#allocation2 + $0x28] sm:$0xff]
      %v287 = vld [vmem:[#allocation2 + $0x30] sm:$0xff]
      %v288 = vld [vmem:[#allocation2 + $0x38] sm:$0xff]
      %v289 = vld [vmem:[#allocation2 + $0x40] sm:$0xff]
      %v290 = vld [vmem:[#allocation2 + $0x48] sm:$0xff]
      %v291 = vld [vmem:[#allocation2 + $0x50] sm:$0xff]
      %v292 = vld [vmem:[#allocation2 + $0x58] sm:$0xff]
      %v293 = vld [vmem:[#allocation2 + $0x60] sm:$0xff]
      %v294 = vld [vmem:[#allocation2 + $0x68] sm:$0xff]
      %v295 = vld [vmem:[#allocation2 + $0x70] sm:$0xff]
      %v296 = vld [vmem:[#allocation2 + $0x78] sm:$0xff]
      %v297 = vld [vmem:[%s236] sm:$0xf]
      %v298 = vld [vmem:[%s236 + $0x4] sm:$0xf]
      %v299 = vld [vmem:[%s236 + $0x8] sm:$0xf]
      %v300 = vld [vmem:[%s236 + $0xc] sm:$0xf]
      %v301 = vld [vmem:[%s236 + $0x10] sm:$0xf]
      %v302 = vld [vmem:[%s236 + $0x14] sm:$0xf]
      %v303 = vld [vmem:[%s236 + $0x18] sm:$0xf]
      %v304 = vld [vmem:[%s236 + $0x1c] sm:$0xf]
      %v305 = vld [vmem:[%s236 + $0x20] sm:$0xf]
      %v306 = vld [vmem:[%s236 + $0x24] sm:$0xf]
      %v307 = vld [vmem:[%s236 + $0x28] sm:$0xf]
      %v308 = vld [vmem:[%s236 + $0x2c] sm:$0xf]
      %v309 = vld [vmem:[%s236 + $0x30] sm:$0xf]
      %v310 = vld [vmem:[%s236 + $0x34] sm:$0xf]
      %v311 = vld [vmem:[%s236 + $0x38] sm:$0xf]
      %v312 = vld [vmem:[%s236 + $0x3c] sm:$0xf]
      %v313 = vld [vmem:[%s245] sm:$0xf]
      %v314 = vld [vmem:[%s245 + $0x4] sm:$0xf]
      %v315 = vld [vmem:[%s245 + $0x8] sm:$0xf]
      %v316 = vld [vmem:[%s245 + $0xc] sm:$0xf]
      %v333 = vunpack.c.l.b16 %v297
      %v334 = vunpack.c.l.b16 %v298
      %v335 = vunpack.c.l.b16 %v299
      %v336 = vunpack.c.l.b16 %v300
      %v337 = vunpack.c.l.b16 %v301
      %v338 = vunpack.c.l.b16 %v302
      %v339 = vunpack.c.l.b16 %v303
      %v340 = vunpack.c.l.b16 %v304
      %v341 = vunpack.c.l.b16 %v305
      %v342 = vunpack.c.l.b16 %v306
      %v343 = vunpack.c.l.b16 %v307
      %v344 = vunpack.c.l.b16 %v308
      %v345 = vunpack.c.l.b16 %v309
      %v346 = vunpack.c.l.b16 %v310
      %v347 = vunpack.c.l.b16 %v311
      %v348 = vunpack.c.l.b16 %v312
      %v349 = vpack.c.b16 %v334, %v333
      %v350 = vpack.c.b16 %v336, %v335
      %v351 = vpack.c.b16 %v338, %v337
      %v352 = vpack.c.b16 %v340, %v339
      %v353 = vpack.c.b16 %v342, %v341
      %v354 = vpack.c.b16 %v344, %v343
      %v355 = vpack.c.b16 %v346, %v345
      %v356 = vpack.c.b16 %v348, %v347
      %v361 = vunpack.c.l.b16 %v313
      %v362 = vunpack.c.l.b16 %v314
      %v363 = vunpack.c.l.b16 %v315
      %v364 = vunpack.c.l.b16 %v316
      %v365 = vpack.c.b16 %v362, %v361
      %v366 = vpack.c.b16 %v364, %v363
      %vm369 = vcmask 261120
      %v371 = vsel %vm369, %v349, 0
      %v374 = vsel %vm369, %v350, 0
      %v377 = vsel %vm369, %v351, 0
      %v380 = vsel %vm369, %v352, 0
      %v383 = vsel %vm369, %v353, 0
      %v386 = vsel %vm369, %v354, 0
      %v389 = vsel %vm369, %v355, 0
      %v392 = vsel %vm369, %v356, 0
      %394 = vmatprep.subr.bf16.mxu0 0
      %395 = vmatpush1.bf16.msra.mxu0 %v365
      %396 = vmatprep.subr.bf16.mxu0 0
      %397 = vmatpush1.bf16.msra.mxu0 %v366
      %398 = vmatprep.subr.bf16.mxu0 0
      %399 = vmatpush1.bf16.msra.mxu0 0
      %400 = vmatprep.subr.bf16.mxu0 0
      %401 = vmatpush1.bf16.msra.mxu0 0
      %402 = vmatprep.subr.bf16.mxu0 0
      %403 = vmatpush1.bf16.msra.mxu0 0
      %404 = vmatprep.subr.bf16.mxu0 0
      %405 = vmatpush1.bf16.msra.mxu0 0
      %406 = vmatprep.subr.bf16.mxu0 0
      %407 = vmatpush1.bf16.msra.mxu0 0
      %408 = vmatprep.subr.bf16.mxu0 0
      %409 = vmatpush1.bf16.msra.mxu0 0
      %410 = vmatprep.subr.bf16.mxu0 0
      %411 = vmatpush1.bf16.msra.mxu0 0
      %412 = vmatprep.subr.bf16.mxu0 0
      %413 = vmatpush1.bf16.msra.mxu0 0
      %414 = vmatprep.subr.bf16.mxu0 0
      %415 = vmatpush1.bf16.msra.mxu0 0
      %416 = vmatprep.subr.bf16.mxu0 0
      %417 = vmatpush1.bf16.msra.mxu0 0
      %418 = vmatprep.subr.bf16.mxu0 0
      %419 = vmatpush1.bf16.msra.mxu0 0
      %420 = vmatprep.subr.bf16.mxu0 0
      %421 = vmatpush1.bf16.msra.mxu0 0
      %422 = vmatprep.subr.bf16.mxu0 0
      %423 = vmatpush1.bf16.msra.mxu0 0
      %424 = vmatprep.subr.bf16.mxu0 0
      %425 = vmatpush1.bf16.msra.mxu0 0
      %426 = vmatprep.mubr.bf16.mxu0 0
      %427 = vmatmul.mubr.bf16.gmra.mrb[0].mxu0 %v371
      %v428 = vpop.f32.mrb[0].mxu0
      %v429 = vadd.f32 0.0, %v428
      %v430 = vpop.f32.mrb[0].mxu0
      %v431 = vpop.f32.mrb[0].mxu0
      %v432 = vadd.f32 0.0, %v431
      %v433 = vpop.f32.mrb[0].mxu0
      %434 = vmatprep.mubr.bf16.mxu0 0
      %435 = vmatmul.mubr.bf16.gmra.mrb[0].mxu0 %v374
      %v436 = vpop.f32.mrb[0].mxu0
      %v437 = vadd.f32 0.0, %v436
      %v438 = vpop.f32.mrb[0].mxu0
      %v439 = vpop.f32.mrb[0].mxu0
      %v440 = vadd.f32 0.0, %v439
      %v441 = vpop.f32.mrb[0].mxu0
      %442 = vmatprep.mubr.bf16.mxu0 0
      %443 = vmatmul.mubr.bf16.gmra.mrb[0].mxu0 %v377
      %v444 = vpop.f32.mrb[0].mxu0
      %v445 = vadd.f32 0.0, %v444
      %v446 = vpop.f32.mrb[0].mxu0
      %v447 = vpop.f32.mrb[0].mxu0
      %v448 = vadd.f32 0.0, %v447
      %v449 = vpop.f32.mrb[0].mxu0
      %450 = vmatprep.mubr.bf16.mxu0 0
      %451 = vmatmul.mubr.bf16.gmra.mrb[0].mxu0 %v380
      %v452 = vpop.f32.mrb[0].mxu0
      %v453 = vadd.f32 0.0, %v452
      %v454 = vpop.f32.mrb[0].mxu0
      %v455 = vpop.f32.mrb[0].mxu0
      %v456 = vadd.f32 0.0, %v455
      %v457 = vpop.f32.mrb[0].mxu0
      %458 = vmatprep.mubr.bf16.mxu0 0
      %459 = vmatmul.mubr.bf16.gmra.mrb[0].mxu0 %v383
      %v460 = vpop.f32.mrb[0].mxu0
      %v461 = vadd.f32 0.0, %v460
      %v462 = vpop.f32.mrb[0].mxu0
      %v463 = vpop.f32.mrb[0].mxu0
      %v464 = vadd.f32 0.0, %v463
      %v465 = vpop.f32.mrb[0].mxu0
      %466 = vmatprep.mubr.bf16.mxu0 0
      %467 = vmatmul.mubr.bf16.gmra.mrb[0].mxu0 %v386
      %v468 = vpop.f32.mrb[0].mxu0
      %v469 = vadd.f32 0.0, %v468
      %v470 = vpop.f32.mrb[0].mxu0
      %v471 = vpop.f32.mrb[0].mxu0
      %v472 = vadd.f32 0.0, %v471
      %v473 = vpop.f32.mrb[0].mxu0
      %474 = vmatprep.mubr.bf16.mxu0 0
      %475 = vmatmul.mubr.bf16.gmra.mrb[0].mxu0 %v389
      %v476 = vpop.f32.mrb[0].mxu0
      %v477 = vadd.f32 0.0, %v476
      %v478 = vpop.f32.mrb[0].mxu0
      %v479 = vpop.f32.mrb[0].mxu0
      %v480 = vadd.f32 0.0, %v479
      %v481 = vpop.f32.mrb[0].mxu0
      %482 = vmatprep.mubr.bf16.mxu0 0
      %483 = vmatmul.mubr.bf16.gmra.mrb[0].mxu0 %v392
      %v484 = vpop.f32.mrb[0].mxu0
      %v485 = vadd.f32 0.0, %v484
      %v486 = vpop.f32.mrb[0].mxu0
      %v487 = vpop.f32.mrb[0].mxu0
      %v488 = vadd.f32 0.0, %v487
      %v489 = vpop.f32.mrb[0].mxu0
      %490 = vdwg.mxu0
      %v491 = vadd.f32 %v281, %v429
      %v492 = vadd.f32 %v282, %v432
      %v493 = vadd.f32 %v283, %v437
      %v494 = vadd.f32 %v284, %v440
      %v495 = vadd.f32 %v285, %v445
      %v496 = vadd.f32 %v286, %v448
      %v497 = vadd.f32 %v287, %v453
      %v498 = vadd.f32 %v288, %v456
      %v499 = vadd.f32 %v289, %v461
      %v500 = vadd.f32 %v290, %v464
      %v501 = vadd.f32 %v291, %v469
      %v502 = vadd.f32 %v292, %v472
      %v503 = vadd.f32 %v293, %v477
      %v504 = vadd.f32 %v294, %v480
      %v505 = vadd.f32 %v295, %v485
      %v506 = vadd.f32 %v296, %v488
      %507 = vst.msk [vmem:[#allocation2] sm:$0xff] %vm369, %v491
      %508 = vst.msk [vmem:[#allocation2 + $0x8] sm:$0xff] %vm369, %v492
      %509 = vst.msk [vmem:[#allocation2 + $0x10] sm:$0xff] %vm369, %v493
      %510 = vst.msk [vmem:[#allocation2 + $0x18] sm:$0xff] %vm369, %v494
      %511 = vst.msk [vmem:[#allocation2 + $0x20] sm:$0xff] %vm369, %v495
      %512 = vst.msk [vmem:[#allocation2 + $0x28] sm:$0xff] %vm369, %v496
      %513 = vst.msk [vmem:[#allocation2 + $0x30] sm:$0xff] %vm369, %v497
      %514 = vst.msk [vmem:[#allocation2 + $0x38] sm:$0xff] %vm369, %v498
      %515 = vst.msk [vmem:[#allocation2 + $0x40] sm:$0xff] %vm369, %v499
      %516 = vst.msk [vmem:[#allocation2 + $0x48] sm:$0xff] %vm369, %v500
      %517 = vst.msk [vmem:[#allocation2 + $0x50] sm:$0xff] %vm369, %v501
      %518 = vst.msk [vmem:[#allocation2 + $0x58] sm:$0xff] %vm369, %v502
      %519 = vst.msk [vmem:[#allocation2 + $0x60] sm:$0xff] %vm369, %v503
      %520 = vst.msk [vmem:[#allocation2 + $0x68] sm:$0xff] %vm369, %v504
      %521 = vst.msk [vmem:[#allocation2 + $0x70] sm:$0xff] %vm369, %v505
      %522 = vst.msk [vmem:[#allocation2 + $0x78] sm:$0xff] %vm369, %v506
      // Predicated region
      $region37: #{attention_forward.5} parent=31 // pred_check
        %p523 = pneg %p260
      $region38: #{attention_forward.5} parent=31 // pred_check_branch
        %525 = sbr.rel (%p523) target = $region40
      $region39: #{attention_forward.5} parent=31 // pred_region
        %v526 = vld [vmem:[#allocation2] sm:$0xff]
        %v527 = vld [vmem:[#allocation2 + $0x8] sm:$0xff]
        %v528 = vld [vmem:[#allocation2 + $0x10] sm:$0xff]
        %v529 = vld [vmem:[#allocation2 + $0x18] sm:$0xff]
        %v530 = vld [vmem:[#allocation2 + $0x20] sm:$0xff]
        %v531 = vld [vmem:[#allocation2 + $0x28] sm:$0xff]
        %v532 = vld [vmem:[#allocation2 + $0x30] sm:$0xff]
        %v533 = vld [vmem:[#allocation2 + $0x38] sm:$0xff]
        %v534 = vld [vmem:[#allocation2 + $0x40] sm:$0xff]
        %v535 = vld [vmem:[#allocation2 + $0x48] sm:$0xff]
        %v536 = vld [vmem:[#allocation2 + $0x50] sm:$0xff]
        %v537 = vld [vmem:[#allocation2 + $0x58] sm:$0xff]
        %v538 = vld [vmem:[#allocation2 + $0x60] sm:$0xff]
        %v539 = vld [vmem:[#allocation2 + $0x68] sm:$0xff]
        %v540 = vld [vmem:[#allocation2 + $0x70] sm:$0xff]
        %v541 = vld [vmem:[#allocation2 + $0x78] sm:$0xff]
        %v542 = vld [vmem:[%s249] sm:$0x1]
        %v544 = vlaneseq
        %v545 = vshrl.u32 %v544, 7
        %v546 = vsub.s32 0, %v545
        %v547 = vrot.slane %v542, %v546
        %v549 = vadd.f32 %v526, %v547
        %v550 = vadd.f32 %v527, %v547
        %v551 = vadd.f32 %v528, %v547
        %v552 = vadd.f32 %v529, %v547
        %v553 = vadd.f32 %v530, %v547
        %v554 = vadd.f32 %v531, %v547
        %v555 = vadd.f32 %v532, %v547
        %v556 = vadd.f32 %v533, %v547
        %v557 = vadd.f32 %v534, %v547
        %v558 = vadd.f32 %v535, %v547
        %v559 = vadd.f32 %v536, %v547
        %v560 = vadd.f32 %v537, %v547
        %v561 = vadd.f32 %v538, %v547
        %v562 = vadd.f32 %v539, %v547
        %v563 = vadd.f32 %v540, %v547
        %v564 = vadd.f32 %v541, %v547
        %565 = vst.msk [vmem:[%s257] sm:$0xff] %vm369, %v549
        %566 = vst.msk [vmem:[%s257 + $0x8] sm:$0xff] %vm369, %v550
        %567 = vst.msk [vmem:[%s257 + $0x10] sm:$0xff] %vm369, %v551
        %568 = vst.msk [vmem:[%s257 + $0x18] sm:$0xff] %vm369, %v552
        %569 = vst.msk [vmem:[%s257 + $0x20] sm:$0xff] %vm369, %v553
        %570 = vst.msk [vmem:[%s257 + $0x28] sm:$0xff] %vm369, %v554
        %571 = vst.msk [vmem:[%s257 + $0x30] sm:$0xff] %vm369, %v555
        %572 = vst.msk [vmem:[%s257 + $0x38] sm:$0xff] %vm369, %v556
        %573 = vst.msk [vmem:[%s257 + $0x40] sm:$0xff] %vm369, %v557
        %574 = vst.msk [vmem:[%s257 + $0x48] sm:$0xff] %vm369, %v558
        %575 = vst.msk [vmem:[%s257 + $0x50] sm:$0xff] %vm369, %v559
        %576 = vst.msk [vmem:[%s257 + $0x58] sm:$0xff] %vm369, %v560
        %577 = vst.msk [vmem:[%s257 + $0x60] sm:$0xff] %vm369, %v561
        %578 = vst.msk [vmem:[%s257 + $0x68] sm:$0xff] %vm369, %v562
        %579 = vst.msk [vmem:[%s257 + $0x70] sm:$0xff] %vm369, %v563
        %580 = vst.msk [vmem:[%s257 + $0x78] sm:$0xff] %vm369, %v564
      $region40: #{attention_forward.5} parent=31 // pred_fallthru
        _
      %s581 = smul.u32 16, %s19
      %p582 = scmp.lt.s32.totalorder %s581, 31
      %s583 = scalar_select %p582, %s581, 31
      %p584 = scmp.lt.s32.totalorder %s20, 0
      %s585 = scalar_select %p584, %s20, 0
      %s586 = sadd.s32 %s585, %s583
      %s587 = smul.addr %s586, 8
      %s588 = scalar_lea.vmem %s3, %s587
      // Predicated region
      $region41: #{attention_forward.5} parent=31 // pred_check
        %p589 = pneg %p135
      $region42: #{attention_forward.5} parent=31 // pred_check_branch
        %591 = sbr.rel (%p589) target = $region44
      $region43: #{attention_forward.5} parent=31 // pred_region
        %s592 = smul.u32 16, %s19
      $region44: #{attention_forward.5} parent=31 // pred_fallthru
        _
    $region32: #{attention_forward.5} parent=5 // pred_fallthru
      _
    %p593 = scmp.le.s32.totalorder 2, %s9
    // Predicated region
    $region45: #{attention_forward.5} parent=5 // pred_check
      %p594 = pneg %p593
    $region46: #{attention_forward.5} parent=5 // pred_check_branch
      %596 = sbr.rel (%p594) target = $region48
    $region47: #{attention_forward.5} parent=5 // pred_region
      %s597 = ssub.s32 %s9, 2
      // Predicated region
      $region49: #{attention_forward.5} parent=47 // pred_check
        %p598 = pneg %p141
      $region50: #{attention_forward.5} parent=47 // pred_check_branch
        %600 = sbr.rel (%p598) target = $region52
      $region51: #{attention_forward.5} parent=47 // pred_region
        %s601 = smul.u32 16, %s22
        %p602 = scmp.lt.s32.totalorder %s601, 31
        %s603 = scalar_select %p602, %s601, 31
        %p604 = scmp.lt.s32.totalorder %s23, 0
        %s605 = scalar_select %p604, %s23, 0
        %s606 = sadd.s32 %s605, %s603
        %s607 = smul.addr %s606, 8
        %s608 = scalar_lea.vmem %s3, %s607
      $region52: #{attention_forward.5} parent=47 // pred_fallthru
        _
    $region48: #{attention_forward.5} parent=5 // pred_fallthru
      _
  $region6: #{attention_forward.5} parent=0 // loop_footer
    %s13 = sadd.s32 1, %s9
  $region7: #{attention_forward.5} parent=0 // loop_footer_branch
    %8 = sbr.rel target = $region3
  $region8: #{attention_forward.5} parent=0 // loop_exit
    _

// kernel: attention_forward.3
$region0: #{attention_forward.3}
  #allocation0 [shape = 'u32[]', space=smem, size = 0x4, offset = 0x4, fixed_abs, tag = 'smem constant byte address 0x4 - core index']
  #allocation1 [shape = 'u32[144,128]{1,0:T(1,128)}', space=vmem, size = 0x12000, scoped, tag = 'internal scratch']
  #allocation2 [shape = 'f32[128,32]{1,0:T(8,128)}', space=vmem, size = 0x10000, scoped, tag = 'scratch operand']
  #allocation3 [shape = 'f32[128,32]{1,0:T(8,128)}', space=vmem, size = 0x10000, scoped, tag = 'scratch operand']
  #allocation4 [shape = 'f32[128,32]{1,0:T(8,128)}', space=vmem, size = 0x10000, scoped, tag = 'scratch operand']
  %s0 = inlined_call_operand.vmem [shape: f32[256,32], index: 0, kind: input, shape index: {}]
  %s1 = inlined_call_operand.vmem [shape: bf16[32,32], index: 1, kind: input, shape index: {}]
  %s2 = inlined_call_operand.vmem [shape: bf16[32,32], index: 2, kind: input, shape index: {}]
  %s3 = inlined_call_operand.vmem [shape: bf16[32,32], index: 3, kind: input, shape index: {}]
  %s4 = inlined_call_operand.vmem [shape: f32[1,32], index: 4, kind: input, shape index: {}]
  %s5 = inlined_call_operand.vmem [shape: f32[1,32], index: 5, kind: input, shape index: {}]
  %s6 = inlined_call_operand.vmem [shape: f32[1,32], index: 6, kind: input, shape index: {}]
  %s7 = inlined_call_operand.vmem [shape: bf16[256,32], index: 7, kind: output, shape index: {0}]
  %s8 = inlined_call_operand.vmem [shape: bf16[256,32], index: 8, kind: output, shape index: {1}]
  %s9 = inlined_call_operand.vmem [shape: bf16[256,32], index: 9, kind: output, shape index: {2}]
  %10 = xla_tuple %s7, %s8, %s9
  %s11 = sld [smem:[#allocation0]]
  $region85: #{attention_forward.3} parent=0
    _
  %s13 = ssub.s32 1, %s11
  %s14 = scalar_select 0, %s13, %s11
  loop: start=0, step=1, limit=4
  $region2: #{attention_forward.3} parent=0 // loop_pre_header
    _
  $region3: #{attention_forward.3} parent=0 // loop_header
    %s16 = sphi 0, %s20
    %p17 = scmp.ge.s32.totalorder %s16, 4
    %s23 = sphi 0, %s42
    %s24 = sphi 0, %s38
    %s25 = sphi 0, %s34
    %s26 = sphi 0, %s23
    %s27 = sphi 0, %s24
    %s28 = sphi 0, %s25
    %s29 = sphi 0, %s26
    %s30 = sphi 0, %s27
    %s31 = sphi 0, %s28
    %s47 = sphi 0, %s49
    %s50 = sphi 0, %s47
    %s51 = sphi 0, %s50
    %s67 = sphi 0, %s51
    %s75 = sphi 0, %s77
    %s78 = sphi 0, %s75
    %s79 = sphi 0, %s78
    %s95 = sphi 0, %s79
    %s103 = sphi 0, %s105
    %s106 = sphi 0, %s103
    %s107 = sphi 0, %s106
    %s123 = sphi 0, %s107
    %s131 = sphi 0, %s133
    %s134 = sphi 0, %s131
    %s135 = sphi 0, %s134
    %s151 = sphi 0, %s135
    %s157 = sphi 0, %s159
    %s160 = sphi 0, %s157
    %s161 = sphi 0, %s160
    %s177 = sphi 0, %s161
    %s183 = sphi 0, %s185
    %s186 = sphi 0, %s183
    %s187 = sphi 0, %s186
    %s203 = sphi 0, %s187
    %s209 = sphi 0, %s211
    %s212 = sphi 0, %s209
    %s213 = sphi 0, %s212
    %s229 = sphi 0, %s213
    %s237 = sphi 0, %s239
    %s240 = sphi 0, %s237
    %s241 = sphi 0, %s240
    %s257 = sphi 0, %s241
    %s265 = sphi 0, %s267
    %s268 = sphi 0, %s265
    %s269 = sphi 0, %s268
    %s285 = sphi 0, %s269
    %s293 = sphi 0, %s295
    %s296 = sphi 0, %s293
    %s297 = sphi 0, %s296
    %s313 = sphi 0, %s297
  $region4: #{attention_forward.3} parent=0 // loop_header_branch
    %19 = sbr.rel (%p17) target = $region8
  $region5: #{attention_forward.3} parent=0 // loop_body
    %s21 = ssub.s32 %s16, 1
    %s22 = ssub.s32 %s16, 2
    %s32 = sadd.s32 1, %s25
    %p33 = scmp.ge.s32.totalorder %s32, 1
    %s34 = scalar_select %p33, 0, %s32
    %s35 = sadd.s32 1, %s24
    %s36 = scalar_select %p33, %s35, %s24
    %p37 = scmp.ge.s32.totalorder %s36, 1
    %s38 = scalar_select %p37, 0, %s36
    %s39 = sadd.s32 1, %s23
    %s40 = scalar_select %p37, %s39, %s23
    %p41 = scmp.ge.s32.totalorder %s40, 2
    %s42 = scalar_select %p41, 0, %s40
    %s43 = ssub.s32 %s23, %s42
    %s44 = ssub.s32 %s25, %s34
    %s45 = sor.u32 %s43, %s44
    %p46 = scmp.eq.s32.totalorder %s45, 0
    %s48 = sadd.s32 %s47, 1
    %s49 = scalar_select %p46, %s47, %s48
    %p52 = pneg %p46
    %p53 = scmp.eq.s32.totalorder %s16, 1
    %p54 = por %p52, %p53
    %p55 = scmp.ne.s32.totalorder %s47, %s50
    %p56 = scmp.eq.s32.totalorder %s16, 0
    %p57 = por %p55, %p56
    %p58 = scmp.ne.s32.totalorder %s47, %s50
    %p59 = scmp.eq.s32.totalorder %s21, 1
    %p60 = por %p58, %p59
    %p61 = scmp.ne.s32.totalorder %s50, %s51
    %p62 = scmp.eq.s32.totalorder %s21, 0
    %p63 = por %p61, %p62
    %p64 = scmp.ne.s32.totalorder %s50, %s51
    %p65 = scmp.eq.s32.totalorder %s22, 1
    %p66 = por %p64, %p65
    %p68 = scmp.ne.s32.totalorder %s51, %s67
    %p69 = scmp.eq.s32.totalorder %s22, 0
    %p70 = por %p68, %p69
    %s71 = ssub.s32 %s25, %s34
    %s72 = ssub.s32 %s24, %s38
    %s73 = sor.u32 %s71, %s72
    %p74 = scmp.eq.s32.totalorder %s73, 0
    %s76 = sadd.s32 %s75, 1
    %s77 = scalar_select %p74, %s75, %s76
    %p80 = pneg %p74
    %p81 = scmp.eq.s32.totalorder %s16, 1
    %p82 = por %p80, %p81
    %p83 = scmp.ne.s32.totalorder %s75, %s78
    %p84 = scmp.eq.s32.totalorder %s16, 0
    %p85 = por %p83, %p84
    %p86 = scmp.ne.s32.totalorder %s75, %s78
    %p87 = scmp.eq.s32.totalorder %s21, 1
    %p88 = por %p86, %p87
    %p89 = scmp.ne.s32.totalorder %s78, %s79
    %p90 = scmp.eq.s32.totalorder %s21, 0
    %p91 = por %p89, %p90
    %p92 = scmp.ne.s32.totalorder %s78, %s79
    %p93 = scmp.eq.s32.totalorder %s22, 1
    %p94 = por %p92, %p93
    %p96 = scmp.ne.s32.totalorder %s79, %s95
    %p97 = scmp.eq.s32.totalorder %s22, 0
    %p98 = por %p96, %p97
    %s99 = ssub.s32 %s25, %s34
    %s100 = ssub.s32 %s24, %s38
    %s101 = sor.u32 %s99, %s100
    %p102 = scmp.eq.s32.totalorder %s101, 0
    %s104 = sadd.s32 %s103, 1
    %s105 = scalar_select %p102, %s103, %s104
    %p108 = pneg %p102
    %p109 = scmp.eq.s32.totalorder %s16, 1
    %p110 = por %p108, %p109
    %p111 = scmp.ne.s32.totalorder %s103, %s106
    %p112 = scmp.eq.s32.totalorder %s16, 0
    %p113 = por %p111, %p112
    %p114 = scmp.ne.s32.totalorder %s103, %s106
    %p115 = scmp.eq.s32.totalorder %s21, 1
    %p116 = por %p114, %p115
    %p117 = scmp.ne.s32.totalorder %s106, %s107
    %p118 = scmp.eq.s32.totalorder %s21, 0
    %p119 = por %p117, %p118
    %p120 = scmp.ne.s32.totalorder %s106, %s107
    %p121 = scmp.eq.s32.totalorder %s22, 1
    %p122 = por %p120, %p121
    %p124 = scmp.ne.s32.totalorder %s107, %s123
    %p125 = scmp.eq.s32.totalorder %s22, 0
    %p126 = por %p124, %p125
    %s127 = ssub.s32 %s25, %s34
    %s128 = ssub.s32 %s24, %s38
    %s129 = sor.u32 %s127, %s128
    %p130 = scmp.eq.s32.totalorder %s129, 0
    %s132 = sadd.s32 %s131, 1
    %s133 = scalar_select %p130, %s131, %s132
    %p136 = pneg %p130
    %p137 = scmp.eq.s32.totalorder %s16, 1
    %p138 = por %p136, %p137
    %p139 = scmp.ne.s32.totalorder %s131, %s134
    %p140 = scmp.eq.s32.totalorder %s16, 0
    %p141 = por %p139, %p140
    %p142 = scmp.ne.s32.totalorder %s131, %s134
    %p143 = scmp.eq.s32.totalorder %s21, 1
    %p144 = por %p142, %p143
    %p145 = scmp.ne.s32.totalorder %s134, %s135
    %p146 = scmp.eq.s32.totalorder %s21, 0
    %p147 = por %p145, %p146
    %p148 = scmp.ne.s32.totalorder %s134, %s135
    %p149 = scmp.eq.s32.totalorder %s22, 1
    %p150 = por %p148, %p149
    %p152 = scmp.ne.s32.totalorder %s135, %s151
    %p153 = scmp.eq.s32.totalorder %s22, 0
    %p154 = por %p152, %p153
    %s155 = ssub.s32 %s24, %s38
    %p156 = scmp.eq.s32.totalorder %s155, 0
    %s158 = sadd.s32 %s157, 1
    %s159 = scalar_select %p156, %s157, %s158
    %p162 = pneg %p156
    %p163 = scmp.eq.s32.totalorder %s16, 1
    %p164 = por %p162, %p163
    %p165 = scmp.ne.s32.totalorder %s157, %s160
    %p166 = scmp.eq.s32.totalorder %s16, 0
    %p167 = por %p165, %p166
    %p168 = scmp.ne.s32.totalorder %s157, %s160
    %p169 = scmp.eq.s32.totalorder %s21, 1
    %p170 = por %p168, %p169
    %p171 = scmp.ne.s32.totalorder %s160, %s161
    %p172 = scmp.eq.s32.totalorder %s21, 0
    %p173 = por %p171, %p172
    %p174 = scmp.ne.s32.totalorder %s160, %s161
    %p175 = scmp.eq.s32.totalorder %s22, 1
    %p176 = por %p174, %p175
    %p178 = scmp.ne.s32.totalorder %s161, %s177
    %p179 = scmp.eq.s32.totalorder %s22, 0
    %p180 = por %p178, %p179
    %s181 = ssub.s32 %s24, %s38
    %p182 = scmp.eq.s32.totalorder %s181, 0
    %s184 = sadd.s32 %s183, 1
    %s185 = scalar_select %p182, %s183, %s184
    %p188 = pneg %p182
    %p189 = scmp.eq.s32.totalorder %s16, 1
    %p190 = por %p188, %p189
    %p191 = scmp.ne.s32.totalorder %s183, %s186
    %p192 = scmp.eq.s32.totalorder %s16, 0
    %p193 = por %p191, %p192
    %p194 = scmp.ne.s32.totalorder %s183, %s186
    %p195 = scmp.eq.s32.totalorder %s21, 1
    %p196 = por %p194, %p195
    %p197 = scmp.ne.s32.totalorder %s186, %s187
    %p198 = scmp.eq.s32.totalorder %s21, 0
    %p199 = por %p197, %p198
    %p200 = scmp.ne.s32.totalorder %s186, %s187
    %p201 = scmp.eq.s32.totalorder %s22, 1
    %p202 = por %p200, %p201
    %p204 = scmp.ne.s32.totalorder %s187, %s203
    %p205 = scmp.eq.s32.totalorder %s22, 0
    %p206 = por %p204, %p205
    %s207 = ssub.s32 %s24, %s38
    %p208 = scmp.eq.s32.totalorder %s207, 0
    %s210 = sadd.s32 %s209, 1
    %s211 = scalar_select %p208, %s209, %s210
    %p214 = pneg %p208
    %p215 = scmp.eq.s32.totalorder %s16, 1
    %p216 = por %p214, %p215
    %p217 = scmp.ne.s32.totalorder %s209, %s212
    %p218 = scmp.eq.s32.totalorder %s16, 0
    %p219 = por %p217, %p218
    %p220 = scmp.ne.s32.totalorder %s209, %s212
    %p221 = scmp.eq.s32.totalorder %s21, 1
    %p222 = por %p220, %p221
    %p223 = scmp.ne.s32.totalorder %s212, %s213
    %p224 = scmp.eq.s32.totalorder %s21, 0
    %p225 = por %p223, %p224
    %p226 = scmp.ne.s32.totalorder %s212, %s213
    %p227 = scmp.eq.s32.totalorder %s22, 1
    %p228 = por %p226, %p227
    %p230 = scmp.ne.s32.totalorder %s213, %s229
    %p231 = scmp.eq.s32.totalorder %s22, 0
    %p232 = por %p230, %p231
    %s233 = ssub.s32 %s23, %s42
    %s234 = ssub.s32 %s24, %s38
    %s235 = sor.u32 %s233, %s234
    %p236 = scmp.eq.s32.totalorder %s235, 0
    %s238 = sadd.s32 %s237, 1
    %s239 = scalar_select %p236, %s237, %s238
    %p242 = pneg %p236
    %p243 = scmp.eq.s32.totalorder %s16, 1
    %p244 = por %p242, %p243
    %p245 = scmp.ne.s32.totalorder %s237, %s240
    %p246 = scmp.eq.s32.totalorder %s16, 0
    %p247 = por %p245, %p246
    %p248 = scmp.ne.s32.totalorder %s237, %s240
    %p249 = scmp.eq.s32.totalorder %s21, 1
    %p250 = por %p248, %p249
    %p251 = scmp.ne.s32.totalorder %s240, %s241
    %p252 = scmp.eq.s32.totalorder %s21, 0
    %p253 = por %p251, %p252
    %p254 = scmp.ne.s32.totalorder %s240, %s241
    %p255 = scmp.eq.s32.totalorder %s22, 1
    %p256 = por %p254, %p255
    %p258 = scmp.ne.s32.totalorder %s241, %s257
    %p259 = scmp.eq.s32.totalorder %s22, 0
    %p260 = por %p258, %p259
    %s261 = ssub.s32 %s23, %s42
    %s262 = ssub.s32 %s24, %s38
    %s263 = sor.u32 %s261, %s262
    %p264 = scmp.eq.s32.totalorder %s263, 0
    %s266 = sadd.s32 %s265, 1
    %s267 = scalar_select %p264, %s265, %s266
    %p270 = pneg %p264
    %p271 = scmp.eq.s32.totalorder %s16, 1
    %p272 = por %p270, %p271
    %p273 = scmp.ne.s32.totalorder %s265, %s268
    %p274 = scmp.eq.s32.totalorder %s16, 0
    %p275 = por %p273, %p274
    %p276 = scmp.ne.s32.totalorder %s265, %s268
    %p277 = scmp.eq.s32.totalorder %s21, 1
    %p278 = por %p276, %p277
    %p279 = scmp.ne.s32.totalorder %s268, %s269
    %p280 = scmp.eq.s32.totalorder %s21, 0
    %p281 = por %p279, %p280
    %p282 = scmp.ne.s32.totalorder %s268, %s269
    %p283 = scmp.eq.s32.totalorder %s22, 1
    %p284 = por %p282, %p283
    %p286 = scmp.ne.s32.totalorder %s269, %s285
    %p287 = scmp.eq.s32.totalorder %s22, 0
    %p288 = por %p286, %p287
    %s289 = ssub.s32 %s23, %s42
    %s290 = ssub.s32 %s24, %s38
    %s291 = sor.u32 %s289, %s290
    %p292 = scmp.eq.s32.totalorder %s291, 0
    %s294 = sadd.s32 %s293, 1
    %s295 = scalar_select %p292, %s293, %s294
    %p298 = pneg %p292
    %p299 = scmp.eq.s32.totalorder %s16, 1
    %p300 = por %p298, %p299
    %p301 = scmp.ne.s32.totalorder %s293, %s296
    %p302 = scmp.eq.s32.totalorder %s16, 0
    %p303 = por %p301, %p302
    %p304 = scmp.ne.s32.totalorder %s293, %s296
    %p305 = scmp.eq.s32.totalorder %s21, 1
    %p306 = por %p304, %p305
    %p307 = scmp.ne.s32.totalorder %s296, %s297
    %p308 = scmp.eq.s32.totalorder %s21, 0
    %p309 = por %p307, %p308
    %p310 = scmp.ne.s32.totalorder %s296, %s297
    %p311 = scmp.eq.s32.totalorder %s22, 1
    %p312 = por %p310, %p311
    %p314 = scmp.ne.s32.totalorder %s297, %s313
    %p315 = scmp.eq.s32.totalorder %s22, 0
    %p316 = por %p314, %p315
    %p317 = scmp.le.s32.totalorder 1, %s16
    %p318 = scmp.lt.s32.totalorder %s16, 3
    %p319 = pnand %p317, %p318
    %p320 = pneg %p319
    // Predicated region
    $region9: #{attention_forward.3} parent=5 // pred_check
      _
    $region10: #{attention_forward.3} parent=5 // pred_check_branch
      %322 = sbr.rel (%p319) target = $region12
    $region11: #{attention_forward.3} parent=5 // pred_region
      %s323 = ssub.s32 %s16, 1
      // Predicated region
      $region13: #{attention_forward.3} parent=11 // pred_check
        %p324 = pneg %p91
      $region14: #{attention_forward.3} parent=11 // pred_check_branch
        %326 = sbr.rel (%p324) target = $region16
      $region15: #{attention_forward.3} parent=11 // pred_region
        %s327 = smul.u32 4, %s28
        %p328 = scmp.lt.s32.totalorder %s327, 3
        %s329 = scalar_select %p328, %s327, 3
        %p330 = scmp.lt.s32.totalorder %s27, 0
        %s331 = scalar_select %p330, %s27, 0
        %s332 = sadd.s32 %s331, %s329
        %s333 = smul.addr %s332, 4
        %s334 = scalar_lea.vmem %s1, %s333
        %s335 = smul.u32 4, %s28
      $region16: #{attention_forward.3} parent=11 // pred_fallthru
        _
      // Predicated region
      $region17: #{attention_forward.3} parent=11 // pred_check
        %p336 = pneg %p119
      $region18: #{attention_forward.3} parent=11 // pred_check_branch
        %338 = sbr.rel (%p336) target = $region20
      $region19: #{attention_forward.3} parent=11 // pred_region
        %s339 = smul.u32 4, %s28
        %p340 = scmp.lt.s32.totalorder %s339, 3
        %s341 = scalar_select %p340, %s339, 3
        %p342 = scmp.lt.s32.totalorder %s27, 0
        %s343 = scalar_select %p342, %s27, 0
        %s344 = sadd.s32 %s343, %s341
        %s345 = smul.addr %s344, 4
        %s346 = scalar_lea.vmem %s2, %s345
        %s347 = smul.u32 4, %s28
      $region20: #{attention_forward.3} parent=11 // pred_fallthru
        _
      // Predicated region
      $region21: #{attention_forward.3} parent=11 // pred_check
        %p348 = pneg %p147
      $region22: #{attention_forward.3} parent=11 // pred_check_branch
        %350 = sbr.rel (%p348) target = $region24
      $region23: #{attention_forward.3} parent=11 // pred_region
        %s351 = smul.u32 4, %s28
        %p352 = scmp.lt.s32.totalorder %s351, 3
        %s353 = scalar_select %p352, %s351, 3
        %p354 = scmp.lt.s32.totalorder %s27, 0
        %s355 = scalar_select %p354, %s27, 0
        %s356 = sadd.s32 %s355, %s353
        %s357 = smul.addr %s356, 4
        %s358 = scalar_lea.vmem %s3, %s357
        %s359 = smul.u32 4, %s28
      $region24: #{attention_forward.3} parent=11 // pred_fallthru
        _
      // Predicated region
      $region25: #{attention_forward.3} parent=11 // pred_check
        %p360 = pneg %p173
      $region26: #{attention_forward.3} parent=11 // pred_check_branch
        %362 = sbr.rel (%p360) target = $region28
      $region27: #{attention_forward.3} parent=11 // pred_region
        %p363 = scmp.lt.s32.totalorder %s27, 0
        %s364 = scalar_select %p363, %s27, 0
        %s365 = scalar_lea.vmem %s4, %s364
      $region28: #{attention_forward.3} parent=11 // pred_fallthru
        _
      // Predicated region
      $region29: #{attention_forward.3} parent=11 // pred_check
        %p366 = pneg %p199
      $region30: #{attention_forward.3} parent=11 // pred_check_branch
        %368 = sbr.rel (%p366) target = $region32
      $region31: #{attention_forward.3} parent=11 // pred_region
        %p369 = scmp.lt.s32.totalorder %s27, 0
        %s370 = scalar_select %p369, %s27, 0
        %s371 = scalar_lea.vmem %s5, %s370
      $region32: #{attention_forward.3} parent=11 // pred_fallthru
        _
      // Predicated region
      $region33: #{attention_forward.3} parent=11 // pred_check
        %p372 = pneg %p225
      $region34: #{attention_forward.3} parent=11 // pred_check_branch
        %374 = sbr.rel (%p372) target = $region36
      $region35: #{attention_forward.3} parent=11 // pred_region
        %p375 = scmp.lt.s32.totalorder %s27, 0
        %s376 = scalar_select %p375, %s27, 0
        %s377 = scalar_lea.vmem %s6, %s376
      $region36: #{attention_forward.3} parent=11 // pred_fallthru
        _
    $region12: #{attention_forward.3} parent=5 // pred_fallthru
      _
    %p378 = scmp.lt.s32.totalorder %s16, 2
    // Predicated region
    $region37: #{attention_forward.3} parent=5 // pred_check
      %p379 = pneg %p378
    $region38: #{attention_forward.3} parent=5 // pred_check_branch
      %381 = sbr.rel (%p379) target = $region40
    $region39: #{attention_forward.3} parent=5 // pred_region
      // Predicated region
      $region41: #{attention_forward.3} parent=39 // pred_check
        %p382 = pneg %p57
      $region42: #{attention_forward.3} parent=39 // pred_check_branch
        %384 = sbr.rel (%p382) target = $region44
      $region43: #{attention_forward.3} parent=39 // pred_region
        %s385 = smul.u32 16, %s23
        %p386 = scmp.lt.s32.totalorder %s385, 31
        %s387 = scalar_select %p386, %s385, 31
        %p388 = scmp.lt.s32.totalorder %s25, 0
        %s389 = scalar_select %p388, %s25, 0
        %s390 = sadd.s32 %s389, %s387
        %s391 = smul.addr %s390, 8
        %s392 = scalar_lea.vmem %s0, %s391
        %s393 = smul.u32 16, %s23
      $region44: #{attention_forward.3} parent=39 // pred_fallthru
        _
    $region40: #{attention_forward.3} parent=5 // pred_fallthru
      _
    %p394 = scmp.le.s32.totalorder 1, %s16
    %p395 = scmp.lt.s32.totalorder %s16, 3
    %p396 = pnand %p394, %p395
    %p397 = pneg %p396
    // Predicated region
    $region45: #{attention_forward.3} parent=5 // pred_check
      _
    $region46: #{attention_forward.3} parent=5 // pred_check_branch
      %399 = sbr.rel (%p396) target = $region48
    $region47: #{attention_forward.3} parent=5 // pred_region
      %s400 = ssub.s32 %s16, 1
      %s401 = smul.u32 16, %s26
      %p402 = scmp.lt.s32.totalorder %s401, 31
      %s403 = scalar_select %p402, %s401, 31
      %p404 = scmp.lt.s32.totalorder %s28, 0
      %s405 = scalar_select %p404, %s28, 0
      %s406 = sadd.s32 %s405, %s403
      %s407 = smul.addr %s406, 8
      %s408 = scalar_lea.vmem %s0, %s407
      %p409 = pneg %p63
      %p410 = pneg %p60
      %s411 = smul.u32 4, %s28
      %p412 = scmp.lt.s32.totalorder %s411, 3
      %s413 = scalar_select %p412, %s411, 3
      %p414 = scmp.lt.s32.totalorder %s27, 0
      %s415 = scalar_select %p414, %s27, 0
      %s416 = sadd.s32 %s415, %s413
      %s417 = smul.addr %s416, 4
      %s418 = scalar_lea.vmem %s1, %s417
      %p419 = pneg %p91
      %p420 = pneg %p88
      %s421 = smul.u32 4, %s28
      %p422 = scmp.lt.s32.totalorder %s421, 3
      %s423 = scalar_select %p422, %s421, 3
      %p424 = scmp.lt.s32.totalorder %s27, 0
      %s425 = scalar_select %p424, %s27, 0
      %s426 = sadd.s32 %s425, %s423
      %s427 = smul.addr %s426, 4
      %s428 = scalar_lea.vmem %s2, %s427
      %p429 = pneg %p119
      %p430 = pneg %p116
      %s431 = smul.u32 4, %s28
      %p432 = scmp.lt.s32.totalorder %s431, 3
      %s433 = scalar_select %p432, %s431, 3
      %p434 = scmp.lt.s32.totalorder %s27, 0
      %s435 = scalar_select %p434, %s27, 0
      %s436 = sadd.s32 %s435, %s433
      %s437 = smul.addr %s436, 4
      %s438 = scalar_lea.vmem %s3, %s437
      %p439 = pneg %p147
      %p440 = pneg %p144
      %p441 = scmp.lt.s32.totalorder %s27, 0
      %s442 = scalar_select %p441, %s27, 0
      %s443 = scalar_lea.vmem %s4, %s442
      %p444 = pneg %p173
      %p445 = pneg %p170
      %p446 = scmp.lt.s32.totalorder %s27, 0
      %s447 = scalar_select %p446, %s27, 0
      %s448 = scalar_lea.vmem %s5, %s447
      %p449 = pneg %p199
      %p450 = pneg %p196
      %p451 = scmp.lt.s32.totalorder %s27, 0
      %s452 = scalar_select %p451, %s27, 0
      %s453 = scalar_lea.vmem %s6, %s452
      %p454 = pneg %p225
      %p455 = pneg %p222
      %p456 = pneg %p253
      %p457 = pneg %p250
      %s458 = smul.u32 16, %s26
      %p459 = scmp.lt.s32.totalorder %s458, 31
      %s460 = scalar_select %p459, %s458, 31
      %p461 = scmp.lt.s32.totalorder %s27, 0
      %s462 = scalar_select %p461, %s27, 0
      %s463 = sadd.s32 %s462, %s460
      %s464 = smul.addr %s463, 4
      %s465 = scalar_lea.vmem %s7, %s464
      %p466 = pneg %p281
      %p467 = pneg %p278
      %s468 = smul.u32 16, %s26
      %p469 = scmp.lt.s32.totalorder %s468, 31
      %s470 = scalar_select %p469, %s468, 31
      %p471 = scmp.lt.s32.totalorder %s27, 0
      %s472 = scalar_select %p471, %s27, 0
      %s473 = sadd.s32 %s472, %s470
      %s474 = smul.addr %s473, 4
      %s475 = scalar_lea.vmem %s8, %s474
      %p476 = pneg %p309
      %p477 = pneg %p306
      %s478 = smul.u32 16, %s26
      %p479 = scmp.lt.s32.totalorder %s478, 31
      %s480 = scalar_select %p479, %s478, 31
      %p481 = scmp.lt.s32.totalorder %s27, 0
      %s482 = scalar_select %p481, %s27, 0
      %s483 = sadd.s32 %s482, %s480
      %s484 = smul.addr %s483, 4
      %s485 = scalar_lea.vmem %s9, %s484
      %s486 = smul.u32 16, %s26
      %p487 = scmp.lt.s32.totalorder %s486, 31
      %s488 = scalar_select %p487, %s486, 31
      %p489 = scmp.lt.s32.totalorder %s28, 0
      %s490 = scalar_select %p489, %s28, 0
      %s491 = sadd.s32 %s490, %s488
      %s492 = smul.addr %s491, 8
      %s493 = scalar_lea.vmem %s0, %s492
      %s494 = smul.u32 16, %s26
      %s495 = smul.u32 4, %s28
      %p496 = scmp.lt.s32.totalorder %s495, 3
      %s497 = scalar_select %p496, %s495, 3
      %p498 = scmp.lt.s32.totalorder %s27, 0
      %s499 = scalar_select %p498, %s27, 0
      %s500 = sadd.s32 %s499, %s497
      %s501 = smul.addr %s500, 4
      %s502 = scalar_lea.vmem %s1, %s501
      %s503 = smul.u32 4, %s28
      %s504 = smul.u32 4, %s28
      %p505 = scmp.lt.s32.totalorder %s504, 3
      %s506 = scalar_select %p505, %s504, 3
      %p507 = scmp.lt.s32.totalorder %s27, 0
      %s508 = scalar_select %p507, %s27, 0
      %s509 = sadd.s32 %s508, %s506
      %s510 = smul.addr %s509, 4
      %s511 = scalar_lea.vmem %s2, %s510
      %s512 = smul.u32 4, %s28
      %s513 = smul.u32 4, %s28
      %p514 = scmp.lt.s32.totalorder %s513, 3
      %s515 = scalar_select %p514, %s513, 3
      %p516 = scmp.lt.s32.totalorder %s27, 0
      %s517 = scalar_select %p516, %s27, 0
      %s518 = sadd.s32 %s517, %s515
      %s519 = smul.addr %s518, 4
      %s520 = scalar_lea.vmem %s3, %s519
      %s521 = smul.u32 4, %s28
      %p522 = scmp.lt.s32.totalorder %s27, 0
      %s523 = scalar_select %p522, %s27, 0
      %s524 = scalar_lea.vmem %s4, %s523
      %p525 = scmp.lt.s32.totalorder %s27, 0
      %s526 = scalar_select %p525, %s27, 0
      %s527 = scalar_lea.vmem %s5, %s526
      %p528 = scmp.lt.s32.totalorder %s27, 0
      %s529 = scalar_select %p528, %s27, 0
      %s530 = scalar_lea.vmem %s6, %s529
      %s531 = smul.u32 16, %s26
      %p532 = scmp.lt.s32.totalorder %s531, 31
      %s533 = scalar_select %p532, %s531, 31
      %p534 = scmp.lt.s32.totalorder %s27, 0
      %s535 = scalar_select %p534, %s27, 0
      %s536 = sadd.s32 %s535, %s533
      %s537 = smul.addr %s536, 4
      %s538 = scalar_lea.vmem %s7, %s537
      %s539 = smul.u32 16, %s26
      %s540 = smul.u32 16, %s26
      %p541 = scmp.lt.s32.totalorder %s540, 31
      %s542 = scalar_select %p541, %s540, 31
      %p543 = scmp.lt.s32.totalorder %s27, 0
      %s544 = scalar_select %p543, %s27, 0
      %s545 = sadd.s32 %s544, %s542
      %s546 = smul.addr %s545, 4
      %s547 = scalar_lea.vmem %s8, %s546
      %s548 = smul.u32 16, %s26
      %s549 = smul.u32 16, %s26
      %p550 = scmp.lt.s32.totalorder %s549, 31
      %s551 = scalar_select %p550, %s549, 31
      %p552 = scmp.lt.s32.totalorder %s27, 0
      %s553 = scalar_select %p552, %s27, 0
      %s554 = sadd.s32 %s553, %s551
      %s555 = smul.addr %s554, 4
      %s556 = scalar_lea.vmem %s9, %s555
      %s557 = smul.u32 16, %s26
      %p559 = scmp.eq.s32.totalorder %s28, 0
      // Predicated region
      $region49: #{attention_forward.3} parent=47 // pred_check
        %p560 = pneg %p559
      $region50: #{attention_forward.3} parent=47 // pred_check_branch
        %562 = sbr.rel (%p560) target = $region52
      $region51: #{attention_forward.3} parent=47 // pred_region
        %vm563 = vcmask 261120
        %564 = vst.msk [vmem:[#allocation2] sm:$0xff] %vm563, 0.0
        %565 = vst.msk [vmem:[#allocation2 + $0x8] sm:$0xff] %vm563, 0.0
        %566 = vst.msk [vmem:[#allocation2 + $0x10] sm:$0xff] %vm563, 0.0
        %567 = vst.msk [vmem:[#allocation2 + $0x18] sm:$0xff] %vm563, 0.0
        %568 = vst.msk [vmem:[#allocation2 + $0x20] sm:$0xff] %vm563, 0.0
        %569 = vst.msk [vmem:[#allocation2 + $0x28] sm:$0xff] %vm563, 0.0
        %570 = vst.msk [vmem:[#allocation2 + $0x30] sm:$0xff] %vm563, 0.0
        %571 = vst.msk [vmem:[#allocation2 + $0x38] sm:$0xff] %vm563, 0.0
        %572 = vst.msk [vmem:[#allocation2 + $0x40] sm:$0xff] %vm563, 0.0
        %573 = vst.msk [vmem:[#allocation2 + $0x48] sm:$0xff] %vm563, 0.0
        %574 = vst.msk [vmem:[#allocation2 + $0x50] sm:$0xff] %vm563, 0.0
        %575 = vst.msk [vmem:[#allocation2 + $0x58] sm:$0xff] %vm563, 0.0
        %576 = vst.msk [vmem:[#allocation2 + $0x60] sm:$0xff] %vm563, 0.0
        %577 = vst.msk [vmem:[#allocation2 + $0x68] sm:$0xff] %vm563, 0.0
        %578 = vst.msk [vmem:[#allocation2 + $0x70] sm:$0xff] %vm563, 0.0
        %579 = vst.msk [vmem:[#allocation2 + $0x78] sm:$0xff] %vm563, 0.0
        %580 = vst.msk [vmem:[#allocation3] sm:$0xff] %vm563, 0.0
        %581 = vst.msk [vmem:[#allocation3 + $0x8] sm:$0xff] %vm563, 0.0
        %582 = vst.msk [vmem:[#allocation3 + $0x10] sm:$0xff] %vm563, 0.0
        %583 = vst.msk [vmem:[#allocation3 + $0x18] sm:$0xff] %vm563, 0.0
        %584 = vst.msk [vmem:[#allocation3 + $0x20] sm:$0xff] %vm563, 0.0
        %585 = vst.msk [vmem:[#allocation3 + $0x28] sm:$0xff] %vm563, 0.0
        %586 = vst.msk [vmem:[#allocation3 + $0x30] sm:$0xff] %vm563, 0.0
        %587 = vst.msk [vmem:[#allocation3 + $0x38] sm:$0xff] %vm563, 0.0
        %588 = vst.msk [vmem:[#allocation3 + $0x40] sm:$0xff] %vm563, 0.0
        %589 = vst.msk [vmem:[#allocation3 + $0x48] sm:$0xff] %vm563, 0.0
        %590 = vst.msk [vmem:[#allocation3 + $0x50] sm:$0xff] %vm563, 0.0
        %591 = vst.msk [vmem:[#allocation3 + $0x58] sm:$0xff] %vm563, 0.0
        %592 = vst.msk [vmem:[#allocation3 + $0x60] sm:$0xff] %vm563, 0.0
        %593 = vst.msk [vmem:[#allocation3 + $0x68] sm:$0xff] %vm563, 0.0
        %594 = vst.msk [vmem:[#allocation3 + $0x70] sm:$0xff] %vm563, 0.0
        %595 = vst.msk [vmem:[#allocation3 + $0x78] sm:$0xff] %vm563, 0.0
        %596 = vst.msk [vmem:[#allocation4] sm:$0xff] %vm563, 0.0
        %597 = vst.msk [vmem:[#allocation4 + $0x8] sm:$0xff] %vm563, 0.0
        %598 = vst.msk [vmem:[#allocation4 + $0x10] sm:$0xff] %vm563, 0.0
        %599 = vst.msk [vmem:[#allocation4 + $0x18] sm:$0xff] %vm563, 0.0
        %600 = vst.msk [vmem:[#allocation4 + $0x20] sm:$0xff] %vm563, 0.0
        %601 = vst.msk [vmem:[#allocation4 + $0x28] sm:$0xff] %vm563, 0.0
        %602 = vst.msk [vmem:[#allocation4 + $0x30] sm:$0xff] %vm563, 0.0
        %603 = vst.msk [vmem:[#allocation4 + $0x38] sm:$0xff] %vm563, 0.0
        %604 = vst.msk [vmem:[#allocation4 + $0x40] sm:$0xff] %vm563, 0.0
        %605 = vst.msk [vmem:[#allocation4 + $0x48] sm:$0xff] %vm563, 0.0
        %606 = vst.msk [vmem:[#allocation4 + $0x50] sm:$0xff] %vm563, 0.0
        %607 = vst.msk [vmem:[#allocation4 + $0x58] sm:$0xff] %vm563, 0.0
        %608 = vst.msk [vmem:[#allocation4 + $0x60] sm:$0xff] %vm563, 0.0
        %609 = vst.msk [vmem:[#allocation4 + $0x68] sm:$0xff] %vm563, 0.0
        %610 = vst.msk [vmem:[#allocation4 + $0x70] sm:$0xff] %vm563, 0.0
        %611 = vst.msk [vmem:[#allocation4 + $0x78] sm:$0xff] %vm563, 0.0
      $region52: #{attention_forward.3} parent=47 // pred_fallthru
        _
      %v612 = vld [vmem:[%s493] sm:$0xff]
      %v613 = vld [vmem:[%s493 + $0x8] sm:$0xff]
      %v614 = vld [vmem:[%s493 + $0x10] sm:$0xff]
      %v615 = vld [vmem:[%s493 + $0x18] sm:$0xff]
      %v616 = vld [vmem:[%s493 + $0x20] sm:$0xff]
      %v617 = vld [vmem:[%s493 + $0x28] sm:$0xff]
      %v618 = vld [vmem:[%s493 + $0x30] sm:$0xff]
      %v619 = vld [vmem:[%s493 + $0x38] sm:$0xff]
      %v620 = vld [vmem:[%s493 + $0x40] sm:$0xff]
      %v621 = vld [vmem:[%s493 + $0x48] sm:$0xff]
      %v622 = vld [vmem:[%s493 + $0x50] sm:$0xff]
      %v623 = vld [vmem:[%s493 + $0x58] sm:$0xff]
      %v624 = vld [vmem:[%s493 + $0x60] sm:$0xff]
      %v625 = vld [vmem:[%s493 + $0x68] sm:$0xff]
      %v626 = vld [vmem:[%s493 + $0x70] sm:$0xff]
      %v627 = vld [vmem:[%s493 + $0x78] sm:$0xff]
      %v628 = vpack.c.bf16 %v613, %v612
      %v629 = vpack.c.bf16 %v615, %v614
      %v630 = vpack.c.bf16 %v617, %v616
      %v631 = vpack.c.bf16 %v619, %v618
      %v632 = vpack.c.bf16 %v621, %v620
      %v633 = vpack.c.bf16 %v623, %v622
      %v634 = vpack.c.bf16 %v625, %v624
      %v635 = vpack.c.bf16 %v627, %v626
      %v636 = vld [vmem:[#allocation2] sm:$0xff]
      %v637 = vld [vmem:[#allocation2 + $0x8] sm:$0xff]
      %v638 = vld [vmem:[#allocation2 + $0x10] sm:$0xff]
      %v639 = vld [vmem:[#allocation2 + $0x18] sm:$0xff]
      %v640 = vld [vmem:[#allocation2 + $0x20] sm:$0xff]
      %v641 = vld [vmem:[#allocation2 + $0x28] sm:$0xff]
      %v642 = vld [vmem:[#allocation2 + $0x30] sm:$0xff]
      %v643 = vld [vmem:[#allocation2 + $0x38] sm:$0xff]
      %v644 = vld [vmem:[#allocation2 + $0x40] sm:$0xff]
      %v645 = vld [vmem:[#allocation2 + $0x48] sm:$0xff]
      %v646 = vld [vmem:[#allocation2 + $0x50] sm:$0xff]
      %v647 = vld [vmem:[#allocation2 + $0x58] sm:$0xff]
      %v648 = vld [vmem:[#allocation2 + $0x60] sm:$0xff]
      %v649 = vld [vmem:[#allocation2 + $0x68] sm:$0xff]
      %v650 = vld [vmem:[#allocation2 + $0x70] sm:$0xff]
      %v651 = vld [vmem:[#allocation2 + $0x78] sm:$0xff]
      %v652 = vld [vmem:[%s502] sm:$0xf]
      %v653 = vld [vmem:[%s502 + $0x4] sm:$0xf]
      %v654 = vld [vmem:[%s502 + $0x8] sm:$0xf]
      %v655 = vld [vmem:[%s502 + $0xc] sm:$0xf]
      %v660 = vunpack.c.l.b16 %v652
      %v661 = vunpack.c.l.b16 %v653
      %v662 = vunpack.c.l.b16 %v654
      %v663 = vunpack.c.l.b16 %v655
      %v664 = vpack.c.b16 %v661, %v660
      %v665 = vpack.c.b16 %v663, %v662
      %vm668 = vcmask 261120
      %v670 = vsel %vm668, %v628, 0
      %v673 = vsel %vm668, %v629, 0
      %v676 = vsel %vm668, %v630, 0
      %v679 = vsel %vm668, %v631, 0
      %v682 = vsel %vm668, %v632, 0
      %v685 = vsel %vm668, %v633, 0
      %v688 = vsel %vm668, %v634, 0
      %v691 = vsel %vm668, %v635, 0
      %693 = vmatprep.subr.bf16.mxu0 0
      %694 = vmatpush1.bf16.msra.mxu0 %v664
      %695 = vmatprep.subr.bf16.mxu0 0
      %696 = vmatpush1.bf16.msra.mxu0 %v665
      %697 = vmatprep.subr.bf16.mxu0 0
      %698 = vmatpush1.bf16.msra.mxu0 0
      %699 = vmatprep.subr.bf16.mxu0 0
      %700 = vmatpush1.bf16.msra.mxu0 0
      %701 = vmatprep.subr.bf16.mxu0 0
      %702 = vmatpush1.bf16.msra.mxu0 0
      %703 = vmatprep.subr.bf16.mxu0 0
      %704 = vmatpush1.bf16.msra.mxu0 0
      %705 = vmatprep.subr.bf16.mxu0 0
      %706 = vmatpush1.bf16.msra.mxu0 0
      %707 = vmatprep.subr.bf16.mxu0 0
      %708 = vmatpush1.bf16.msra.mxu0 0
      %709 = vmatprep.subr.bf16.mxu0 0
      %710 = vmatpush1.bf16.msra.mxu0 0
      %711 = vmatprep.subr.bf16.mxu0 0
      %712 = vmatpush1.bf16.msra.mxu0 0
      %713 = vmatprep.subr.bf16.mxu0 0
      %714 = vmatpush1.bf16.msra.mxu0 0
      %715 = vmatprep.subr.bf16.mxu0 0
      %716 = vmatpush1.bf16.msra.mxu0 0
      %717 = vmatprep.subr.bf16.mxu0 0
      %718 = vmatpush1.bf16.msra.mxu0 0
      %719 = vmatprep.subr.bf16.mxu0 0
      %720 = vmatpush1.bf16.msra.mxu0 0
      %721 = vmatprep.subr.bf16.mxu0 0
      %722 = vmatpush1.bf16.msra.mxu0 0
      %723 = vmatprep.subr.bf16.mxu0 0
      %724 = vmatpush1.bf16.msra.mxu0 0
      %725 = vmatprep.mubr.bf16.mxu0 0
      %726 = vmatmul.mubr.bf16.gmra.mrb[0].mxu0 %v670
      %v727 = vpop.f32.mrb[0].mxu0
      %v728 = vadd.f32 0.0, %v727
      %v729 = vpop.f32.mrb[0].mxu0
      %v730 = vpop.f32.mrb[0].mxu0
      %v731 = vadd.f32 0.0, %v730
      %v732 = vpop.f32.mrb[0].mxu0
      %733 = vmatprep.mubr.bf16.mxu0 0
      %734 = vmatmul.mubr.bf16.gmra.mrb[0].mxu0 %v673
      %v735 = vpop.f32.mrb[0].mxu0
      %v736 = vadd.f32 0.0, %v735
      %v737 = vpop.f32.mrb[0].mxu0
      %v738 = vpop.f32.mrb[0].mxu0
      %v739 = vadd.f32 0.0, %v738
      %v740 = vpop.f32.mrb[0].mxu0
      %741 = vmatprep.mubr.bf16.mxu0 0
      %742 = vmatmul.mubr.bf16.gmra.mrb[0].mxu0 %v676
      %v743 = vpop.f32.mrb[0].mxu0
      %v744 = vadd.f32 0.0, %v743
      %v745 = vpop.f32.mrb[0].mxu0
      %v746 = vpop.f32.mrb[0].mxu0
      %v747 = vadd.f32 0.0, %v746
      %v748 = vpop.f32.mrb[0].mxu0
      %749 = vmatprep.mubr.bf16.mxu0 0
      %750 = vmatmul.mubr.bf16.gmra.mrb[0].mxu0 %v679
      %v751 = vpop.f32.mrb[0].mxu0
      %v752 = vadd.f32 0.0, %v751
      %v753 = vpop.f32.mrb[0].mxu0
      %v754 = vpop.f32.mrb[0].mxu0
      %v755 = vadd.f32 0.0, %v754
      %v756 = vpop.f32.mrb[0].mxu0
      %757 = vmatprep.mubr.bf16.mxu0 0
      %758 = vmatmul.mubr.bf16.gmra.mrb[0].mxu0 %v682
      %v759 = vpop.f32.mrb[0].mxu0
      %v760 = vadd.f32 0.0, %v759
      %v761 = vpop.f32.mrb[0].mxu0
      %v762 = vpop.f32.mrb[0].mxu0
      %v763 = vadd.f32 0.0, %v762
      %v764 = vpop.f32.mrb[0].mxu0
      %765 = vmatprep.mubr.bf16.mxu0 0
      %766 = vmatmul.mubr.bf16.gmra.mrb[0].mxu0 %v685
      %v767 = vpop.f32.mrb[0].mxu0
      %v768 = vadd.f32 0.0, %v767
      %v769 = vpop.f32.mrb[0].mxu0
      %v770 = vpop.f32.mrb[0].mxu0
      %v771 = vadd.f32 0.0, %v770
      %v772 = vpop.f32.mrb[0].mxu0
      %773 = vmatprep.mubr.bf16.mxu0 0
      %774 = vmatmul.mubr.bf16.gmra.mrb[0].mxu0 %v688
      %v775 = vpop.f32.mrb[0].mxu0
      %v776 = vadd.f32 0.0, %v775
      %v777 = vpop.f32.mrb[0].mxu0
      %v778 = vpop.f32.mrb[0].mxu0
      %v779 = vadd.f32 0.0, %v778
      %v780 = vpop.f32.mrb[0].mxu0
      %781 = vmatprep.mubr.bf16.mxu0 0
      %782 = vmatmul.mubr.bf16.gmra.mrb[0].mxu0 %v691
      %v783 = vpop.f32.mrb[0].mxu0
      %v784 = vadd.f32 0.0, %v783
      %v785 = vpop.f32.mrb[0].mxu0
      %v786 = vpop.f32.mrb[0].mxu0
      %v787 = vadd.f32 0.0, %v786
      %v788 = vpop.f32.mrb[0].mxu0
      %789 = vdwg.mxu0
      %v790 = vadd.f32 %v636, %v728
      %v791 = vadd.f32 %v637, %v731
      %v792 = vadd.f32 %v638, %v736
      %v793 = vadd.f32 %v639, %v739
      %v794 = vadd.f32 %v640, %v744
      %v795 = vadd.f32 %v641, %v747
      %v796 = vadd.f32 %v642, %v752
      %v797 = vadd.f32 %v643, %v755
      %v798 = vadd.f32 %v644, %v760
      %v799 = vadd.f32 %v645, %v763
      %v800 = vadd.f32 %v646, %v768
      %v801 = vadd.f32 %v647, %v771
      %v802 = vadd.f32 %v648, %v776
      %v803 = vadd.f32 %v649, %v779
      %v804 = vadd.f32 %v650, %v784
      %v805 = vadd.f32 %v651, %v787
      %806 = vst.msk [vmem:[#allocation2] sm:$0xff] %vm668, %v790
      %807 = vst.msk [vmem:[#allocation2 + $0x8] sm:$0xff] %vm668, %v791
      %808 = vst.msk [vmem:[#allocation2 + $0x10] sm:$0xff] %vm668, %v792
      %809 = vst.msk [vmem:[#allocation2 + $0x18] sm:$0xff] %vm668, %v793
      %810 = vst.msk [vmem:[#allocation2 + $0x20] sm:$0xff] %vm668, %v794
      %811 = vst.msk [vmem:[#allocation2 + $0x28] sm:$0xff] %vm668, %v795
      %812 = vst.msk [vmem:[#allocation2 + $0x30] sm:$0xff] %vm668, %v796
      %813 = vst.msk [vmem:[#allocation2 + $0x38] sm:$0xff] %vm668, %v797
      %814 = vst.msk [vmem:[#allocation2 + $0x40] sm:$0xff] %vm668, %v798
      %815 = vst.msk [vmem:[#allocation2 + $0x48] sm:$0xff] %vm668, %v799
      %816 = vst.msk [vmem:[#allocation2 + $0x50] sm:$0xff] %vm668, %v800
      %817 = vst.msk [vmem:[#allocation2 + $0x58] sm:$0xff] %vm668, %v801
      %818 = vst.msk [vmem:[#allocation2 + $0x60] sm:$0xff] %vm668, %v802
      %819 = vst.msk [vmem:[#allocation2 + $0x68] sm:$0xff] %vm668, %v803
      %820 = vst.msk [vmem:[#allocation2 + $0x70] sm:$0xff] %vm668, %v804
      %821 = vst.msk [vmem:[#allocation2 + $0x78] sm:$0xff] %vm668, %v805
      %v822 = vld [vmem:[#allocation3] sm:$0xff]
      %v823 = vld [vmem:[#allocation3 + $0x8] sm:$0xff]
      %v824 = vld [vmem:[#allocation3 + $0x10] sm:$0xff]
      %v825 = vld [vmem:[#allocation3 + $0x18] sm:$0xff]
      %v826 = vld [vmem:[#allocation3 + $0x20] sm:$0xff]
      %v827 = vld [vmem:[#allocation3 + $0x28] sm:$0xff]
      %v828 = vld [vmem:[#allocation3 + $0x30] sm:$0xff]
      %v829 = vld [vmem:[#allocation3 + $0x38] sm:$0xff]
      %v830 = vld [vmem:[#allocation3 + $0x40] sm:$0xff]
      %v831 = vld [vmem:[#allocation3 + $0x48] sm:$0xff]
      %v832 = vld [vmem:[#allocation3 + $0x50] sm:$0xff]
      %v833 = vld [vmem:[#allocation3 + $0x58] sm:$0xff]
      %v834 = vld [vmem:[#allocation3 + $0x60] sm:$0xff]
      %v835 = vld [vmem:[#allocation3 + $0x68] sm:$0xff]
      %v836 = vld [vmem:[#allocation3 + $0x70] sm:$0xff]
      %v837 = vld [vmem:[#allocation3 + $0x78] sm:$0xff]
      %v838 = vld [vmem:[%s511] sm:$0xf]
      %v839 = vld [vmem:[%s511 + $0x4] sm:$0xf]
      %v840 = vld [vmem:[%s511 + $0x8] sm:$0xf]
      %v841 = vld [vmem:[%s511 + $0xc] sm:$0xf]
      %v846 = vunpack.c.l.b16 %v838
      %v847 = vunpack.c.l.b16 %v839
      %v848 = vunpack.c.l.b16 %v840
      %v849 = vunpack.c.l.b16 %v841
      %v850 = vpack.c.b16 %v847, %v846
      %v851 = vpack.c.b16 %v849, %v848
      %854 = vmatprep.subr.bf16.mxu0 0
      %855 = vmatpush1.bf16.msra.mxu0 %v850
      %856 = vmatprep.subr.bf16.mxu0 0
      %857 = vmatpush1.bf16.msra.mxu0 %v851
      %858 = vmatprep.subr.bf16.mxu0 0
      %859 = vmatpush1.bf16.msra.mxu0 0
      %860 = vmatprep.subr.bf16.mxu0 0
      %861 = vmatpush1.bf16.msra.mxu0 0
      %862 = vmatprep.subr.bf16.mxu0 0
      %863 = vmatpush1.bf16.msra.mxu0 0
      %864 = vmatprep.subr.bf16.mxu0 0
      %865 = vmatpush1.bf16.msra.mxu0 0
      %866 = vmatprep.subr.bf16.mxu0 0
      %867 = vmatpush1.bf16.msra.mxu0 0
      %868 = vmatprep.subr.bf16.mxu0 0
      %869 = vmatpush1.bf16.msra.mxu0 0
      %870 = vmatprep.subr.bf16.mxu0 0
      %871 = vmatpush1.bf16.msra.mxu0 0
      %872 = vmatprep.subr.bf16.mxu0 0
      %873 = vmatpush1.bf16.msra.mxu0 0
      %874 = vmatprep.subr.bf16.mxu0 0
      %875 = vmatpush1.bf16.msra.mxu0 0
      %876 = vmatprep.subr.bf16.mxu0 0
      %877 = vmatpush1.bf16.msra.mxu0 0
      %878 = vmatprep.subr.bf16.mxu0 0
      %879 = vmatpush1.bf16.msra.mxu0 0
      %880 = vmatprep.subr.bf16.mxu0 0
      %881 = vmatpush1.bf16.msra.mxu0 0
      %882 = vmatprep.subr.bf16.mxu0 0
      %883 = vmatpush1.bf16.msra.mxu0 0
      %884 = vmatprep.subr.bf16.mxu0 0
      %885 = vmatpush1.bf16.msra.mxu0 0
      %886 = vmatprep.mubr.bf16.mxu0 0
      %887 = vmatmul.mubr.bf16.gmra.mrb[0].mxu0 %v670
      %v888 = vpop.f32.mrb[0].mxu0
      %v889 = vadd.f32 0.0, %v888
      %v890 = vpop.f32.mrb[0].mxu0
      %v891 = vpop.f32.mrb[0].mxu0
      %v892 = vadd.f32 0.0, %v891
      %v893 = vpop.f32.mrb[0].mxu0
      %894 = vmatprep.mubr.bf16.mxu0 0
      %895 = vmatmul.mubr.bf16.gmra.mrb[0].mxu0 %v673
      %v896 = vpop.f32.mrb[0].mxu0
      %v897 = vadd.f32 0.0, %v896
      %v898 = vpop.f32.mrb[0].mxu0
      %v899 = vpop.f32.mrb[0].mxu0
      %v900 = vadd.f32 0.0, %v899
      %v901 = vpop.f32.mrb[0].mxu0
      %902 = vmatprep.mubr.bf16.mxu0 0
      %903 = vmatmul.mubr.bf16.gmra.mrb[0].mxu0 %v676
      %v904 = vpop.f32.mrb[0].mxu0
      %v905 = vadd.f32 0.0, %v904
      %v906 = vpop.f32.mrb[0].mxu0
      %v907 = vpop.f32.mrb[0].mxu0
      %v908 = vadd.f32 0.0, %v907
      %v909 = vpop.f32.mrb[0].mxu0
      %910 = vmatprep.mubr.bf16.mxu0 0
      %911 = vmatmul.mubr.bf16.gmra.mrb[0].mxu0 %v679
      %v912 = vpop.f32.mrb[0].mxu0
      %v913 = vadd.f32 0.0, %v912
      %v914 = vpop.f32.mrb[0].mxu0
      %v915 = vpop.f32.mrb[0].mxu0
      %v916 = vadd.f32 0.0, %v915
      %v917 = vpop.f32.mrb[0].mxu0
      %918 = vmatprep.mubr.bf16.mxu0 0
      %919 = vmatmul.mubr.bf16.gmra.mrb[0].mxu0 %v682
      %v920 = vpop.f32.mrb[0].mxu0
      %v921 = vadd.f32 0.0, %v920
      %v922 = vpop.f32.mrb[0].mxu0
      %v923 = vpop.f32.mrb[0].mxu0
      %v924 = vadd.f32 0.0, %v923
      %v925 = vpop.f32.mrb[0].mxu0
      %926 = vmatprep.mubr.bf16.mxu0 0
      %927 = vmatmul.mubr.bf16.gmra.mrb[0].mxu0 %v685
      %v928 = vpop.f32.mrb[0].mxu0
      %v929 = vadd.f32 0.0, %v928
      %v930 = vpop.f32.mrb[0].mxu0
      %v931 = vpop.f32.mrb[0].mxu0
      %v932 = vadd.f32 0.0, %v931
      %v933 = vpop.f32.mrb[0].mxu0
      %934 = vmatprep.mubr.bf16.mxu0 0
      %935 = vmatmul.mubr.bf16.gmra.mrb[0].mxu0 %v688
      %v936 = vpop.f32.mrb[0].mxu0
      %v937 = vadd.f32 0.0, %v936
      %v938 = vpop.f32.mrb[0].mxu0
      %v939 = vpop.f32.mrb[0].mxu0
      %v940 = vadd.f32 0.0, %v939
      %v941 = vpop.f32.mrb[0].mxu0
      %942 = vmatprep.mubr.bf16.mxu0 0
      %943 = vmatmul.mubr.bf16.gmra.mrb[0].mxu0 %v691
      %v944 = vpop.f32.mrb[0].mxu0
      %v945 = vadd.f32 0.0, %v944
      %v946 = vpop.f32.mrb[0].mxu0
      %v947 = vpop.f32.mrb[0].mxu0
      %v948 = vadd.f32 0.0, %v947
      %v949 = vpop.f32.mrb[0].mxu0
      %950 = vdwg.mxu0
      %v951 = vadd.f32 %v822, %v889
      %v952 = vadd.f32 %v823, %v892
      %v953 = vadd.f32 %v824, %v897
      %v954 = vadd.f32 %v825, %v900
      %v955 = vadd.f32 %v826, %v905
      %v956 = vadd.f32 %v827, %v908
      %v957 = vadd.f32 %v828, %v913
      %v958 = vadd.f32 %v829, %v916
      %v959 = vadd.f32 %v830, %v921
      %v960 = vadd.f32 %v831, %v924
      %v961 = vadd.f32 %v832, %v929
      %v962 = vadd.f32 %v833, %v932
      %v963 = vadd.f32 %v834, %v937
      %v964 = vadd.f32 %v835, %v940
      %v965 = vadd.f32 %v836, %v945
      %v966 = vadd.f32 %v837, %v948
      %967 = vst.msk [vmem:[#allocation3] sm:$0xff] %vm668, %v951
      %968 = vst.msk [vmem:[#allocation3 + $0x8] sm:$0xff] %vm668, %v952
      %969 = vst.msk [vmem:[#allocation3 + $0x10] sm:$0xff] %vm668, %v953
      %970 = vst.msk [vmem:[#allocation3 + $0x18] sm:$0xff] %vm668, %v954
      %971 = vst.msk [vmem:[#allocation3 + $0x20] sm:$0xff] %vm668, %v955
      %972 = vst.msk [vmem:[#allocation3 + $0x28] sm:$0xff] %vm668, %v956
      %973 = vst.msk [vmem:[#allocation3 + $0x30] sm:$0xff] %vm668, %v957
      %974 = vst.msk [vmem:[#allocation3 + $0x38] sm:$0xff] %vm668, %v958
      %975 = vst.msk [vmem:[#allocation3 + $0x40] sm:$0xff] %vm668, %v959
      %976 = vst.msk [vmem:[#allocation3 + $0x48] sm:$0xff] %vm668, %v960
      %977 = vst.msk [vmem:[#allocation3 + $0x50] sm:$0xff] %vm668, %v961
      %978 = vst.msk [vmem:[#allocation3 + $0x58] sm:$0xff] %vm668, %v962
      %979 = vst.msk [vmem:[#allocation3 + $0x60] sm:$0xff] %vm668, %v963
      %980 = vst.msk [vmem:[#allocation3 + $0x68] sm:$0xff] %vm668, %v964
      %981 = vst.msk [vmem:[#allocation3 + $0x70] sm:$0xff] %vm668, %v965
      %982 = vst.msk [vmem:[#allocation3 + $0x78] sm:$0xff] %vm668, %v966
      %v983 = vld [vmem:[#allocation4] sm:$0xff]
      %v984 = vld [vmem:[#allocation4 + $0x8] sm:$0xff]
      %v985 = vld [vmem:[#allocation4 + $0x10] sm:$0xff]
      %v986 = vld [vmem:[#allocation4 + $0x18] sm:$0xff]
      %v987 = vld [vmem:[#allocation4 + $0x20] sm:$0xff]
      %v988 = vld [vmem:[#allocation4 + $0x28] sm:$0xff]
      %v989 = vld [vmem:[#allocation4 + $0x30] sm:$0xff]
      %v990 = vld [vmem:[#allocation4 + $0x38] sm:$0xff]
      %v991 = vld [vmem:[#allocation4 + $0x40] sm:$0xff]
      %v992 = vld [vmem:[#allocation4 + $0x48] sm:$0xff]
      %v993 = vld [vmem:[#allocation4 + $0x50] sm:$0xff]
      %v994 = vld [vmem:[#allocation4 + $0x58] sm:$0xff]
      %v995 = vld [vmem:[#allocation4 + $0x60] sm:$0xff]
      %v996 = vld [vmem:[#allocation4 + $0x68] sm:$0xff]
      %v997 = vld [vmem:[#allocation4 + $0x70] sm:$0xff]
      %v998 = vld [vmem:[#allocation4 + $0x78] sm:$0xff]
      %v999 = vld [vmem:[%s520] sm:$0xf]
      %v1000 = vld [vmem:[%s520 + $0x4] sm:$0xf]
      %v1001 = vld [vmem:[%s520 + $0x8] sm:$0xf]
      %v1002 = vld [vmem:[%s520 + $0xc] sm:$0xf]
      %v1007 = vunpack.c.l.b16 %v999
      %v1008 = vunpack.c.l.b16 %v1000
      %v1009 = vunpack.c.l.b16 %v1001
      %v1010 = vunpack.c.l.b16 %v1002
      %v1011 = vpack.c.b16 %v1008, %v1007
      %v1012 = vpack.c.b16 %v1010, %v1009
      %1015 = vmatprep.subr.bf16.mxu0 0
      %1016 = vmatpush1.bf16.msra.mxu0 %v1011
      %1017 = vmatprep.subr.bf16.mxu0 0
      %1018 = vmatpush1.bf16.msra.mxu0 %v1012
      %1019 = vmatprep.subr.bf16.mxu0 0
      %1020 = vmatpush1.bf16.msra.mxu0 0
      %1021 = vmatprep.subr.bf16.mxu0 0
      %1022 = vmatpush1.bf16.msra.mxu0 0
      %1023 = vmatprep.subr.bf16.mxu0 0
      %1024 = vmatpush1.bf16.msra.mxu0 0
      %1025 = vmatprep.subr.bf16.mxu0 0
      %1026 = vmatpush1.bf16.msra.mxu0 0
      %1027 = vmatprep.subr.bf16.mxu0 0
      %1028 = vmatpush1.bf16.msra.mxu0 0
      %1029 = vmatprep.subr.bf16.mxu0 0
      %1030 = vmatpush1.bf16.msra.mxu0 0
      %1031 = vmatprep.subr.bf16.mxu0 0
      %1032 = vmatpush1.bf16.msra.mxu0 0
      %1033 = vmatprep.subr.bf16.mxu0 0
      %1034 = vmatpush1.bf16.msra.mxu0 0
      %1035 = vmatprep.subr.bf16.mxu0 0
      %1036 = vmatpush1.bf16.msra.mxu0 0
      %1037 = vmatprep.subr.bf16.mxu0 0
      %1038 = vmatpush1.bf16.msra.mxu0 0
      %1039 = vmatprep.subr.bf16.mxu0 0
      %1040 = vmatpush1.bf16.msra.mxu0 0
      %1041 = vmatprep.subr.bf16.mxu0 0
      %1042 = vmatpush1.bf16.msra.mxu0 0
      %1043 = vmatprep.subr.bf16.mxu0 0
      %1044 = vmatpush1.bf16.msra.mxu0 0
      %1045 = vmatprep.subr.bf16.mxu0 0
      %1046 = vmatpush1.bf16.msra.mxu0 0
      %1047 = vmatprep.mubr.bf16.mxu0 0
      %1048 = vmatmul.mubr.bf16.gmra.mrb[0].mxu0 %v670
      %v1049 = vpop.f32.mrb[0].mxu0
      %v1050 = vadd.f32 0.0, %v1049
      %v1051 = vpop.f32.mrb[0].mxu0
      %v1052 = vpop.f32.mrb[0].mxu0
      %v1053 = vadd.f32 0.0, %v1052
      %v1054 = vpop.f32.mrb[0].mxu0
      %1055 = vmatprep.mubr.bf16.mxu0 0
      %1056 = vmatmul.mubr.bf16.gmra.mrb[0].mxu0 %v673
      %v1057 = vpop.f32.mrb[0].mxu0
      %v1058 = vadd.f32 0.0, %v1057
      %v1059 = vpop.f32.mrb[0].mxu0
      %v1060 = vpop.f32.mrb[0].mxu0
      %v1061 = vadd.f32 0.0, %v1060
      %v1062 = vpop.f32.mrb[0].mxu0
      %1063 = vmatprep.mubr.bf16.mxu0 0
      %1064 = vmatmul.mubr.bf16.gmra.mrb[0].mxu0 %v676
      %v1065 = vpop.f32.mrb[0].mxu0
      %v1066 = vadd.f32 0.0, %v1065
      %v1067 = vpop.f32.mrb[0].mxu0
      %v1068 = vpop.f32.mrb[0].mxu0
      %v1069 = vadd.f32 0.0, %v1068
      %v1070 = vpop.f32.mrb[0].mxu0
      %1071 = vmatprep.mubr.bf16.mxu0 0
      %1072 = vmatmul.mubr.bf16.gmra.mrb[0].mxu0 %v679
      %v1073 = vpop.f32.mrb[0].mxu0
      %v1074 = vadd.f32 0.0, %v1073
      %v1075 = vpop.f32.mrb[0].mxu0
      %v1076 = vpop.f32.mrb[0].mxu0
      %v1077 = vadd.f32 0.0, %v1076
      %v1078 = vpop.f32.mrb[0].mxu0
      %1079 = vmatprep.mubr.bf16.mxu0 0
      %1080 = vmatmul.mubr.bf16.gmra.mrb[0].mxu0 %v682
      %v1081 = vpop.f32.mrb[0].mxu0
      %v1082 = vadd.f32 0.0, %v1081
      %v1083 = vpop.f32.mrb[0].mxu0
      %v1084 = vpop.f32.mrb[0].mxu0
      %v1085 = vadd.f32 0.0, %v1084
      %v1086 = vpop.f32.mrb[0].mxu0
      %1087 = vmatprep.mubr.bf16.mxu0 0
      %1088 = vmatmul.mubr.bf16.gmra.mrb[0].mxu0 %v685
      %v1089 = vpop.f32.mrb[0].mxu0
      %v1090 = vadd.f32 0.0, %v1089
      %v1091 = vpop.f32.mrb[0].mxu0
      %v1092 = vpop.f32.mrb[0].mxu0
      %v1093 = vadd.f32 0.0, %v1092
      %v1094 = vpop.f32.mrb[0].mxu0
      %1095 = vmatprep.mubr.bf16.mxu0 0
      %1096 = vmatmul.mubr.bf16.gmra.mrb[0].mxu0 %v688
      %v1097 = vpop.f32.mrb[0].mxu0
      %v1098 = vadd.f32 0.0, %v1097
      %v1099 = vpop.f32.mrb[0].mxu0
      %v1100 = vpop.f32.mrb[0].mxu0
      %v1101 = vadd.f32 0.0, %v1100
      %v1102 = vpop.f32.mrb[0].mxu0
      %1103 = vmatprep.mubr.bf16.mxu0 0
      %1104 = vmatmul.mubr.bf16.gmra.mrb[0].mxu0 %v691
      %v1105 = vpop.f32.mrb[0].mxu0
      %v1106 = vadd.f32 0.0, %v1105
      %v1107 = vpop.f32.mrb[0].mxu0
      %v1108 = vpop.f32.mrb[0].mxu0
      %v1109 = vadd.f32 0.0, %v1108
      %v1110 = vpop.f32.mrb[0].mxu0
      %1111 = vdwg.mxu0
      %v1112 = vadd.f32 %v983, %v1050
      %v1113 = vadd.f32 %v984, %v1053
      %v1114 = vadd.f32 %v985, %v1058
      %v1115 = vadd.f32 %v986, %v1061
      %v1116 = vadd.f32 %v987, %v1066
      %v1117 = vadd.f32 %v988, %v1069
      %v1118 = vadd.f32 %v989, %v1074
      %v1119 = vadd.f32 %v990, %v1077
      %v1120 = vadd.f32 %v991, %v1082
      %v1121 = vadd.f32 %v992, %v1085
      %v1122 = vadd.f32 %v993, %v1090
      %v1123 = vadd.f32 %v994, %v1093
      %v1124 = vadd.f32 %v995, %v1098
      %v1125 = vadd.f32 %v996, %v1101
      %v1126 = vadd.f32 %v997, %v1106
      %v1127 = vadd.f32 %v998, %v1109
      %1128 = vst.msk [vmem:[#allocation4] sm:$0xff] %vm668, %v1112
      %1129 = vst.msk [vmem:[#allocation4 + $0x8] sm:$0xff] %vm668, %v1113
      %1130 = vst.msk [vmem:[#allocation4 + $0x10] sm:$0xff] %vm668, %v1114
      %1131 = vst.msk [vmem:[#allocation4 + $0x18] sm:$0xff] %vm668, %v1115
      %1132 = vst.msk [vmem:[#allocation4 + $0x20] sm:$0xff] %vm668, %v1116
      %1133 = vst.msk [vmem:[#allocation4 + $0x28] sm:$0xff] %vm668, %v1117
      %1134 = vst.msk [vmem:[#allocation4 + $0x30] sm:$0xff] %vm668, %v1118
      %1135 = vst.msk [vmem:[#allocation4 + $0x38] sm:$0xff] %vm668, %v1119
      %1136 = vst.msk [vmem:[#allocation4 + $0x40] sm:$0xff] %vm668, %v1120
      %1137 = vst.msk [vmem:[#allocation4 + $0x48] sm:$0xff] %vm668, %v1121
      %1138 = vst.msk [vmem:[#allocation4 + $0x50] sm:$0xff] %vm668, %v1122
      %1139 = vst.msk [vmem:[#allocation4 + $0x58] sm:$0xff] %vm668, %v1123
      %1140 = vst.msk [vmem:[#allocation4 + $0x60] sm:$0xff] %vm668, %v1124
      %1141 = vst.msk [vmem:[#allocation4 + $0x68] sm:$0xff] %vm668, %v1125
      %1142 = vst.msk [vmem:[#allocation4 + $0x70] sm:$0xff] %vm668, %v1126
      %1143 = vst.msk [vmem:[#allocation4 + $0x78] sm:$0xff] %vm668, %v1127
      // Predicated region
      $region53: #{attention_forward.3} parent=47 // pred_check
        %p1144 = pneg %p559
      $region54: #{attention_forward.3} parent=47 // pred_check_branch
        %1146 = sbr.rel (%p1144) target = $region56
      $region55: #{attention_forward.3} parent=47 // pred_region
        %v1147 = vld [vmem:[#allocation2] sm:$0xff]
        %v1148 = vld [vmem:[#allocation2 + $0x8] sm:$0xff]
        %v1149 = vld [vmem:[#allocation2 + $0x10] sm:$0xff]
        %v1150 = vld [vmem:[#allocation2 + $0x18] sm:$0xff]
        %v1151 = vld [vmem:[#allocation2 + $0x20] sm:$0xff]
        %v1152 = vld [vmem:[#allocation2 + $0x28] sm:$0xff]
        %v1153 = vld [vmem:[#allocation2 + $0x30] sm:$0xff]
        %v1154 = vld [vmem:[#allocation2 + $0x38] sm:$0xff]
        %v1155 = vld [vmem:[#allocation2 + $0x40] sm:$0xff]
        %v1156 = vld [vmem:[#allocation2 + $0x48] sm:$0xff]
        %v1157 = vld [vmem:[#allocation2 + $0x50] sm:$0xff]
        %v1158 = vld [vmem:[#allocation2 + $0x58] sm:$0xff]
        %v1159 = vld [vmem:[#allocation2 + $0x60] sm:$0xff]
        %v1160 = vld [vmem:[#allocation2 + $0x68] sm:$0xff]
        %v1161 = vld [vmem:[#allocation2 + $0x70] sm:$0xff]
        %v1162 = vld [vmem:[#allocation2 + $0x78] sm:$0xff]
        %v1163 = vld [vmem:[%s524] sm:$0x1]
        %v1165 = vlaneseq
        %v1166 = vshrl.u32 %v1165, 7
        %v1167 = vsub.s32 0, %v1166
        %v1168 = vrot.slane %v1163, %v1167
        %v1170 = vadd.f32 %v1147, %v1168
        %v1171 = vadd.f32 %v1148, %v1168
        %v1172 = vadd.f32 %v1149, %v1168
        %v1173 = vadd.f32 %v1150, %v1168
        %v1174 = vadd.f32 %v1151, %v1168
        %v1175 = vadd.f32 %v1152, %v1168
        %v1176 = vadd.f32 %v1153, %v1168
        %v1177 = vadd.f32 %v1154, %v1168
        %v1178 = vadd.f32 %v1155, %v1168
        %v1179 = vadd.f32 %v1156, %v1168
        %v1180 = vadd.f32 %v1157, %v1168
        %v1181 = vadd.f32 %v1158, %v1168
        %v1182 = vadd.f32 %v1159, %v1168
        %v1183 = vadd.f32 %v1160, %v1168
        %v1184 = vadd.f32 %v1161, %v1168
        %v1185 = vadd.f32 %v1162, %v1168
        %v1186 = vpack.c.bf16 %v1171, %v1170
        %v1187 = vpack.c.bf16 %v1173, %v1172
        %v1188 = vpack.c.bf16 %v1175, %v1174
        %v1189 = vpack.c.bf16 %v1177, %v1176
        %v1190 = vpack.c.bf16 %v1179, %v1178
        %v1191 = vpack.c.bf16 %v1181, %v1180
        %v1192 = vpack.c.bf16 %v1183, %v1182
        %v1193 = vpack.c.bf16 %v1185, %v1184
        %v1202 = vunpack.c.l.b16 %v1186
        %v1203 = vunpack.c.h.b16 %v1186
        %v1204 = vunpack.c.l.b16 %v1187
        %v1205 = vunpack.c.h.b16 %v1187
        %v1206 = vunpack.c.l.b16 %v1188
        %v1207 = vunpack.c.h.b16 %v1188
        %v1208 = vunpack.c.l.b16 %v1189
        %v1209 = vunpack.c.h.b16 %v1189
        %v1210 = vunpack.c.l.b16 %v1190
        %v1211 = vunpack.c.h.b16 %v1190
        %v1212 = vunpack.c.l.b16 %v1191
        %v1213 = vunpack.c.h.b16 %v1191
        %v1214 = vunpack.c.l.b16 %v1192
        %v1215 = vunpack.c.h.b16 %v1192
        %v1216 = vunpack.c.l.b16 %v1193
        %v1217 = vunpack.c.h.b16 %v1193
        %v1218 = vpack.c.b16 %v1202, %v1202
        %v1219 = vpack.c.b16 %v1203, %v1203
        %v1220 = vpack.c.b16 %v1204, %v1204
        %v1221 = vpack.c.b16 %v1205, %v1205
        %v1222 = vpack.c.b16 %v1206, %v1206
        %v1223 = vpack.c.b16 %v1207, %v1207
        %v1224 = vpack.c.b16 %v1208, %v1208
        %v1225 = vpack.c.b16 %v1209, %v1209
        %v1226 = vpack.c.b16 %v1210, %v1210
        %v1227 = vpack.c.b16 %v1211, %v1211
        %v1228 = vpack.c.b16 %v1212, %v1212
        %v1229 = vpack.c.b16 %v1213, %v1213
        %v1230 = vpack.c.b16 %v1214, %v1214
        %v1231 = vpack.c.b16 %v1215, %v1215
        %v1232 = vpack.c.b16 %v1216, %v1216
        %v1233 = vpack.c.b16 %v1217, %v1217
        %vm1250 = vcmask 257024
        %1251 = vst.msk [vmem:[%s538] sm:$0xf] %vm1250, %v1218
        %1252 = vst.msk [vmem:[%s538 + $0x4] sm:$0xf] %vm1250, %v1219
        %1253 = vst.msk [vmem:[%s538 + $0x8] sm:$0xf] %vm1250, %v1220
        %1254 = vst.msk [vmem:[%s538 + $0xc] sm:$0xf] %vm1250, %v1221
        %1255 = vst.msk [vmem:[%s538 + $0x10] sm:$0xf] %vm1250, %v1222
        %1256 = vst.msk [vmem:[%s538 + $0x14] sm:$0xf] %vm1250, %v1223
        %1257 = vst.msk [vmem:[%s538 + $0x18] sm:$0xf] %vm1250, %v1224
        %1258 = vst.msk [vmem:[%s538 + $0x1c] sm:$0xf] %vm1250, %v1225
        %1259 = vst.msk [vmem:[%s538 + $0x20] sm:$0xf] %vm1250, %v1226
        %1260 = vst.msk [vmem:[%s538 + $0x24] sm:$0xf] %vm1250, %v1227
        %1261 = vst.msk [vmem:[%s538 + $0x28] sm:$0xf] %vm1250, %v1228
        %1262 = vst.msk [vmem:[%s538 + $0x2c] sm:$0xf] %vm1250, %v1229
        %1263 = vst.msk [vmem:[%s538 + $0x30] sm:$0xf] %vm1250, %v1230
        %1264 = vst.msk [vmem:[%s538 + $0x34] sm:$0xf] %vm1250, %v1231
        %1265 = vst.msk [vmem:[%s538 + $0x38] sm:$0xf] %vm1250, %v1232
        %1266 = vst.msk [vmem:[%s538 + $0x3c] sm:$0xf] %vm1250, %v1233
        %v1267 = vld [vmem:[#allocation3] sm:$0xff]
        %v1268 = vld [vmem:[#allocation3 + $0x8] sm:$0xff]
        %v1269 = vld [vmem:[#allocation3 + $0x10] sm:$0xff]
        %v1270 = vld [vmem:[#allocation3 + $0x18] sm:$0xff]
        %v1271 = vld [vmem:[#allocation3 + $0x20] sm:$0xff]
        %v1272 = vld [vmem:[#allocation3 + $0x28] sm:$0xff]
        %v1273 = vld [vmem:[#allocation3 + $0x30] sm:$0xff]
        %v1274 = vld [vmem:[#allocation3 + $0x38] sm:$0xff]
        %v1275 = vld [vmem:[#allocation3 + $0x40] sm:$0xff]
        %v1276 = vld [vmem:[#allocation3 + $0x48] sm:$0xff]
        %v1277 = vld [vmem:[#allocation3 + $0x50] sm:$0xff]
        %v1278 = vld [vmem:[#allocation3 + $0x58] sm:$0xff]
        %v1279 = vld [vmem:[#allocation3 + $0x60] sm:$0xff]
        %v1280 = vld [vmem:[#allocation3 + $0x68] sm:$0xff]
        %v1281 = vld [vmem:[#allocation3 + $0x70] sm:$0xff]
        %v1282 = vld [vmem:[#allocation3 + $0x78] sm:$0xff]
        %v1283 = vld [vmem:[%s527] sm:$0x1]
        %v1285 = vlaneseq
        %v1286 = vshrl.u32 %v1285, 7
        %v1287 = vsub.s32 0, %v1286
        %v1288 = vrot.slane %v1283, %v1287
        %v1290 = vadd.f32 %v1267, %v1288
        %v1291 = vadd.f32 %v1268, %v1288
        %v1292 = vadd.f32 %v1269, %v1288
        %v1293 = vadd.f32 %v1270, %v1288
        %v1294 = vadd.f32 %v1271, %v1288
        %v1295 = vadd.f32 %v1272, %v1288
        %v1296 = vadd.f32 %v1273, %v1288
        %v1297 = vadd.f32 %v1274, %v1288
        %v1298 = vadd.f32 %v1275, %v1288
        %v1299 = vadd.f32 %v1276, %v1288
        %v1300 = vadd.f32 %v1277, %v1288
        %v1301 = vadd.f32 %v1278, %v1288
        %v1302 = vadd.f32 %v1279, %v1288
        %v1303 = vadd.f32 %v1280, %v1288
        %v1304 = vadd.f32 %v1281, %v1288
        %v1305 = vadd.f32 %v1282, %v1288
        %v1306 = vpack.c.bf16 %v1291, %v1290
        %v1307 = vpack.c.bf16 %v1293, %v1292
        %v1308 = vpack.c.bf16 %v1295, %v1294
        %v1309 = vpack.c.bf16 %v1297, %v1296
        %v1310 = vpack.c.bf16 %v1299, %v1298
        %v1311 = vpack.c.bf16 %v1301, %v1300
        %v1312 = vpack.c.bf16 %v1303, %v1302
        %v1313 = vpack.c.bf16 %v1305, %v1304
        %v1322 = vunpack.c.l.b16 %v1306
        %v1323 = vunpack.c.h.b16 %v1306
        %v1324 = vunpack.c.l.b16 %v1307
        %v1325 = vunpack.c.h.b16 %v1307
        %v1326 = vunpack.c.l.b16 %v1308
        %v1327 = vunpack.c.h.b16 %v1308
        %v1328 = vunpack.c.l.b16 %v1309
        %v1329 = vunpack.c.h.b16 %v1309
        %v1330 = vunpack.c.l.b16 %v1310
        %v1331 = vunpack.c.h.b16 %v1310
        %v1332 = vunpack.c.l.b16 %v1311
        %v1333 = vunpack.c.h.b16 %v1311
        %v1334 = vunpack.c.l.b16 %v1312
        %v1335 = vunpack.c.h.b16 %v1312
        %v1336 = vunpack.c.l.b16 %v1313
        %v1337 = vunpack.c.h.b16 %v1313
        %v1338 = vpack.c.b16 %v1322, %v1322
        %v1339 = vpack.c.b16 %v1323, %v1323
        %v1340 = vpack.c.b16 %v1324, %v1324
        %v1341 = vpack.c.b16 %v1325, %v1325
        %v1342 = vpack.c.b16 %v1326, %v1326
        %v1343 = vpack.c.b16 %v1327, %v1327
        %v1344 = vpack.c.b16 %v1328, %v1328
        %v1345 = vpack.c.b16 %v1329, %v1329
        %v1346 = vpack.c.b16 %v1330, %v1330
        %v1347 = vpack.c.b16 %v1331, %v1331
        %v1348 = vpack.c.b16 %v1332, %v1332
        %v1349 = vpack.c.b16 %v1333, %v1333
        %v1350 = vpack.c.b16 %v1334, %v1334
        %v1351 = vpack.c.b16 %v1335, %v1335
        %v1352 = vpack.c.b16 %v1336, %v1336
        %v1353 = vpack.c.b16 %v1337, %v1337
        %1370 = vst.msk [vmem:[%s547] sm:$0xf] %vm1250, %v1338
        %1371 = vst.msk [vmem:[%s547 + $0x4] sm:$0xf] %vm1250, %v1339
        %1372 = vst.msk [vmem:[%s547 + $0x8] sm:$0xf] %vm1250, %v1340
        %1373 = vst.msk [vmem:[%s547 + $0xc] sm:$0xf] %vm1250, %v1341
        %1374 = vst.msk [vmem:[%s547 + $0x10] sm:$0xf] %vm1250, %v1342
        %1375 = vst.msk [vmem:[%s547 + $0x14] sm:$0xf] %vm1250, %v1343
        %1376 = vst.msk [vmem:[%s547 + $0x18] sm:$0xf] %vm1250, %v1344
        %1377 = vst.msk [vmem:[%s547 + $0x1c] sm:$0xf] %vm1250, %v1345
        %1378 = vst.msk [vmem:[%s547 + $0x20] sm:$0xf] %vm1250, %v1346
        %1379 = vst.msk [vmem:[%s547 + $0x24] sm:$0xf] %vm1250, %v1347
        %1380 = vst.msk [vmem:[%s547 + $0x28] sm:$0xf] %vm1250, %v1348
        %1381 = vst.msk [vmem:[%s547 + $0x2c] sm:$0xf] %vm1250, %v1349
        %1382 = vst.msk [vmem:[%s547 + $0x30] sm:$0xf] %vm1250, %v1350
        %1383 = vst.msk [vmem:[%s547 + $0x34] sm:$0xf] %vm1250, %v1351
        %1384 = vst.msk [vmem:[%s547 + $0x38] sm:$0xf] %vm1250, %v1352
        %1385 = vst.msk [vmem:[%s547 + $0x3c] sm:$0xf] %vm1250, %v1353
        %v1386 = vld [vmem:[#allocation4] sm:$0xff]
        %v1387 = vld [vmem:[#allocation4 + $0x8] sm:$0xff]
        %v1388 = vld [vmem:[#allocation4 + $0x10] sm:$0xff]
        %v1389 = vld [vmem:[#allocation4 + $0x18] sm:$0xff]
        %v1390 = vld [vmem:[#allocation4 + $0x20] sm:$0xff]
        %v1391 = vld [vmem:[#allocation4 + $0x28] sm:$0xff]
        %v1392 = vld [vmem:[#allocation4 + $0x30] sm:$0xff]
        %v1393 = vld [vmem:[#allocation4 + $0x38] sm:$0xff]
        %v1394 = vld [vmem:[#allocation4 + $0x40] sm:$0xff]
        %v1395 = vld [vmem:[#allocation4 + $0x48] sm:$0xff]
        %v1396 = vld [vmem:[#allocation4 + $0x50] sm:$0xff]
        %v1397 = vld [vmem:[#allocation4 + $0x58] sm:$0xff]
        %v1398 = vld [vmem:[#allocation4 + $0x60] sm:$0xff]
        %v1399 = vld [vmem:[#allocation4 + $0x68] sm:$0xff]
        %v1400 = vld [vmem:[#allocation4 + $0x70] sm:$0xff]
        %v1401 = vld [vmem:[#allocation4 + $0x78] sm:$0xff]
        %v1402 = vld [vmem:[%s530] sm:$0x1]
        %v1404 = vlaneseq
        %v1405 = vshrl.u32 %v1404, 7
        %v1406 = vsub.s32 0, %v1405
        %v1407 = vrot.slane %v1402, %v1406
        %v1409 = vadd.f32 %v1386, %v1407
        %v1410 = vadd.f32 %v1387, %v1407
        %v1411 = vadd.f32 %v1388, %v1407
        %v1412 = vadd.f32 %v1389, %v1407
        %v1413 = vadd.f32 %v1390, %v1407
        %v1414 = vadd.f32 %v1391, %v1407
        %v1415 = vadd.f32 %v1392, %v1407
        %v1416 = vadd.f32 %v1393, %v1407
        %v1417 = vadd.f32 %v1394, %v1407
        %v1418 = vadd.f32 %v1395, %v1407
        %v1419 = vadd.f32 %v1396, %v1407
        %v1420 = vadd.f32 %v1397, %v1407
        %v1421 = vadd.f32 %v1398, %v1407
        %v1422 = vadd.f32 %v1399, %v1407
        %v1423 = vadd.f32 %v1400, %v1407
        %v1424 = vadd.f32 %v1401, %v1407
        %v1425 = vpack.c.bf16 %v1410, %v1409
        %v1426 = vpack.c.bf16 %v1412, %v1411
        %v1427 = vpack.c.bf16 %v1414, %v1413
        %v1428 = vpack.c.bf16 %v1416, %v1415
        %v1429 = vpack.c.bf16 %v1418, %v1417
        %v1430 = vpack.c.bf16 %v1420, %v1419
        %v1431 = vpack.c.bf16 %v1422, %v1421
        %v1432 = vpack.c.bf16 %v1424, %v1423
        %v1441 = vunpack.c.l.b16 %v1425
        %v1442 = vunpack.c.h.b16 %v1425
        %v1443 = vunpack.c.l.b16 %v1426
        %v1444 = vunpack.c.h.b16 %v1426
        %v1445 = vunpack.c.l.b16 %v1427
        %v1446 = vunpack.c.h.b16 %v1427
        %v1447 = vunpack.c.l.b16 %v1428
        %v1448 = vunpack.c.h.b16 %v1428
        %v1449 = vunpack.c.l.b16 %v1429
        %v1450 = vunpack.c.h.b16 %v1429
        %v1451 = vunpack.c.l.b16 %v1430
        %v1452 = vunpack.c.h.b16 %v1430
        %v1453 = vunpack.c.l.b16 %v1431
        %v1454 = vunpack.c.h.b16 %v1431
        %v1455 = vunpack.c.l.b16 %v1432
        %v1456 = vunpack.c.h.b16 %v1432
        %v1457 = vpack.c.b16 %v1441, %v1441
        %v1458 = vpack.c.b16 %v1442, %v1442
        %v1459 = vpack.c.b16 %v1443, %v1443
        %v1460 = vpack.c.b16 %v1444, %v1444
        %v1461 = vpack.c.b16 %v1445, %v1445
        %v1462 = vpack.c.b16 %v1446, %v1446
        %v1463 = vpack.c.b16 %v1447, %v1447
        %v1464 = vpack.c.b16 %v1448, %v1448
        %v1465 = vpack.c.b16 %v1449, %v1449
        %v1466 = vpack.c.b16 %v1450, %v1450
        %v1467 = vpack.c.b16 %v1451, %v1451
        %v1468 = vpack.c.b16 %v1452, %v1452
        %v1469 = vpack.c.b16 %v1453, %v1453
        %v1470 = vpack.c.b16 %v1454, %v1454
        %v1471 = vpack.c.b16 %v1455, %v1455
        %v1472 = vpack.c.b16 %v1456, %v1456
        %1489 = vst.msk [vmem:[%s556] sm:$0xf] %vm1250, %v1457
        %1490 = vst.msk [vmem:[%s556 + $0x4] sm:$0xf] %vm1250, %v1458
        %1491 = vst.msk [vmem:[%s556 + $0x8] sm:$0xf] %vm1250, %v1459
        %1492 = vst.msk [vmem:[%s556 + $0xc] sm:$0xf] %vm1250, %v1460
        %1493 = vst.msk [vmem:[%s556 + $0x10] sm:$0xf] %vm1250, %v1461
        %1494 = vst.msk [vmem:[%s556 + $0x14] sm:$0xf] %vm1250, %v1462
        %1495 = vst.msk [vmem:[%s556 + $0x18] sm:$0xf] %vm1250, %v1463
        %1496 = vst.msk [vmem:[%s556 + $0x1c] sm:$0xf] %vm1250, %v1464
        %1497 = vst.msk [vmem:[%s556 + $0x20] sm:$0xf] %vm1250, %v1465
        %1498 = vst.msk [vmem:[%s556 + $0x24] sm:$0xf] %vm1250, %v1466
        %1499 = vst.msk [vmem:[%s556 + $0x28] sm:$0xf] %vm1250, %v1467
        %1500 = vst.msk [vmem:[%s556 + $0x2c] sm:$0xf] %vm1250, %v1468
        %1501 = vst.msk [vmem:[%s556 + $0x30] sm:$0xf] %vm1250, %v1469
        %1502 = vst.msk [vmem:[%s556 + $0x34] sm:$0xf] %vm1250, %v1470
        %1503 = vst.msk [vmem:[%s556 + $0x38] sm:$0xf] %vm1250, %v1471
        %1504 = vst.msk [vmem:[%s556 + $0x3c] sm:$0xf] %vm1250, %v1472
      $region56: #{attention_forward.3} parent=47 // pred_fallthru
        _
      %s1505 = smul.u32 16, %s26
      %p1506 = scmp.lt.s32.totalorder %s1505, 31
      %s1507 = scalar_select %p1506, %s1505, 31
      %p1508 = scmp.lt.s32.totalorder %s27, 0
      %s1509 = scalar_select %p1508, %s27, 0
      %s1510 = sadd.s32 %s1509, %s1507
      %s1511 = smul.addr %s1510, 4
      %s1512 = scalar_lea.vmem %s7, %s1511
      %s1513 = smul.u32 16, %s26
      %p1514 = scmp.lt.s32.totalorder %s1513, 31
      %s1515 = scalar_select %p1514, %s1513, 31
      %p1516 = scmp.lt.s32.totalorder %s27, 0
      %s1517 = scalar_select %p1516, %s27, 0
      %s1518 = sadd.s32 %s1517, %s1515
      %s1519 = smul.addr %s1518, 4
      %s1520 = scalar_lea.vmem %s8, %s1519
      %s1521 = smul.u32 16, %s26
      %p1522 = scmp.lt.s32.totalorder %s1521, 31
      %s1523 = scalar_select %p1522, %s1521, 31
      %p1524 = scmp.lt.s32.totalorder %s27, 0
      %s1525 = scalar_select %p1524, %s27, 0
      %s1526 = sadd.s32 %s1525, %s1523
      %s1527 = smul.addr %s1526, 4
      %s1528 = scalar_lea.vmem %s9, %s1527
      // Predicated region
      $region57: #{attention_forward.3} parent=47 // pred_check
        %p1529 = pneg %p250
      $region58: #{attention_forward.3} parent=47 // pred_check_branch
        %1531 = sbr.rel (%p1529) target = $region60
      $region59: #{attention_forward.3} parent=47 // pred_region
        %s1532 = smul.u32 16, %s26
      $region60: #{attention_forward.3} parent=47 // pred_fallthru
        _
      // Predicated region
      $region61: #{attention_forward.3} parent=47 // pred_check
        %p1533 = pneg %p278
      $region62: #{attention_forward.3} parent=47 // pred_check_branch
        %1535 = sbr.rel (%p1533) target = $region64
      $region63: #{attention_forward.3} parent=47 // pred_region
        %s1536 = smul.u32 16, %s26
      $region64: #{attention_forward.3} parent=47 // pred_fallthru
        _
      // Predicated region
      $region65: #{attention_forward.3} parent=47 // pred_check
        %p1537 = pneg %p306
      $region66: #{attention_forward.3} parent=47 // pred_check_branch
        %1539 = sbr.rel (%p1537) target = $region68
      $region67: #{attention_forward.3} parent=47 // pred_region
        %s1540 = smul.u32 16, %s26
      $region68: #{attention_forward.3} parent=47 // pred_fallthru
        _
    $region48: #{attention_forward.3} parent=5 // pred_fallthru
      _
    %p1541 = scmp.le.s32.totalorder 2, %s16
    // Predicated region
    $region69: #{attention_forward.3} parent=5 // pred_check
      %p1542 = pneg %p1541
    $region70: #{attention_forward.3} parent=5 // pred_check_branch
      %1544 = sbr.rel (%p1542) target = $region72
    $region71: #{attention_forward.3} parent=5 // pred_region
      %s1545 = ssub.s32 %s16, 2
      // Predicated region
      $region73: #{attention_forward.3} parent=71 // pred_check
        %p1546 = pneg %p256
      $region74: #{attention_forward.3} parent=71 // pred_check_branch
        %1548 = sbr.rel (%p1546) target = $region76
      $region75: #{attention_forward.3} parent=71 // pred_region
        %s1549 = smul.u32 16, %s29
        %p1550 = scmp.lt.s32.totalorder %s1549, 31
        %s1551 = scalar_select %p1550, %s1549, 31
        %p1552 = scmp.lt.s32.totalorder %s30, 0
        %s1553 = scalar_select %p1552, %s30, 0
        %s1554 = sadd.s32 %s1553, %s1551
        %s1555 = smul.addr %s1554, 4
        %s1556 = scalar_lea.vmem %s7, %s1555
      $region76: #{attention_forward.3} parent=71 // pred_fallthru
        _
      // Predicated region
      $region77: #{attention_forward.3} parent=71 // pred_check
        %p1557 = pneg %p284
      $region78: #{attention_forward.3} parent=71 // pred_check_branch
        %1559 = sbr.rel (%p1557) target = $region80
      $region79: #{attention_forward.3} parent=71 // pred_region
        %s1560 = smul.u32 16, %s29
        %p1561 = scmp.lt.s32.totalorder %s1560, 31
        %s1562 = scalar_select %p1561, %s1560, 31
        %p1563 = scmp.lt.s32.totalorder %s30, 0
        %s1564 = scalar_select %p1563, %s30, 0
        %s1565 = sadd.s32 %s1564, %s1562
        %s1566 = smul.addr %s1565, 4
        %s1567 = scalar_lea.vmem %s8, %s1566
      $region80: #{attention_forward.3} parent=71 // pred_fallthru
        _
      // Predicated region
      $region81: #{attention_forward.3} parent=71 // pred_check
        %p1568 = pneg %p312
      $region82: #{attention_forward.3} parent=71 // pred_check_branch
        %1570 = sbr.rel (%p1568) target = $region84
      $region83: #{attention_forward.3} parent=71 // pred_region
        %s1571 = smul.u32 16, %s29
        %p1572 = scmp.lt.s32.totalorder %s1571, 31
        %s1573 = scalar_select %p1572, %s1571, 31
        %p1574 = scmp.lt.s32.totalorder %s30, 0
        %s1575 = scalar_select %p1574, %s30, 0
        %s1576 = sadd.s32 %s1575, %s1573
        %s1577 = smul.addr %s1576, 4
        %s1578 = scalar_lea.vmem %s9, %s1577
      $region84: #{attention_forward.3} parent=71 // pred_fallthru
        _
    $region72: #{attention_forward.3} parent=5 // pred_fallthru
      _
  $region6: #{attention_forward.3} parent=0 // loop_footer
    %s20 = sadd.s32 1, %s16
  $region7: #{attention_forward.3} parent=0 // loop_footer_branch
    %15 = sbr.rel target = $region3
  $region8: #{attention_forward.3} parent=0 // loop_exit
    _

// kernel: attention_forward.4
$region0: #{attention_forward.4}
  #allocation0 [shape = 'u32[]', space=smem, size = 0x4, offset = 0x4, fixed_abs, tag = 'smem constant byte address 0x4 - core index']
  #allocation1 [shape = 'u32[144,128]{1,0:T(1,128)}', space=vmem, size = 0x12000, scoped, tag = 'internal scratch']
  #allocation2 [shape = 'f32[4,128,1]{2,1,0:T(8,128)}', space=vmem, size = 0x40000, scoped, tag = 'scratch operand']
  #allocation3 [shape = 'f32[4,128,1]{2,1,0:T(8,128)}', space=vmem, size = 0x40000, scoped, tag = 'scratch operand']
  #allocation4 [shape = 'f32[128,32]{1,0:T(8,128)}', space=vmem, size = 0x10000, scoped, tag = 'scratch operand']
  %s0 = inlined_call_operand.vmem [shape: bf16[256,32], index: 0, kind: input, shape index: {}]
  %s1 = inlined_call_operand.vmem [shape: bf16[256,32], index: 1, kind: input, shape index: {}]
  %s2 = inlined_call_operand.vmem [shape: bf16[256,32], index: 2, kind: input, shape index: {}]
  %s3 = inlined_call_operand.vmem [shape: bf16[256,32], index: 3, kind: output, shape index: {}]
  %s4 = sld [smem:[#allocation0]]
  $region57: #{attention_forward.4} parent=0
    _
  %s6 = ssub.s32 1, %s4
  %s7 = scalar_select 0, %s6, %s4
  loop: start=0, step=1, limit=4
  $region2: #{attention_forward.4} parent=0 // loop_pre_header
    _
  $region3: #{attention_forward.4} parent=0 // loop_header
    %s9 = sphi 0, %s13
    %p10 = scmp.ge.s32.totalorder %s9, 4
    %s16 = sphi 0, %s35
    %s17 = sphi 0, %s31
    %s18 = sphi 0, %s27
    %s19 = sphi 0, %s16
    %s20 = sphi 0, %s17
    %s21 = sphi 0, %s18
    %s22 = sphi 0, %s19
    %s23 = sphi 0, %s20
    %s24 = sphi 0, %s21
    %s40 = sphi 0, %s42
    %s43 = sphi 0, %s40
    %s44 = sphi 0, %s43
    %s60 = sphi 0, %s44
    %s72 = sphi 0, %s74
    %s75 = sphi 0, %s72
    %s76 = sphi 0, %s75
    %s92 = sphi 0, %s76
    %s104 = sphi 0, %s106
    %s107 = sphi 0, %s104
    %s108 = sphi 0, %s107
    %s124 = sphi 0, %s108
    %s132 = sphi 0, %s134
    %s135 = sphi 0, %s132
    %s136 = sphi 0, %s135
    %s152 = sphi 0, %s136
  $region4: #{attention_forward.4} parent=0 // loop_header_branch
    %12 = sbr.rel (%p10) target = $region8
  $region5: #{attention_forward.4} parent=0 // loop_body
    %s14 = ssub.s32 %s9, 1
    %s15 = ssub.s32 %s9, 2
    %s25 = sadd.s32 1, %s18
    %p26 = scmp.ge.s32.totalorder %s25, 1
    %s27 = scalar_select %p26, 0, %s25
    %s28 = sadd.s32 1, %s17
    %s29 = scalar_select %p26, %s28, %s17
    %p30 = scmp.ge.s32.totalorder %s29, 1
    %s31 = scalar_select %p30, 0, %s29
    %s32 = sadd.s32 1, %s16
    %s33 = scalar_select %p30, %s32, %s16
    %p34 = scmp.ge.s32.totalorder %s33, 2
    %s35 = scalar_select %p34, 0, %s33
    %s36 = sadd.s32 %s16, %s17
    %s37 = sadd.s32 %s35, %s31
    %s38 = ssub.s32 %s36, %s37
    %p39 = scmp.eq.s32.totalorder %s38, 0
    %s41 = sadd.s32 %s40, 1
    %s42 = scalar_select %p39, %s40, %s41
    %p45 = pneg %p39
    %p46 = scmp.eq.s32.totalorder %s9, 1
    %p47 = por %p45, %p46
    %p48 = scmp.ne.s32.totalorder %s40, %s43
    %p49 = scmp.eq.s32.totalorder %s9, 0
    %p50 = por %p48, %p49
    %p51 = scmp.ne.s32.totalorder %s40, %s43
    %p52 = scmp.eq.s32.totalorder %s14, 1
    %p53 = por %p51, %p52
    %p54 = scmp.ne.s32.totalorder %s43, %s44
    %p55 = scmp.eq.s32.totalorder %s14, 0
    %p56 = por %p54, %p55
    %p57 = scmp.ne.s32.totalorder %s43, %s44
    %p58 = scmp.eq.s32.totalorder %s15, 1
    %p59 = por %p57, %p58
    %p61 = scmp.ne.s32.totalorder %s44, %s60
    %p62 = scmp.eq.s32.totalorder %s15, 0
    %p63 = por %p61, %p62
    %p64 = scmp.lt.s32.totalorder %s18, %s17
    %s65 = scalar_select %p64, %s18, %s17
    %s66 = sadd.s32 %s16, %s65
    %p67 = scmp.lt.s32.totalorder %s27, %s31
    %s68 = scalar_select %p67, %s27, %s31
    %s69 = sadd.s32 %s35, %s68
    %s70 = ssub.s32 %s66, %s69
    %p71 = scmp.eq.s32.totalorder %s70, 0
    %s73 = sadd.s32 %s72, 1
    %s74 = scalar_select %p71, %s72, %s73
    %p77 = pneg %p71
    %p78 = scmp.eq.s32.totalorder %s9, 1
    %p79 = por %p77, %p78
    %p80 = scmp.ne.s32.totalorder %s72, %s75
    %p81 = scmp.eq.s32.totalorder %s9, 0
    %p82 = por %p80, %p81
    %p83 = scmp.ne.s32.totalorder %s72, %s75
    %p84 = scmp.eq.s32.totalorder %s14, 1
    %p85 = por %p83, %p84
    %p86 = scmp.ne.s32.totalorder %s75, %s76
    %p87 = scmp.eq.s32.totalorder %s14, 0
    %p88 = por %p86, %p87
    %p89 = scmp.ne.s32.totalorder %s75, %s76
    %p90 = scmp.eq.s32.totalorder %s15, 1
    %p91 = por %p89, %p90
    %p93 = scmp.ne.s32.totalorder %s76, %s92
    %p94 = scmp.eq.s32.totalorder %s15, 0
    %p95 = por %p93, %p94
    %p96 = scmp.lt.s32.totalorder %s18, %s17
    %s97 = scalar_select %p96, %s18, %s17
    %s98 = sadd.s32 %s16, %s97
    %p99 = scmp.lt.s32.totalorder %s27, %s31
    %s100 = scalar_select %p99, %s27, %s31
    %s101 = sadd.s32 %s35, %s100
    %s102 = ssub.s32 %s98, %s101
    %p103 = scmp.eq.s32.totalorder %s102, 0
    %s105 = sadd.s32 %s104, 1
    %s106 = scalar_select %p103, %s104, %s105
    %p109 = pneg %p103
    %p110 = scmp.eq.s32.totalorder %s9, 1
    %p111 = por %p109, %p110
    %p112 = scmp.ne.s32.totalorder %s104, %s107
    %p113 = scmp.eq.s32.totalorder %s9, 0
    %p114 = por %p112, %p113
    %p115 = scmp.ne.s32.totalorder %s104, %s107
    %p116 = scmp.eq.s32.totalorder %s14, 1
    %p117 = por %p115, %p116
    %p118 = scmp.ne.s32.totalorder %s107, %s108
    %p119 = scmp.eq.s32.totalorder %s14, 0
    %p120 = por %p118, %p119
    %p121 = scmp.ne.s32.totalorder %s107, %s108
    %p122 = scmp.eq.s32.totalorder %s15, 1
    %p123 = por %p121, %p122
    %p125 = scmp.ne.s32.totalorder %s108, %s124
    %p126 = scmp.eq.s32.totalorder %s15, 0
    %p127 = por %p125, %p126
    %s128 = sadd.s32 %s16, %s17
    %s129 = sadd.s32 %s35, %s31
    %s130 = ssub.s32 %s128, %s129
    %p131 = scmp.eq.s32.totalorder %s130, 0
    %s133 = sadd.s32 %s132, 1
    %s134 = scalar_select %p131, %s132, %s133
    %p137 = pneg %p131
    %p138 = scmp.eq.s32.totalorder %s9, 1
    %p139 = por %p137, %p138
    %p140 = scmp.ne.s32.totalorder %s132, %s135
    %p141 = scmp.eq.s32.totalorder %s9, 0
    %p142 = por %p140, %p141
    %p143 = scmp.ne.s32.totalorder %s132, %s135
    %p144 = scmp.eq.s32.totalorder %s14, 1
    %p145 = por %p143, %p144
    %p146 = scmp.ne.s32.totalorder %s135, %s136
    %p147 = scmp.eq.s32.totalorder %s14, 0
    %p148 = por %p146, %p147
    %p149 = scmp.ne.s32.totalorder %s135, %s136
    %p150 = scmp.eq.s32.totalorder %s15, 1
    %p151 = por %p149, %p150
    %p153 = scmp.ne.s32.totalorder %s136, %s152
    %p154 = scmp.eq.s32.totalorder %s15, 0
    %p155 = por %p153, %p154
    %p156 = scmp.le.s32.totalorder 1, %s9
    %p157 = scmp.lt.s32.totalorder %s9, 3
    %p158 = pnand %p156, %p157
    %p159 = pneg %p158
    // Predicated region
    $region9: #{attention_forward.4} parent=5 // pred_check
      _
    $region10: #{attention_forward.4} parent=5 // pred_check_branch
      %161 = sbr.rel (%p158) target = $region12
    $region11: #{attention_forward.4} parent=5 // pred_region
      %s162 = ssub.s32 %s9, 1
    $region12: #{attention_forward.4} parent=5 // pred_fallthru
      _
    %p163 = scmp.lt.s32.totalorder %s9, 2
    // Predicated region
    $region13: #{attention_forward.4} parent=5 // pred_check
      %p164 = pneg %p163
    $region14: #{attention_forward.4} parent=5 // pred_check_branch
      %166 = sbr.rel (%p164) target = $region16
    $region15: #{attention_forward.4} parent=5 // pred_region
      // Predicated region
      $region17: #{attention_forward.4} parent=15 // pred_check
        %p167 = pneg %p50
      $region18: #{attention_forward.4} parent=15 // pred_check_branch
        %169 = sbr.rel (%p167) target = $region20
      $region19: #{attention_forward.4} parent=15 // pred_region
        %s170 = sadd.s32 %s16, %s17
        %s171 = smul.u32 16, %s170
        %p172 = scmp.lt.s32.totalorder %s171, 31
        %s173 = scalar_select %p172, %s171, 31
        %s174 = smul.addr %s173, 4
        %s175 = scalar_lea.vmem %s0, %s174
        %s176 = sadd.s32 %s16, %s17
        %s177 = smul.u32 16, %s176
      $region20: #{attention_forward.4} parent=15 // pred_fallthru
        _
      // Predicated region
      $region21: #{attention_forward.4} parent=15 // pred_check
        %p178 = pneg %p82
      $region22: #{attention_forward.4} parent=15 // pred_check_branch
        %180 = sbr.rel (%p178) target = $region24
      $region23: #{attention_forward.4} parent=15 // pred_region
        %p181 = scmp.lt.s32.totalorder %s18, %s17
        %s182 = scalar_select %p181, %s18, %s17
        %s183 = sadd.s32 %s16, %s182
        %s184 = smul.u32 16, %s183
        %p185 = scmp.lt.s32.totalorder %s184, 31
        %s186 = scalar_select %p185, %s184, 31
        %s187 = smul.addr %s186, 4
        %s188 = scalar_lea.vmem %s1, %s187
        %p189 = scmp.lt.s32.totalorder %s18, %s17
        %s190 = scalar_select %p189, %s18, %s17
        %s191 = sadd.s32 %s16, %s190
        %s192 = smul.u32 16, %s191
      $region24: #{attention_forward.4} parent=15 // pred_fallthru
        _
      // Predicated region
      $region25: #{attention_forward.4} parent=15 // pred_check
        %p193 = pneg %p114
      $region26: #{attention_forward.4} parent=15 // pred_check_branch
        %195 = sbr.rel (%p193) target = $region28
      $region27: #{attention_forward.4} parent=15 // pred_region
        %p196 = scmp.lt.s32.totalorder %s18, %s17
        %s197 = scalar_select %p196, %s18, %s17
        %s198 = sadd.s32 %s16, %s197
        %s199 = smul.u32 16, %s198
        %p200 = scmp.lt.s32.totalorder %s199, 31
        %s201 = scalar_select %p200, %s199, 31
        %s202 = smul.addr %s201, 4
        %s203 = scalar_lea.vmem %s2, %s202
        %p204 = scmp.lt.s32.totalorder %s18, %s17
        %s205 = scalar_select %p204, %s18, %s17
        %s206 = sadd.s32 %s16, %s205
        %s207 = smul.u32 16, %s206
      $region28: #{attention_forward.4} parent=15 // pred_fallthru
        _
    $region16: #{attention_forward.4} parent=5 // pred_fallthru
      _
    %p208 = scmp.le.s32.totalorder 1, %s9
    %p209 = scmp.lt.s32.totalorder %s9, 3
    %p210 = pnand %p208, %p209
    %p211 = pneg %p210
    // Predicated region
    $region29: #{attention_forward.4} parent=5 // pred_check
      _
    $region30: #{attention_forward.4} parent=5 // pred_check_branch
      %213 = sbr.rel (%p210) target = $region32
    $region31: #{attention_forward.4} parent=5 // pred_region
      %s214 = ssub.s32 %s9, 1
      %s215 = sadd.s32 %s19, %s20
      %s216 = smul.u32 16, %s215
      %p217 = scmp.lt.s32.totalorder %s216, 31
      %s218 = scalar_select %p217, %s216, 31
      %s219 = smul.addr %s218, 4
      %s220 = scalar_lea.vmem %s0, %s219
      %p221 = pneg %p56
      %p222 = pneg %p53
      %p223 = scmp.lt.s32.totalorder %s21, %s20
      %s224 = scalar_select %p223, %s21, %s20
      %s225 = sadd.s32 %s19, %s224
      %s226 = smul.u32 16, %s225
      %p227 = scmp.lt.s32.totalorder %s226, 31
      %s228 = scalar_select %p227, %s226, 31
      %s229 = smul.addr %s228, 4
      %s230 = scalar_lea.vmem %s1, %s229
      %p231 = pneg %p88
      %p232 = pneg %p85
      %p233 = scmp.lt.s32.totalorder %s21, %s20
      %s234 = scalar_select %p233, %s21, %s20
      %s235 = sadd.s32 %s19, %s234
      %s236 = smul.u32 16, %s235
      %p237 = scmp.lt.s32.totalorder %s236, 31
      %s238 = scalar_select %p237, %s236, 31
      %s239 = smul.addr %s238, 4
      %s240 = scalar_lea.vmem %s2, %s239
      %p241 = pneg %p120
      %p242 = pneg %p117
      %p243 = pneg %p148
      %p244 = pneg %p145
      %s245 = sadd.s32 %s19, %s20
      %s246 = smul.u32 16, %s245
      %p247 = scmp.lt.s32.totalorder %s246, 31
      %s248 = scalar_select %p247, %s246, 31
      %s249 = smul.addr %s248, 4
      %s250 = scalar_lea.vmem %s3, %s249
      %s251 = sadd.s32 %s19, %s20
      %s252 = smul.u32 16, %s251
      %p253 = scmp.lt.s32.totalorder %s252, 31
      %s254 = scalar_select %p253, %s252, 31
      %s255 = smul.addr %s254, 4
      %s256 = scalar_lea.vmem %s0, %s255
      %s257 = sadd.s32 %s19, %s20
      %s258 = smul.u32 16, %s257
      %p259 = scmp.lt.s32.totalorder %s21, %s20
      %s260 = scalar_select %p259, %s21, %s20
      %s261 = sadd.s32 %s19, %s260
      %s262 = smul.u32 16, %s261
      %p263 = scmp.lt.s32.totalorder %s262, 31
      %s264 = scalar_select %p263, %s262, 31
      %s265 = smul.addr %s264, 4
      %s266 = scalar_lea.vmem %s1, %s265
      %p267 = scmp.lt.s32.totalorder %s21, %s20
      %s268 = scalar_select %p267, %s21, %s20
      %s269 = sadd.s32 %s19, %s268
      %s270 = smul.u32 16, %s269
      %p271 = scmp.lt.s32.totalorder %s21, %s20
      %s272 = scalar_select %p271, %s21, %s20
      %s273 = sadd.s32 %s19, %s272
      %s274 = smul.u32 16, %s273
      %p275 = scmp.lt.s32.totalorder %s274, 31
      %s276 = scalar_select %p275, %s274, 31
      %s277 = smul.addr %s276, 4
      %s278 = scalar_lea.vmem %s2, %s277
      %p279 = scmp.lt.s32.totalorder %s21, %s20
      %s280 = scalar_select %p279, %s21, %s20
      %s281 = sadd.s32 %s19, %s280
      %s282 = smul.u32 16, %s281
      %s283 = sadd.s32 %s19, %s20
      %s284 = smul.u32 16, %s283
      %p285 = scmp.lt.s32.totalorder %s284, 31
      %s286 = scalar_select %p285, %s284, 31
      %s287 = smul.addr %s286, 4
      %s288 = scalar_lea.vmem %s3, %s287
      %s289 = sadd.s32 %s19, %s20
      %s290 = smul.u32 16, %s289
      %s292 = smul.u32 %s20, 128
      %s293 = smul.u32 %s21, 128
      %p294 = scmp.eq.s32.totalorder %s21, 0
      // Predicated region
      $region33: #{attention_forward.4} parent=31 // pred_check
        %p295 = pneg %p294
      $region34: #{attention_forward.4} parent=31 // pred_check_branch
        %297 = sbr.rel (%p295) target = $region36
      $region35: #{attention_forward.4} parent=31 // pred_region
        %vm298 = vcmask 7168
        %299 = vst.msk [vmem:[#allocation2] sm:$0xff] %vm298, -inf
        %300 = vst.msk [vmem:[#allocation2 + $0x8] sm:$0xff] %vm298, -inf
        %301 = vst.msk [vmem:[#allocation2 + $0x10] sm:$0xff] %vm298, -inf
        %302 = vst.msk [vmem:[#allocation2 + $0x18] sm:$0xff] %vm298, -inf
        %303 = vst.msk [vmem:[#allocation2 + $0x20] sm:$0xff] %vm298, -inf
        %304 = vst.msk [vmem:[#allocation2 + $0x28] sm:$0xff] %vm298, -inf
        %305 = vst.msk [vmem:[#allocation2 + $0x30] sm:$0xff] %vm298, -inf
        %306 = vst.msk [vmem:[#allocation2 + $0x38] sm:$0xff] %vm298, -inf
        %307 = vst.msk [vmem:[#allocation2 + $0x40] sm:$0xff] %vm298, -inf
        %308 = vst.msk [vmem:[#allocation2 + $0x48] sm:$0xff] %vm298, -inf
        %309 = vst.msk [vmem:[#allocation2 + $0x50] sm:$0xff] %vm298, -inf
        %310 = vst.msk [vmem:[#allocation2 + $0x58] sm:$0xff] %vm298, -inf
        %311 = vst.msk [vmem:[#allocation2 + $0x60] sm:$0xff] %vm298, -inf
        %312 = vst.msk [vmem:[#allocation2 + $0x68] sm:$0xff] %vm298, -inf
        %313 = vst.msk [vmem:[#allocation2 + $0x70] sm:$0xff] %vm298, -inf
        %314 = vst.msk [vmem:[#allocation2 + $0x78] sm:$0xff] %vm298, -inf
        %315 = vst.msk [vmem:[#allocation2 + $0x80] sm:$0xff] %vm298, -inf
        %316 = vst.msk [vmem:[#allocation2 + $0x88] sm:$0xff] %vm298, -inf
        %317 = vst.msk [vmem:[#allocation2 + $0x90] sm:$0xff] %vm298, -inf
        %318 = vst.msk [vmem:[#allocation2 + $0x98] sm:$0xff] %vm298, -inf
        %319 = vst.msk [vmem:[#allocation2 + $0xa0] sm:$0xff] %vm298, -inf
        %320 = vst.msk [vmem:[#allocation2 + $0xa8] sm:$0xff] %vm298, -inf
        %321 = vst.msk [vmem:[#allocation2 + $0xb0] sm:$0xff] %vm298, -inf
        %322 = vst.msk [vmem:[#allocation2 + $0xb8] sm:$0xff] %vm298, -inf
        %323 = vst.msk [vmem:[#allocation2 + $0xc0] sm:$0xff] %vm298, -inf
        %324 = vst.msk [vmem:[#allocation2 + $0xc8] sm:$0xff] %vm298, -inf
        %325 = vst.msk [vmem:[#allocation2 + $0xd0] sm:$0xff] %vm298, -inf
        %326 = vst.msk [vmem:[#allocation2 + $0xd8] sm:$0xff] %vm298, -inf
        %327 = vst.msk [vmem:[#allocation2 + $0xe0] sm:$0xff] %vm298, -inf
        %328 = vst.msk [vmem:[#allocation2 + $0xe8] sm:$0xff] %vm298, -inf
        %329 = vst.msk [vmem:[#allocation2 + $0xf0] sm:$0xff] %vm298, -inf
        %330 = vst.msk [vmem:[#allocation2 + $0xf8] sm:$0xff] %vm298, -inf
        %331 = vst.msk [vmem:[#allocation2 + $0x100] sm:$0xff] %vm298, -inf
        %332 = vst.msk [vmem:[#allocation2 + $0x108] sm:$0xff] %vm298, -inf
        %333 = vst.msk [vmem:[#allocation2 + $0x110] sm:$0xff] %vm298, -inf
        %334 = vst.msk [vmem:[#allocation2 + $0x118] sm:$0xff] %vm298, -inf
        %335 = vst.msk [vmem:[#allocation2 + $0x120] sm:$0xff] %vm298, -inf
        %336 = vst.msk [vmem:[#allocation2 + $0x128] sm:$0xff] %vm298, -inf
        %337 = vst.msk [vmem:[#allocation2 + $0x130] sm:$0xff] %vm298, -inf
        %338 = vst.msk [vmem:[#allocation2 + $0x138] sm:$0xff] %vm298, -inf
        %339 = vst.msk [vmem:[#allocation2 + $0x140] sm:$0xff] %vm298, -inf
        %340 = vst.msk [vmem:[#allocation2 + $0x148] sm:$0xff] %vm298, -inf
        %341 = vst.msk [vmem:[#allocation2 + $0x150] sm:$0xff] %vm298, -inf
        %342 = vst.msk [vmem:[#allocation2 + $0x158] sm:$0xff] %vm298, -inf
        %343 = vst.msk [vmem:[#allocation2 + $0x160] sm:$0xff] %vm298, -inf
        %344 = vst.msk [vmem:[#allocation2 + $0x168] sm:$0xff] %vm298, -inf
        %345 = vst.msk [vmem:[#allocation2 + $0x170] sm:$0xff] %vm298, -inf
        %346 = vst.msk [vmem:[#allocation2 + $0x178] sm:$0xff] %vm298, -inf
        %347 = vst.msk [vmem:[#allocation2 + $0x180] sm:$0xff] %vm298, -inf
        %348 = vst.msk [vmem:[#allocation2 + $0x188] sm:$0xff] %vm298, -inf
        %349 = vst.msk [vmem:[#allocation2 + $0x190] sm:$0xff] %vm298, -inf
        %350 = vst.msk [vmem:[#allocation2 + $0x198] sm:$0xff] %vm298, -inf
        %351 = vst.msk [vmem:[#allocation2 + $0x1a0] sm:$0xff] %vm298, -inf
        %352 = vst.msk [vmem:[#allocation2 + $0x1a8] sm:$0xff] %vm298, -inf
        %353 = vst.msk [vmem:[#allocation2 + $0x1b0] sm:$0xff] %vm298, -inf
        %354 = vst.msk [vmem:[#allocation2 + $0x1b8] sm:$0xff] %vm298, -inf
        %355 = vst.msk [vmem:[#allocation2 + $0x1c0] sm:$0xff] %vm298, -inf
        %356 = vst.msk [vmem:[#allocation2 + $0x1c8] sm:$0xff] %vm298, -inf
        %357 = vst.msk [vmem:[#allocation2 + $0x1d0] sm:$0xff] %vm298, -inf
        %358 = vst.msk [vmem:[#allocation2 + $0x1d8] sm:$0xff] %vm298, -inf
        %359 = vst.msk [vmem:[#allocation2 + $0x1e0] sm:$0xff] %vm298, -inf
        %360 = vst.msk [vmem:[#allocation2 + $0x1e8] sm:$0xff] %vm298, -inf
        %361 = vst.msk [vmem:[#allocation2 + $0x1f0] sm:$0xff] %vm298, -inf
        %362 = vst.msk [vmem:[#allocation2 + $0x1f8] sm:$0xff] %vm298, -inf
        %363 = vst.msk [vmem:[#allocation3] sm:$0xff] %vm298, 0.0
        %364 = vst.msk [vmem:[#allocation3 + $0x8] sm:$0xff] %vm298, 0.0
        %365 = vst.msk [vmem:[#allocation3 + $0x10] sm:$0xff] %vm298, 0.0
        %366 = vst.msk [vmem:[#allocation3 + $0x18] sm:$0xff] %vm298, 0.0
        %367 = vst.msk [vmem:[#allocation3 + $0x20] sm:$0xff] %vm298, 0.0
        %368 = vst.msk [vmem:[#allocation3 + $0x28] sm:$0xff] %vm298, 0.0
        %369 = vst.msk [vmem:[#allocation3 + $0x30] sm:$0xff] %vm298, 0.0
        %370 = vst.msk [vmem:[#allocation3 + $0x38] sm:$0xff] %vm298, 0.0
        %371 = vst.msk [vmem:[#allocation3 + $0x40] sm:$0xff] %vm298, 0.0
        %372 = vst.msk [vmem:[#allocation3 + $0x48] sm:$0xff] %vm298, 0.0
        %373 = vst.msk [vmem:[#allocation3 + $0x50] sm:$0xff] %vm298, 0.0
        %374 = vst.msk [vmem:[#allocation3 + $0x58] sm:$0xff] %vm298, 0.0
        %375 = vst.msk [vmem:[#allocation3 + $0x60] sm:$0xff] %vm298, 0.0
        %376 = vst.msk [vmem:[#allocation3 + $0x68] sm:$0xff] %vm298, 0.0
        %377 = vst.msk [vmem:[#allocation3 + $0x70] sm:$0xff] %vm298, 0.0
        %378 = vst.msk [vmem:[#allocation3 + $0x78] sm:$0xff] %vm298, 0.0
        %379 = vst.msk [vmem:[#allocation3 + $0x80] sm:$0xff] %vm298, 0.0
        %380 = vst.msk [vmem:[#allocation3 + $0x88] sm:$0xff] %vm298, 0.0
        %381 = vst.msk [vmem:[#allocation3 + $0x90] sm:$0xff] %vm298, 0.0
        %382 = vst.msk [vmem:[#allocation3 + $0x98] sm:$0xff] %vm298, 0.0
        %383 = vst.msk [vmem:[#allocation3 + $0xa0] sm:$0xff] %vm298, 0.0
        %384 = vst.msk [vmem:[#allocation3 + $0xa8] sm:$0xff] %vm298, 0.0
        %385 = vst.msk [vmem:[#allocation3 + $0xb0] sm:$0xff] %vm298, 0.0
        %386 = vst.msk [vmem:[#allocation3 + $0xb8] sm:$0xff] %vm298, 0.0
        %387 = vst.msk [vmem:[#allocation3 + $0xc0] sm:$0xff] %vm298, 0.0
        %388 = vst.msk [vmem:[#allocation3 + $0xc8] sm:$0xff] %vm298, 0.0
        %389 = vst.msk [vmem:[#allocation3 + $0xd0] sm:$0xff] %vm298, 0.0
        %390 = vst.msk [vmem:[#allocation3 + $0xd8] sm:$0xff] %vm298, 0.0
        %391 = vst.msk [vmem:[#allocation3 + $0xe0] sm:$0xff] %vm298, 0.0
        %392 = vst.msk [vmem:[#allocation3 + $0xe8] sm:$0xff] %vm298, 0.0
        %393 = vst.msk [vmem:[#allocation3 + $0xf0] sm:$0xff] %vm298, 0.0
        %394 = vst.msk [vmem:[#allocation3 + $0xf8] sm:$0xff] %vm298, 0.0
        %395 = vst.msk [vmem:[#allocation3 + $0x100] sm:$0xff] %vm298, 0.0
        %396 = vst.msk [vmem:[#allocation3 + $0x108] sm:$0xff] %vm298, 0.0
        %397 = vst.msk [vmem:[#allocation3 + $0x110] sm:$0xff] %vm298, 0.0
        %398 = vst.msk [vmem:[#allocation3 + $0x118] sm:$0xff] %vm298, 0.0
        %399 = vst.msk [vmem:[#allocation3 + $0x120] sm:$0xff] %vm298, 0.0
        %400 = vst.msk [vmem:[#allocation3 + $0x128] sm:$0xff] %vm298, 0.0
        %401 = vst.msk [vmem:[#allocation3 + $0x130] sm:$0xff] %vm298, 0.0
        %402 = vst.msk [vmem:[#allocation3 + $0x138] sm:$0xff] %vm298, 0.0
        %403 = vst.msk [vmem:[#allocation3 + $0x140] sm:$0xff] %vm298, 0.0
        %404 = vst.msk [vmem:[#allocation3 + $0x148] sm:$0xff] %vm298, 0.0
        %405 = vst.msk [vmem:[#allocation3 + $0x150] sm:$0xff] %vm298, 0.0
        %406 = vst.msk [vmem:[#allocation3 + $0x158] sm:$0xff] %vm298, 0.0
        %407 = vst.msk [vmem:[#allocation3 + $0x160] sm:$0xff] %vm298, 0.0
        %408 = vst.msk [vmem:[#allocation3 + $0x168] sm:$0xff] %vm298, 0.0
        %409 = vst.msk [vmem:[#allocation3 + $0x170] sm:$0xff] %vm298, 0.0
        %410 = vst.msk [vmem:[#allocation3 + $0x178] sm:$0xff] %vm298, 0.0
        %411 = vst.msk [vmem:[#allocation3 + $0x180] sm:$0xff] %vm298, 0.0
        %412 = vst.msk [vmem:[#allocation3 + $0x188] sm:$0xff] %vm298, 0.0
        %413 = vst.msk [vmem:[#allocation3 + $0x190] sm:$0xff] %vm298, 0.0
        %414 = vst.msk [vmem:[#allocation3 + $0x198] sm:$0xff] %vm298, 0.0
        %415 = vst.msk [vmem:[#allocation3 + $0x1a0] sm:$0xff] %vm298, 0.0
        %416 = vst.msk [vmem:[#allocation3 + $0x1a8] sm:$0xff] %vm298, 0.0
        %417 = vst.msk [vmem:[#allocation3 + $0x1b0] sm:$0xff] %vm298, 0.0
        %418 = vst.msk [vmem:[#allocation3 + $0x1b8] sm:$0xff] %vm298, 0.0
        %419 = vst.msk [vmem:[#allocation3 + $0x1c0] sm:$0xff] %vm298, 0.0
        %420 = vst.msk [vmem:[#allocation3 + $0x1c8] sm:$0xff] %vm298, 0.0
        %421 = vst.msk [vmem:[#allocation3 + $0x1d0] sm:$0xff] %vm298, 0.0
        %422 = vst.msk [vmem:[#allocation3 + $0x1d8] sm:$0xff] %vm298, 0.0
        %423 = vst.msk [vmem:[#allocation3 + $0x1e0] sm:$0xff] %vm298, 0.0
        %424 = vst.msk [vmem:[#allocation3 + $0x1e8] sm:$0xff] %vm298, 0.0
        %425 = vst.msk [vmem:[#allocation3 + $0x1f0] sm:$0xff] %vm298, 0.0
        %426 = vst.msk [vmem:[#allocation3 + $0x1f8] sm:$0xff] %vm298, 0.0
        %vm427 = vcmask 261120
        %428 = vst.msk [vmem:[#allocation4] sm:$0xff] %vm427, 0.0
        %429 = vst.msk [vmem:[#allocation4 + $0x8] sm:$0xff] %vm427, 0.0
        %430 = vst.msk [vmem:[#allocation4 + $0x10] sm:$0xff] %vm427, 0.0
        %431 = vst.msk [vmem:[#allocation4 + $0x18] sm:$0xff] %vm427, 0.0
        %432 = vst.msk [vmem:[#allocation4 + $0x20] sm:$0xff] %vm427, 0.0
        %433 = vst.msk [vmem:[#allocation4 + $0x28] sm:$0xff] %vm427, 0.0
        %434 = vst.msk [vmem:[#allocation4 + $0x30] sm:$0xff] %vm427, 0.0
        %435 = vst.msk [vmem:[#allocation4 + $0x38] sm:$0xff] %vm427, 0.0
        %436 = vst.msk [vmem:[#allocation4 + $0x40] sm:$0xff] %vm427, 0.0
        %437 = vst.msk [vmem:[#allocation4 + $0x48] sm:$0xff] %vm427, 0.0
        %438 = vst.msk [vmem:[#allocation4 + $0x50] sm:$0xff] %vm427, 0.0
        %439 = vst.msk [vmem:[#allocation4 + $0x58] sm:$0xff] %vm427, 0.0
        %440 = vst.msk [vmem:[#allocation4 + $0x60] sm:$0xff] %vm427, 0.0
        %441 = vst.msk [vmem:[#allocation4 + $0x68] sm:$0xff] %vm427, 0.0
        %442 = vst.msk [vmem:[#allocation4 + $0x70] sm:$0xff] %vm427, 0.0
        %443 = vst.msk [vmem:[#allocation4 + $0x78] sm:$0xff] %vm427, 0.0
      $region36: #{attention_forward.4} parent=31 // pred_fallthru
        _
      %p444 = scmp.le.s32.totalorder %s21, %s20
      // Predicated region
      $region37: #{attention_forward.4} parent=31 // pred_check
        %p445 = pneg %p444
      $region38: #{attention_forward.4} parent=31 // pred_check_branch
        %447 = sbr.rel (%p445) target = $region40
      $region39: #{attention_forward.4} parent=31 // pred_region
        %v448 = vlaneseq
        %v449 = vshrl.u32 %v448, 7
        %v450 = vadd.s32 %v449, 8
        %v451 = vadd.s32 %v449, 16
        %v452 = vadd.s32 %v449, 24
        %v453 = vadd.s32 %v449, 32
        %v454 = vadd.s32 %v449, 40
        %v455 = vadd.s32 %v449, 48
        %v456 = vadd.s32 %v449, 56
        %v457 = vadd.s32 %v449, 64
        %v458 = vadd.s32 %v449, 72
        %v459 = vadd.s32 %v449, 80
        %v460 = vadd.s32 %v449, 88
        %v461 = vadd.s32 %v449, 96
        %v462 = vadd.s32 %v449, 104
        %v463 = vadd.s32 %v449, 112
        %v464 = vadd.s32 %v449, 120
        %v465 = vstv %s292
        %v466 = vadd.s32 %v465, %v449
        %v467 = vadd.s32 %v465, %v450
        %v468 = vadd.s32 %v465, %v451
        %v469 = vadd.s32 %v465, %v452
        %v470 = vadd.s32 %v465, %v453
        %v471 = vadd.s32 %v465, %v454
        %v472 = vadd.s32 %v465, %v455
        %v473 = vadd.s32 %v465, %v456
        %v474 = vadd.s32 %v465, %v457
        %v475 = vadd.s32 %v465, %v458
        %v476 = vadd.s32 %v465, %v459
        %v477 = vadd.s32 %v465, %v460
        %v478 = vadd.s32 %v465, %v461
        %v479 = vadd.s32 %v465, %v462
        %v480 = vadd.s32 %v465, %v463
        %v481 = vadd.s32 %v465, %v464
        %v482 = vlaneseq
        %v483 = vand.u32 %v482, 127
        %v484 = vstv %s293
        %v485 = vadd.s32 %v484, %v483
        %vm486 = vcmp.ge.s32.totalorder %v466, %v485
        %vm487 = vcmp.ge.s32.totalorder %v467, %v485
        %vm488 = vcmp.ge.s32.totalorder %v468, %v485
        %vm489 = vcmp.ge.s32.totalorder %v469, %v485
        %vm490 = vcmp.ge.s32.totalorder %v470, %v485
        %vm491 = vcmp.ge.s32.totalorder %v471, %v485
        %vm492 = vcmp.ge.s32.totalorder %v472, %v485
        %vm493 = vcmp.ge.s32.totalorder %v473, %v485
        %vm494 = vcmp.ge.s32.totalorder %v474, %v485
        %vm495 = vcmp.ge.s32.totalorder %v475, %v485
        %vm496 = vcmp.ge.s32.totalorder %v476, %v485
        %vm497 = vcmp.ge.s32.totalorder %v477, %v485
        %vm498 = vcmp.ge.s32.totalorder %v478, %v485
        %vm499 = vcmp.ge.s32.totalorder %v479, %v485
        %vm500 = vcmp.ge.s32.totalorder %v480, %v485
        %vm501 = vcmp.ge.s32.totalorder %v481, %v485
        %v502 = vld [vmem:[%s256] sm:$0xf]
        %v503 = vld [vmem:[%s256 + $0x4] sm:$0xf]
        %v504 = vld [vmem:[%s256 + $0x8] sm:$0xf]
        %v505 = vld [vmem:[%s256 + $0xc] sm:$0xf]
        %v506 = vld [vmem:[%s256 + $0x10] sm:$0xf]
        %v507 = vld [vmem:[%s256 + $0x14] sm:$0xf]
        %v508 = vld [vmem:[%s256 + $0x18] sm:$0xf]
        %v509 = vld [vmem:[%s256 + $0x1c] sm:$0xf]
        %v510 = vld [vmem:[%s256 + $0x20] sm:$0xf]
        %v511 = vld [vmem:[%s256 + $0x24] sm:$0xf]
        %v512 = vld [vmem:[%s256 + $0x28] sm:$0xf]
        %v513 = vld [vmem:[%s256 + $0x2c] sm:$0xf]
        %v514 = vld [vmem:[%s256 + $0x30] sm:$0xf]
        %v515 = vld [vmem:[%s256 + $0x34] sm:$0xf]
        %v516 = vld [vmem:[%s256 + $0x38] sm:$0xf]
        %v517 = vld [vmem:[%s256 + $0x3c] sm:$0xf]
        %v518 = vld [vmem:[%s266] sm:$0xf]
        %v519 = vld [vmem:[%s266 + $0x4] sm:$0xf]
        %v520 = vld [vmem:[%s266 + $0x8] sm:$0xf]
        %v521 = vld [vmem:[%s266 + $0xc] sm:$0xf]
        %v522 = vld [vmem:[%s266 + $0x10] sm:$0xf]
        %v523 = vld [vmem:[%s266 + $0x14] sm:$0xf]
        %v524 = vld [vmem:[%s266 + $0x18] sm:$0xf]
        %v525 = vld [vmem:[%s266 + $0x1c] sm:$0xf]
        %v526 = vld [vmem:[%s266 + $0x20] sm:$0xf]
        %v527 = vld [vmem:[%s266 + $0x24] sm:$0xf]
        %v528 = vld [vmem:[%s266 + $0x28] sm:$0xf]
        %v529 = vld [vmem:[%s266 + $0x2c] sm:$0xf]
        %v530 = vld [vmem:[%s266 + $0x30] sm:$0xf]
        %v531 = vld [vmem:[%s266 + $0x34] sm:$0xf]
        %v532 = vld [vmem:[%s266 + $0x38] sm:$0xf]
        %v533 = vld [vmem:[%s266 + $0x3c] sm:$0xf]
        %v534 = vld [vmem:[%s278] sm:$0xf]
        %v535 = vld [vmem:[%s278 + $0x4] sm:$0xf]
        %v536 = vld [vmem:[%s278 + $0x8] sm:$0xf]
        %v537 = vld [vmem:[%s278 + $0xc] sm:$0xf]
        %v538 = vld [vmem:[%s278 + $0x10] sm:$0xf]
        %v539 = vld [vmem:[%s278 + $0x14] sm:$0xf]
        %v540 = vld [vmem:[%s278 + $0x18] sm:$0xf]
        %v541 = vld [vmem:[%s278 + $0x1c] sm:$0xf]
        %v542 = vld [vmem:[%s278 + $0x20] sm:$0xf]
        %v543 = vld [vmem:[%s278 + $0x24] sm:$0xf]
        %v544 = vld [vmem:[%s278 + $0x28] sm:$0xf]
        %v545 = vld [vmem:[%s278 + $0x2c] sm:$0xf]
        %v546 = vld [vmem:[%s278 + $0x30] sm:$0xf]
        %v547 = vld [vmem:[%s278 + $0x34] sm:$0xf]
        %v548 = vld [vmem:[%s278 + $0x38] sm:$0xf]
        %v549 = vld [vmem:[%s278 + $0x3c] sm:$0xf]
        %v566 = vunpack.c.l.b16 %v502
        %v567 = vunpack.c.l.b16 %v503
        %v568 = vunpack.c.l.b16 %v504
        %v569 = vunpack.c.l.b16 %v505
        %v570 = vunpack.c.l.b16 %v506
        %v571 = vunpack.c.l.b16 %v507
        %v572 = vunpack.c.l.b16 %v508
        %v573 = vunpack.c.l.b16 %v509
        %v574 = vunpack.c.l.b16 %v510
        %v575 = vunpack.c.l.b16 %v511
        %v576 = vunpack.c.l.b16 %v512
        %v577 = vunpack.c.l.b16 %v513
        %v578 = vunpack.c.l.b16 %v514
        %v579 = vunpack.c.l.b16 %v515
        %v580 = vunpack.c.l.b16 %v516
        %v581 = vunpack.c.l.b16 %v517
        %v582 = vpack.c.b16 %v567, %v566
        %v583 = vpack.c.b16 %v569, %v568
        %v584 = vpack.c.b16 %v571, %v570
        %v585 = vpack.c.b16 %v573, %v572
        %v586 = vpack.c.b16 %v575, %v574
        %v587 = vpack.c.b16 %v577, %v576
        %v588 = vpack.c.b16 %v579, %v578
        %v589 = vpack.c.b16 %v581, %v580
        %v606 = vunpack.c.l.b16 %v518
        %v607 = vunpack.c.l.b16 %v519
        %v608 = vunpack.c.l.b16 %v520
        %v609 = vunpack.c.l.b16 %v521
        %v610 = vunpack.c.l.b16 %v522
        %v611 = vunpack.c.l.b16 %v523
        %v612 = vunpack.c.l.b16 %v524
        %v613 = vunpack.c.l.b16 %v525
        %v614 = vunpack.c.l.b16 %v526
        %v615 = vunpack.c.l.b16 %v527
        %v616 = vunpack.c.l.b16 %v528
        %v617 = vunpack.c.l.b16 %v529
        %v618 = vunpack.c.l.b16 %v530
        %v619 = vunpack.c.l.b16 %v531
        %v620 = vunpack.c.l.b16 %v532
        %v621 = vunpack.c.l.b16 %v533
        %v622 = vpack.c.b16 %v607, %v606
        %v623 = vpack.c.b16 %v609, %v608
        %v624 = vpack.c.b16 %v611, %v610
        %v625 = vpack.c.b16 %v613, %v612
        %v626 = vpack.c.b16 %v615, %v614
        %v627 = vpack.c.b16 %v617, %v616
        %v628 = vpack.c.b16 %v619, %v618
        %v629 = vpack.c.b16 %v621, %v620
        %vm630 = vcmask 64512
        %v632 = vsel %vm630, %v582, 0
        %v635 = vsel %vm630, %v583, 0
        %v638 = vsel %vm630, %v584, 0
        %v641 = vsel %vm630, %v585, 0
        %v644 = vsel %vm630, %v586, 0
        %v647 = vsel %vm630, %v587, 0
        %v650 = vsel %vm630, %v588, 0
        %v653 = vsel %vm630, %v589, 0
        %v656 = vsel %vm630, %v622, 0
        %v659 = vsel %vm630, %v623, 0
        %v662 = vsel %vm630, %v624, 0
        %v665 = vsel %vm630, %v625, 0
        %v668 = vsel %vm630, %v626, 0
        %v671 = vsel %vm630, %v627, 0
        %v674 = vsel %vm630, %v628, 0
        %v677 = vsel %vm630, %v629, 0
        %679 = vmatprep.subr.bf16.mxu0 0
        %680 = vmatpush1.bf16.xpose.msra.mxu0 %v656
        %681 = vmatprep.subr.bf16.mxu0 0
        %682 = vmatpush1.bf16.xpose.msra.mxu0 %v659
        %683 = vmatprep.subr.bf16.mxu0 0
        %684 = vmatpush1.bf16.xpose.msra.mxu0 %v662
        %685 = vmatprep.subr.bf16.mxu0 0
        %686 = vmatpush1.bf16.xpose.msra.mxu0 %v665
        %687 = vmatprep.subr.bf16.mxu0 0
        %688 = vmatpush1.bf16.xpose.msra.mxu0 %v668
        %689 = vmatprep.subr.bf16.mxu0 0
        %690 = vmatpush1.bf16.xpose.msra.mxu0 %v671
        %691 = vmatprep.subr.bf16.mxu0 0
        %692 = vmatpush1.bf16.xpose.msra.mxu0 %v674
        %693 = vmatprep.subr.bf16.mxu0 0
        %694 = vmatpush1.bf16.xpose.msra.mxu0 %v677
        %695 = vmatprep.subr.bf16.mxu0 0
        %696 = vmatpush1.bf16.xpose.msra.mxu0 0
        %697 = vmatprep.subr.bf16.mxu0 0
        %698 = vmatpush1.bf16.xpose.msra.mxu0 0
        %699 = vmatprep.subr.bf16.mxu0 0
        %700 = vmatpush1.bf16.xpose.msra.mxu0 0
        %701 = vmatprep.subr.bf16.mxu0 0
        %702 = vmatpush1.bf16.xpose.msra.mxu0 0
        %703 = vmatprep.subr.bf16.mxu0 0
        %704 = vmatpush1.bf16.xpose.msra.mxu0 0
        %705 = vmatprep.subr.bf16.mxu0 0
        %706 = vmatpush1.bf16.xpose.msra.mxu0 0
        %707 = vmatprep.subr.bf16.mxu0 0
        %708 = vmatpush1.bf16.xpose.msra.mxu0 0
        %709 = vmatprep.subr.bf16.mxu0 0
        %710 = vmatpush1.bf16.xpose.msra.mxu0 0
        %711 = vmatprep.mubr.bf16.mxu0 0
        %712 = vmatmul.mubr.bf16.gmra.mrb[0].mxu0 %v632
        %v713 = vpop.f32.mrb[0].mxu0
        %v714 = vadd.f32 0.0, %v713
        %v715 = vpop.f32.mrb[0].mxu0
        %v716 = vpop.f32.mrb[0].mxu0
        %v717 = vadd.f32 0.0, %v716
        %v718 = vpop.f32.mrb[0].mxu0
        %719 = vmatprep.mubr.bf16.mxu0 0
        %720 = vmatmul.mubr.bf16.gmra.mrb[0].mxu0 %v635
        %v721 = vpop.f32.mrb[0].mxu0
        %v722 = vadd.f32 0.0, %v721
        %v723 = vpop.f32.mrb[0].mxu0
        %v724 = vpop.f32.mrb[0].mxu0
        %v725 = vadd.f32 0.0, %v724
        %v726 = vpop.f32.mrb[0].mxu0
        %727 = vmatprep.mubr.bf16.mxu0 0
        %728 = vmatmul.mubr.bf16.gmra.mrb[0].mxu0 %v638
        %v729 = vpop.f32.mrb[0].mxu0
        %v730 = vadd.f32 0.0, %v729
        %v731 = vpop.f32.mrb[0].mxu0
        %v732 = vpop.f32.mrb[0].mxu0
        %v733 = vadd.f32 0.0, %v732
        %v734 = vpop.f32.mrb[0].mxu0
        %735 = vmatprep.mubr.bf16.mxu0 0
        %736 = vmatmul.mubr.bf16.gmra.mrb[0].mxu0 %v641
        %v737 = vpop.f32.mrb[0].mxu0
        %v738 = vadd.f32 0.0, %v737
        %v739 = vpop.f32.mrb[0].mxu0
        %v740 = vpop.f32.mrb[0].mxu0
        %v741 = vadd.f32 0.0, %v740
        %v742 = vpop.f32.mrb[0].mxu0
        %743 = vmatprep.mubr.bf16.mxu0 0
        %744 = vmatmul.mubr.bf16.gmra.mrb[0].mxu0 %v644
        %v745 = vpop.f32.mrb[0].mxu0
        %v746 = vadd.f32 0.0, %v745
        %v747 = vpop.f32.mrb[0].mxu0
        %v748 = vpop.f32.mrb[0].mxu0
        %v749 = vadd.f32 0.0, %v748
        %v750 = vpop.f32.mrb[0].mxu0
        %751 = vmatprep.mubr.bf16.mxu0 0
        %752 = vmatmul.mubr.bf16.gmra.mrb[0].mxu0 %v647
        %v753 = vpop.f32.mrb[0].mxu0
        %v754 = vadd.f32 0.0, %v753
        %v755 = vpop.f32.mrb[0].mxu0
        %v756 = vpop.f32.mrb[0].mxu0
        %v757 = vadd.f32 0.0, %v756
        %v758 = vpop.f32.mrb[0].mxu0
        %759 = vmatprep.mubr.bf16.mxu0 0
        %760 = vmatmul.mubr.bf16.gmra.mrb[0].mxu0 %v650
        %v761 = vpop.f32.mrb[0].mxu0
        %v762 = vadd.f32 0.0, %v761
        %v763 = vpop.f32.mrb[0].mxu0
        %v764 = vpop.f32.mrb[0].mxu0
        %v765 = vadd.f32 0.0, %v764
        %v766 = vpop.f32.mrb[0].mxu0
        %767 = vmatprep.mubr.bf16.mxu0 0
        %768 = vmatmul.mubr.bf16.gmra.mrb[0].mxu0 %v653
        %v769 = vpop.f32.mrb[0].mxu0
        %v770 = vadd.f32 0.0, %v769
        %v771 = vpop.f32.mrb[0].mxu0
        %v772 = vpop.f32.mrb[0].mxu0
        %v773 = vadd.f32 0.0, %v772
        %v774 = vpop.f32.mrb[0].mxu0
        %775 = vdwg.mxu0
        %v776 = vmul.f32 %v714, 0.35355338
        %v777 = vmul.f32 %v717, 0.35355338
        %v778 = vmul.f32 %v722, 0.35355338
        %v779 = vmul.f32 %v725, 0.35355338
        %v780 = vmul.f32 %v730, 0.35355338
        %v781 = vmul.f32 %v733, 0.35355338
        %v782 = vmul.f32 %v738, 0.35355338
        %v783 = vmul.f32 %v741, 0.35355338
        %v784 = vmul.f32 %v746, 0.35355338
        %v785 = vmul.f32 %v749, 0.35355338
        %v786 = vmul.f32 %v754, 0.35355338
        %v787 = vmul.f32 %v757, 0.35355338
        %v788 = vmul.f32 %v762, 0.35355338
        %v789 = vmul.f32 %v765, 0.35355338
        %v790 = vmul.f32 %v770, 0.35355338
        %v791 = vmul.f32 %v773, 0.35355338
        %v792 = vsel %vm486, %v776, -1e+30
        %v793 = vsel %vm487, %v777, -1e+30
        %v794 = vsel %vm488, %v778, -1e+30
        %v795 = vsel %vm489, %v779, -1e+30
        %v796 = vsel %vm490, %v780, -1e+30
        %v797 = vsel %vm491, %v781, -1e+30
        %v798 = vsel %vm492, %v782, -1e+30
        %v799 = vsel %vm493, %v783, -1e+30
        %v800 = vsel %vm494, %v784, -1e+30
        %v801 = vsel %vm495, %v785, -1e+30
        %v802 = vsel %vm496, %v786, -1e+30
        %v803 = vsel %vm497, %v787, -1e+30
        %v804 = vsel %vm498, %v788, -1e+30
        %v805 = vsel %vm499, %v789, -1e+30
        %v806 = vsel %vm500, %v790, -1e+30
        %v807 = vsel %vm501, %v791, -1e+30
        %v808 = vld [vmem:[#allocation2] sm:$0xff]
        %v809 = vld [vmem:[#allocation2 + $0x8] sm:$0xff]
        %v810 = vld [vmem:[#allocation2 + $0x10] sm:$0xff]
        %v811 = vld [vmem:[#allocation2 + $0x18] sm:$0xff]
        %v812 = vld [vmem:[#allocation2 + $0x20] sm:$0xff]
        %v813 = vld [vmem:[#allocation2 + $0x28] sm:$0xff]
        %v814 = vld [vmem:[#allocation2 + $0x30] sm:$0xff]
        %v815 = vld [vmem:[#allocation2 + $0x38] sm:$0xff]
        %v816 = vld [vmem:[#allocation2 + $0x40] sm:$0xff]
        %v817 = vld [vmem:[#allocation2 + $0x48] sm:$0xff]
        %v818 = vld [vmem:[#allocation2 + $0x50] sm:$0xff]
        %v819 = vld [vmem:[#allocation2 + $0x58] sm:$0xff]
        %v820 = vld [vmem:[#allocation2 + $0x60] sm:$0xff]
        %v821 = vld [vmem:[#allocation2 + $0x68] sm:$0xff]
        %v822 = vld [vmem:[#allocation2 + $0x70] sm:$0xff]
        %v823 = vld [vmem:[#allocation2 + $0x78] sm:$0xff]
        %824 = vmax.xlane.f32.xlu0 %v792
        %v825 = vpop.xlane.xlu0 %824
        %826 = vmax.xlane.f32.xlu0 %v793
        %v827 = vpop.xlane.xlu0 %826
        %828 = vmax.xlane.f32.xlu0 %v794
        %v829 = vpop.xlane.xlu0 %828
        %830 = vmax.xlane.f32.xlu0 %v795
        %v831 = vpop.xlane.xlu0 %830
        %832 = vmax.xlane.f32.xlu0 %v796
        %v833 = vpop.xlane.xlu0 %832
        %834 = vmax.xlane.f32.xlu0 %v797
        %v835 = vpop.xlane.xlu0 %834
        %836 = vmax.xlane.f32.xlu0 %v798
        %v837 = vpop.xlane.xlu0 %836
        %838 = vmax.xlane.f32.xlu0 %v799
        %v839 = vpop.xlane.xlu0 %838
        %840 = vmax.xlane.f32.xlu0 %v800
        %v841 = vpop.xlane.xlu0 %840
        %842 = vmax.xlane.f32.xlu0 %v801
        %v843 = vpop.xlane.xlu0 %842
        %844 = vmax.xlane.f32.xlu0 %v802
        %v845 = vpop.xlane.xlu0 %844
        %846 = vmax.xlane.f32.xlu0 %v803
        %v847 = vpop.xlane.xlu0 %846
        %848 = vmax.xlane.f32.xlu0 %v804
        %v849 = vpop.xlane.xlu0 %848
        %850 = vmax.xlane.f32.xlu0 %v805
        %v851 = vpop.xlane.xlu0 %850
        %852 = vmax.xlane.f32.xlu0 %v806
        %v853 = vpop.xlane.xlu0 %852
        %854 = vmax.xlane.f32.xlu0 %v807
        %v855 = vpop.xlane.xlu0 %854
        %v856 = vmax.f32 %v808, %v825
        %v857 = vmax.f32 %v809, %v827
        %v858 = vmax.f32 %v810, %v829
        %v859 = vmax.f32 %v811, %v831
        %v860 = vmax.f32 %v812, %v833
        %v861 = vmax.f32 %v813, %v835
        %v862 = vmax.f32 %v814, %v837
        %v863 = vmax.f32 %v815, %v839
        %v864 = vmax.f32 %v816, %v841
        %v865 = vmax.f32 %v817, %v843
        %v866 = vmax.f32 %v818, %v845
        %v867 = vmax.f32 %v819, %v847
        %v868 = vmax.f32 %v820, %v849
        %v869 = vmax.f32 %v821, %v851
        %v870 = vmax.f32 %v822, %v853
        %v871 = vmax.f32 %v823, %v855
        %v872 = vsub.f32 %v808, %v856
        %v873 = vsub.f32 %v809, %v857
        %v874 = vsub.f32 %v810, %v858
        %v875 = vsub.f32 %v811, %v859
        %v876 = vsub.f32 %v812, %v860
        %v877 = vsub.f32 %v813, %v861
        %v878 = vsub.f32 %v814, %v862
        %v879 = vsub.f32 %v815, %v863
        %v880 = vsub.f32 %v816, %v864
        %v881 = vsub.f32 %v817, %v865
        %v882 = vsub.f32 %v818, %v866
        %v883 = vsub.f32 %v819, %v867
        %v884 = vsub.f32 %v820, %v868
        %v885 = vsub.f32 %v821, %v869
        %v886 = vsub.f32 %v822, %v870
        %v887 = vsub.f32 %v823, %v871
        %v888 = vmul.f32 %v872, 1.442695
        %v889 = vpow.pop %v888
        %v890 = vmul.f32 %v873, 1.442695
        %v891 = vpow.pop %v890
        %v892 = vmul.f32 %v874, 1.442695
        %v893 = vpow.pop %v892
        %v894 = vmul.f32 %v875, 1.442695
        %v895 = vpow.pop %v894
        %v896 = vmul.f32 %v876, 1.442695
        %v897 = vpow.pop %v896
        %v898 = vmul.f32 %v877, 1.442695
        %v899 = vpow.pop %v898
        %v900 = vmul.f32 %v878, 1.442695
        %v901 = vpow.pop %v900
        %v902 = vmul.f32 %v879, 1.442695
        %v903 = vpow.pop %v902
        %v904 = vmul.f32 %v880, 1.442695
        %v905 = vpow.pop %v904
        %v906 = vmul.f32 %v881, 1.442695
        %v907 = vpow.pop %v906
        %v908 = vmul.f32 %v882, 1.442695
        %v909 = vpow.pop %v908
        %v910 = vmul.f32 %v883, 1.442695
        %v911 = vpow.pop %v910
        %v912 = vmul.f32 %v884, 1.442695
        %v913 = vpow.pop %v912
        %v914 = vmul.f32 %v885, 1.442695
        %v915 = vpow.pop %v914
        %v916 = vmul.f32 %v886, 1.442695
        %v917 = vpow.pop %v916
        %v918 = vmul.f32 %v887, 1.442695
        %v919 = vpow.pop %v918
        %921 = vset.pattern.permute.xlu0 0
        %922 = vperm.xlu0 %921, %v856
        %v923 = vpop.permute.xlu0 %922
        %926 = vset.pattern.permute.xlu0 0
        %927 = vperm.xlu0 %926, %v857
        %v928 = vpop.permute.xlu0 %927
        %931 = vset.pattern.permute.xlu0 0
        %932 = vperm.xlu0 %931, %v858
        %v933 = vpop.permute.xlu0 %932
        %936 = vset.pattern.permute.xlu0 0
        %937 = vperm.xlu0 %936, %v859
        %v938 = vpop.permute.xlu0 %937
        %941 = vset.pattern.permute.xlu0 0
        %942 = vperm.xlu0 %941, %v860
        %v943 = vpop.permute.xlu0 %942
        %946 = vset.pattern.permute.xlu0 0
        %947 = vperm.xlu0 %946, %v861
        %v948 = vpop.permute.xlu0 %947
        %951 = vset.pattern.permute.xlu0 0
        %952 = vperm.xlu0 %951, %v862
        %v953 = vpop.permute.xlu0 %952
        %956 = vset.pattern.permute.xlu0 0
        %957 = vperm.xlu0 %956, %v863
        %v958 = vpop.permute.xlu0 %957
        %961 = vset.pattern.permute.xlu0 0
        %962 = vperm.xlu0 %961, %v864
        %v963 = vpop.permute.xlu0 %962
        %966 = vset.pattern.permute.xlu0 0
        %967 = vperm.xlu0 %966, %v865
        %v968 = vpop.permute.xlu0 %967
        %971 = vset.pattern.permute.xlu0 0
        %972 = vperm.xlu0 %971, %v866
        %v973 = vpop.permute.xlu0 %972
        %976 = vset.pattern.permute.xlu0 0
        %977 = vperm.xlu0 %976, %v867
        %v978 = vpop.permute.xlu0 %977
        %981 = vset.pattern.permute.xlu0 0
        %982 = vperm.xlu0 %981, %v868
        %v983 = vpop.permute.xlu0 %982
        %986 = vset.pattern.permute.xlu0 0
        %987 = vperm.xlu0 %986, %v869
        %v988 = vpop.permute.xlu0 %987
        %991 = vset.pattern.permute.xlu0 0
        %992 = vperm.xlu0 %991, %v870
        %v993 = vpop.permute.xlu0 %992
        %996 = vset.pattern.permute.xlu0 0
        %997 = vperm.xlu0 %996, %v871
        %v998 = vpop.permute.xlu0 %997
        %v1000 = vsub.f32 %v792, %v923
        %v1001 = vsub.f32 %v793, %v928
        %v1002 = vsub.f32 %v794, %v933
        %v1003 = vsub.f32 %v795, %v938
        %v1004 = vsub.f32 %v796, %v943
        %v1005 = vsub.f32 %v797, %v948
        %v1006 = vsub.f32 %v798, %v953
        %v1007 = vsub.f32 %v799, %v958
        %v1008 = vsub.f32 %v800, %v963
        %v1009 = vsub.f32 %v801, %v968
        %v1010 = vsub.f32 %v802, %v973
        %v1011 = vsub.f32 %v803, %v978
        %v1012 = vsub.f32 %v804, %v983
        %v1013 = vsub.f32 %v805, %v988
        %v1014 = vsub.f32 %v806, %v993
        %v1015 = vsub.f32 %v807, %v998
        %v1016 = vmul.f32 %v1000, 1.442695
        %v1017 = vpow.pop %v1016
        %v1018 = vmul.f32 %v1001, 1.442695
        %v1019 = vpow.pop %v1018
        %v1020 = vmul.f32 %v1002, 1.442695
        %v1021 = vpow.pop %v1020
        %v1022 = vmul.f32 %v1003, 1.442695
        %v1023 = vpow.pop %v1022
        %v1024 = vmul.f32 %v1004, 1.442695
        %v1025 = vpow.pop %v1024
        %v1026 = vmul.f32 %v1005, 1.442695
        %v1027 = vpow.pop %v1026
        %v1028 = vmul.f32 %v1006, 1.442695
        %v1029 = vpow.pop %v1028
        %v1030 = vmul.f32 %v1007, 1.442695
        %v1031 = vpow.pop %v1030
        %v1032 = vmul.f32 %v1008, 1.442695
        %v1033 = vpow.pop %v1032
        %v1034 = vmul.f32 %v1009, 1.442695
        %v1035 = vpow.pop %v1034
        %v1036 = vmul.f32 %v1010, 1.442695
        %v1037 = vpow.pop %v1036
        %v1038 = vmul.f32 %v1011, 1.442695
        %v1039 = vpow.pop %v1038
        %v1040 = vmul.f32 %v1012, 1.442695
        %v1041 = vpow.pop %v1040
        %v1042 = vmul.f32 %v1013, 1.442695
        %v1043 = vpow.pop %v1042
        %v1044 = vmul.f32 %v1014, 1.442695
        %v1045 = vpow.pop %v1044
        %v1046 = vmul.f32 %v1015, 1.442695
        %v1047 = vpow.pop %v1046
        %v1048 = vld [vmem:[#allocation3] sm:$0xff]
        %v1049 = vld [vmem:[#allocation3 + $0x8] sm:$0xff]
        %v1050 = vld [vmem:[#allocation3 + $0x10] sm:$0xff]
        %v1051 = vld [vmem:[#allocation3 + $0x18] sm:$0xff]
        %v1052 = vld [vmem:[#allocation3 + $0x20] sm:$0xff]
        %v1053 = vld [vmem:[#allocation3 + $0x28] sm:$0xff]
        %v1054 = vld [vmem:[#allocation3 + $0x30] sm:$0xff]
        %v1055 = vld [vmem:[#allocation3 + $0x38] sm:$0xff]
        %v1056 = vld [vmem:[#allocation3 + $0x40] sm:$0xff]
        %v1057 = vld [vmem:[#allocation3 + $0x48] sm:$0xff]
        %v1058 = vld [vmem:[#allocation3 + $0x50] sm:$0xff]
        %v1059 = vld [vmem:[#allocation3 + $0x58] sm:$0xff]
        %v1060 = vld [vmem:[#allocation3 + $0x60] sm:$0xff]
        %v1061 = vld [vmem:[#allocation3 + $0x68] sm:$0xff]
        %v1062 = vld [vmem:[#allocation3 + $0x70] sm:$0xff]
        %v1063 = vld [vmem:[#allocation3 + $0x78] sm:$0xff]
        %v1064 = vmul.f32 %v889, %v1048
        %v1065 = vmul.f32 %v891, %v1049
        %v1066 = vmul.f32 %v893, %v1050
        %v1067 = vmul.f32 %v895, %v1051
        %v1068 = vmul.f32 %v897, %v1052
        %v1069 = vmul.f32 %v899, %v1053
        %v1070 = vmul.f32 %v901, %v1054
        %v1071 = vmul.f32 %v903, %v1055
        %v1072 = vmul.f32 %v905, %v1056
        %v1073 = vmul.f32 %v907, %v1057
        %v1074 = vmul.f32 %v909, %v1058
        %v1075 = vmul.f32 %v911, %v1059
        %v1076 = vmul.f32 %v913, %v1060
        %v1077 = vmul.f32 %v915, %v1061
        %v1078 = vmul.f32 %v917, %v1062
        %v1079 = vmul.f32 %v919, %v1063
        %1080 = vadd.xlane.f32.xlu0 %v1017
        %v1081 = vpop.xlane.xlu0 %1080
        %1082 = vadd.xlane.f32.xlu0 %v1019
        %v1083 = vpop.xlane.xlu0 %1082
        %1084 = vadd.xlane.f32.xlu0 %v1021
        %v1085 = vpop.xlane.xlu0 %1084
        %1086 = vadd.xlane.f32.xlu0 %v1023
        %v1087 = vpop.xlane.xlu0 %1086
        %1088 = vadd.xlane.f32.xlu0 %v1025
        %v1089 = vpop.xlane.xlu0 %1088
        %1090 = vadd.xlane.f32.xlu0 %v1027
        %v1091 = vpop.xlane.xlu0 %1090
        %1092 = vadd.xlane.f32.xlu0 %v1029
        %v1093 = vpop.xlane.xlu0 %1092
        %1094 = vadd.xlane.f32.xlu0 %v1031
        %v1095 = vpop.xlane.xlu0 %1094
        %1096 = vadd.xlane.f32.xlu0 %v1033
        %v1097 = vpop.xlane.xlu0 %1096
        %1098 = vadd.xlane.f32.xlu0 %v1035
        %v1099 = vpop.xlane.xlu0 %1098
        %1100 = vadd.xlane.f32.xlu0 %v1037
        %v1101 = vpop.xlane.xlu0 %1100
        %1102 = vadd.xlane.f32.xlu0 %v1039
        %v1103 = vpop.xlane.xlu0 %1102
        %1104 = vadd.xlane.f32.xlu0 %v1041
        %v1105 = vpop.xlane.xlu0 %1104
        %1106 = vadd.xlane.f32.xlu0 %v1043
        %v1107 = vpop.xlane.xlu0 %1106
        %1108 = vadd.xlane.f32.xlu0 %v1045
        %v1109 = vpop.xlane.xlu0 %1108
        %1110 = vadd.xlane.f32.xlu0 %v1047
        %v1111 = vpop.xlane.xlu0 %1110
        %v1112 = vadd.f32 %v1064, %v1081
        %v1113 = vadd.f32 %v1065, %v1083
        %v1114 = vadd.f32 %v1066, %v1085
        %v1115 = vadd.f32 %v1067, %v1087
        %v1116 = vadd.f32 %v1068, %v1089
        %v1117 = vadd.f32 %v1069, %v1091
        %v1118 = vadd.f32 %v1070, %v1093
        %v1119 = vadd.f32 %v1071, %v1095
        %v1120 = vadd.f32 %v1072, %v1097
        %v1121 = vadd.f32 %v1073, %v1099
        %v1122 = vadd.f32 %v1074, %v1101
        %v1123 = vadd.f32 %v1075, %v1103
        %v1124 = vadd.f32 %v1076, %v1105
        %v1125 = vadd.f32 %v1077, %v1107
        %v1126 = vadd.f32 %v1078, %v1109
        %v1127 = vadd.f32 %v1079, %v1111
        %vm1128 = vcmask 7168
        %1129 = vst.msk [vmem:[#allocation3] sm:$0xff] %vm1128, %v1112
        %1130 = vst.msk [vmem:[#allocation3 + $0x8] sm:$0xff] %vm1128, %v1113
        %1131 = vst.msk [vmem:[#allocation3 + $0x10] sm:$0xff] %vm1128, %v1114
        %1132 = vst.msk [vmem:[#allocation3 + $0x18] sm:$0xff] %vm1128, %v1115
        %1133 = vst.msk [vmem:[#allocation3 + $0x20] sm:$0xff] %vm1128, %v1116
        %1134 = vst.msk [vmem:[#allocation3 + $0x28] sm:$0xff] %vm1128, %v1117
        %1135 = vst.msk [vmem:[#allocation3 + $0x30] sm:$0xff] %vm1128, %v1118
        %1136 = vst.msk [vmem:[#allocation3 + $0x38] sm:$0xff] %vm1128, %v1119
        %1137 = vst.msk [vmem:[#allocation3 + $0x40] sm:$0xff] %vm1128, %v1120
        %1138 = vst.msk [vmem:[#allocation3 + $0x48] sm:$0xff] %vm1128, %v1121
        %1139 = vst.msk [vmem:[#allocation3 + $0x50] sm:$0xff] %vm1128, %v1122
        %1140 = vst.msk [vmem:[#allocation3 + $0x58] sm:$0xff] %vm1128, %v1123
        %1141 = vst.msk [vmem:[#allocation3 + $0x60] sm:$0xff] %vm1128, %v1124
        %1142 = vst.msk [vmem:[#allocation3 + $0x68] sm:$0xff] %vm1128, %v1125
        %1143 = vst.msk [vmem:[#allocation3 + $0x70] sm:$0xff] %vm1128, %v1126
        %1144 = vst.msk [vmem:[#allocation3 + $0x78] sm:$0xff] %vm1128, %v1127
        %v1145 = vld [vmem:[#allocation4] sm:$0xff]
        %v1146 = vld [vmem:[#allocation4 + $0x8] sm:$0xff]
        %v1147 = vld [vmem:[#allocation4 + $0x10] sm:$0xff]
        %v1148 = vld [vmem:[#allocation4 + $0x18] sm:$0xff]
        %v1149 = vld [vmem:[#allocation4 + $0x20] sm:$0xff]
        %v1150 = vld [vmem:[#allocation4 + $0x28] sm:$0xff]
        %v1151 = vld [vmem:[#allocation4 + $0x30] sm:$0xff]
        %v1152 = vld [vmem:[#allocation4 + $0x38] sm:$0xff]
        %v1153 = vld [vmem:[#allocation4 + $0x40] sm:$0xff]
        %v1154 = vld [vmem:[#allocation4 + $0x48] sm:$0xff]
        %v1155 = vld [vmem:[#allocation4 + $0x50] sm:$0xff]
        %v1156 = vld [vmem:[#allocation4 + $0x58] sm:$0xff]
        %v1157 = vld [vmem:[#allocation4 + $0x60] sm:$0xff]
        %v1158 = vld [vmem:[#allocation4 + $0x68] sm:$0xff]
        %v1159 = vld [vmem:[#allocation4 + $0x70] sm:$0xff]
        %v1160 = vld [vmem:[#allocation4 + $0x78] sm:$0xff]
        %1162 = vset.pattern.permute.xlu0 0
        %1163 = vperm.xlu0 %1162, %v889
        %v1164 = vpop.permute.xlu0 %1163
        %1167 = vset.pattern.permute.xlu0 0
        %1168 = vperm.xlu0 %1167, %v891
        %v1169 = vpop.permute.xlu0 %1168
        %1172 = vset.pattern.permute.xlu0 0
        %1173 = vperm.xlu0 %1172, %v893
        %v1174 = vpop.permute.xlu0 %1173
        %1177 = vset.pattern.permute.xlu0 0
        %1178 = vperm.xlu0 %1177, %v895
        %v1179 = vpop.permute.xlu0 %1178
        %1182 = vset.pattern.permute.xlu0 0
        %1183 = vperm.xlu0 %1182, %v897
        %v1184 = vpop.permute.xlu0 %1183
        %1187 = vset.pattern.permute.xlu0 0
        %1188 = vperm.xlu0 %1187, %v899
        %v1189 = vpop.permute.xlu0 %1188
        %1192 = vset.pattern.permute.xlu0 0
        %1193 = vperm.xlu0 %1192, %v901
        %v1194 = vpop.permute.xlu0 %1193
        %1197 = vset.pattern.permute.xlu0 0
        %1198 = vperm.xlu0 %1197, %v903
        %v1199 = vpop.permute.xlu0 %1198
        %1202 = vset.pattern.permute.xlu0 0
        %1203 = vperm.xlu0 %1202, %v905
        %v1204 = vpop.permute.xlu0 %1203
        %1207 = vset.pattern.permute.xlu0 0
        %1208 = vperm.xlu0 %1207, %v907
        %v1209 = vpop.permute.xlu0 %1208
        %1212 = vset.pattern.permute.xlu0 0
        %1213 = vperm.xlu0 %1212, %v909
        %v1214 = vpop.permute.xlu0 %1213
        %1217 = vset.pattern.permute.xlu0 0
        %1218 = vperm.xlu0 %1217, %v911
        %v1219 = vpop.permute.xlu0 %1218
        %1222 = vset.pattern.permute.xlu0 0
        %1223 = vperm.xlu0 %1222, %v913
        %v1224 = vpop.permute.xlu0 %1223
        %1227 = vset.pattern.permute.xlu0 0
        %1228 = vperm.xlu0 %1227, %v915
        %v1229 = vpop.permute.xlu0 %1228
        %1232 = vset.pattern.permute.xlu0 0
        %1233 = vperm.xlu0 %1232, %v917
        %v1234 = vpop.permute.xlu0 %1233
        %1237 = vset.pattern.permute.xlu0 0
        %1238 = vperm.xlu0 %1237, %v919
        %v1239 = vpop.permute.xlu0 %1238
        %v1241 = vmul.f32 %v1164, %v1145
        %v1242 = vmul.f32 %v1169, %v1146
        %v1243 = vmul.f32 %v1174, %v1147
        %v1244 = vmul.f32 %v1179, %v1148
        %v1245 = vmul.f32 %v1184, %v1149
        %v1246 = vmul.f32 %v1189, %v1150
        %v1247 = vmul.f32 %v1194, %v1151
        %v1248 = vmul.f32 %v1199, %v1152
        %v1249 = vmul.f32 %v1204, %v1153
        %v1250 = vmul.f32 %v1209, %v1154
        %v1251 = vmul.f32 %v1214, %v1155
        %v1252 = vmul.f32 %v1219, %v1156
        %v1253 = vmul.f32 %v1224, %v1157
        %v1254 = vmul.f32 %v1229, %v1158
        %v1255 = vmul.f32 %v1234, %v1159
        %v1256 = vmul.f32 %v1239, %v1160
        %v1257 = vpack.c.bf16 %v1019, %v1017
        %v1258 = vpack.c.bf16 %v1023, %v1021
        %v1259 = vpack.c.bf16 %v1027, %v1025
        %v1260 = vpack.c.bf16 %v1031, %v1029
        %v1261 = vpack.c.bf16 %v1035, %v1033
        %v1262 = vpack.c.bf16 %v1039, %v1037
        %v1263 = vpack.c.bf16 %v1043, %v1041
        %v1264 = vpack.c.bf16 %v1047, %v1045
        %v1281 = vunpack.c.l.b16 %v534
        %v1282 = vunpack.c.l.b16 %v535
        %v1283 = vunpack.c.l.b16 %v536
        %v1284 = vunpack.c.l.b16 %v537
        %v1285 = vunpack.c.l.b16 %v538
        %v1286 = vunpack.c.l.b16 %v539
        %v1287 = vunpack.c.l.b16 %v540
        %v1288 = vunpack.c.l.b16 %v541
        %v1289 = vunpack.c.l.b16 %v542
        %v1290 = vunpack.c.l.b16 %v543
        %v1291 = vunpack.c.l.b16 %v544
        %v1292 = vunpack.c.l.b16 %v545
        %v1293 = vunpack.c.l.b16 %v546
        %v1294 = vunpack.c.l.b16 %v547
        %v1295 = vunpack.c.l.b16 %v548
        %v1296 = vunpack.c.l.b16 %v549
        %v1297 = vpack.c.b16 %v1282, %v1281
        %v1298 = vpack.c.b16 %v1284, %v1283
        %v1299 = vpack.c.b16 %v1286, %v1285
        %v1300 = vpack.c.b16 %v1288, %v1287
        %v1301 = vpack.c.b16 %v1290, %v1289
        %v1302 = vpack.c.b16 %v1292, %v1291
        %v1303 = vpack.c.b16 %v1294, %v1293
        %v1304 = vpack.c.b16 %v1296, %v1295
        %1313 = vmatprep.subr.bf16.mxu0 0
        %1314 = vmatpush1.bf16.msra.mxu0 %v1297
        %1315 = vmatprep.subr.bf16.mxu0 0
        %1316 = vmatpush1.bf16.msra.mxu0 %v1298
        %1317 = vmatprep.subr.bf16.mxu0 0
        %1318 = vmatpush1.bf16.msra.mxu0 %v1299
        %1319 = vmatprep.subr.bf16.mxu0 0
        %1320 = vmatpush1.bf16.msra.mxu0 %v1300
        %1321 = vmatprep.subr.bf16.mxu0 0
        %1322 = vmatpush1.bf16.msra.mxu0 %v1301
        %1323 = vmatprep.subr.bf16.mxu0 0
        %1324 = vmatpush1.bf16.msra.mxu0 %v1302
        %1325 = vmatprep.subr.bf16.mxu0 0
        %1326 = vmatpush1.bf16.msra.mxu0 %v1303
        %1327 = vmatprep.subr.bf16.mxu0 0
        %1328 = vmatpush1.bf16.msra.mxu0 %v1304
        %1329 = vmatprep.subr.bf16.mxu0 0
        %1330 = vmatpush1.bf16.msra.mxu0 0
        %1331 = vmatprep.subr.bf16.mxu0 0
        %1332 = vmatpush1.bf16.msra.mxu0 0
        %1333 = vmatprep.subr.bf16.mxu0 0
        %1334 = vmatpush1.bf16.msra.mxu0 0
        %1335 = vmatprep.subr.bf16.mxu0 0
        %1336 = vmatpush1.bf16.msra.mxu0 0
        %1337 = vmatprep.subr.bf16.mxu0 0
        %1338 = vmatpush1.bf16.msra.mxu0 0
        %1339 = vmatprep.subr.bf16.mxu0 0
        %1340 = vmatpush1.bf16.msra.mxu0 0
        %1341 = vmatprep.subr.bf16.mxu0 0
        %1342 = vmatpush1.bf16.msra.mxu0 0
        %1343 = vmatprep.subr.bf16.mxu0 0
        %1344 = vmatpush1.bf16.msra.mxu0 0
        %1345 = vmatprep.mubr.bf16.mxu0 0
        %1346 = vmatmul.mubr.bf16.gmra.mrb[0].mxu0 %v1257
        %v1347 = vpop.f32.mrb[0].mxu0
        %v1348 = vadd.f32 0.0, %v1347
        %v1349 = vpop.f32.mrb[0].mxu0
        %v1350 = vpop.f32.mrb[0].mxu0
        %v1351 = vadd.f32 0.0, %v1350
        %v1352 = vpop.f32.mrb[0].mxu0
        %1353 = vmatprep.mubr.bf16.mxu0 0
        %1354 = vmatmul.mubr.bf16.gmra.mrb[0].mxu0 %v1258
        %v1355 = vpop.f32.mrb[0].mxu0
        %v1356 = vadd.f32 0.0, %v1355
        %v1357 = vpop.f32.mrb[0].mxu0
        %v1358 = vpop.f32.mrb[0].mxu0
        %v1359 = vadd.f32 0.0, %v1358
        %v1360 = vpop.f32.mrb[0].mxu0
        %1361 = vmatprep.mubr.bf16.mxu0 0
        %1362 = vmatmul.mubr.bf16.gmra.mrb[0].mxu0 %v1259
        %v1363 = vpop.f32.mrb[0].mxu0
        %v1364 = vadd.f32 0.0, %v1363
        %v1365 = vpop.f32.mrb[0].mxu0
        %v1366 = vpop.f32.mrb[0].mxu0
        %v1367 = vadd.f32 0.0, %v1366
        %v1368 = vpop.f32.mrb[0].mxu0
        %1369 = vmatprep.mubr.bf16.mxu0 0
        %1370 = vmatmul.mubr.bf16.gmra.mrb[0].mxu0 %v1260
        %v1371 = vpop.f32.mrb[0].mxu0
        %v1372 = vadd.f32 0.0, %v1371
        %v1373 = vpop.f32.mrb[0].mxu0
        %v1374 = vpop.f32.mrb[0].mxu0
        %v1375 = vadd.f32 0.0, %v1374
        %v1376 = vpop.f32.mrb[0].mxu0
        %1377 = vmatprep.mubr.bf16.mxu0 0
        %1378 = vmatmul.mubr.bf16.gmra.mrb[0].mxu0 %v1261
        %v1379 = vpop.f32.mrb[0].mxu0
        %v1380 = vadd.f32 0.0, %v1379
        %v1381 = vpop.f32.mrb[0].mxu0
        %v1382 = vpop.f32.mrb[0].mxu0
        %v1383 = vadd.f32 0.0, %v1382
        %v1384 = vpop.f32.mrb[0].mxu0
        %1385 = vmatprep.mubr.bf16.mxu0 0
        %1386 = vmatmul.mubr.bf16.gmra.mrb[0].mxu0 %v1262
        %v1387 = vpop.f32.mrb[0].mxu0
        %v1388 = vadd.f32 0.0, %v1387
        %v1389 = vpop.f32.mrb[0].mxu0
        %v1390 = vpop.f32.mrb[0].mxu0
        %v1391 = vadd.f32 0.0, %v1390
        %v1392 = vpop.f32.mrb[0].mxu0
        %1393 = vmatprep.mubr.bf16.mxu0 0
        %1394 = vmatmul.mubr.bf16.gmra.mrb[0].mxu0 %v1263
        %v1395 = vpop.f32.mrb[0].mxu0
        %v1396 = vadd.f32 0.0, %v1395
        %v1397 = vpop.f32.mrb[0].mxu0
        %v1398 = vpop.f32.mrb[0].mxu0
        %v1399 = vadd.f32 0.0, %v1398
        %v1400 = vpop.f32.mrb[0].mxu0
        %1401 = vmatprep.mubr.bf16.mxu0 0
        %1402 = vmatmul.mubr.bf16.gmra.mrb[0].mxu0 %v1264
        %v1403 = vpop.f32.mrb[0].mxu0
        %v1404 = vadd.f32 0.0, %v1403
        %v1405 = vpop.f32.mrb[0].mxu0
        %v1406 = vpop.f32.mrb[0].mxu0
        %v1407 = vadd.f32 0.0, %v1406
        %v1408 = vpop.f32.mrb[0].mxu0
        %1409 = vdwg.mxu0
        %v1410 = vadd.f32 %v1241, %v1348
        %v1411 = vadd.f32 %v1242, %v1351
        %v1412 = vadd.f32 %v1243, %v1356
        %v1413 = vadd.f32 %v1244, %v1359
        %v1414 = vadd.f32 %v1245, %v1364
        %v1415 = vadd.f32 %v1246, %v1367
        %v1416 = vadd.f32 %v1247, %v1372
        %v1417 = vadd.f32 %v1248, %v1375
        %v1418 = vadd.f32 %v1249, %v1380
        %v1419 = vadd.f32 %v1250, %v1383
        %v1420 = vadd.f32 %v1251, %v1388
        %v1421 = vadd.f32 %v1252, %v1391
        %v1422 = vadd.f32 %v1253, %v1396
        %v1423 = vadd.f32 %v1254, %v1399
        %v1424 = vadd.f32 %v1255, %v1404
        %v1425 = vadd.f32 %v1256, %v1407
        %1426 = vst.msk [vmem:[#allocation4] sm:$0xff] %vm630, %v1410
        %1427 = vst.msk [vmem:[#allocation4 + $0x8] sm:$0xff] %vm630, %v1411
        %1428 = vst.msk [vmem:[#allocation4 + $0x10] sm:$0xff] %vm630, %v1412
        %1429 = vst.msk [vmem:[#allocation4 + $0x18] sm:$0xff] %vm630, %v1413
        %1430 = vst.msk [vmem:[#allocation4 + $0x20] sm:$0xff] %vm630, %v1414
        %1431 = vst.msk [vmem:[#allocation4 + $0x28] sm:$0xff] %vm630, %v1415
        %1432 = vst.msk [vmem:[#allocation4 + $0x30] sm:$0xff] %vm630, %v1416
        %1433 = vst.msk [vmem:[#allocation4 + $0x38] sm:$0xff] %vm630, %v1417
        %1434 = vst.msk [vmem:[#allocation4 + $0x40] sm:$0xff] %vm630, %v1418
        %1435 = vst.msk [vmem:[#allocation4 + $0x48] sm:$0xff] %vm630, %v1419
        %1436 = vst.msk [vmem:[#allocation4 + $0x50] sm:$0xff] %vm630, %v1420
        %1437 = vst.msk [vmem:[#allocation4 + $0x58] sm:$0xff] %vm630, %v1421
        %1438 = vst.msk [vmem:[#allocation4 + $0x60] sm:$0xff] %vm630, %v1422
        %1439 = vst.msk [vmem:[#allocation4 + $0x68] sm:$0xff] %vm630, %v1423
        %1440 = vst.msk [vmem:[#allocation4 + $0x70] sm:$0xff] %vm630, %v1424
        %1441 = vst.msk [vmem:[#allocation4 + $0x78] sm:$0xff] %vm630, %v1425
        %1442 = vst.msk [vmem:[#allocation2] sm:$0xff] %vm1128, %v856
        %1443 = vst.msk [vmem:[#allocation2 + $0x8] sm:$0xff] %vm1128, %v857
        %1444 = vst.msk [vmem:[#allocation2 + $0x10] sm:$0xff] %vm1128, %v858
        %1445 = vst.msk [vmem:[#allocation2 + $0x18] sm:$0xff] %vm1128, %v859
        %1446 = vst.msk [vmem:[#allocation2 + $0x20] sm:$0xff] %vm1128, %v860
        %1447 = vst.msk [vmem:[#allocation2 + $0x28] sm:$0xff] %vm1128, %v861
        %1448 = vst.msk [vmem:[#allocation2 + $0x30] sm:$0xff] %vm1128, %v862
        %1449 = vst.msk [vmem:[#allocation2 + $0x38] sm:$0xff] %vm1128, %v863
        %1450 = vst.msk [vmem:[#allocation2 + $0x40] sm:$0xff] %vm1128, %v864
        %1451 = vst.msk [vmem:[#allocation2 + $0x48] sm:$0xff] %vm1128, %v865
        %1452 = vst.msk [vmem:[#allocation2 + $0x50] sm:$0xff] %vm1128, %v866
        %1453 = vst.msk [vmem:[#allocation2 + $0x58] sm:$0xff] %vm1128, %v867
        %1454 = vst.msk [vmem:[#allocation2 + $0x60] sm:$0xff] %vm1128, %v868
        %1455 = vst.msk [vmem:[#allocation2 + $0x68] sm:$0xff] %vm1128, %v869
        %1456 = vst.msk [vmem:[#allocation2 + $0x70] sm:$0xff] %vm1128, %v870
        %1457 = vst.msk [vmem:[#allocation2 + $0x78] sm:$0xff] %vm1128, %v871
        %1458 = vrot.lane.b32.xlu0 %v582, 120
        %v1459 = vpop.permute.xlu0 %1458
        %1460 = vrot.lane.b32.xlu0 %v583, 120
        %v1461 = vpop.permute.xlu0 %1460
        %1462 = vrot.lane.b32.xlu0 %v584, 120
        %v1463 = vpop.permute.xlu0 %1462
        %1464 = vrot.lane.b32.xlu0 %v585, 120
        %v1465 = vpop.permute.xlu0 %1464
        %1466 = vrot.lane.b32.xlu0 %v586, 120
        %v1467 = vpop.permute.xlu0 %1466
        %1468 = vrot.lane.b32.xlu0 %v587, 120
        %v1469 = vpop.permute.xlu0 %1468
        %1470 = vrot.lane.b32.xlu0 %v588, 120
        %v1471 = vpop.permute.xlu0 %1470
        %1472 = vrot.lane.b32.xlu0 %v589, 120
        %v1473 = vpop.permute.xlu0 %1472
        %1474 = vrot.lane.b32.xlu0 %v622, 120
        %v1475 = vpop.permute.xlu0 %1474
        %1476 = vrot.lane.b32.xlu0 %v623, 120
        %v1477 = vpop.permute.xlu0 %1476
        %1478 = vrot.lane.b32.xlu0 %v624, 120
        %v1479 = vpop.permute.xlu0 %1478
        %1480 = vrot.lane.b32.xlu0 %v625, 120
        %v1481 = vpop.permute.xlu0 %1480
        %1482 = vrot.lane.b32.xlu0 %v626, 120
        %v1483 = vpop.permute.xlu0 %1482
        %1484 = vrot.lane.b32.xlu0 %v627, 120
        %v1485 = vpop.permute.xlu0 %1484
        %1486 = vrot.lane.b32.xlu0 %v628, 120
        %v1487 = vpop.permute.xlu0 %1486
        %1488 = vrot.lane.b32.xlu0 %v629, 120
        %v1489 = vpop.permute.xlu0 %1488
        %v1491 = vsel %vm630, %v1459, 0
        %v1494 = vsel %vm630, %v1461, 0
        %v1497 = vsel %vm630, %v1463, 0
        %v1500 = vsel %vm630, %v1465, 0
        %v1503 = vsel %vm630, %v1467, 0
        %v1506 = vsel %vm630, %v1469, 0
        %v1509 = vsel %vm630, %v1471, 0
        %v1512 = vsel %vm630, %v1473, 0
        %v1515 = vsel %vm630, %v1475, 0
        %v1518 = vsel %vm630, %v1477, 0
        %v1521 = vsel %vm630, %v1479, 0
        %v1524 = vsel %vm630, %v1481, 0
        %v1527 = vsel %vm630, %v1483, 0
        %v1530 = vsel %vm630, %v1485, 0
        %v1533 = vsel %vm630, %v1487, 0
        %v1536 = vsel %vm630, %v1489, 0
        %1538 = vmatprep.subr.bf16.mxu0 0
        %1539 = vmatpush1.bf16.xpose.msra.mxu0 %v1515
        %1540 = vmatprep.subr.bf16.mxu0 0
        %1541 = vmatpush1.bf16.xpose.msra.mxu0 %v1518
        %1542 = vmatprep.subr.bf16.mxu0 0
        %1543 = vmatpush1.bf16.xpose.msra.mxu0 %v1521
        %1544 = vmatprep.subr.bf16.mxu0 0
        %1545 = vmatpush1.bf16.xpose.msra.mxu0 %v1524
        %1546 = vmatprep.subr.bf16.mxu0 0
        %1547 = vmatpush1.bf16.xpose.msra.mxu0 %v1527
        %1548 = vmatprep.subr.bf16.mxu0 0
        %1549 = vmatpush1.bf16.xpose.msra.mxu0 %v1530
        %1550 = vmatprep.subr.bf16.mxu0 0
        %1551 = vmatpush1.bf16.xpose.msra.mxu0 %v1533
        %1552 = vmatprep.subr.bf16.mxu0 0
        %1553 = vmatpush1.bf16.xpose.msra.mxu0 %v1536
        %1554 = vmatprep.subr.bf16.mxu0 0
        %1555 = vmatpush1.bf16.xpose.msra.mxu0 0
        %1556 = vmatprep.subr.bf16.mxu0 0
        %1557 = vmatpush1.bf16.xpose.msra.mxu0 0
        %1558 = vmatprep.subr.bf16.mxu0 0
        %1559 = vmatpush1.bf16.xpose.msra.mxu0 0
        %1560 = vmatprep.subr.bf16.mxu0 0
        %1561 = vmatpush1.bf16.xpose.msra.mxu0 0
        %1562 = vmatprep.subr.bf16.mxu0 0
        %1563 = vmatpush1.bf16.xpose.msra.mxu0 0
        %1564 = vmatprep.subr.bf16.mxu0 0
        %1565 = vmatpush1.bf16.xpose.msra.mxu0 0
        %1566 = vmatprep.subr.bf16.mxu0 0
        %1567 = vmatpush1.bf16.xpose.msra.mxu0 0
        %1568 = vmatprep.subr.bf16.mxu0 0
        %1569 = vmatpush1.bf16.xpose.msra.mxu0 0
        %1570 = vmatprep.mubr.bf16.mxu0 0
        %1571 = vmatmul.mubr.bf16.gmra.mrb[0].mxu0 %v1491
        %v1572 = vpop.f32.mrb[0].mxu0
        %v1573 = vadd.f32 0.0, %v1572
        %v1574 = vpop.f32.mrb[0].mxu0
        %v1575 = vpop.f32.mrb[0].mxu0
        %v1576 = vadd.f32 0.0, %v1575
        %v1577 = vpop.f32.mrb[0].mxu0
        %1578 = vmatprep.mubr.bf16.mxu0 0
        %1579 = vmatmul.mubr.bf16.gmra.mrb[0].mxu0 %v1494
        %v1580 = vpop.f32.mrb[0].mxu0
        %v1581 = vadd.f32 0.0, %v1580
        %v1582 = vpop.f32.mrb[0].mxu0
        %v1583 = vpop.f32.mrb[0].mxu0
        %v1584 = vadd.f32 0.0, %v1583
        %v1585 = vpop.f32.mrb[0].mxu0
        %1586 = vmatprep.mubr.bf16.mxu0 0
        %1587 = vmatmul.mubr.bf16.gmra.mrb[0].mxu0 %v1497
        %v1588 = vpop.f32.mrb[0].mxu0
        %v1589 = vadd.f32 0.0, %v1588
        %v1590 = vpop.f32.mrb[0].mxu0
        %v1591 = vpop.f32.mrb[0].mxu0
        %v1592 = vadd.f32 0.0, %v1591
        %v1593 = vpop.f32.mrb[0].mxu0
        %1594 = vmatprep.mubr.bf16.mxu0 0
        %1595 = vmatmul.mubr.bf16.gmra.mrb[0].mxu0 %v1500
        %v1596 = vpop.f32.mrb[0].mxu0
        %v1597 = vadd.f32 0.0, %v1596
        %v1598 = vpop.f32.mrb[0].mxu0
        %v1599 = vpop.f32.mrb[0].mxu0
        %v1600 = vadd.f32 0.0, %v1599
        %v1601 = vpop.f32.mrb[0].mxu0
        %1602 = vmatprep.mubr.bf16.mxu0 0
        %1603 = vmatmul.mubr.bf16.gmra.mrb[0].mxu0 %v1503
        %v1604 = vpop.f32.mrb[0].mxu0
        %v1605 = vadd.f32 0.0, %v1604
        %v1606 = vpop.f32.mrb[0].mxu0
        %v1607 = vpop.f32.mrb[0].mxu0
        %v1608 = vadd.f32 0.0, %v1607
        %v1609 = vpop.f32.mrb[0].mxu0
        %1610 = vmatprep.mubr.bf16.mxu0 0
        %1611 = vmatmul.mubr.bf16.gmra.mrb[0].mxu0 %v1506
        %v1612 = vpop.f32.mrb[0].mxu0
        %v1613 = vadd.f32 0.0, %v1612
        %v1614 = vpop.f32.mrb[0].mxu0
        %v1615 = vpop.f32.mrb[0].mxu0
        %v1616 = vadd.f32 0.0, %v1615
        %v1617 = vpop.f32.mrb[0].mxu0
        %1618 = vmatprep.mubr.bf16.mxu0 0
        %1619 = vmatmul.mubr.bf16.gmra.mrb[0].mxu0 %v1509
        %v1620 = vpop.f32.mrb[0].mxu0
        %v1621 = vadd.f32 0.0, %v1620
        %v1622 = vpop.f32.mrb[0].mxu0
        %v1623 = vpop.f32.mrb[0].mxu0
        %v1624 = vadd.f32 0.0, %v1623
        %v1625 = vpop.f32.mrb[0].mxu0
        %1626 = vmatprep.mubr.bf16.mxu0 0
        %1627 = vmatmul.mubr.bf16.gmra.mrb[0].mxu0 %v1512
        %v1628 = vpop.f32.mrb[0].mxu0
        %v1629 = vadd.f32 0.0, %v1628
        %v1630 = vpop.f32.mrb[0].mxu0
        %v1631 = vpop.f32.mrb[0].mxu0
        %v1632 = vadd.f32 0.0, %v1631
        %v1633 = vpop.f32.mrb[0].mxu0
        %1634 = vdwg.mxu0
        %v1635 = vmul.f32 %v1573, 0.35355338
        %v1636 = vmul.f32 %v1576, 0.35355338
        %v1637 = vmul.f32 %v1581, 0.35355338
        %v1638 = vmul.f32 %v1584, 0.35355338
        %v1639 = vmul.f32 %v1589, 0.35355338
        %v1640 = vmul.f32 %v1592, 0.35355338
        %v1641 = vmul.f32 %v1597, 0.35355338
        %v1642 = vmul.f32 %v1600, 0.35355338
        %v1643 = vmul.f32 %v1605, 0.35355338
        %v1644 = vmul.f32 %v1608, 0.35355338
        %v1645 = vmul.f32 %v1613, 0.35355338
        %v1646 = vmul.f32 %v1616, 0.35355338
        %v1647 = vmul.f32 %v1621, 0.35355338
        %v1648 = vmul.f32 %v1624, 0.35355338
        %v1649 = vmul.f32 %v1629, 0.35355338
        %v1650 = vmul.f32 %v1632, 0.35355338
        %v1651 = vsel %vm486, %v1635, -1e+30
        %v1652 = vsel %vm487, %v1636, -1e+30
        %v1653 = vsel %vm488, %v1637, -1e+30
        %v1654 = vsel %vm489, %v1638, -1e+30
        %v1655 = vsel %vm490, %v1639, -1e+30
        %v1656 = vsel %vm491, %v1640, -1e+30
        %v1657 = vsel %vm492, %v1641, -1e+30
        %v1658 = vsel %vm493, %v1642, -1e+30
        %v1659 = vsel %vm494, %v1643, -1e+30
        %v1660 = vsel %vm495, %v1644, -1e+30
        %v1661 = vsel %vm496, %v1645, -1e+30
        %v1662 = vsel %vm497, %v1646, -1e+30
        %v1663 = vsel %vm498, %v1647, -1e+30
        %v1664 = vsel %vm499, %v1648, -1e+30
        %v1665 = vsel %vm500, %v1649, -1e+30
        %v1666 = vsel %vm501, %v1650, -1e+30
        %s1667 = scalar_lea.vmem [#allocation2], 128
        %v1668 = vld [vmem:[%s1667] sm:$0xff]
        %v1669 = vld [vmem:[%s1667 + $0x8] sm:$0xff]
        %v1670 = vld [vmem:[%s1667 + $0x10] sm:$0xff]
        %v1671 = vld [vmem:[%s1667 + $0x18] sm:$0xff]
        %v1672 = vld [vmem:[%s1667 + $0x20] sm:$0xff]
        %v1673 = vld [vmem:[%s1667 + $0x28] sm:$0xff]
        %v1674 = vld [vmem:[%s1667 + $0x30] sm:$0xff]
        %v1675 = vld [vmem:[%s1667 + $0x38] sm:$0xff]
        %v1676 = vld [vmem:[%s1667 + $0x40] sm:$0xff]
        %v1677 = vld [vmem:[%s1667 + $0x48] sm:$0xff]
        %v1678 = vld [vmem:[%s1667 + $0x50] sm:$0xff]
        %v1679 = vld [vmem:[%s1667 + $0x58] sm:$0xff]
        %v1680 = vld [vmem:[%s1667 + $0x60] sm:$0xff]
        %v1681 = vld [vmem:[%s1667 + $0x68] sm:$0xff]
        %v1682 = vld [vmem:[%s1667 + $0x70] sm:$0xff]
        %v1683 = vld [vmem:[%s1667 + $0x78] sm:$0xff]
        %1684 = vmax.xlane.f32.xlu0 %v1651
        %v1685 = vpop.xlane.xlu0 %1684
        %1686 = vmax.xlane.f32.xlu0 %v1652
        %v1687 = vpop.xlane.xlu0 %1686
        %1688 = vmax.xlane.f32.xlu0 %v1653
        %v1689 = vpop.xlane.xlu0 %1688
        %1690 = vmax.xlane.f32.xlu0 %v1654
        %v1691 = vpop.xlane.xlu0 %1690
        %1692 = vmax.xlane.f32.xlu0 %v1655
        %v1693 = vpop.xlane.xlu0 %1692
        %1694 = vmax.xlane.f32.xlu0 %v1656
        %v1695 = vpop.xlane.xlu0 %1694
        %1696 = vmax.xlane.f32.xlu0 %v1657
        %v1697 = vpop.xlane.xlu0 %1696
        %1698 = vmax.xlane.f32.xlu0 %v1658
        %v1699 = vpop.xlane.xlu0 %1698
        %1700 = vmax.xlane.f32.xlu0 %v1659
        %v1701 = vpop.xlane.xlu0 %1700
        %1702 = vmax.xlane.f32.xlu0 %v1660
        %v1703 = vpop.xlane.xlu0 %1702
        %1704 = vmax.xlane.f32.xlu0 %v1661
        %v1705 = vpop.xlane.xlu0 %1704
        %1706 = vmax.xlane.f32.xlu0 %v1662
        %v1707 = vpop.xlane.xlu0 %1706
        %1708 = vmax.xlane.f32.xlu0 %v1663
        %v1709 = vpop.xlane.xlu0 %1708
        %1710 = vmax.xlane.f32.xlu0 %v1664
        %v1711 = vpop.xlane.xlu0 %1710
        %1712 = vmax.xlane.f32.xlu0 %v1665
        %v1713 = vpop.xlane.xlu0 %1712
        %1714 = vmax.xlane.f32.xlu0 %v1666
        %v1715 = vpop.xlane.xlu0 %1714
        %v1716 = vmax.f32 %v1668, %v1685
        %v1717 = vmax.f32 %v1669, %v1687
        %v1718 = vmax.f32 %v1670, %v1689
        %v1719 = vmax.f32 %v1671, %v1691
        %v1720 = vmax.f32 %v1672, %v1693
        %v1721 = vmax.f32 %v1673, %v1695
        %v1722 = vmax.f32 %v1674, %v1697
        %v1723 = vmax.f32 %v1675, %v1699
        %v1724 = vmax.f32 %v1676, %v1701
        %v1725 = vmax.f32 %v1677, %v1703
        %v1726 = vmax.f32 %v1678, %v1705
        %v1727 = vmax.f32 %v1679, %v1707
        %v1728 = vmax.f32 %v1680, %v1709
        %v1729 = vmax.f32 %v1681, %v1711
        %v1730 = vmax.f32 %v1682, %v1713
        %v1731 = vmax.f32 %v1683, %v1715
        %v1732 = vsub.f32 %v1668, %v1716
        %v1733 = vsub.f32 %v1669, %v1717
        %v1734 = vsub.f32 %v1670, %v1718
        %v1735 = vsub.f32 %v1671, %v1719
        %v1736 = vsub.f32 %v1672, %v1720
        %v1737 = vsub.f32 %v1673, %v1721
        %v1738 = vsub.f32 %v1674, %v1722
        %v1739 = vsub.f32 %v1675, %v1723
        %v1740 = vsub.f32 %v1676, %v1724
        %v1741 = vsub.f32 %v1677, %v1725
        %v1742 = vsub.f32 %v1678, %v1726
        %v1743 = vsub.f32 %v1679, %v1727
        %v1744 = vsub.f32 %v1680, %v1728
        %v1745 = vsub.f32 %v1681, %v1729
        %v1746 = vsub.f32 %v1682, %v1730
        %v1747 = vsub.f32 %v1683, %v1731
        %v1748 = vmul.f32 %v1732, 1.442695
        %v1749 = vpow.pop %v1748
        %v1750 = vmul.f32 %v1733, 1.442695
        %v1751 = vpow.pop %v1750
        %v1752 = vmul.f32 %v1734, 1.442695
        %v1753 = vpow.pop %v1752
        %v1754 = vmul.f32 %v1735, 1.442695
        %v1755 = vpow.pop %v1754
        %v1756 = vmul.f32 %v1736, 1.442695
        %v1757 = vpow.pop %v1756
        %v1758 = vmul.f32 %v1737, 1.442695
        %v1759 = vpow.pop %v1758
        %v1760 = vmul.f32 %v1738, 1.442695
        %v1761 = vpow.pop %v1760
        %v1762 = vmul.f32 %v1739, 1.442695
        %v1763 = vpow.pop %v1762
        %v1764 = vmul.f32 %v1740, 1.442695
        %v1765 = vpow.pop %v1764
        %v1766 = vmul.f32 %v1741, 1.442695
        %v1767 = vpow.pop %v1766
        %v1768 = vmul.f32 %v1742, 1.442695
        %v1769 = vpow.pop %v1768
        %v1770 = vmul.f32 %v1743, 1.442695
        %v1771 = vpow.pop %v1770
        %v1772 = vmul.f32 %v1744, 1.442695
        %v1773 = vpow.pop %v1772
        %v1774 = vmul.f32 %v1745, 1.442695
        %v1775 = vpow.pop %v1774
        %v1776 = vmul.f32 %v1746, 1.442695
        %v1777 = vpow.pop %v1776
        %v1778 = vmul.f32 %v1747, 1.442695
        %v1779 = vpow.pop %v1778
        %1781 = vset.pattern.permute.xlu0 0
        %1782 = vperm.xlu0 %1781, %v1716
        %v1783 = vpop.permute.xlu0 %1782
        %1786 = vset.pattern.permute.xlu0 0
        %1787 = vperm.xlu0 %1786, %v1717
        %v1788 = vpop.permute.xlu0 %1787
        %1791 = vset.pattern.permute.xlu0 0
        %1792 = vperm.xlu0 %1791, %v1718
        %v1793 = vpop.permute.xlu0 %1792
        %1796 = vset.pattern.permute.xlu0 0
        %1797 = vperm.xlu0 %1796, %v1719
        %v1798 = vpop.permute.xlu0 %1797
        %1801 = vset.pattern.permute.xlu0 0
        %1802 = vperm.xlu0 %1801, %v1720
        %v1803 = vpop.permute.xlu0 %1802
        %1806 = vset.pattern.permute.xlu0 0
        %1807 = vperm.xlu0 %1806, %v1721
        %v1808 = vpop.permute.xlu0 %1807
        %1811 = vset.pattern.permute.xlu0 0
        %1812 = vperm.xlu0 %1811, %v1722
        %v1813 = vpop.permute.xlu0 %1812
        %1816 = vset.pattern.permute.xlu0 0
        %1817 = vperm.xlu0 %1816, %v1723
        %v1818 = vpop.permute.xlu0 %1817
        %1821 = vset.pattern.permute.xlu0 0
        %1822 = vperm.xlu0 %1821, %v1724
        %v1823 = vpop.permute.xlu0 %1822
        %1826 = vset.pattern.permute.xlu0 0
        %1827 = vperm.xlu0 %1826, %v1725
        %v1828 = vpop.permute.xlu0 %1827
        %1831 = vset.pattern.permute.xlu0 0
        %1832 = vperm.xlu0 %1831, %v1726
        %v1833 = vpop.permute.xlu0 %1832
        %1836 = vset.pattern.permute.xlu0 0
        %1837 = vperm.xlu0 %1836, %v1727
        %v1838 = vpop.permute.xlu0 %1837
        %1841 = vset.pattern.permute.xlu0 0
        %1842 = vperm.xlu0 %1841, %v1728
        %v1843 = vpop.permute.xlu0 %1842
        %1846 = vset.pattern.permute.xlu0 0
        %1847 = vperm.xlu0 %1846, %v1729
        %v1848 = vpop.permute.xlu0 %1847
        %1851 = vset.pattern.permute.xlu0 0
        %1852 = vperm.xlu0 %1851, %v1730
        %v1853 = vpop.permute.xlu0 %1852
        %1856 = vset.pattern.permute.xlu0 0
        %1857 = vperm.xlu0 %1856, %v1731
        %v1858 = vpop.permute.xlu0 %1857
        %v1860 = vsub.f32 %v1651, %v1783
        %v1861 = vsub.f32 %v1652, %v1788
        %v1862 = vsub.f32 %v1653, %v1793
        %v1863 = vsub.f32 %v1654, %v1798
        %v1864 = vsub.f32 %v1655, %v1803
        %v1865 = vsub.f32 %v1656, %v1808
        %v1866 = vsub.f32 %v1657, %v1813
        %v1867 = vsub.f32 %v1658, %v1818
        %v1868 = vsub.f32 %v1659, %v1823
        %v1869 = vsub.f32 %v1660, %v1828
        %v1870 = vsub.f32 %v1661, %v1833
        %v1871 = vsub.f32 %v1662, %v1838
        %v1872 = vsub.f32 %v1663, %v1843
        %v1873 = vsub.f32 %v1664, %v1848
        %v1874 = vsub.f32 %v1665, %v1853
        %v1875 = vsub.f32 %v1666, %v1858
        %v1876 = vmul.f32 %v1860, 1.442695
        %v1877 = vpow.pop %v1876
        %v1878 = vmul.f32 %v1861, 1.442695
        %v1879 = vpow.pop %v1878
        %v1880 = vmul.f32 %v1862, 1.442695
        %v1881 = vpow.pop %v1880
        %v1882 = vmul.f32 %v1863, 1.442695
        %v1883 = vpow.pop %v1882
        %v1884 = vmul.f32 %v1864, 1.442695
        %v1885 = vpow.pop %v1884
        %v1886 = vmul.f32 %v1865, 1.442695
        %v1887 = vpow.pop %v1886
        %v1888 = vmul.f32 %v1866, 1.442695
        %v1889 = vpow.pop %v1888
        %v1890 = vmul.f32 %v1867, 1.442695
        %v1891 = vpow.pop %v1890
        %v1892 = vmul.f32 %v1868, 1.442695
        %v1893 = vpow.pop %v1892
        %v1894 = vmul.f32 %v1869, 1.442695
        %v1895 = vpow.pop %v1894
        %v1896 = vmul.f32 %v1870, 1.442695
        %v1897 = vpow.pop %v1896
        %v1898 = vmul.f32 %v1871, 1.442695
        %v1899 = vpow.pop %v1898
        %v1900 = vmul.f32 %v1872, 1.442695
        %v1901 = vpow.pop %v1900
        %v1902 = vmul.f32 %v1873, 1.442695
        %v1903 = vpow.pop %v1902
        %v1904 = vmul.f32 %v1874, 1.442695
        %v1905 = vpow.pop %v1904
        %v1906 = vmul.f32 %v1875, 1.442695
        %v1907 = vpow.pop %v1906
        %s1908 = scalar_lea.vmem [#allocation3], 128
        %v1909 = vld [vmem:[%s1908] sm:$0xff]
        %v1910 = vld [vmem:[%s1908 + $0x8] sm:$0xff]
        %v1911 = vld [vmem:[%s1908 + $0x10] sm:$0xff]
        %v1912 = vld [vmem:[%s1908 + $0x18] sm:$0xff]
        %v1913 = vld [vmem:[%s1908 + $0x20] sm:$0xff]
        %v1914 = vld [vmem:[%s1908 + $0x28] sm:$0xff]
        %v1915 = vld [vmem:[%s1908 + $0x30] sm:$0xff]
        %v1916 = vld [vmem:[%s1908 + $0x38] sm:$0xff]
        %v1917 = vld [vmem:[%s1908 + $0x40] sm:$0xff]
        %v1918 = vld [vmem:[%s1908 + $0x48] sm:$0xff]
        %v1919 = vld [vmem:[%s1908 + $0x50] sm:$0xff]
        %v1920 = vld [vmem:[%s1908 + $0x58] sm:$0xff]
        %v1921 = vld [vmem:[%s1908 + $0x60] sm:$0xff]
        %v1922 = vld [vmem:[%s1908 + $0x68] sm:$0xff]
        %v1923 = vld [vmem:[%s1908 + $0x70] sm:$0xff]
        %v1924 = vld [vmem:[%s1908 + $0x78] sm:$0xff]
        %v1925 = vmul.f32 %v1749, %v1909
        %v1926 = vmul.f32 %v1751, %v1910
        %v1927 = vmul.f32 %v1753, %v1911
        %v1928 = vmul.f32 %v1755, %v1912
        %v1929 = vmul.f32 %v1757, %v1913
        %v1930 = vmul.f32 %v1759, %v1914
        %v1931 = vmul.f32 %v1761, %v1915
        %v1932 = vmul.f32 %v1763, %v1916
        %v1933 = vmul.f32 %v1765, %v1917
        %v1934 = vmul.f32 %v1767, %v1918
        %v1935 = vmul.f32 %v1769, %v1919
        %v1936 = vmul.f32 %v1771, %v1920
        %v1937 = vmul.f32 %v1773, %v1921
        %v1938 = vmul.f32 %v1775, %v1922
        %v1939 = vmul.f32 %v1777, %v1923
        %v1940 = vmul.f32 %v1779, %v1924
        %1941 = vadd.xlane.f32.xlu0 %v1877
        %v1942 = vpop.xlane.xlu0 %1941
        %1943 = vadd.xlane.f32.xlu0 %v1879
        %v1944 = vpop.xlane.xlu0 %1943
        %1945 = vadd.xlane.f32.xlu0 %v1881
        %v1946 = vpop.xlane.xlu0 %1945
        %1947 = vadd.xlane.f32.xlu0 %v1883
        %v1948 = vpop.xlane.xlu0 %1947
        %1949 = vadd.xlane.f32.xlu0 %v1885
        %v1950 = vpop.xlane.xlu0 %1949
        %1951 = vadd.xlane.f32.xlu0 %v1887
        %v1952 = vpop.xlane.xlu0 %1951
        %1953 = vadd.xlane.f32.xlu0 %v1889
        %v1954 = vpop.xlane.xlu0 %1953
        %1955 = vadd.xlane.f32.xlu0 %v1891
        %v1956 = vpop.xlane.xlu0 %1955
        %1957 = vadd.xlane.f32.xlu0 %v1893
        %v1958 = vpop.xlane.xlu0 %1957
        %1959 = vadd.xlane.f32.xlu0 %v1895
        %v1960 = vpop.xlane.xlu0 %1959
        %1961 = vadd.xlane.f32.xlu0 %v1897
        %v1962 = vpop.xlane.xlu0 %1961
        %1963 = vadd.xlane.f32.xlu0 %v1899
        %v1964 = vpop.xlane.xlu0 %1963
        %1965 = vadd.xlane.f32.xlu0 %v1901
        %v1966 = vpop.xlane.xlu0 %1965
        %1967 = vadd.xlane.f32.xlu0 %v1903
        %v1968 = vpop.xlane.xlu0 %1967
        %1969 = vadd.xlane.f32.xlu0 %v1905
        %v1970 = vpop.xlane.xlu0 %1969
        %1971 = vadd.xlane.f32.xlu0 %v1907
        %v1972 = vpop.xlane.xlu0 %1971
        %v1973 = vadd.f32 %v1925, %v1942
        %v1974 = vadd.f32 %v1926, %v1944
        %v1975 = vadd.f32 %v1927, %v1946
        %v1976 = vadd.f32 %v1928, %v1948
        %v1977 = vadd.f32 %v1929, %v1950
        %v1978 = vadd.f32 %v1930, %v1952
        %v1979 = vadd.f32 %v1931, %v1954
        %v1980 = vadd.f32 %v1932, %v1956
        %v1981 = vadd.f32 %v1933, %v1958
        %v1982 = vadd.f32 %v1934, %v1960
        %v1983 = vadd.f32 %v1935, %v1962
        %v1984 = vadd.f32 %v1936, %v1964
        %v1985 = vadd.f32 %v1937, %v1966
        %v1986 = vadd.f32 %v1938, %v1968
        %v1987 = vadd.f32 %v1939, %v1970
        %v1988 = vadd.f32 %v1940, %v1972
        %1989 = vst.msk [vmem:[%s1908] sm:$0xff] %vm1128, %v1973
        %1990 = vst.msk [vmem:[%s1908 + $0x8] sm:$0xff] %vm1128, %v1974
        %1991 = vst.msk [vmem:[%s1908 + $0x10] sm:$0xff] %vm1128, %v1975
        %1992 = vst.msk [vmem:[%s1908 + $0x18] sm:$0xff] %vm1128, %v1976
        %1993 = vst.msk [vmem:[%s1908 + $0x20] sm:$0xff] %vm1128, %v1977
        %1994 = vst.msk [vmem:[%s1908 + $0x28] sm:$0xff] %vm1128, %v1978
        %1995 = vst.msk [vmem:[%s1908 + $0x30] sm:$0xff] %vm1128, %v1979
        %1996 = vst.msk [vmem:[%s1908 + $0x38] sm:$0xff] %vm1128, %v1980
        %1997 = vst.msk [vmem:[%s1908 + $0x40] sm:$0xff] %vm1128, %v1981
        %1998 = vst.msk [vmem:[%s1908 + $0x48] sm:$0xff] %vm1128, %v1982
        %1999 = vst.msk [vmem:[%s1908 + $0x50] sm:$0xff] %vm1128, %v1983
        %2000 = vst.msk [vmem:[%s1908 + $0x58] sm:$0xff] %vm1128, %v1984
        %2001 = vst.msk [vmem:[%s1908 + $0x60] sm:$0xff] %vm1128, %v1985
        %2002 = vst.msk [vmem:[%s1908 + $0x68] sm:$0xff] %vm1128, %v1986
        %2003 = vst.msk [vmem:[%s1908 + $0x70] sm:$0xff] %vm1128, %v1987
        %2004 = vst.msk [vmem:[%s1908 + $0x78] sm:$0xff] %vm1128, %v1988
        %v2005 = vld [vmem:[#allocation4] sm:$0xff]
        %v2006 = vld [vmem:[#allocation4 + $0x8] sm:$0xff]
        %v2007 = vld [vmem:[#allocation4 + $0x10] sm:$0xff]
        %v2008 = vld [vmem:[#allocation4 + $0x18] sm:$0xff]
        %v2009 = vld [vmem:[#allocation4 + $0x20] sm:$0xff]
        %v2010 = vld [vmem:[#allocation4 + $0x28] sm:$0xff]
        %v2011 = vld [vmem:[#allocation4 + $0x30] sm:$0xff]
        %v2012 = vld [vmem:[#allocation4 + $0x38] sm:$0xff]
        %v2013 = vld [vmem:[#allocation4 + $0x40] sm:$0xff]
        %v2014 = vld [vmem:[#allocation4 + $0x48] sm:$0xff]
        %v2015 = vld [vmem:[#allocation4 + $0x50] sm:$0xff]
        %v2016 = vld [vmem:[#allocation4 + $0x58] sm:$0xff]
        %v2017 = vld [vmem:[#allocation4 + $0x60] sm:$0xff]
        %v2018 = vld [vmem:[#allocation4 + $0x68] sm:$0xff]
        %v2019 = vld [vmem:[#allocation4 + $0x70] sm:$0xff]
        %v2020 = vld [vmem:[#allocation4 + $0x78] sm:$0xff]
        %2022 = vset.pattern.permute.xlu0 0
        %2023 = vperm.xlu0 %2022, %v1749
        %v2024 = vpop.permute.xlu0 %2023
        %2027 = vset.pattern.permute.xlu0 0
        %2028 = vperm.xlu0 %2027, %v1751
        %v2029 = vpop.permute.xlu0 %2028
        %2032 = vset.pattern.permute.xlu0 0
        %2033 = vperm.xlu0 %2032, %v1753
        %v2034 = vpop.permute.xlu0 %2033
        %2037 = vset.pattern.permute.xlu0 0
        %2038 = vperm.xlu0 %2037, %v1755
        %v2039 = vpop.permute.xlu0 %2038
        %2042 = vset.pattern.permute.xlu0 0
        %2043 = vperm.xlu0 %2042, %v1757
        %v2044 = vpop.permute.xlu0 %2043
        %2047 = vset.pattern.permute.xlu0 0
        %2048 = vperm.xlu0 %2047, %v1759
        %v2049 = vpop.permute.xlu0 %2048
        %2052 = vset.pattern.permute.xlu0 0
        %2053 = vperm.xlu0 %2052, %v1761
        %v2054 = vpop.permute.xlu0 %2053
        %2057 = vset.pattern.permute.xlu0 0
        %2058 = vperm.xlu0 %2057, %v1763
        %v2059 = vpop.permute.xlu0 %2058
        %2062 = vset.pattern.permute.xlu0 0
        %2063 = vperm.xlu0 %2062, %v1765
        %v2064 = vpop.permute.xlu0 %2063
        %2067 = vset.pattern.permute.xlu0 0
        %2068 = vperm.xlu0 %2067, %v1767
        %v2069 = vpop.permute.xlu0 %2068
        %2072 = vset.pattern.permute.xlu0 0
        %2073 = vperm.xlu0 %2072, %v1769
        %v2074 = vpop.permute.xlu0 %2073
        %2077 = vset.pattern.permute.xlu0 0
        %2078 = vperm.xlu0 %2077, %v1771
        %v2079 = vpop.permute.xlu0 %2078
        %2082 = vset.pattern.permute.xlu0 0
        %2083 = vperm.xlu0 %2082, %v1773
        %v2084 = vpop.permute.xlu0 %2083
        %2087 = vset.pattern.permute.xlu0 0
        %2088 = vperm.xlu0 %2087, %v1775
        %v2089 = vpop.permute.xlu0 %2088
        %2092 = vset.pattern.permute.xlu0 0
        %2093 = vperm.xlu0 %2092, %v1777
        %v2094 = vpop.permute.xlu0 %2093
        %2097 = vset.pattern.permute.xlu0 0
        %2098 = vperm.xlu0 %2097, %v1779
        %v2099 = vpop.permute.xlu0 %2098
        %v2101 = vmul.f32 %v2024, %v2005
        %v2102 = vmul.f32 %v2029, %v2006
        %v2103 = vmul.f32 %v2034, %v2007
        %v2104 = vmul.f32 %v2039, %v2008
        %v2105 = vmul.f32 %v2044, %v2009
        %v2106 = vmul.f32 %v2049, %v2010
        %v2107 = vmul.f32 %v2054, %v2011
        %v2108 = vmul.f32 %v2059, %v2012
        %v2109 = vmul.f32 %v2064, %v2013
        %v2110 = vmul.f32 %v2069, %v2014
        %v2111 = vmul.f32 %v2074, %v2015
        %v2112 = vmul.f32 %v2079, %v2016
        %v2113 = vmul.f32 %v2084, %v2017
        %v2114 = vmul.f32 %v2089, %v2018
        %v2115 = vmul.f32 %v2094, %v2019
        %v2116 = vmul.f32 %v2099, %v2020
        %v2117 = vpack.c.bf16 %v1879, %v1877
        %v2118 = vpack.c.bf16 %v1883, %v1881
        %v2119 = vpack.c.bf16 %v1887, %v1885
        %v2120 = vpack.c.bf16 %v1891, %v1889
        %v2121 = vpack.c.bf16 %v1895, %v1893
        %v2122 = vpack.c.bf16 %v1899, %v1897
        %v2123 = vpack.c.bf16 %v1903, %v1901
        %v2124 = vpack.c.bf16 %v1907, %v1905
        %2125 = vrot.lane.b32.xlu0 %v1297, 120
        %v2126 = vpop.permute.xlu0 %2125
        %2127 = vrot.lane.b32.xlu0 %v1298, 120
        %v2128 = vpop.permute.xlu0 %2127
        %2129 = vrot.lane.b32.xlu0 %v1299, 120
        %v2130 = vpop.permute.xlu0 %2129
        %2131 = vrot.lane.b32.xlu0 %v1300, 120
        %v2132 = vpop.permute.xlu0 %2131
        %2133 = vrot.lane.b32.xlu0 %v1301, 120
        %v2134 = vpop.permute.xlu0 %2133
        %2135 = vrot.lane.b32.xlu0 %v1302, 120
        %v2136 = vpop.permute.xlu0 %2135
        %2137 = vrot.lane.b32.xlu0 %v1303, 120
        %v2138 = vpop.permute.xlu0 %2137
        %2139 = vrot.lane.b32.xlu0 %v1304, 120
        %v2140 = vpop.permute.xlu0 %2139
        %2149 = vmatprep.subr.bf16.mxu0 0
        %2150 = vmatpush1.bf16.msra.mxu0 %v2126
        %2151 = vmatprep.subr.bf16.mxu0 0
        %2152 = vmatpush1.bf16.msra.mxu0 %v2128
        %2153 = vmatprep.subr.bf16.mxu0 0
        %2154 = vmatpush1.bf16.msra.mxu0 %v2130
        %2155 = vmatprep.subr.bf16.mxu0 0
        %2156 = vmatpush1.bf16.msra.mxu0 %v2132
        %2157 = vmatprep.subr.bf16.mxu0 0
        %2158 = vmatpush1.bf16.msra.mxu0 %v2134
        %2159 = vmatprep.subr.bf16.mxu0 0
        %2160 = vmatpush1.bf16.msra.mxu0 %v2136
        %2161 = vmatprep.subr.bf16.mxu0 0
        %2162 = vmatpush1.bf16.msra.mxu0 %v2138
        %2163 = vmatprep.subr.bf16.mxu0 0
        %2164 = vmatpush1.bf16.msra.mxu0 %v2140
        %2165 = vmatprep.subr.bf16.mxu0 0
        %2166 = vmatpush1.bf16.msra.mxu0 0
        %2167 = vmatprep.subr.bf16.mxu0 0
        %2168 = vmatpush1.bf16.msra.mxu0 0
        %2169 = vmatprep.subr.bf16.mxu0 0
        %2170 = vmatpush1.bf16.msra.mxu0 0
        %2171 = vmatprep.subr.bf16.mxu0 0
        %2172 = vmatpush1.bf16.msra.mxu0 0
        %2173 = vmatprep.subr.bf16.mxu0 0
        %2174 = vmatpush1.bf16.msra.mxu0 0
        %2175 = vmatprep.subr.bf16.mxu0 0
        %2176 = vmatpush1.bf16.msra.mxu0 0
        %2177 = vmatprep.subr.bf16.mxu0 0
        %2178 = vmatpush1.bf16.msra.mxu0 0
        %2179 = vmatprep.subr.bf16.mxu0 0
        %2180 = vmatpush1.bf16.msra.mxu0 0
        %2181 = vmatprep.mubr.bf16.mxu0 0
        %2182 = vmatmul.mubr.bf16.gmra.mrb[0].mxu0 %v2117
        %v2183 = vpop.f32.mrb[0].mxu0
        %v2184 = vadd.f32 0.0, %v2183
        %v2185 = vpop.f32.mrb[0].mxu0
        %v2186 = vpop.f32.mrb[0].mxu0
        %v2187 = vadd.f32 0.0, %v2186
        %v2188 = vpop.f32.mrb[0].mxu0
        %2189 = vmatprep.mubr.bf16.mxu0 0
        %2190 = vmatmul.mubr.bf16.gmra.mrb[0].mxu0 %v2118
        %v2191 = vpop.f32.mrb[0].mxu0
        %v2192 = vadd.f32 0.0, %v2191
        %v2193 = vpop.f32.mrb[0].mxu0
        %v2194 = vpop.f32.mrb[0].mxu0
        %v2195 = vadd.f32 0.0, %v2194
        %v2196 = vpop.f32.mrb[0].mxu0
        %2197 = vmatprep.mubr.bf16.mxu0 0
        %2198 = vmatmul.mubr.bf16.gmra.mrb[0].mxu0 %v2119
        %v2199 = vpop.f32.mrb[0].mxu0
        %v2200 = vadd.f32 0.0, %v2199
        %v2201 = vpop.f32.mrb[0].mxu0
        %v2202 = vpop.f32.mrb[0].mxu0
        %v2203 = vadd.f32 0.0, %v2202
        %v2204 = vpop.f32.mrb[0].mxu0
        %2205 = vmatprep.mubr.bf16.mxu0 0
        %2206 = vmatmul.mubr.bf16.gmra.mrb[0].mxu0 %v2120
        %v2207 = vpop.f32.mrb[0].mxu0
        %v2208 = vadd.f32 0.0, %v2207
        %v2209 = vpop.f32.mrb[0].mxu0
        %v2210 = vpop.f32.mrb[0].mxu0
        %v2211 = vadd.f32 0.0, %v2210
        %v2212 = vpop.f32.mrb[0].mxu0
        %2213 = vmatprep.mubr.bf16.mxu0 0
        %2214 = vmatmul.mubr.bf16.gmra.mrb[0].mxu0 %v2121
        %v2215 = vpop.f32.mrb[0].mxu0
        %v2216 = vadd.f32 0.0, %v2215
        %v2217 = vpop.f32.mrb[0].mxu0
        %v2218 = vpop.f32.mrb[0].mxu0
        %v2219 = vadd.f32 0.0, %v2218
        %v2220 = vpop.f32.mrb[0].mxu0
        %2221 = vmatprep.mubr.bf16.mxu0 0
        %2222 = vmatmul.mubr.bf16.gmra.mrb[0].mxu0 %v2122
        %v2223 = vpop.f32.mrb[0].mxu0
        %v2224 = vadd.f32 0.0, %v2223
        %v2225 = vpop.f32.mrb[0].mxu0
        %v2226 = vpop.f32.mrb[0].mxu0
        %v2227 = vadd.f32 0.0, %v2226
        %v2228 = vpop.f32.mrb[0].mxu0
        %2229 = vmatprep.mubr.bf16.mxu0 0
        %2230 = vmatmul.mubr.bf16.gmra.mrb[0].mxu0 %v2123
        %v2231 = vpop.f32.mrb[0].mxu0
        %v2232 = vadd.f32 0.0, %v2231
        %v2233 = vpop.f32.mrb[0].mxu0
        %v2234 = vpop.f32.mrb[0].mxu0
        %v2235 = vadd.f32 0.0, %v2234
        %v2236 = vpop.f32.mrb[0].mxu0
        %2237 = vmatprep.mubr.bf16.mxu0 0
        %2238 = vmatmul.mubr.bf16.gmra.mrb[0].mxu0 %v2124
        %v2239 = vpop.f32.mrb[0].mxu0
        %v2240 = vadd.f32 0.0, %v2239
        %v2241 = vpop.f32.mrb[0].mxu0
        %v2242 = vpop.f32.mrb[0].mxu0
        %v2243 = vadd.f32 0.0, %v2242
        %v2244 = vpop.f32.mrb[0].mxu0
        %2245 = vdwg.mxu0
        %2262 = vrot.lane.b32.xlu0 %v2184, 8
        %v2263 = vpop.permute.xlu0 %2262
        %2264 = vrot.lane.b32.xlu0 %v2187, 8
        %v2265 = vpop.permute.xlu0 %2264
        %2266 = vrot.lane.b32.xlu0 %v2192, 8
        %v2267 = vpop.permute.xlu0 %2266
        %2268 = vrot.lane.b32.xlu0 %v2195, 8
        %v2269 = vpop.permute.xlu0 %2268
        %2270 = vrot.lane.b32.xlu0 %v2200, 8
        %v2271 = vpop.permute.xlu0 %2270
        %2272 = vrot.lane.b32.xlu0 %v2203, 8
        %v2273 = vpop.permute.xlu0 %2272
        %2274 = vrot.lane.b32.xlu0 %v2208, 8
        %v2275 = vpop.permute.xlu0 %2274
        %2276 = vrot.lane.b32.xlu0 %v2211, 8
        %v2277 = vpop.permute.xlu0 %2276
        %2278 = vrot.lane.b32.xlu0 %v2216, 8
        %v2279 = vpop.permute.xlu0 %2278
        %2280 = vrot.lane.b32.xlu0 %v2219, 8
        %v2281 = vpop.permute.xlu0 %2280
        %2282 = vrot.lane.b32.xlu0 %v2224, 8
        %v2283 = vpop.permute.xlu0 %2282
        %2284 = vrot.lane.b32.xlu0 %v2227, 8
        %v2285 = vpop.permute.xlu0 %2284
        %2286 = vrot.lane.b32.xlu0 %v2232, 8
        %v2287 = vpop.permute.xlu0 %2286
        %2288 = vrot.lane.b32.xlu0 %v2235, 8
        %v2289 = vpop.permute.xlu0 %2288
        %2290 = vrot.lane.b32.xlu0 %v2240, 8
        %v2291 = vpop.permute.xlu0 %2290
        %2292 = vrot.lane.b32.xlu0 %v2243, 8
        %v2293 = vpop.permute.xlu0 %2292
        %v2310 = vadd.f32 %v2101, %v2263
        %v2311 = vadd.f32 %v2102, %v2265
        %v2312 = vadd.f32 %v2103, %v2267
        %v2313 = vadd.f32 %v2104, %v2269
        %v2314 = vadd.f32 %v2105, %v2271
        %v2315 = vadd.f32 %v2106, %v2273
        %v2316 = vadd.f32 %v2107, %v2275
        %v2317 = vadd.f32 %v2108, %v2277
        %v2318 = vadd.f32 %v2109, %v2279
        %v2319 = vadd.f32 %v2110, %v2281
        %v2320 = vadd.f32 %v2111, %v2283
        %v2321 = vadd.f32 %v2112, %v2285
        %v2322 = vadd.f32 %v2113, %v2287
        %v2323 = vadd.f32 %v2114, %v2289
        %v2324 = vadd.f32 %v2115, %v2291
        %v2325 = vadd.f32 %v2116, %v2293
        %vm2326 = vcmask 130112
        %2327 = vst.msk [vmem:[#allocation4] sm:$0xff] %vm2326, %v2310
        %2328 = vst.msk [vmem:[#allocation4 + $0x8] sm:$0xff] %vm2326, %v2311
        %2329 = vst.msk [vmem:[#allocation4 + $0x10] sm:$0xff] %vm2326, %v2312
        %2330 = vst.msk [vmem:[#allocation4 + $0x18] sm:$0xff] %vm2326, %v2313
        %2331 = vst.msk [vmem:[#allocation4 + $0x20] sm:$0xff] %vm2326, %v2314
        %2332 = vst.msk [vmem:[#allocation4 + $0x28] sm:$0xff] %vm2326, %v2315
        %2333 = vst.msk [vmem:[#allocation4 + $0x30] sm:$0xff] %vm2326, %v2316
        %2334 = vst.msk [vmem:[#allocation4 + $0x38] sm:$0xff] %vm2326, %v2317
        %2335 = vst.msk [vmem:[#allocation4 + $0x40] sm:$0xff] %vm2326, %v2318
        %2336 = vst.msk [vmem:[#allocation4 + $0x48] sm:$0xff] %vm2326, %v2319
        %2337 = vst.msk [vmem:[#allocation4 + $0x50] sm:$0xff] %vm2326, %v2320
        %2338 = vst.msk [vmem:[#allocation4 + $0x58] sm:$0xff] %vm2326, %v2321
        %2339 = vst.msk [vmem:[#allocation4 + $0x60] sm:$0xff] %vm2326, %v2322
        %2340 = vst.msk [vmem:[#allocation4 + $0x68] sm:$0xff] %vm2326, %v2323
        %2341 = vst.msk [vmem:[#allocation4 + $0x70] sm:$0xff] %vm2326, %v2324
        %2342 = vst.msk [vmem:[#allocation4 + $0x78] sm:$0xff] %vm2326, %v2325
        %2343 = vst.msk [vmem:[%s1667] sm:$0xff] %vm1128, %v1716
        %2344 = vst.msk [vmem:[%s1667 + $0x8] sm:$0xff] %vm1128, %v1717
        %2345 = vst.msk [vmem:[%s1667 + $0x10] sm:$0xff] %vm1128, %v1718
        %2346 = vst.msk [vmem:[%s1667 + $0x18] sm:$0xff] %vm1128, %v1719
        %2347 = vst.msk [vmem:[%s1667 + $0x20] sm:$0xff] %vm1128, %v1720
        %2348 = vst.msk [vmem:[%s1667 + $0x28] sm:$0xff] %vm1128, %v1721
        %2349 = vst.msk [vmem:[%s1667 + $0x30] sm:$0xff] %vm1128, %v1722
        %2350 = vst.msk [vmem:[%s1667 + $0x38] sm:$0xff] %vm1128, %v1723
        %2351 = vst.msk [vmem:[%s1667 + $0x40] sm:$0xff] %vm1128, %v1724
        %2352 = vst.msk [vmem:[%s1667 + $0x48] sm:$0xff] %vm1128, %v1725
        %2353 = vst.msk [vmem:[%s1667 + $0x50] sm:$0xff] %vm1128, %v1726
        %2354 = vst.msk [vmem:[%s1667 + $0x58] sm:$0xff] %vm1128, %v1727
        %2355 = vst.msk [vmem:[%s1667 + $0x60] sm:$0xff] %vm1128, %v1728
        %2356 = vst.msk [vmem:[%s1667 + $0x68] sm:$0xff] %vm1128, %v1729
        %2357 = vst.msk [vmem:[%s1667 + $0x70] sm:$0xff] %vm1128, %v1730
        %2358 = vst.msk [vmem:[%s1667 + $0x78] sm:$0xff] %vm1128, %v1731
        %2359 = vrot.lane.b32.xlu0 %v582, 112
        %v2360 = vpop.permute.xlu0 %2359
        %2361 = vrot.lane.b32.xlu0 %v583, 112
        %v2362 = vpop.permute.xlu0 %2361
        %2363 = vrot.lane.b32.xlu0 %v584, 112
        %v2364 = vpop.permute.xlu0 %2363
        %2365 = vrot.lane.b32.xlu0 %v585, 112
        %v2366 = vpop.permute.xlu0 %2365
        %2367 = vrot.lane.b32.xlu0 %v586, 112
        %v2368 = vpop.permute.xlu0 %2367
        %2369 = vrot.lane.b32.xlu0 %v587, 112
        %v2370 = vpop.permute.xlu0 %2369
        %2371 = vrot.lane.b32.xlu0 %v588, 112
        %v2372 = vpop.permute.xlu0 %2371
        %2373 = vrot.lane.b32.xlu0 %v589, 112
        %v2374 = vpop.permute.xlu0 %2373
        %2375 = vrot.lane.b32.xlu0 %v622, 112
        %v2376 = vpop.permute.xlu0 %2375
        %2377 = vrot.lane.b32.xlu0 %v623, 112
        %v2378 = vpop.permute.xlu0 %2377
        %2379 = vrot.lane.b32.xlu0 %v624, 112
        %v2380 = vpop.permute.xlu0 %2379
        %2381 = vrot.lane.b32.xlu0 %v625, 112
        %v2382 = vpop.permute.xlu0 %2381
        %2383 = vrot.lane.b32.xlu0 %v626, 112
        %v2384 = vpop.permute.xlu0 %2383
        %2385 = vrot.lane.b32.xlu0 %v627, 112
        %v2386 = vpop.permute.xlu0 %2385
        %2387 = vrot.lane.b32.xlu0 %v628, 112
        %v2388 = vpop.permute.xlu0 %2387
        %2389 = vrot.lane.b32.xlu0 %v629, 112
        %v2390 = vpop.permute.xlu0 %2389
        %v2392 = vsel %vm630, %v2360, 0
        %v2395 = vsel %vm630, %v2362, 0
        %v2398 = vsel %vm630, %v2364, 0
        %v2401 = vsel %vm630, %v2366, 0
        %v2404 = vsel %vm630, %v2368, 0
        %v2407 = vsel %vm630, %v2370, 0
        %v2410 = vsel %vm630, %v2372, 0
        %v2413 = vsel %vm630, %v2374, 0
        %v2416 = vsel %vm630, %v2376, 0
        %v2419 = vsel %vm630, %v2378, 0
        %v2422 = vsel %vm630, %v2380, 0
        %v2425 = vsel %vm630, %v2382, 0
        %v2428 = vsel %vm630, %v2384, 0
        %v2431 = vsel %vm630, %v2386, 0
        %v2434 = vsel %vm630, %v2388, 0
        %v2437 = vsel %vm630, %v2390, 0
        %2439 = vmatprep.subr.bf16.mxu0 0
        %2440 = vmatpush1.bf16.xpose.msra.mxu0 %v2416
        %2441 = vmatprep.subr.bf16.mxu0 0
        %2442 = vmatpush1.bf16.xpose.msra.mxu0 %v2419
        %2443 = vmatprep.subr.bf16.mxu0 0
        %2444 = vmatpush1.bf16.xpose.msra.mxu0 %v2422
        %2445 = vmatprep.subr.bf16.mxu0 0
        %2446 = vmatpush1.bf16.xpose.msra.mxu0 %v2425
        %2447 = vmatprep.subr.bf16.mxu0 0
        %2448 = vmatpush1.bf16.xpose.msra.mxu0 %v2428
        %2449 = vmatprep.subr.bf16.mxu0 0
        %2450 = vmatpush1.bf16.xpose.msra.mxu0 %v2431
        %2451 = vmatprep.subr.bf16.mxu0 0
        %2452 = vmatpush1.bf16.xpose.msra.mxu0 %v2434
        %2453 = vmatprep.subr.bf16.mxu0 0
        %2454 = vmatpush1.bf16.xpose.msra.mxu0 %v2437
        %2455 = vmatprep.subr.bf16.mxu0 0
        %2456 = vmatpush1.bf16.xpose.msra.mxu0 0
        %2457 = vmatprep.subr.bf16.mxu0 0
        %2458 = vmatpush1.bf16.xpose.msra.mxu0 0
        %2459 = vmatprep.subr.bf16.mxu0 0
        %2460 = vmatpush1.bf16.xpose.msra.mxu0 0
        %2461 = vmatprep.subr.bf16.mxu0 0
        %2462 = vmatpush1.bf16.xpose.msra.mxu0 0
        %2463 = vmatprep.subr.bf16.mxu0 0
        %2464 = vmatpush1.bf16.xpose.msra.mxu0 0
        %2465 = vmatprep.subr.bf16.mxu0 0
        %2466 = vmatpush1.bf16.xpose.msra.mxu0 0
        %2467 = vmatprep.subr.bf16.mxu0 0
        %2468 = vmatpush1.bf16.xpose.msra.mxu0 0
        %2469 = vmatprep.subr.bf16.mxu0 0
        %2470 = vmatpush1.bf16.xpose.msra.mxu0 0
        %2471 = vmatprep.mubr.bf16.mxu0 0
        %2472 = vmatmul.mubr.bf16.gmra.mrb[0].mxu0 %v2392
        %v2473 = vpop.f32.mrb[0].mxu0
        %v2474 = vadd.f32 0.0, %v2473
        %v2475 = vpop.f32.mrb[0].mxu0
        %v2476 = vpop.f32.mrb[0].mxu0
        %v2477 = vadd.f32 0.0, %v2476
        %v2478 = vpop.f32.mrb[0].mxu0
        %2479 = vmatprep.mubr.bf16.mxu0 0
        %2480 = vmatmul.mubr.bf16.gmra.mrb[0].mxu0 %v2395
        %v2481 = vpop.f32.mrb[0].mxu0
        %v2482 = vadd.f32 0.0, %v2481
        %v2483 = vpop.f32.mrb[0].mxu0
        %v2484 = vpop.f32.mrb[0].mxu0
        %v2485 = vadd.f32 0.0, %v2484
        %v2486 = vpop.f32.mrb[0].mxu0
        %2487 = vmatprep.mubr.bf16.mxu0 0
        %2488 = vmatmul.mubr.bf16.gmra.mrb[0].mxu0 %v2398
        %v2489 = vpop.f32.mrb[0].mxu0
        %v2490 = vadd.f32 0.0, %v2489
        %v2491 = vpop.f32.mrb[0].mxu0
        %v2492 = vpop.f32.mrb[0].mxu0
        %v2493 = vadd.f32 0.0, %v2492
        %v2494 = vpop.f32.mrb[0].mxu0
        %2495 = vmatprep.mubr.bf16.mxu0 0
        %2496 = vmatmul.mubr.bf16.gmra.mrb[0].mxu0 %v2401
        %v2497 = vpop.f32.mrb[0].mxu0
        %v2498 = vadd.f32 0.0, %v2497
        %v2499 = vpop.f32.mrb[0].mxu0
        %v2500 = vpop.f32.mrb[0].mxu0
        %v2501 = vadd.f32 0.0, %v2500
        %v2502 = vpop.f32.mrb[0].mxu0
        %2503 = vmatprep.mubr.bf16.mxu0 0
        %2504 = vmatmul.mubr.bf16.gmra.mrb[0].mxu0 %v2404
        %v2505 = vpop.f32.mrb[0].mxu0
        %v2506 = vadd.f32 0.0, %v2505
        %v2507 = vpop.f32.mrb[0].mxu0
        %v2508 = vpop.f32.mrb[0].mxu0
        %v2509 = vadd.f32 0.0, %v2508
        %v2510 = vpop.f32.mrb[0].mxu0
        %2511 = vmatprep.mubr.bf16.mxu0 0
        %2512 = vmatmul.mubr.bf16.gmra.mrb[0].mxu0 %v2407
        %v2513 = vpop.f32.mrb[0].mxu0
        %v2514 = vadd.f32 0.0, %v2513
        %v2515 = vpop.f32.mrb[0].mxu0
        %v2516 = vpop.f32.mrb[0].mxu0
        %v2517 = vadd.f32 0.0, %v2516
        %v2518 = vpop.f32.mrb[0].mxu0
        %2519 = vmatprep.mubr.bf16.mxu0 0
        %2520 = vmatmul.mubr.bf16.gmra.mrb[0].mxu0 %v2410
        %v2521 = vpop.f32.mrb[0].mxu0
        %v2522 = vadd.f32 0.0, %v2521
        %v2523 = vpop.f32.mrb[0].mxu0
        %v2524 = vpop.f32.mrb[0].mxu0
        %v2525 = vadd.f32 0.0, %v2524
        %v2526 = vpop.f32.mrb[0].mxu0
        %2527 = vmatprep.mubr.bf16.mxu0 0
        %2528 = vmatmul.mubr.bf16.gmra.mrb[0].mxu0 %v2413
        %v2529 = vpop.f32.mrb[0].mxu0
        %v2530 = vadd.f32 0.0, %v2529
        %v2531 = vpop.f32.mrb[0].mxu0
        %v2532 = vpop.f32.mrb[0].mxu0
        %v2533 = vadd.f32 0.0, %v2532
        %v2534 = vpop.f32.mrb[0].mxu0
        %2535 = vdwg.mxu0
        %v2536 = vmul.f32 %v2474, 0.35355338
        %v2537 = vmul.f32 %v2477, 0.35355338
        %v2538 = vmul.f32 %v2482, 0.35355338
        %v2539 = vmul.f32 %v2485, 0.35355338
        %v2540 = vmul.f32 %v2490, 0.35355338
        %v2541 = vmul.f32 %v2493, 0.35355338
        %v2542 = vmul.f32 %v2498, 0.35355338
        %v2543 = vmul.f32 %v2501, 0.35355338
        %v2544 = vmul.f32 %v2506, 0.35355338
        %v2545 = vmul.f32 %v2509, 0.35355338
        %v2546 = vmul.f32 %v2514, 0.35355338
        %v2547 = vmul.f32 %v2517, 0.35355338
        %v2548 = vmul.f32 %v2522, 0.35355338
        %v2549 = vmul.f32 %v2525, 0.35355338
        %v2550 = vmul.f32 %v2530, 0.35355338
        %v2551 = vmul.f32 %v2533, 0.35355338
        %v2552 = vsel %vm486, %v2536, -1e+30
        %v2553 = vsel %vm487, %v2537, -1e+30
        %v2554 = vsel %vm488, %v2538, -1e+30
        %v2555 = vsel %vm489, %v2539, -1e+30
        %v2556 = vsel %vm490, %v2540, -1e+30
        %v2557 = vsel %vm491, %v2541, -1e+30
        %v2558 = vsel %vm492, %v2542, -1e+30
        %v2559 = vsel %vm493, %v2543, -1e+30
        %v2560 = vsel %vm494, %v2544, -1e+30
        %v2561 = vsel %vm495, %v2545, -1e+30
        %v2562 = vsel %vm496, %v2546, -1e+30
        %v2563 = vsel %vm497, %v2547, -1e+30
        %v2564 = vsel %vm498, %v2548, -1e+30
        %v2565 = vsel %vm499, %v2549, -1e+30
        %v2566 = vsel %vm500, %v2550, -1e+30
        %v2567 = vsel %vm501, %v2551, -1e+30
        %s2568 = scalar_lea.vmem [#allocation2], 256
        %v2569 = vld [vmem:[%s2568] sm:$0xff]
        %v2570 = vld [vmem:[%s2568 + $0x8] sm:$0xff]
        %v2571 = vld [vmem:[%s2568 + $0x10] sm:$0xff]
        %v2572 = vld [vmem:[%s2568 + $0x18] sm:$0xff]
        %v2573 = vld [vmem:[%s2568 + $0x20] sm:$0xff]
        %v2574 = vld [vmem:[%s2568 + $0x28] sm:$0xff]
        %v2575 = vld [vmem:[%s2568 + $0x30] sm:$0xff]
        %v2576 = vld [vmem:[%s2568 + $0x38] sm:$0xff]
        %v2577 = vld [vmem:[%s2568 + $0x40] sm:$0xff]
        %v2578 = vld [vmem:[%s2568 + $0x48] sm:$0xff]
        %v2579 = vld [vmem:[%s2568 + $0x50] sm:$0xff]
        %v2580 = vld [vmem:[%s2568 + $0x58] sm:$0xff]
        %v2581 = vld [vmem:[%s2568 + $0x60] sm:$0xff]
        %v2582 = vld [vmem:[%s2568 + $0x68] sm:$0xff]
        %v2583 = vld [vmem:[%s2568 + $0x70] sm:$0xff]
        %v2584 = vld [vmem:[%s2568 + $0x78] sm:$0xff]
        %2585 = vmax.xlane.f32.xlu0 %v2552
        %v2586 = vpop.xlane.xlu0 %2585
        %2587 = vmax.xlane.f32.xlu0 %v2553
        %v2588 = vpop.xlane.xlu0 %2587
        %2589 = vmax.xlane.f32.xlu0 %v2554
        %v2590 = vpop.xlane.xlu0 %2589
        %2591 = vmax.xlane.f32.xlu0 %v2555
        %v2592 = vpop.xlane.xlu0 %2591
        %2593 = vmax.xlane.f32.xlu0 %v2556
        %v2594 = vpop.xlane.xlu0 %2593
        %2595 = vmax.xlane.f32.xlu0 %v2557
        %v2596 = vpop.xlane.xlu0 %2595
        %2597 = vmax.xlane.f32.xlu0 %v2558
        %v2598 = vpop.xlane.xlu0 %2597
        %2599 = vmax.xlane.f32.xlu0 %v2559
        %v2600 = vpop.xlane.xlu0 %2599
        %2601 = vmax.xlane.f32.xlu0 %v2560
        %v2602 = vpop.xlane.xlu0 %2601
        %2603 = vmax.xlane.f32.xlu0 %v2561
        %v2604 = vpop.xlane.xlu0 %2603
        %2605 = vmax.xlane.f32.xlu0 %v2562
        %v2606 = vpop.xlane.xlu0 %2605
        %2607 = vmax.xlane.f32.xlu0 %v2563
        %v2608 = vpop.xlane.xlu0 %2607
        %2609 = vmax.xlane.f32.xlu0 %v2564
        %v2610 = vpop.xlane.xlu0 %2609
        %2611 = vmax.xlane.f32.xlu0 %v2565
        %v2612 = vpop.xlane.xlu0 %2611
        %2613 = vmax.xlane.f32.xlu0 %v2566
        %v2614 = vpop.xlane.xlu0 %2613
        %2615 = vmax.xlane.f32.xlu0 %v2567
        %v2616 = vpop.xlane.xlu0 %2615
        %v2617 = vmax.f32 %v2569, %v2586
        %v2618 = vmax.f32 %v2570, %v2588
        %v2619 = vmax.f32 %v2571, %v2590
        %v2620 = vmax.f32 %v2572, %v2592
        %v2621 = vmax.f32 %v2573, %v2594
        %v2622 = vmax.f32 %v2574, %v2596
        %v2623 = vmax.f32 %v2575, %v2598
        %v2624 = vmax.f32 %v2576, %v2600
        %v2625 = vmax.f32 %v2577, %v2602
        %v2626 = vmax.f32 %v2578, %v2604
        %v2627 = vmax.f32 %v2579, %v2606
        %v2628 = vmax.f32 %v2580, %v2608
        %v2629 = vmax.f32 %v2581, %v2610
        %v2630 = vmax.f32 %v2582, %v2612
        %v2631 = vmax.f32 %v2583, %v2614
        %v2632 = vmax.f32 %v2584, %v2616
        %v2633 = vsub.f32 %v2569, %v2617
        %v2634 = vsub.f32 %v2570, %v2618
        %v2635 = vsub.f32 %v2571, %v2619
        %v2636 = vsub.f32 %v2572, %v2620
        %v2637 = vsub.f32 %v2573, %v2621
        %v2638 = vsub.f32 %v2574, %v2622
        %v2639 = vsub.f32 %v2575, %v2623
        %v2640 = vsub.f32 %v2576, %v2624
        %v2641 = vsub.f32 %v2577, %v2625
        %v2642 = vsub.f32 %v2578, %v2626
        %v2643 = vsub.f32 %v2579, %v2627
        %v2644 = vsub.f32 %v2580, %v2628
        %v2645 = vsub.f32 %v2581, %v2629
        %v2646 = vsub.f32 %v2582, %v2630
        %v2647 = vsub.f32 %v2583, %v2631
        %v2648 = vsub.f32 %v2584, %v2632
        %v2649 = vmul.f32 %v2633, 1.442695
        %v2650 = vpow.pop %v2649
        %v2651 = vmul.f32 %v2634, 1.442695
        %v2652 = vpow.pop %v2651
        %v2653 = vmul.f32 %v2635, 1.442695
        %v2654 = vpow.pop %v2653
        %v2655 = vmul.f32 %v2636, 1.442695
        %v2656 = vpow.pop %v2655
        %v2657 = vmul.f32 %v2637, 1.442695
        %v2658 = vpow.pop %v2657
        %v2659 = vmul.f32 %v2638, 1.442695
        %v2660 = vpow.pop %v2659
        %v2661 = vmul.f32 %v2639, 1.442695
        %v2662 = vpow.pop %v2661
        %v2663 = vmul.f32 %v2640, 1.442695
        %v2664 = vpow.pop %v2663
        %v2665 = vmul.f32 %v2641, 1.442695
        %v2666 = vpow.pop %v2665
        %v2667 = vmul.f32 %v2642, 1.442695
        %v2668 = vpow.pop %v2667
        %v2669 = vmul.f32 %v2643, 1.442695
        %v2670 = vpow.pop %v2669
        %v2671 = vmul.f32 %v2644, 1.442695
        %v2672 = vpow.pop %v2671
        %v2673 = vmul.f32 %v2645, 1.442695
        %v2674 = vpow.pop %v2673
        %v2675 = vmul.f32 %v2646, 1.442695
        %v2676 = vpow.pop %v2675
        %v2677 = vmul.f32 %v2647, 1.442695
        %v2678 = vpow.pop %v2677
        %v2679 = vmul.f32 %v2648, 1.442695
        %v2680 = vpow.pop %v2679
        %2682 = vset.pattern.permute.xlu0 0
        %2683 = vperm.xlu0 %2682, %v2617
        %v2684 = vpop.permute.xlu0 %2683
        %2687 = vset.pattern.permute.xlu0 0
        %2688 = vperm.xlu0 %2687, %v2618
        %v2689 = vpop.permute.xlu0 %2688
        %2692 = vset.pattern.permute.xlu0 0
        %2693 = vperm.xlu0 %2692, %v2619
        %v2694 = vpop.permute.xlu0 %2693
        %2697 = vset.pattern.permute.xlu0 0
        %2698 = vperm.xlu0 %2697, %v2620
        %v2699 = vpop.permute.xlu0 %2698
        %2702 = vset.pattern.permute.xlu0 0
        %2703 = vperm.xlu0 %2702, %v2621
        %v2704 = vpop.permute.xlu0 %2703
        %2707 = vset.pattern.permute.xlu0 0
        %2708 = vperm.xlu0 %2707, %v2622
        %v2709 = vpop.permute.xlu0 %2708
        %2712 = vset.pattern.permute.xlu0 0
        %2713 = vperm.xlu0 %2712, %v2623
        %v2714 = vpop.permute.xlu0 %2713
        %2717 = vset.pattern.permute.xlu0 0
        %2718 = vperm.xlu0 %2717, %v2624
        %v2719 = vpop.permute.xlu0 %2718
        %2722 = vset.pattern.permute.xlu0 0
        %2723 = vperm.xlu0 %2722, %v2625
        %v2724 = vpop.permute.xlu0 %2723
        %2727 = vset.pattern.permute.xlu0 0
        %2728 = vperm.xlu0 %2727, %v2626
        %v2729 = vpop.permute.xlu0 %2728
        %2732 = vset.pattern.permute.xlu0 0
        %2733 = vperm.xlu0 %2732, %v2627
        %v2734 = vpop.permute.xlu0 %2733
        %2737 = vset.pattern.permute.xlu0 0
        %2738 = vperm.xlu0 %2737, %v2628
        %v2739 = vpop.permute.xlu0 %2738
        %2742 = vset.pattern.permute.xlu0 0
        %2743 = vperm.xlu0 %2742, %v2629
        %v2744 = vpop.permute.xlu0 %2743
        %2747 = vset.pattern.permute.xlu0 0
        %2748 = vperm.xlu0 %2747, %v2630
        %v2749 = vpop.permute.xlu0 %2748
        %2752 = vset.pattern.permute.xlu0 0
        %2753 = vperm.xlu0 %2752, %v2631
        %v2754 = vpop.permute.xlu0 %2753
        %2757 = vset.pattern.permute.xlu0 0
        %2758 = vperm.xlu0 %2757, %v2632
        %v2759 = vpop.permute.xlu0 %2758
        %v2761 = vsub.f32 %v2552, %v2684
        %v2762 = vsub.f32 %v2553, %v2689
        %v2763 = vsub.f32 %v2554, %v2694
        %v2764 = vsub.f32 %v2555, %v2699
        %v2765 = vsub.f32 %v2556, %v2704
        %v2766 = vsub.f32 %v2557, %v2709
        %v2767 = vsub.f32 %v2558, %v2714
        %v2768 = vsub.f32 %v2559, %v2719
        %v2769 = vsub.f32 %v2560, %v2724
        %v2770 = vsub.f32 %v2561, %v2729
        %v2771 = vsub.f32 %v2562, %v2734
        %v2772 = vsub.f32 %v2563, %v2739
        %v2773 = vsub.f32 %v2564, %v2744
        %v2774 = vsub.f32 %v2565, %v2749
        %v2775 = vsub.f32 %v2566, %v2754
        %v2776 = vsub.f32 %v2567, %v2759
        %v2777 = vmul.f32 %v2761, 1.442695
        %v2778 = vpow.pop %v2777
        %v2779 = vmul.f32 %v2762, 1.442695
        %v2780 = vpow.pop %v2779
        %v2781 = vmul.f32 %v2763, 1.442695
        %v2782 = vpow.pop %v2781
        %v2783 = vmul.f32 %v2764, 1.442695
        %v2784 = vpow.pop %v2783
        %v2785 = vmul.f32 %v2765, 1.442695
        %v2786 = vpow.pop %v2785
        %v2787 = vmul.f32 %v2766, 1.442695
        %v2788 = vpow.pop %v2787
        %v2789 = vmul.f32 %v2767, 1.442695
        %v2790 = vpow.pop %v2789
        %v2791 = vmul.f32 %v2768, 1.442695
        %v2792 = vpow.pop %v2791
        %v2793 = vmul.f32 %v2769, 1.442695
        %v2794 = vpow.pop %v2793
        %v2795 = vmul.f32 %v2770, 1.442695
        %v2796 = vpow.pop %v2795
        %v2797 = vmul.f32 %v2771, 1.442695
        %v2798 = vpow.pop %v2797
        %v2799 = vmul.f32 %v2772, 1.442695
        %v2800 = vpow.pop %v2799
        %v2801 = vmul.f32 %v2773, 1.442695
        %v2802 = vpow.pop %v2801
        %v2803 = vmul.f32 %v2774, 1.442695
        %v2804 = vpow.pop %v2803
        %v2805 = vmul.f32 %v2775, 1.442695
        %v2806 = vpow.pop %v2805
        %v2807 = vmul.f32 %v2776, 1.442695
        %v2808 = vpow.pop %v2807
        %s2809 = scalar_lea.vmem [#allocation3], 256
        %v2810 = vld [vmem:[%s2809] sm:$0xff]
        %v2811 = vld [vmem:[%s2809 + $0x8] sm:$0xff]
        %v2812 = vld [vmem:[%s2809 + $0x10] sm:$0xff]
        %v2813 = vld [vmem:[%s2809 + $0x18] sm:$0xff]
        %v2814 = vld [vmem:[%s2809 + $0x20] sm:$0xff]
        %v2815 = vld [vmem:[%s2809 + $0x28] sm:$0xff]
        %v2816 = vld [vmem:[%s2809 + $0x30] sm:$0xff]
        %v2817 = vld [vmem:[%s2809 + $0x38] sm:$0xff]
        %v2818 = vld [vmem:[%s2809 + $0x40] sm:$0xff]
        %v2819 = vld [vmem:[%s2809 + $0x48] sm:$0xff]
        %v2820 = vld [vmem:[%s2809 + $0x50] sm:$0xff]
        %v2821 = vld [vmem:[%s2809 + $0x58] sm:$0xff]
        %v2822 = vld [vmem:[%s2809 + $0x60] sm:$0xff]
        %v2823 = vld [vmem:[%s2809 + $0x68] sm:$0xff]
        %v2824 = vld [vmem:[%s2809 + $0x70] sm:$0xff]
        %v2825 = vld [vmem:[%s2809 + $0x78] sm:$0xff]
        %v2826 = vmul.f32 %v2650, %v2810
        %v2827 = vmul.f32 %v2652, %v2811
        %v2828 = vmul.f32 %v2654, %v2812
        %v2829 = vmul.f32 %v2656, %v2813
        %v2830 = vmul.f32 %v2658, %v2814
        %v2831 = vmul.f32 %v2660, %v2815
        %v2832 = vmul.f32 %v2662, %v2816
        %v2833 = vmul.f32 %v2664, %v2817
        %v2834 = vmul.f32 %v2666, %v2818
        %v2835 = vmul.f32 %v2668, %v2819
        %v2836 = vmul.f32 %v2670, %v2820
        %v2837 = vmul.f32 %v2672, %v2821
        %v2838 = vmul.f32 %v2674, %v2822
        %v2839 = vmul.f32 %v2676, %v2823
        %v2840 = vmul.f32 %v2678, %v2824
        %v2841 = vmul.f32 %v2680, %v2825
        %2842 = vadd.xlane.f32.xlu0 %v2778
        %v2843 = vpop.xlane.xlu0 %2842
        %2844 = vadd.xlane.f32.xlu0 %v2780
        %v2845 = vpop.xlane.xlu0 %2844
        %2846 = vadd.xlane.f32.xlu0 %v2782
        %v2847 = vpop.xlane.xlu0 %2846
        %2848 = vadd.xlane.f32.xlu0 %v2784
        %v2849 = vpop.xlane.xlu0 %2848
        %2850 = vadd.xlane.f32.xlu0 %v2786
        %v2851 = vpop.xlane.xlu0 %2850
        %2852 = vadd.xlane.f32.xlu0 %v2788
        %v2853 = vpop.xlane.xlu0 %2852
        %2854 = vadd.xlane.f32.xlu0 %v2790
        %v2855 = vpop.xlane.xlu0 %2854
        %2856 = vadd.xlane.f32.xlu0 %v2792
        %v2857 = vpop.xlane.xlu0 %2856
        %2858 = vadd.xlane.f32.xlu0 %v2794
        %v2859 = vpop.xlane.xlu0 %2858
        %2860 = vadd.xlane.f32.xlu0 %v2796
        %v2861 = vpop.xlane.xlu0 %2860
        %2862 = vadd.xlane.f32.xlu0 %v2798
        %v2863 = vpop.xlane.xlu0 %2862
        %2864 = vadd.xlane.f32.xlu0 %v2800
        %v2865 = vpop.xlane.xlu0 %2864
        %2866 = vadd.xlane.f32.xlu0 %v2802
        %v2867 = vpop.xlane.xlu0 %2866
        %2868 = vadd.xlane.f32.xlu0 %v2804
        %v2869 = vpop.xlane.xlu0 %2868
        %2870 = vadd.xlane.f32.xlu0 %v2806
        %v2871 = vpop.xlane.xlu0 %2870
        %2872 = vadd.xlane.f32.xlu0 %v2808
        %v2873 = vpop.xlane.xlu0 %2872
        %v2874 = vadd.f32 %v2826, %v2843
        %v2875 = vadd.f32 %v2827, %v2845
        %v2876 = vadd.f32 %v2828, %v2847
        %v2877 = vadd.f32 %v2829, %v2849
        %v2878 = vadd.f32 %v2830, %v2851
        %v2879 = vadd.f32 %v2831, %v2853
        %v2880 = vadd.f32 %v2832, %v2855
        %v2881 = vadd.f32 %v2833, %v2857
        %v2882 = vadd.f32 %v2834, %v2859
        %v2883 = vadd.f32 %v2835, %v2861
        %v2884 = vadd.f32 %v2836, %v2863
        %v2885 = vadd.f32 %v2837, %v2865
        %v2886 = vadd.f32 %v2838, %v2867
        %v2887 = vadd.f32 %v2839, %v2869
        %v2888 = vadd.f32 %v2840, %v2871
        %v2889 = vadd.f32 %v2841, %v2873
        %2890 = vst.msk [vmem:[%s2809] sm:$0xff] %vm1128, %v2874
        %2891 = vst.msk [vmem:[%s2809 + $0x8] sm:$0xff] %vm1128, %v2875
        %2892 = vst.msk [vmem:[%s2809 + $0x10] sm:$0xff] %vm1128, %v2876
        %2893 = vst.msk [vmem:[%s2809 + $0x18] sm:$0xff] %vm1128, %v2877
        %2894 = vst.msk [vmem:[%s2809 + $0x20] sm:$0xff] %vm1128, %v2878
        %2895 = vst.msk [vmem:[%s2809 + $0x28] sm:$0xff] %vm1128, %v2879
        %2896 = vst.msk [vmem:[%s2809 + $0x30] sm:$0xff] %vm1128, %v2880
        %2897 = vst.msk [vmem:[%s2809 + $0x38] sm:$0xff] %vm1128, %v2881
        %2898 = vst.msk [vmem:[%s2809 + $0x40] sm:$0xff] %vm1128, %v2882
        %2899 = vst.msk [vmem:[%s2809 + $0x48] sm:$0xff] %vm1128, %v2883
        %2900 = vst.msk [vmem:[%s2809 + $0x50] sm:$0xff] %vm1128, %v2884
        %2901 = vst.msk [vmem:[%s2809 + $0x58] sm:$0xff] %vm1128, %v2885
        %2902 = vst.msk [vmem:[%s2809 + $0x60] sm:$0xff] %vm1128, %v2886
        %2903 = vst.msk [vmem:[%s2809 + $0x68] sm:$0xff] %vm1128, %v2887
        %2904 = vst.msk [vmem:[%s2809 + $0x70] sm:$0xff] %vm1128, %v2888
        %2905 = vst.msk [vmem:[%s2809 + $0x78] sm:$0xff] %vm1128, %v2889
        %v2906 = vld [vmem:[#allocation4] sm:$0xff]
        %v2907 = vld [vmem:[#allocation4 + $0x8] sm:$0xff]
        %v2908 = vld [vmem:[#allocation4 + $0x10] sm:$0xff]
        %v2909 = vld [vmem:[#allocation4 + $0x18] sm:$0xff]
        %v2910 = vld [vmem:[#allocation4 + $0x20] sm:$0xff]
        %v2911 = vld [vmem:[#allocation4 + $0x28] sm:$0xff]
        %v2912 = vld [vmem:[#allocation4 + $0x30] sm:$0xff]
        %v2913 = vld [vmem:[#allocation4 + $0x38] sm:$0xff]
        %v2914 = vld [vmem:[#allocation4 + $0x40] sm:$0xff]
        %v2915 = vld [vmem:[#allocation4 + $0x48] sm:$0xff]
        %v2916 = vld [vmem:[#allocation4 + $0x50] sm:$0xff]
        %v2917 = vld [vmem:[#allocation4 + $0x58] sm:$0xff]
        %v2918 = vld [vmem:[#allocation4 + $0x60] sm:$0xff]
        %v2919 = vld [vmem:[#allocation4 + $0x68] sm:$0xff]
        %v2920 = vld [vmem:[#allocation4 + $0x70] sm:$0xff]
        %v2921 = vld [vmem:[#allocation4 + $0x78] sm:$0xff]
        %2923 = vset.pattern.permute.xlu0 0
        %2924 = vperm.xlu0 %2923, %v2650
        %v2925 = vpop.permute.xlu0 %2924
        %2928 = vset.pattern.permute.xlu0 0
        %2929 = vperm.xlu0 %2928, %v2652
        %v2930 = vpop.permute.xlu0 %2929
        %2933 = vset.pattern.permute.xlu0 0
        %2934 = vperm.xlu0 %2933, %v2654
        %v2935 = vpop.permute.xlu0 %2934
        %2938 = vset.pattern.permute.xlu0 0
        %2939 = vperm.xlu0 %2938, %v2656
        %v2940 = vpop.permute.xlu0 %2939
        %2943 = vset.pattern.permute.xlu0 0
        %2944 = vperm.xlu0 %2943, %v2658
        %v2945 = vpop.permute.xlu0 %2944
        %2948 = vset.pattern.permute.xlu0 0
        %2949 = vperm.xlu0 %2948, %v2660
        %v2950 = vpop.permute.xlu0 %2949
        %2953 = vset.pattern.permute.xlu0 0
        %2954 = vperm.xlu0 %2953, %v2662
        %v2955 = vpop.permute.xlu0 %2954
        %2958 = vset.pattern.permute.xlu0 0
        %2959 = vperm.xlu0 %2958, %v2664
        %v2960 = vpop.permute.xlu0 %2959
        %2963 = vset.pattern.permute.xlu0 0
        %2964 = vperm.xlu0 %2963, %v2666
        %v2965 = vpop.permute.xlu0 %2964
        %2968 = vset.pattern.permute.xlu0 0
        %2969 = vperm.xlu0 %2968, %v2668
        %v2970 = vpop.permute.xlu0 %2969
        %2973 = vset.pattern.permute.xlu0 0
        %2974 = vperm.xlu0 %2973, %v2670
        %v2975 = vpop.permute.xlu0 %2974
        %2978 = vset.pattern.permute.xlu0 0
        %2979 = vperm.xlu0 %2978, %v2672
        %v2980 = vpop.permute.xlu0 %2979
        %2983 = vset.pattern.permute.xlu0 0
        %2984 = vperm.xlu0 %2983, %v2674
        %v2985 = vpop.permute.xlu0 %2984
        %2988 = vset.pattern.permute.xlu0 0
        %2989 = vperm.xlu0 %2988, %v2676
        %v2990 = vpop.permute.xlu0 %2989
        %2993 = vset.pattern.permute.xlu0 0
        %2994 = vperm.xlu0 %2993, %v2678
        %v2995 = vpop.permute.xlu0 %2994
        %2998 = vset.pattern.permute.xlu0 0
        %2999 = vperm.xlu0 %2998, %v2680
        %v3000 = vpop.permute.xlu0 %2999
        %v3002 = vmul.f32 %v2925, %v2906
        %v3003 = vmul.f32 %v2930, %v2907
        %v3004 = vmul.f32 %v2935, %v2908
        %v3005 = vmul.f32 %v2940, %v2909
        %v3006 = vmul.f32 %v2945, %v2910
        %v3007 = vmul.f32 %v2950, %v2911
        %v3008 = vmul.f32 %v2955, %v2912
        %v3009 = vmul.f32 %v2960, %v2913
        %v3010 = vmul.f32 %v2965, %v2914
        %v3011 = vmul.f32 %v2970, %v2915
        %v3012 = vmul.f32 %v2975, %v2916
        %v3013 = vmul.f32 %v2980, %v2917
        %v3014 = vmul.f32 %v2985, %v2918
        %v3015 = vmul.f32 %v2990, %v2919
        %v3016 = vmul.f32 %v2995, %v2920
        %v3017 = vmul.f32 %v3000, %v2921
        %v3018 = vpack.c.bf16 %v2780, %v2778
        %v3019 = vpack.c.bf16 %v2784, %v2782
        %v3020 = vpack.c.bf16 %v2788, %v2786
        %v3021 = vpack.c.bf16 %v2792, %v2790
        %v3022 = vpack.c.bf16 %v2796, %v2794
        %v3023 = vpack.c.bf16 %v2800, %v2798
        %v3024 = vpack.c.bf16 %v2804, %v2802
        %v3025 = vpack.c.bf16 %v2808, %v2806
        %3026 = vrot.lane.b32.xlu0 %v1297, 112
        %v3027 = vpop.permute.xlu0 %3026
        %3028 = vrot.lane.b32.xlu0 %v1298, 112
        %v3029 = vpop.permute.xlu0 %3028
        %3030 = vrot.lane.b32.xlu0 %v1299, 112
        %v3031 = vpop.permute.xlu0 %3030
        %3032 = vrot.lane.b32.xlu0 %v1300, 112
        %v3033 = vpop.permute.xlu0 %3032
        %3034 = vrot.lane.b32.xlu0 %v1301, 112
        %v3035 = vpop.permute.xlu0 %3034
        %3036 = vrot.lane.b32.xlu0 %v1302, 112
        %v3037 = vpop.permute.xlu0 %3036
        %3038 = vrot.lane.b32.xlu0 %v1303, 112
        %v3039 = vpop.permute.xlu0 %3038
        %3040 = vrot.lane.b32.xlu0 %v1304, 112
        %v3041 = vpop.permute.xlu0 %3040
        %3050 = vmatprep.subr.bf16.mxu0 0
        %3051 = vmatpush1.bf16.msra.mxu0 %v3027
        %3052 = vmatprep.subr.bf16.mxu0 0
        %3053 = vmatpush1.bf16.msra.mxu0 %v3029
        %3054 = vmatprep.subr.bf16.mxu0 0
        %3055 = vmatpush1.bf16.msra.mxu0 %v3031
        %3056 = vmatprep.subr.bf16.mxu0 0
        %3057 = vmatpush1.bf16.msra.mxu0 %v3033
        %3058 = vmatprep.subr.bf16.mxu0 0
        %3059 = vmatpush1.bf16.msra.mxu0 %v3035
        %3060 = vmatprep.subr.bf16.mxu0 0
        %3061 = vmatpush1.bf16.msra.mxu0 %v3037
        %3062 = vmatprep.subr.bf16.mxu0 0
        %3063 = vmatpush1.bf16.msra.mxu0 %v3039
        %3064 = vmatprep.subr.bf16.mxu0 0
        %3065 = vmatpush1.bf16.msra.mxu0 %v3041
        %3066 = vmatprep.subr.bf16.mxu0 0
        %3067 = vmatpush1.bf16.msra.mxu0 0
        %3068 = vmatprep.subr.bf16.mxu0 0
        %3069 = vmatpush1.bf16.msra.mxu0 0
        %3070 = vmatprep.subr.bf16.mxu0 0
        %3071 = vmatpush1.bf16.msra.mxu0 0
        %3072 = vmatprep.subr.bf16.mxu0 0
        %3073 = vmatpush1.bf16.msra.mxu0 0
        %3074 = vmatprep.subr.bf16.mxu0 0
        %3075 = vmatpush1.bf16.msra.mxu0 0
        %3076 = vmatprep.subr.bf16.mxu0 0
        %3077 = vmatpush1.bf16.msra.mxu0 0
        %3078 = vmatprep.subr.bf16.mxu0 0
        %3079 = vmatpush1.bf16.msra.mxu0 0
        %3080 = vmatprep.subr.bf16.mxu0 0
        %3081 = vmatpush1.bf16.msra.mxu0 0
        %3082 = vmatprep.mubr.bf16.mxu0 0
        %3083 = vmatmul.mubr.bf16.gmra.mrb[0].mxu0 %v3018
        %v3084 = vpop.f32.mrb[0].mxu0
        %v3085 = vadd.f32 0.0, %v3084
        %v3086 = vpop.f32.mrb[0].mxu0
        %v3087 = vpop.f32.mrb[0].mxu0
        %v3088 = vadd.f32 0.0, %v3087
        %v3089 = vpop.f32.mrb[0].mxu0
        %3090 = vmatprep.mubr.bf16.mxu0 0
        %3091 = vmatmul.mubr.bf16.gmra.mrb[0].mxu0 %v3019
        %v3092 = vpop.f32.mrb[0].mxu0
        %v3093 = vadd.f32 0.0, %v3092
        %v3094 = vpop.f32.mrb[0].mxu0
        %v3095 = vpop.f32.mrb[0].mxu0
        %v3096 = vadd.f32 0.0, %v3095
        %v3097 = vpop.f32.mrb[0].mxu0
        %3098 = vmatprep.mubr.bf16.mxu0 0
        %3099 = vmatmul.mubr.bf16.gmra.mrb[0].mxu0 %v3020
        %v3100 = vpop.f32.mrb[0].mxu0
        %v3101 = vadd.f32 0.0, %v3100
        %v3102 = vpop.f32.mrb[0].mxu0
        %v3103 = vpop.f32.mrb[0].mxu0
        %v3104 = vadd.f32 0.0, %v3103
        %v3105 = vpop.f32.mrb[0].mxu0
        %3106 = vmatprep.mubr.bf16.mxu0 0
        %3107 = vmatmul.mubr.bf16.gmra.mrb[0].mxu0 %v3021
        %v3108 = vpop.f32.mrb[0].mxu0
        %v3109 = vadd.f32 0.0, %v3108
        %v3110 = vpop.f32.mrb[0].mxu0
        %v3111 = vpop.f32.mrb[0].mxu0
        %v3112 = vadd.f32 0.0, %v3111
        %v3113 = vpop.f32.mrb[0].mxu0
        %3114 = vmatprep.mubr.bf16.mxu0 0
        %3115 = vmatmul.mubr.bf16.gmra.mrb[0].mxu0 %v3022
        %v3116 = vpop.f32.mrb[0].mxu0
        %v3117 = vadd.f32 0.0, %v3116
        %v3118 = vpop.f32.mrb[0].mxu0
        %v3119 = vpop.f32.mrb[0].mxu0
        %v3120 = vadd.f32 0.0, %v3119
        %v3121 = vpop.f32.mrb[0].mxu0
        %3122 = vmatprep.mubr.bf16.mxu0 0
        %3123 = vmatmul.mubr.bf16.gmra.mrb[0].mxu0 %v3023
        %v3124 = vpop.f32.mrb[0].mxu0
        %v3125 = vadd.f32 0.0, %v3124
        %v3126 = vpop.f32.mrb[0].mxu0
        %v3127 = vpop.f32.mrb[0].mxu0
        %v3128 = vadd.f32 0.0, %v3127
        %v3129 = vpop.f32.mrb[0].mxu0
        %3130 = vmatprep.mubr.bf16.mxu0 0
        %3131 = vmatmul.mubr.bf16.gmra.mrb[0].mxu0 %v3024
        %v3132 = vpop.f32.mrb[0].mxu0
        %v3133 = vadd.f32 0.0, %v3132
        %v3134 = vpop.f32.mrb[0].mxu0
        %v3135 = vpop.f32.mrb[0].mxu0
        %v3136 = vadd.f32 0.0, %v3135
        %v3137 = vpop.f32.mrb[0].mxu0
        %3138 = vmatprep.mubr.bf16.mxu0 0
        %3139 = vmatmul.mubr.bf16.gmra.mrb[0].mxu0 %v3025
        %v3140 = vpop.f32.mrb[0].mxu0
        %v3141 = vadd.f32 0.0, %v3140
        %v3142 = vpop.f32.mrb[0].mxu0
        %v3143 = vpop.f32.mrb[0].mxu0
        %v3144 = vadd.f32 0.0, %v3143
        %v3145 = vpop.f32.mrb[0].mxu0
        %3146 = vdwg.mxu0
        %3163 = vrot.lane.b32.xlu0 %v3085, 16
        %v3164 = vpop.permute.xlu0 %3163
        %3165 = vrot.lane.b32.xlu0 %v3088, 16
        %v3166 = vpop.permute.xlu0 %3165
        %3167 = vrot.lane.b32.xlu0 %v3093, 16
        %v3168 = vpop.permute.xlu0 %3167
        %3169 = vrot.lane.b32.xlu0 %v3096, 16
        %v3170 = vpop.permute.xlu0 %3169
        %3171 = vrot.lane.b32.xlu0 %v3101, 16
        %v3172 = vpop.permute.xlu0 %3171
        %3173 = vrot.lane.b32.xlu0 %v3104, 16
        %v3174 = vpop.permute.xlu0 %3173
        %3175 = vrot.lane.b32.xlu0 %v3109, 16
        %v3176 = vpop.permute.xlu0 %3175
        %3177 = vrot.lane.b32.xlu0 %v3112, 16
        %v3178 = vpop.permute.xlu0 %3177
        %3179 = vrot.lane.b32.xlu0 %v3117, 16
        %v3180 = vpop.permute.xlu0 %3179
        %3181 = vrot.lane.b32.xlu0 %v3120, 16
        %v3182 = vpop.permute.xlu0 %3181
        %3183 = vrot.lane.b32.xlu0 %v3125, 16
        %v3184 = vpop.permute.xlu0 %3183
        %3185 = vrot.lane.b32.xlu0 %v3128, 16
        %v3186 = vpop.permute.xlu0 %3185
        %3187 = vrot.lane.b32.xlu0 %v3133, 16
        %v3188 = vpop.permute.xlu0 %3187
        %3189 = vrot.lane.b32.xlu0 %v3136, 16
        %v3190 = vpop.permute.xlu0 %3189
        %3191 = vrot.lane.b32.xlu0 %v3141, 16
        %v3192 = vpop.permute.xlu0 %3191
        %3193 = vrot.lane.b32.xlu0 %v3144, 16
        %v3194 = vpop.permute.xlu0 %3193
        %v3211 = vadd.f32 %v3002, %v3164
        %v3212 = vadd.f32 %v3003, %v3166
        %v3213 = vadd.f32 %v3004, %v3168
        %v3214 = vadd.f32 %v3005, %v3170
        %v3215 = vadd.f32 %v3006, %v3172
        %v3216 = vadd.f32 %v3007, %v3174
        %v3217 = vadd.f32 %v3008, %v3176
        %v3218 = vadd.f32 %v3009, %v3178
        %v3219 = vadd.f32 %v3010, %v3180
        %v3220 = vadd.f32 %v3011, %v3182
        %v3221 = vadd.f32 %v3012, %v3184
        %v3222 = vadd.f32 %v3013, %v3186
        %v3223 = vadd.f32 %v3014, %v3188
        %v3224 = vadd.f32 %v3015, %v3190
        %v3225 = vadd.f32 %v3016, %v3192
        %v3226 = vadd.f32 %v3017, %v3194
        %vm3227 = vcmask 195712
        %3228 = vst.msk [vmem:[#allocation4] sm:$0xff] %vm3227, %v3211
        %3229 = vst.msk [vmem:[#allocation4 + $0x8] sm:$0xff] %vm3227, %v3212
        %3230 = vst.msk [vmem:[#allocation4 + $0x10] sm:$0xff] %vm3227, %v3213
        %3231 = vst.msk [vmem:[#allocation4 + $0x18] sm:$0xff] %vm3227, %v3214
        %3232 = vst.msk [vmem:[#allocation4 + $0x20] sm:$0xff] %vm3227, %v3215
        %3233 = vst.msk [vmem:[#allocation4 + $0x28] sm:$0xff] %vm3227, %v3216
        %3234 = vst.msk [vmem:[#allocation4 + $0x30] sm:$0xff] %vm3227, %v3217
        %3235 = vst.msk [vmem:[#allocation4 + $0x38] sm:$0xff] %vm3227, %v3218
        %3236 = vst.msk [vmem:[#allocation4 + $0x40] sm:$0xff] %vm3227, %v3219
        %3237 = vst.msk [vmem:[#allocation4 + $0x48] sm:$0xff] %vm3227, %v3220
        %3238 = vst.msk [vmem:[#allocation4 + $0x50] sm:$0xff] %vm3227, %v3221
        %3239 = vst.msk [vmem:[#allocation4 + $0x58] sm:$0xff] %vm3227, %v3222
        %3240 = vst.msk [vmem:[#allocation4 + $0x60] sm:$0xff] %vm3227, %v3223
        %3241 = vst.msk [vmem:[#allocation4 + $0x68] sm:$0xff] %vm3227, %v3224
        %3242 = vst.msk [vmem:[#allocation4 + $0x70] sm:$0xff] %vm3227, %v3225
        %3243 = vst.msk [vmem:[#allocation4 + $0x78] sm:$0xff] %vm3227, %v3226
        %3244 = vst.msk [vmem:[%s2568] sm:$0xff] %vm1128, %v2617
        %3245 = vst.msk [vmem:[%s2568 + $0x8] sm:$0xff] %vm1128, %v2618
        %3246 = vst.msk [vmem:[%s2568 + $0x10] sm:$0xff] %vm1128, %v2619
        %3247 = vst.msk [vmem:[%s2568 + $0x18] sm:$0xff] %vm1128, %v2620
        %3248 = vst.msk [vmem:[%s2568 + $0x20] sm:$0xff] %vm1128, %v2621
        %3249 = vst.msk [vmem:[%s2568 + $0x28] sm:$0xff] %vm1128, %v2622
        %3250 = vst.msk [vmem:[%s2568 + $0x30] sm:$0xff] %vm1128, %v2623
        %3251 = vst.msk [vmem:[%s2568 + $0x38] sm:$0xff] %vm1128, %v2624
        %3252 = vst.msk [vmem:[%s2568 + $0x40] sm:$0xff] %vm1128, %v2625
        %3253 = vst.msk [vmem:[%s2568 + $0x48] sm:$0xff] %vm1128, %v2626
        %3254 = vst.msk [vmem:[%s2568 + $0x50] sm:$0xff] %vm1128, %v2627
        %3255 = vst.msk [vmem:[%s2568 + $0x58] sm:$0xff] %vm1128, %v2628
        %3256 = vst.msk [vmem:[%s2568 + $0x60] sm:$0xff] %vm1128, %v2629
        %3257 = vst.msk [vmem:[%s2568 + $0x68] sm:$0xff] %vm1128, %v2630
        %3258 = vst.msk [vmem:[%s2568 + $0x70] sm:$0xff] %vm1128, %v2631
        %3259 = vst.msk [vmem:[%s2568 + $0x78] sm:$0xff] %vm1128, %v2632
        %3260 = vrot.lane.b32.xlu0 %v582, 104
        %v3261 = vpop.permute.xlu0 %3260
        %3262 = vrot.lane.b32.xlu0 %v583, 104
        %v3263 = vpop.permute.xlu0 %3262
        %3264 = vrot.lane.b32.xlu0 %v584, 104
        %v3265 = vpop.permute.xlu0 %3264
        %3266 = vrot.lane.b32.xlu0 %v585, 104
        %v3267 = vpop.permute.xlu0 %3266
        %3268 = vrot.lane.b32.xlu0 %v586, 104
        %v3269 = vpop.permute.xlu0 %3268
        %3270 = vrot.lane.b32.xlu0 %v587, 104
        %v3271 = vpop.permute.xlu0 %3270
        %3272 = vrot.lane.b32.xlu0 %v588, 104
        %v3273 = vpop.permute.xlu0 %3272
        %3274 = vrot.lane.b32.xlu0 %v589, 104
        %v3275 = vpop.permute.xlu0 %3274
        %3276 = vrot.lane.b32.xlu0 %v622, 104
        %v3277 = vpop.permute.xlu0 %3276
        %3278 = vrot.lane.b32.xlu0 %v623, 104
        %v3279 = vpop.permute.xlu0 %3278
        %3280 = vrot.lane.b32.xlu0 %v624, 104
        %v3281 = vpop.permute.xlu0 %3280
        %3282 = vrot.lane.b32.xlu0 %v625, 104
        %v3283 = vpop.permute.xlu0 %3282
        %3284 = vrot.lane.b32.xlu0 %v626, 104
        %v3285 = vpop.permute.xlu0 %3284
        %3286 = vrot.lane.b32.xlu0 %v627, 104
        %v3287 = vpop.permute.xlu0 %3286
        %3288 = vrot.lane.b32.xlu0 %v628, 104
        %v3289 = vpop.permute.xlu0 %3288
        %3290 = vrot.lane.b32.xlu0 %v629, 104
        %v3291 = vpop.permute.xlu0 %3290
        %v3293 = vsel %vm630, %v3261, 0
        %v3296 = vsel %vm630, %v3263, 0
        %v3299 = vsel %vm630, %v3265, 0
        %v3302 = vsel %vm630, %v3267, 0
        %v3305 = vsel %vm630, %v3269, 0
        %v3308 = vsel %vm630, %v3271, 0
        %v3311 = vsel %vm630, %v3273, 0
        %v3314 = vsel %vm630, %v3275, 0
        %v3317 = vsel %vm630, %v3277, 0
        %v3320 = vsel %vm630, %v3279, 0
        %v3323 = vsel %vm630, %v3281, 0
        %v3326 = vsel %vm630, %v3283, 0
        %v3329 = vsel %vm630, %v3285, 0
        %v3332 = vsel %vm630, %v3287, 0
        %v3335 = vsel %vm630, %v3289, 0
        %v3338 = vsel %vm630, %v3291, 0
        %3340 = vmatprep.subr.bf16.mxu0 0
        %3341 = vmatpush1.bf16.xpose.msra.mxu0 %v3317
        %3342 = vmatprep.subr.bf16.mxu0 0
        %3343 = vmatpush1.bf16.xpose.msra.mxu0 %v3320
        %3344 = vmatprep.subr.bf16.mxu0 0
        %3345 = vmatpush1.bf16.xpose.msra.mxu0 %v3323
        %3346 = vmatprep.subr.bf16.mxu0 0
        %3347 = vmatpush1.bf16.xpose.msra.mxu0 %v3326
        %3348 = vmatprep.subr.bf16.mxu0 0
        %3349 = vmatpush1.bf16.xpose.msra.mxu0 %v3329
        %3350 = vmatprep.subr.bf16.mxu0 0
        %3351 = vmatpush1.bf16.xpose.msra.mxu0 %v3332
        %3352 = vmatprep.subr.bf16.mxu0 0
        %3353 = vmatpush1.bf16.xpose.msra.mxu0 %v3335
        %3354 = vmatprep.subr.bf16.mxu0 0
        %3355 = vmatpush1.bf16.xpose.msra.mxu0 %v3338
        %3356 = vmatprep.subr.bf16.mxu0 0
        %3357 = vmatpush1.bf16.xpose.msra.mxu0 0
        %3358 = vmatprep.subr.bf16.mxu0 0
        %3359 = vmatpush1.bf16.xpose.msra.mxu0 0
        %3360 = vmatprep.subr.bf16.mxu0 0
        %3361 = vmatpush1.bf16.xpose.msra.mxu0 0
        %3362 = vmatprep.subr.bf16.mxu0 0
        %3363 = vmatpush1.bf16.xpose.msra.mxu0 0
        %3364 = vmatprep.subr.bf16.mxu0 0
        %3365 = vmatpush1.bf16.xpose.msra.mxu0 0
        %3366 = vmatprep.subr.bf16.mxu0 0
        %3367 = vmatpush1.bf16.xpose.msra.mxu0 0
        %3368 = vmatprep.subr.bf16.mxu0 0
        %3369 = vmatpush1.bf16.xpose.msra.mxu0 0
        %3370 = vmatprep.subr.bf16.mxu0 0
        %3371 = vmatpush1.bf16.xpose.msra.mxu0 0
        %3372 = vmatprep.mubr.bf16.mxu0 0
        %3373 = vmatmul.mubr.bf16.gmra.mrb[0].mxu0 %v3293
        %v3374 = vpop.f32.mrb[0].mxu0
        %v3375 = vadd.f32 0.0, %v3374
        %v3376 = vpop.f32.mrb[0].mxu0
        %v3377 = vpop.f32.mrb[0].mxu0
        %v3378 = vadd.f32 0.0, %v3377
        %v3379 = vpop.f32.mrb[0].mxu0
        %3380 = vmatprep.mubr.bf16.mxu0 0
        %3381 = vmatmul.mubr.bf16.gmra.mrb[0].mxu0 %v3296
        %v3382 = vpop.f32.mrb[0].mxu0
        %v3383 = vadd.f32 0.0, %v3382
        %v3384 = vpop.f32.mrb[0].mxu0
        %v3385 = vpop.f32.mrb[0].mxu0
        %v3386 = vadd.f32 0.0, %v3385
        %v3387 = vpop.f32.mrb[0].mxu0
        %3388 = vmatprep.mubr.bf16.mxu0 0
        %3389 = vmatmul.mubr.bf16.gmra.mrb[0].mxu0 %v3299
        %v3390 = vpop.f32.mrb[0].mxu0
        %v3391 = vadd.f32 0.0, %v3390
        %v3392 = vpop.f32.mrb[0].mxu0
        %v3393 = vpop.f32.mrb[0].mxu0
        %v3394 = vadd.f32 0.0, %v3393
        %v3395 = vpop.f32.mrb[0].mxu0
        %3396 = vmatprep.mubr.bf16.mxu0 0
        %3397 = vmatmul.mubr.bf16.gmra.mrb[0].mxu0 %v3302
        %v3398 = vpop.f32.mrb[0].mxu0
        %v3399 = vadd.f32 0.0, %v3398
        %v3400 = vpop.f32.mrb[0].mxu0
        %v3401 = vpop.f32.mrb[0].mxu0
        %v3402 = vadd.f32 0.0, %v3401
        %v3403 = vpop.f32.mrb[0].mxu0
        %3404 = vmatprep.mubr.bf16.mxu0 0
        %3405 = vmatmul.mubr.bf16.gmra.mrb[0].mxu0 %v3305
        %v3406 = vpop.f32.mrb[0].mxu0
        %v3407 = vadd.f32 0.0, %v3406
        %v3408 = vpop.f32.mrb[0].mxu0
        %v3409 = vpop.f32.mrb[0].mxu0
        %v3410 = vadd.f32 0.0, %v3409
        %v3411 = vpop.f32.mrb[0].mxu0
        %3412 = vmatprep.mubr.bf16.mxu0 0
        %3413 = vmatmul.mubr.bf16.gmra.mrb[0].mxu0 %v3308
        %v3414 = vpop.f32.mrb[0].mxu0
        %v3415 = vadd.f32 0.0, %v3414
        %v3416 = vpop.f32.mrb[0].mxu0
        %v3417 = vpop.f32.mrb[0].mxu0
        %v3418 = vadd.f32 0.0, %v3417
        %v3419 = vpop.f32.mrb[0].mxu0
        %3420 = vmatprep.mubr.bf16.mxu0 0
        %3421 = vmatmul.mubr.bf16.gmra.mrb[0].mxu0 %v3311
        %v3422 = vpop.f32.mrb[0].mxu0
        %v3423 = vadd.f32 0.0, %v3422
        %v3424 = vpop.f32.mrb[0].mxu0
        %v3425 = vpop.f32.mrb[0].mxu0
        %v3426 = vadd.f32 0.0, %v3425
        %v3427 = vpop.f32.mrb[0].mxu0
        %3428 = vmatprep.mubr.bf16.mxu0 0
        %3429 = vmatmul.mubr.bf16.gmra.mrb[0].mxu0 %v3314
        %v3430 = vpop.f32.mrb[0].mxu0
        %v3431 = vadd.f32 0.0, %v3430
        %v3432 = vpop.f32.mrb[0].mxu0
        %v3433 = vpop.f32.mrb[0].mxu0
        %v3434 = vadd.f32 0.0, %v3433
        %v3435 = vpop.f32.mrb[0].mxu0
        %3436 = vdwg.mxu0
        %v3437 = vmul.f32 %v3375, 0.35355338
        %v3438 = vmul.f32 %v3378, 0.35355338
        %v3439 = vmul.f32 %v3383, 0.35355338
        %v3440 = vmul.f32 %v3386, 0.35355338
        %v3441 = vmul.f32 %v3391, 0.35355338
        %v3442 = vmul.f32 %v3394, 0.35355338
        %v3443 = vmul.f32 %v3399, 0.35355338
        %v3444 = vmul.f32 %v3402, 0.35355338
        %v3445 = vmul.f32 %v3407, 0.35355338
        %v3446 = vmul.f32 %v3410, 0.35355338
        %v3447 = vmul.f32 %v3415, 0.35355338
        %v3448 = vmul.f32 %v3418, 0.35355338
        %v3449 = vmul.f32 %v3423, 0.35355338
        %v3450 = vmul.f32 %v3426, 0.35355338
        %v3451 = vmul.f32 %v3431, 0.35355338
        %v3452 = vmul.f32 %v3434, 0.35355338
        %v3453 = vsel %vm486, %v3437, -1e+30
        %v3454 = vsel %vm487, %v3438, -1e+30
        %v3455 = vsel %vm488, %v3439, -1e+30
        %v3456 = vsel %vm489, %v3440, -1e+30
        %v3457 = vsel %vm490, %v3441, -1e+30
        %v3458 = vsel %vm491, %v3442, -1e+30
        %v3459 = vsel %vm492, %v3443, -1e+30
        %v3460 = vsel %vm493, %v3444, -1e+30
        %v3461 = vsel %vm494, %v3445, -1e+30
        %v3462 = vsel %vm495, %v3446, -1e+30
        %v3463 = vsel %vm496, %v3447, -1e+30
        %v3464 = vsel %vm497, %v3448, -1e+30
        %v3465 = vsel %vm498, %v3449, -1e+30
        %v3466 = vsel %vm499, %v3450, -1e+30
        %v3467 = vsel %vm500, %v3451, -1e+30
        %v3468 = vsel %vm501, %v3452, -1e+30
        %s3469 = scalar_lea.vmem [#allocation2], 384
        %v3470 = vld [vmem:[%s3469] sm:$0xff]
        %v3471 = vld [vmem:[%s3469 + $0x8] sm:$0xff]
        %v3472 = vld [vmem:[%s3469 + $0x10] sm:$0xff]
        %v3473 = vld [vmem:[%s3469 + $0x18] sm:$0xff]
        %v3474 = vld [vmem:[%s3469 + $0x20] sm:$0xff]
        %v3475 = vld [vmem:[%s3469 + $0x28] sm:$0xff]
        %v3476 = vld [vmem:[%s3469 + $0x30] sm:$0xff]
        %v3477 = vld [vmem:[%s3469 + $0x38] sm:$0xff]
        %v3478 = vld [vmem:[%s3469 + $0x40] sm:$0xff]
        %v3479 = vld [vmem:[%s3469 + $0x48] sm:$0xff]
        %v3480 = vld [vmem:[%s3469 + $0x50] sm:$0xff]
        %v3481 = vld [vmem:[%s3469 + $0x58] sm:$0xff]
        %v3482 = vld [vmem:[%s3469 + $0x60] sm:$0xff]
        %v3483 = vld [vmem:[%s3469 + $0x68] sm:$0xff]
        %v3484 = vld [vmem:[%s3469 + $0x70] sm:$0xff]
        %v3485 = vld [vmem:[%s3469 + $0x78] sm:$0xff]
        %3486 = vmax.xlane.f32.xlu0 %v3453
        %v3487 = vpop.xlane.xlu0 %3486
        %3488 = vmax.xlane.f32.xlu0 %v3454
        %v3489 = vpop.xlane.xlu0 %3488
        %3490 = vmax.xlane.f32.xlu0 %v3455
        %v3491 = vpop.xlane.xlu0 %3490
        %3492 = vmax.xlane.f32.xlu0 %v3456
        %v3493 = vpop.xlane.xlu0 %3492
        %3494 = vmax.xlane.f32.xlu0 %v3457
        %v3495 = vpop.xlane.xlu0 %3494
        %3496 = vmax.xlane.f32.xlu0 %v3458
        %v3497 = vpop.xlane.xlu0 %3496
        %3498 = vmax.xlane.f32.xlu0 %v3459
        %v3499 = vpop.xlane.xlu0 %3498
        %3500 = vmax.xlane.f32.xlu0 %v3460
        %v3501 = vpop.xlane.xlu0 %3500
        %3502 = vmax.xlane.f32.xlu0 %v3461
        %v3503 = vpop.xlane.xlu0 %3502
        %3504 = vmax.xlane.f32.xlu0 %v3462
        %v3505 = vpop.xlane.xlu0 %3504
        %3506 = vmax.xlane.f32.xlu0 %v3463
        %v3507 = vpop.xlane.xlu0 %3506
        %3508 = vmax.xlane.f32.xlu0 %v3464
        %v3509 = vpop.xlane.xlu0 %3508
        %3510 = vmax.xlane.f32.xlu0 %v3465
        %v3511 = vpop.xlane.xlu0 %3510
        %3512 = vmax.xlane.f32.xlu0 %v3466
        %v3513 = vpop.xlane.xlu0 %3512
        %3514 = vmax.xlane.f32.xlu0 %v3467
        %v3515 = vpop.xlane.xlu0 %3514
        %3516 = vmax.xlane.f32.xlu0 %v3468
        %v3517 = vpop.xlane.xlu0 %3516
        %v3518 = vmax.f32 %v3470, %v3487
        %v3519 = vmax.f32 %v3471, %v3489
        %v3520 = vmax.f32 %v3472, %v3491
        %v3521 = vmax.f32 %v3473, %v3493
        %v3522 = vmax.f32 %v3474, %v3495
        %v3523 = vmax.f32 %v3475, %v3497
        %v3524 = vmax.f32 %v3476, %v3499
        %v3525 = vmax.f32 %v3477, %v3501
        %v3526 = vmax.f32 %v3478, %v3503
        %v3527 = vmax.f32 %v3479, %v3505
        %v3528 = vmax.f32 %v3480, %v3507
        %v3529 = vmax.f32 %v3481, %v3509
        %v3530 = vmax.f32 %v3482, %v3511
        %v3531 = vmax.f32 %v3483, %v3513
        %v3532 = vmax.f32 %v3484, %v3515
        %v3533 = vmax.f32 %v3485, %v3517
        %v3534 = vsub.f32 %v3470, %v3518
        %v3535 = vsub.f32 %v3471, %v3519
        %v3536 = vsub.f32 %v3472, %v3520
        %v3537 = vsub.f32 %v3473, %v3521
        %v3538 = vsub.f32 %v3474, %v3522
        %v3539 = vsub.f32 %v3475, %v3523
        %v3540 = vsub.f32 %v3476, %v3524
        %v3541 = vsub.f32 %v3477, %v3525
        %v3542 = vsub.f32 %v3478, %v3526
        %v3543 = vsub.f32 %v3479, %v3527
        %v3544 = vsub.f32 %v3480, %v3528
        %v3545 = vsub.f32 %v3481, %v3529
        %v3546 = vsub.f32 %v3482, %v3530
        %v3547 = vsub.f32 %v3483, %v3531
        %v3548 = vsub.f32 %v3484, %v3532
        %v3549 = vsub.f32 %v3485, %v3533
        %v3550 = vmul.f32 %v3534, 1.442695
        %v3551 = vpow.pop %v3550
        %v3552 = vmul.f32 %v3535, 1.442695
        %v3553 = vpow.pop %v3552
        %v3554 = vmul.f32 %v3536, 1.442695
        %v3555 = vpow.pop %v3554
        %v3556 = vmul.f32 %v3537, 1.442695
        %v3557 = vpow.pop %v3556
        %v3558 = vmul.f32 %v3538, 1.442695
        %v3559 = vpow.pop %v3558
        %v3560 = vmul.f32 %v3539, 1.442695
        %v3561 = vpow.pop %v3560
        %v3562 = vmul.f32 %v3540, 1.442695
        %v3563 = vpow.pop %v3562
        %v3564 = vmul.f32 %v3541, 1.442695
        %v3565 = vpow.pop %v3564
        %v3566 = vmul.f32 %v3542, 1.442695
        %v3567 = vpow.pop %v3566
        %v3568 = vmul.f32 %v3543, 1.442695
        %v3569 = vpow.pop %v3568
        %v3570 = vmul.f32 %v3544, 1.442695
        %v3571 = vpow.pop %v3570
        %v3572 = vmul.f32 %v3545, 1.442695
        %v3573 = vpow.pop %v3572
        %v3574 = vmul.f32 %v3546, 1.442695
        %v3575 = vpow.pop %v3574
        %v3576 = vmul.f32 %v3547, 1.442695
        %v3577 = vpow.pop %v3576
        %v3578 = vmul.f32 %v3548, 1.442695
        %v3579 = vpow.pop %v3578
        %v3580 = vmul.f32 %v3549, 1.442695
        %v3581 = vpow.pop %v3580
        %3583 = vset.pattern.permute.xlu0 0
        %3584 = vperm.xlu0 %3583, %v3518
        %v3585 = vpop.permute.xlu0 %3584
        %3588 = vset.pattern.permute.xlu0 0
        %3589 = vperm.xlu0 %3588, %v3519
        %v3590 = vpop.permute.xlu0 %3589
        %3593 = vset.pattern.permute.xlu0 0
        %3594 = vperm.xlu0 %3593, %v3520
        %v3595 = vpop.permute.xlu0 %3594
        %3598 = vset.pattern.permute.xlu0 0
        %3599 = vperm.xlu0 %3598, %v3521
        %v3600 = vpop.permute.xlu0 %3599
        %3603 = vset.pattern.permute.xlu0 0
        %3604 = vperm.xlu0 %3603, %v3522
        %v3605 = vpop.permute.xlu0 %3604
        %3608 = vset.pattern.permute.xlu0 0
        %3609 = vperm.xlu0 %3608, %v3523
        %v3610 = vpop.permute.xlu0 %3609
        %3613 = vset.pattern.permute.xlu0 0
        %3614 = vperm.xlu0 %3613, %v3524
        %v3615 = vpop.permute.xlu0 %3614
        %3618 = vset.pattern.permute.xlu0 0
        %3619 = vperm.xlu0 %3618, %v3525
        %v3620 = vpop.permute.xlu0 %3619
        %3623 = vset.pattern.permute.xlu0 0
        %3624 = vperm.xlu0 %3623, %v3526
        %v3625 = vpop.permute.xlu0 %3624
        %3628 = vset.pattern.permute.xlu0 0
        %3629 = vperm.xlu0 %3628, %v3527
        %v3630 = vpop.permute.xlu0 %3629
        %3633 = vset.pattern.permute.xlu0 0
        %3634 = vperm.xlu0 %3633, %v3528
        %v3635 = vpop.permute.xlu0 %3634
        %3638 = vset.pattern.permute.xlu0 0
        %3639 = vperm.xlu0 %3638, %v3529
        %v3640 = vpop.permute.xlu0 %3639
        %3643 = vset.pattern.permute.xlu0 0
        %3644 = vperm.xlu0 %3643, %v3530
        %v3645 = vpop.permute.xlu0 %3644
        %3648 = vset.pattern.permute.xlu0 0
        %3649 = vperm.xlu0 %3648, %v3531
        %v3650 = vpop.permute.xlu0 %3649
        %3653 = vset.pattern.permute.xlu0 0
        %3654 = vperm.xlu0 %3653, %v3532
        %v3655 = vpop.permute.xlu0 %3654
        %3658 = vset.pattern.permute.xlu0 0
        %3659 = vperm.xlu0 %3658, %v3533
        %v3660 = vpop.permute.xlu0 %3659
        %v3662 = vsub.f32 %v3453, %v3585
        %v3663 = vsub.f32 %v3454, %v3590
        %v3664 = vsub.f32 %v3455, %v3595
        %v3665 = vsub.f32 %v3456, %v3600
        %v3666 = vsub.f32 %v3457, %v3605
        %v3667 = vsub.f32 %v3458, %v3610
        %v3668 = vsub.f32 %v3459, %v3615
        %v3669 = vsub.f32 %v3460, %v3620
        %v3670 = vsub.f32 %v3461, %v3625
        %v3671 = vsub.f32 %v3462, %v3630
        %v3672 = vsub.f32 %v3463, %v3635
        %v3673 = vsub.f32 %v3464, %v3640
        %v3674 = vsub.f32 %v3465, %v3645
        %v3675 = vsub.f32 %v3466, %v3650
        %v3676 = vsub.f32 %v3467, %v3655
        %v3677 = vsub.f32 %v3468, %v3660
        %v3678 = vmul.f32 %v3662, 1.442695
        %v3679 = vpow.pop %v3678
        %v3680 = vmul.f32 %v3663, 1.442695
        %v3681 = vpow.pop %v3680
        %v3682 = vmul.f32 %v3664, 1.442695
        %v3683 = vpow.pop %v3682
        %v3684 = vmul.f32 %v3665, 1.442695
        %v3685 = vpow.pop %v3684
        %v3686 = vmul.f32 %v3666, 1.442695
        %v3687 = vpow.pop %v3686
        %v3688 = vmul.f32 %v3667, 1.442695
        %v3689 = vpow.pop %v3688
        %v3690 = vmul.f32 %v3668, 1.442695
        %v3691 = vpow.pop %v3690
        %v3692 = vmul.f32 %v3669, 1.442695
        %v3693 = vpow.pop %v3692
        %v3694 = vmul.f32 %v3670, 1.442695
        %v3695 = vpow.pop %v3694
        %v3696 = vmul.f32 %v3671, 1.442695
        %v3697 = vpow.pop %v3696
        %v3698 = vmul.f32 %v3672, 1.442695
        %v3699 = vpow.pop %v3698
        %v3700 = vmul.f32 %v3673, 1.442695
        %v3701 = vpow.pop %v3700
        %v3702 = vmul.f32 %v3674, 1.442695
        %v3703 = vpow.pop %v3702
        %v3704 = vmul.f32 %v3675, 1.442695
        %v3705 = vpow.pop %v3704
        %v3706 = vmul.f32 %v3676, 1.442695
        %v3707 = vpow.pop %v3706
        %v3708 = vmul.f32 %v3677, 1.442695
        %v3709 = vpow.pop %v3708
        %s3710 = scalar_lea.vmem [#allocation3], 384
        %v3711 = vld [vmem:[%s3710] sm:$0xff]
        %v3712 = vld [vmem:[%s3710 + $0x8] sm:$0xff]
        %v3713 = vld [vmem:[%s3710 + $0x10] sm:$0xff]
        %v3714 = vld [vmem:[%s3710 + $0x18] sm:$0xff]
        %v3715 = vld [vmem:[%s3710 + $0x20] sm:$0xff]
        %v3716 = vld [vmem:[%s3710 + $0x28] sm:$0xff]
        %v3717 = vld [vmem:[%s3710 + $0x30] sm:$0xff]
        %v3718 = vld [vmem:[%s3710 + $0x38] sm:$0xff]
        %v3719 = vld [vmem:[%s3710 + $0x40] sm:$0xff]
        %v3720 = vld [vmem:[%s3710 + $0x48] sm:$0xff]
        %v3721 = vld [vmem:[%s3710 + $0x50] sm:$0xff]
        %v3722 = vld [vmem:[%s3710 + $0x58] sm:$0xff]
        %v3723 = vld [vmem:[%s3710 + $0x60] sm:$0xff]
        %v3724 = vld [vmem:[%s3710 + $0x68] sm:$0xff]
        %v3725 = vld [vmem:[%s3710 + $0x70] sm:$0xff]
        %v3726 = vld [vmem:[%s3710 + $0x78] sm:$0xff]
        %v3727 = vmul.f32 %v3551, %v3711
        %v3728 = vmul.f32 %v3553, %v3712
        %v3729 = vmul.f32 %v3555, %v3713
        %v3730 = vmul.f32 %v3557, %v3714
        %v3731 = vmul.f32 %v3559, %v3715
        %v3732 = vmul.f32 %v3561, %v3716
        %v3733 = vmul.f32 %v3563, %v3717
        %v3734 = vmul.f32 %v3565, %v3718
        %v3735 = vmul.f32 %v3567, %v3719
        %v3736 = vmul.f32 %v3569, %v3720
        %v3737 = vmul.f32 %v3571, %v3721
        %v3738 = vmul.f32 %v3573, %v3722
        %v3739 = vmul.f32 %v3575, %v3723
        %v3740 = vmul.f32 %v3577, %v3724
        %v3741 = vmul.f32 %v3579, %v3725
        %v3742 = vmul.f32 %v3581, %v3726
        %3743 = vadd.xlane.f32.xlu0 %v3679
        %v3744 = vpop.xlane.xlu0 %3743
        %3745 = vadd.xlane.f32.xlu0 %v3681
        %v3746 = vpop.xlane.xlu0 %3745
        %3747 = vadd.xlane.f32.xlu0 %v3683
        %v3748 = vpop.xlane.xlu0 %3747
        %3749 = vadd.xlane.f32.xlu0 %v3685
        %v3750 = vpop.xlane.xlu0 %3749
        %3751 = vadd.xlane.f32.xlu0 %v3687
        %v3752 = vpop.xlane.xlu0 %3751
        %3753 = vadd.xlane.f32.xlu0 %v3689
        %v3754 = vpop.xlane.xlu0 %3753
        %3755 = vadd.xlane.f32.xlu0 %v3691
        %v3756 = vpop.xlane.xlu0 %3755
        %3757 = vadd.xlane.f32.xlu0 %v3693
        %v3758 = vpop.xlane.xlu0 %3757
        %3759 = vadd.xlane.f32.xlu0 %v3695
        %v3760 = vpop.xlane.xlu0 %3759
        %3761 = vadd.xlane.f32.xlu0 %v3697
        %v3762 = vpop.xlane.xlu0 %3761
        %3763 = vadd.xlane.f32.xlu0 %v3699
        %v3764 = vpop.xlane.xlu0 %3763
        %3765 = vadd.xlane.f32.xlu0 %v3701
        %v3766 = vpop.xlane.xlu0 %3765
        %3767 = vadd.xlane.f32.xlu0 %v3703
        %v3768 = vpop.xlane.xlu0 %3767
        %3769 = vadd.xlane.f32.xlu0 %v3705
        %v3770 = vpop.xlane.xlu0 %3769
        %3771 = vadd.xlane.f32.xlu0 %v3707
        %v3772 = vpop.xlane.xlu0 %3771
        %3773 = vadd.xlane.f32.xlu0 %v3709
        %v3774 = vpop.xlane.xlu0 %3773
        %v3775 = vadd.f32 %v3727, %v3744
        %v3776 = vadd.f32 %v3728, %v3746
        %v3777 = vadd.f32 %v3729, %v3748
        %v3778 = vadd.f32 %v3730, %v3750
        %v3779 = vadd.f32 %v3731, %v3752
        %v3780 = vadd.f32 %v3732, %v3754
        %v3781 = vadd.f32 %v3733, %v3756
        %v3782 = vadd.f32 %v3734, %v3758
        %v3783 = vadd.f32 %v3735, %v3760
        %v3784 = vadd.f32 %v3736, %v3762
        %v3785 = vadd.f32 %v3737, %v3764
        %v3786 = vadd.f32 %v3738, %v3766
        %v3787 = vadd.f32 %v3739, %v3768
        %v3788 = vadd.f32 %v3740, %v3770
        %v3789 = vadd.f32 %v3741, %v3772
        %v3790 = vadd.f32 %v3742, %v3774
        %3791 = vst.msk [vmem:[%s3710] sm:$0xff] %vm1128, %v3775
        %3792 = vst.msk [vmem:[%s3710 + $0x8] sm:$0xff] %vm1128, %v3776
        %3793 = vst.msk [vmem:[%s3710 + $0x10] sm:$0xff] %vm1128, %v3777
        %3794 = vst.msk [vmem:[%s3710 + $0x18] sm:$0xff] %vm1128, %v3778
        %3795 = vst.msk [vmem:[%s3710 + $0x20] sm:$0xff] %vm1128, %v3779
        %3796 = vst.msk [vmem:[%s3710 + $0x28] sm:$0xff] %vm1128, %v3780
        %3797 = vst.msk [vmem:[%s3710 + $0x30] sm:$0xff] %vm1128, %v3781
        %3798 = vst.msk [vmem:[%s3710 + $0x38] sm:$0xff] %vm1128, %v3782
        %3799 = vst.msk [vmem:[%s3710 + $0x40] sm:$0xff] %vm1128, %v3783
        %3800 = vst.msk [vmem:[%s3710 + $0x48] sm:$0xff] %vm1128, %v3784
        %3801 = vst.msk [vmem:[%s3710 + $0x50] sm:$0xff] %vm1128, %v3785
        %3802 = vst.msk [vmem:[%s3710 + $0x58] sm:$0xff] %vm1128, %v3786
        %3803 = vst.msk [vmem:[%s3710 + $0x60] sm:$0xff] %vm1128, %v3787
        %3804 = vst.msk [vmem:[%s3710 + $0x68] sm:$0xff] %vm1128, %v3788
        %3805 = vst.msk [vmem:[%s3710 + $0x70] sm:$0xff] %vm1128, %v3789
        %3806 = vst.msk [vmem:[%s3710 + $0x78] sm:$0xff] %vm1128, %v3790
        %v3807 = vld [vmem:[#allocation4] sm:$0xff]
        %v3808 = vld [vmem:[#allocation4 + $0x8] sm:$0xff]
        %v3809 = vld [vmem:[#allocation4 + $0x10] sm:$0xff]
        %v3810 = vld [vmem:[#allocation4 + $0x18] sm:$0xff]
        %v3811 = vld [vmem:[#allocation4 + $0x20] sm:$0xff]
        %v3812 = vld [vmem:[#allocation4 + $0x28] sm:$0xff]
        %v3813 = vld [vmem:[#allocation4 + $0x30] sm:$0xff]
        %v3814 = vld [vmem:[#allocation4 + $0x38] sm:$0xff]
        %v3815 = vld [vmem:[#allocation4 + $0x40] sm:$0xff]
        %v3816 = vld [vmem:[#allocation4 + $0x48] sm:$0xff]
        %v3817 = vld [vmem:[#allocation4 + $0x50] sm:$0xff]
        %v3818 = vld [vmem:[#allocation4 + $0x58] sm:$0xff]
        %v3819 = vld [vmem:[#allocation4 + $0x60] sm:$0xff]
        %v3820 = vld [vmem:[#allocation4 + $0x68] sm:$0xff]
        %v3821 = vld [vmem:[#allocation4 + $0x70] sm:$0xff]
        %v3822 = vld [vmem:[#allocation4 + $0x78] sm:$0xff]
        %3824 = vset.pattern.permute.xlu0 0
        %3825 = vperm.xlu0 %3824, %v3551
        %v3826 = vpop.permute.xlu0 %3825
        %3829 = vset.pattern.permute.xlu0 0
        %3830 = vperm.xlu0 %3829, %v3553
        %v3831 = vpop.permute.xlu0 %3830
        %3834 = vset.pattern.permute.xlu0 0
        %3835 = vperm.xlu0 %3834, %v3555
        %v3836 = vpop.permute.xlu0 %3835
        %3839 = vset.pattern.permute.xlu0 0
        %3840 = vperm.xlu0 %3839, %v3557
        %v3841 = vpop.permute.xlu0 %3840
        %3844 = vset.pattern.permute.xlu0 0
        %3845 = vperm.xlu0 %3844, %v3559
        %v3846 = vpop.permute.xlu0 %3845
        %3849 = vset.pattern.permute.xlu0 0
        %3850 = vperm.xlu0 %3849, %v3561
        %v3851 = vpop.permute.xlu0 %3850
        %3854 = vset.pattern.permute.xlu0 0
        %3855 = vperm.xlu0 %3854, %v3563
        %v3856 = vpop.permute.xlu0 %3855
        %3859 = vset.pattern.permute.xlu0 0
        %3860 = vperm.xlu0 %3859, %v3565
        %v3861 = vpop.permute.xlu0 %3860
        %3864 = vset.pattern.permute.xlu0 0
        %3865 = vperm.xlu0 %3864, %v3567
        %v3866 = vpop.permute.xlu0 %3865
        %3869 = vset.pattern.permute.xlu0 0
        %3870 = vperm.xlu0 %3869, %v3569
        %v3871 = vpop.permute.xlu0 %3870
        %3874 = vset.pattern.permute.xlu0 0
        %3875 = vperm.xlu0 %3874, %v3571
        %v3876 = vpop.permute.xlu0 %3875
        %3879 = vset.pattern.permute.xlu0 0
        %3880 = vperm.xlu0 %3879, %v3573
        %v3881 = vpop.permute.xlu0 %3880
        %3884 = vset.pattern.permute.xlu0 0
        %3885 = vperm.xlu0 %3884, %v3575
        %v3886 = vpop.permute.xlu0 %3885
        %3889 = vset.pattern.permute.xlu0 0
        %3890 = vperm.xlu0 %3889, %v3577
        %v3891 = vpop.permute.xlu0 %3890
        %3894 = vset.pattern.permute.xlu0 0
        %3895 = vperm.xlu0 %3894, %v3579
        %v3896 = vpop.permute.xlu0 %3895
        %3899 = vset.pattern.permute.xlu0 0
        %3900 = vperm.xlu0 %3899, %v3581
        %v3901 = vpop.permute.xlu0 %3900
        %v3903 = vmul.f32 %v3826, %v3807
        %v3904 = vmul.f32 %v3831, %v3808
        %v3905 = vmul.f32 %v3836, %v3809
        %v3906 = vmul.f32 %v3841, %v3810
        %v3907 = vmul.f32 %v3846, %v3811
        %v3908 = vmul.f32 %v3851, %v3812
        %v3909 = vmul.f32 %v3856, %v3813
        %v3910 = vmul.f32 %v3861, %v3814
        %v3911 = vmul.f32 %v3866, %v3815
        %v3912 = vmul.f32 %v3871, %v3816
        %v3913 = vmul.f32 %v3876, %v3817
        %v3914 = vmul.f32 %v3881, %v3818
        %v3915 = vmul.f32 %v3886, %v3819
        %v3916 = vmul.f32 %v3891, %v3820
        %v3917 = vmul.f32 %v3896, %v3821
        %v3918 = vmul.f32 %v3901, %v3822
        %v3919 = vpack.c.bf16 %v3681, %v3679
        %v3920 = vpack.c.bf16 %v3685, %v3683
        %v3921 = vpack.c.bf16 %v3689, %v3687
        %v3922 = vpack.c.bf16 %v3693, %v3691
        %v3923 = vpack.c.bf16 %v3697, %v3695
        %v3924 = vpack.c.bf16 %v3701, %v3699
        %v3925 = vpack.c.bf16 %v3705, %v3703
        %v3926 = vpack.c.bf16 %v3709, %v3707
        %3927 = vrot.lane.b32.xlu0 %v1297, 104
        %v3928 = vpop.permute.xlu0 %3927
        %3929 = vrot.lane.b32.xlu0 %v1298, 104
        %v3930 = vpop.permute.xlu0 %3929
        %3931 = vrot.lane.b32.xlu0 %v1299, 104
        %v3932 = vpop.permute.xlu0 %3931
        %3933 = vrot.lane.b32.xlu0 %v1300, 104
        %v3934 = vpop.permute.xlu0 %3933
        %3935 = vrot.lane.b32.xlu0 %v1301, 104
        %v3936 = vpop.permute.xlu0 %3935
        %3937 = vrot.lane.b32.xlu0 %v1302, 104
        %v3938 = vpop.permute.xlu0 %3937
        %3939 = vrot.lane.b32.xlu0 %v1303, 104
        %v3940 = vpop.permute.xlu0 %3939
        %3941 = vrot.lane.b32.xlu0 %v1304, 104
        %v3942 = vpop.permute.xlu0 %3941
        %3951 = vmatprep.subr.bf16.mxu0 0
        %3952 = vmatpush1.bf16.msra.mxu0 %v3928
        %3953 = vmatprep.subr.bf16.mxu0 0
        %3954 = vmatpush1.bf16.msra.mxu0 %v3930
        %3955 = vmatprep.subr.bf16.mxu0 0
        %3956 = vmatpush1.bf16.msra.mxu0 %v3932
        %3957 = vmatprep.subr.bf16.mxu0 0
        %3958 = vmatpush1.bf16.msra.mxu0 %v3934
        %3959 = vmatprep.subr.bf16.mxu0 0
        %3960 = vmatpush1.bf16.msra.mxu0 %v3936
        %3961 = vmatprep.subr.bf16.mxu0 0
        %3962 = vmatpush1.bf16.msra.mxu0 %v3938
        %3963 = vmatprep.subr.bf16.mxu0 0
        %3964 = vmatpush1.bf16.msra.mxu0 %v3940
        %3965 = vmatprep.subr.bf16.mxu0 0
        %3966 = vmatpush1.bf16.msra.mxu0 %v3942
        %3967 = vmatprep.subr.bf16.mxu0 0
        %3968 = vmatpush1.bf16.msra.mxu0 0
        %3969 = vmatprep.subr.bf16.mxu0 0
        %3970 = vmatpush1.bf16.msra.mxu0 0
        %3971 = vmatprep.subr.bf16.mxu0 0
        %3972 = vmatpush1.bf16.msra.mxu0 0
        %3973 = vmatprep.subr.bf16.mxu0 0
        %3974 = vmatpush1.bf16.msra.mxu0 0
        %3975 = vmatprep.subr.bf16.mxu0 0
        %3976 = vmatpush1.bf16.msra.mxu0 0
        %3977 = vmatprep.subr.bf16.mxu0 0
        %3978 = vmatpush1.bf16.msra.mxu0 0
        %3979 = vmatprep.subr.bf16.mxu0 0
        %3980 = vmatpush1.bf16.msra.mxu0 0
        %3981 = vmatprep.subr.bf16.mxu0 0
        %3982 = vmatpush1.bf16.msra.mxu0 0
        %3983 = vmatprep.mubr.bf16.mxu0 0
        %3984 = vmatmul.mubr.bf16.gmra.mrb[0].mxu0 %v3919
        %v3985 = vpop.f32.mrb[0].mxu0
        %v3986 = vadd.f32 0.0, %v3985
        %v3987 = vpop.f32.mrb[0].mxu0
        %v3988 = vpop.f32.mrb[0].mxu0
        %v3989 = vadd.f32 0.0, %v3988
        %v3990 = vpop.f32.mrb[0].mxu0
        %3991 = vmatprep.mubr.bf16.mxu0 0
        %3992 = vmatmul.mubr.bf16.gmra.mrb[0].mxu0 %v3920
        %v3993 = vpop.f32.mrb[0].mxu0
        %v3994 = vadd.f32 0.0, %v3993
        %v3995 = vpop.f32.mrb[0].mxu0
        %v3996 = vpop.f32.mrb[0].mxu0
        %v3997 = vadd.f32 0.0, %v3996
        %v3998 = vpop.f32.mrb[0].mxu0
        %3999 = vmatprep.mubr.bf16.mxu0 0
        %4000 = vmatmul.mubr.bf16.gmra.mrb[0].mxu0 %v3921
        %v4001 = vpop.f32.mrb[0].mxu0
        %v4002 = vadd.f32 0.0, %v4001
        %v4003 = vpop.f32.mrb[0].mxu0
        %v4004 = vpop.f32.mrb[0].mxu0
        %v4005 = vadd.f32 0.0, %v4004
        %v4006 = vpop.f32.mrb[0].mxu0
        %4007 = vmatprep.mubr.bf16.mxu0 0
        %4008 = vmatmul.mubr.bf16.gmra.mrb[0].mxu0 %v3922
        %v4009 = vpop.f32.mrb[0].mxu0
        %v4010 = vadd.f32 0.0, %v4009
        %v4011 = vpop.f32.mrb[0].mxu0
        %v4012 = vpop.f32.mrb[0].mxu0
        %v4013 = vadd.f32 0.0, %v4012
        %v4014 = vpop.f32.mrb[0].mxu0
        %4015 = vmatprep.mubr.bf16.mxu0 0
        %4016 = vmatmul.mubr.bf16.gmra.mrb[0].mxu0 %v3923
        %v4017 = vpop.f32.mrb[0].mxu0
        %v4018 = vadd.f32 0.0, %v4017
        %v4019 = vpop.f32.mrb[0].mxu0
        %v4020 = vpop.f32.mrb[0].mxu0
        %v4021 = vadd.f32 0.0, %v4020
        %v4022 = vpop.f32.mrb[0].mxu0
        %4023 = vmatprep.mubr.bf16.mxu0 0
        %4024 = vmatmul.mubr.bf16.gmra.mrb[0].mxu0 %v3924
        %v4025 = vpop.f32.mrb[0].mxu0
        %v4026 = vadd.f32 0.0, %v4025
        %v4027 = vpop.f32.mrb[0].mxu0
        %v4028 = vpop.f32.mrb[0].mxu0
        %v4029 = vadd.f32 0.0, %v4028
        %v4030 = vpop.f32.mrb[0].mxu0
        %4031 = vmatprep.mubr.bf16.mxu0 0
        %4032 = vmatmul.mubr.bf16.gmra.mrb[0].mxu0 %v3925
        %v4033 = vpop.f32.mrb[0].mxu0
        %v4034 = vadd.f32 0.0, %v4033
        %v4035 = vpop.f32.mrb[0].mxu0
        %v4036 = vpop.f32.mrb[0].mxu0
        %v4037 = vadd.f32 0.0, %v4036
        %v4038 = vpop.f32.mrb[0].mxu0
        %4039 = vmatprep.mubr.bf16.mxu0 0
        %4040 = vmatmul.mubr.bf16.gmra.mrb[0].mxu0 %v3926
        %v4041 = vpop.f32.mrb[0].mxu0
        %v4042 = vadd.f32 0.0, %v4041
        %v4043 = vpop.f32.mrb[0].mxu0
        %v4044 = vpop.f32.mrb[0].mxu0
        %v4045 = vadd.f32 0.0, %v4044
        %v4046 = vpop.f32.mrb[0].mxu0
        %4047 = vdwg.mxu0
        %4064 = vrot.lane.b32.xlu0 %v3986, 24
        %v4065 = vpop.permute.xlu0 %4064
        %4066 = vrot.lane.b32.xlu0 %v3989, 24
        %v4067 = vpop.permute.xlu0 %4066
        %4068 = vrot.lane.b32.xlu0 %v3994, 24
        %v4069 = vpop.permute.xlu0 %4068
        %4070 = vrot.lane.b32.xlu0 %v3997, 24
        %v4071 = vpop.permute.xlu0 %4070
        %4072 = vrot.lane.b32.xlu0 %v4002, 24
        %v4073 = vpop.permute.xlu0 %4072
        %4074 = vrot.lane.b32.xlu0 %v4005, 24
        %v4075 = vpop.permute.xlu0 %4074
        %4076 = vrot.lane.b32.xlu0 %v4010, 24
        %v4077 = vpop.permute.xlu0 %4076
        %4078 = vrot.lane.b32.xlu0 %v4013, 24
        %v4079 = vpop.permute.xlu0 %4078
        %4080 = vrot.lane.b32.xlu0 %v4018, 24
        %v4081 = vpop.permute.xlu0 %4080
        %4082 = vrot.lane.b32.xlu0 %v4021, 24
        %v4083 = vpop.permute.xlu0 %4082
        %4084 = vrot.lane.b32.xlu0 %v4026, 24
        %v4085 = vpop.permute.xlu0 %4084
        %4086 = vrot.lane.b32.xlu0 %v4029, 24
        %v4087 = vpop.permute.xlu0 %4086
        %4088 = vrot.lane.b32.xlu0 %v4034, 24
        %v4089 = vpop.permute.xlu0 %4088
        %4090 = vrot.lane.b32.xlu0 %v4037, 24
        %v4091 = vpop.permute.xlu0 %4090
        %4092 = vrot.lane.b32.xlu0 %v4042, 24
        %v4093 = vpop.permute.xlu0 %4092
        %4094 = vrot.lane.b32.xlu0 %v4045, 24
        %v4095 = vpop.permute.xlu0 %4094
        %v4112 = vadd.f32 %v3903, %v4065
        %v4113 = vadd.f32 %v3904, %v4067
        %v4114 = vadd.f32 %v3905, %v4069
        %v4115 = vadd.f32 %v3906, %v4071
        %v4116 = vadd.f32 %v3907, %v4073
        %v4117 = vadd.f32 %v3908, %v4075
        %v4118 = vadd.f32 %v3909, %v4077
        %v4119 = vadd.f32 %v3910, %v4079
        %v4120 = vadd.f32 %v3911, %v4081
        %v4121 = vadd.f32 %v3912, %v4083
        %v4122 = vadd.f32 %v3913, %v4085
        %v4123 = vadd.f32 %v3914, %v4087
        %v4124 = vadd.f32 %v3915, %v4089
        %v4125 = vadd.f32 %v3916, %v4091
        %v4126 = vadd.f32 %v3917, %v4093
        %v4127 = vadd.f32 %v3918, %v4095
        %vm4128 = vcmask 261312
        %4129 = vst.msk [vmem:[#allocation4] sm:$0xff] %vm4128, %v4112
        %4130 = vst.msk [vmem:[#allocation4 + $0x8] sm:$0xff] %vm4128, %v4113
        %4131 = vst.msk [vmem:[#allocation4 + $0x10] sm:$0xff] %vm4128, %v4114
        %4132 = vst.msk [vmem:[#allocation4 + $0x18] sm:$0xff] %vm4128, %v4115
        %4133 = vst.msk [vmem:[#allocation4 + $0x20] sm:$0xff] %vm4128, %v4116
        %4134 = vst.msk [vmem:[#allocation4 + $0x28] sm:$0xff] %vm4128, %v4117
        %4135 = vst.msk [vmem:[#allocation4 + $0x30] sm:$0xff] %vm4128, %v4118
        %4136 = vst.msk [vmem:[#allocation4 + $0x38] sm:$0xff] %vm4128, %v4119
        %4137 = vst.msk [vmem:[#allocation4 + $0x40] sm:$0xff] %vm4128, %v4120
        %4138 = vst.msk [vmem:[#allocation4 + $0x48] sm:$0xff] %vm4128, %v4121
        %4139 = vst.msk [vmem:[#allocation4 + $0x50] sm:$0xff] %vm4128, %v4122
        %4140 = vst.msk [vmem:[#allocation4 + $0x58] sm:$0xff] %vm4128, %v4123
        %4141 = vst.msk [vmem:[#allocation4 + $0x60] sm:$0xff] %vm4128, %v4124
        %4142 = vst.msk [vmem:[#allocation4 + $0x68] sm:$0xff] %vm4128, %v4125
        %4143 = vst.msk [vmem:[#allocation4 + $0x70] sm:$0xff] %vm4128, %v4126
        %4144 = vst.msk [vmem:[#allocation4 + $0x78] sm:$0xff] %vm4128, %v4127
        %4145 = vst.msk [vmem:[%s3469] sm:$0xff] %vm1128, %v3518
        %4146 = vst.msk [vmem:[%s3469 + $0x8] sm:$0xff] %vm1128, %v3519
        %4147 = vst.msk [vmem:[%s3469 + $0x10] sm:$0xff] %vm1128, %v3520
        %4148 = vst.msk [vmem:[%s3469 + $0x18] sm:$0xff] %vm1128, %v3521
        %4149 = vst.msk [vmem:[%s3469 + $0x20] sm:$0xff] %vm1128, %v3522
        %4150 = vst.msk [vmem:[%s3469 + $0x28] sm:$0xff] %vm1128, %v3523
        %4151 = vst.msk [vmem:[%s3469 + $0x30] sm:$0xff] %vm1128, %v3524
        %4152 = vst.msk [vmem:[%s3469 + $0x38] sm:$0xff] %vm1128, %v3525
        %4153 = vst.msk [vmem:[%s3469 + $0x40] sm:$0xff] %vm1128, %v3526
        %4154 = vst.msk [vmem:[%s3469 + $0x48] sm:$0xff] %vm1128, %v3527
        %4155 = vst.msk [vmem:[%s3469 + $0x50] sm:$0xff] %vm1128, %v3528
        %4156 = vst.msk [vmem:[%s3469 + $0x58] sm:$0xff] %vm1128, %v3529
        %4157 = vst.msk [vmem:[%s3469 + $0x60] sm:$0xff] %vm1128, %v3530
        %4158 = vst.msk [vmem:[%s3469 + $0x68] sm:$0xff] %vm1128, %v3531
        %4159 = vst.msk [vmem:[%s3469 + $0x70] sm:$0xff] %vm1128, %v3532
        %4160 = vst.msk [vmem:[%s3469 + $0x78] sm:$0xff] %vm1128, %v3533
      $region40: #{attention_forward.4} parent=31 // pred_fallthru
        _
      // Predicated region
      $region41: #{attention_forward.4} parent=31 // pred_check
        %p4161 = pneg %p294
      $region42: #{attention_forward.4} parent=31 // pred_check_branch
        %4163 = sbr.rel (%p4161) target = $region44
      $region43: #{attention_forward.4} parent=31 // pred_region
        %v4164 = vld [vmem:[#allocation3] sm:$0xff]
        %v4165 = vld [vmem:[#allocation3 + $0x8] sm:$0xff]
        %v4166 = vld [vmem:[#allocation3 + $0x10] sm:$0xff]
        %v4167 = vld [vmem:[#allocation3 + $0x18] sm:$0xff]
        %v4168 = vld [vmem:[#allocation3 + $0x20] sm:$0xff]
        %v4169 = vld [vmem:[#allocation3 + $0x28] sm:$0xff]
        %v4170 = vld [vmem:[#allocation3 + $0x30] sm:$0xff]
        %v4171 = vld [vmem:[#allocation3 + $0x38] sm:$0xff]
        %v4172 = vld [vmem:[#allocation3 + $0x40] sm:$0xff]
        %v4173 = vld [vmem:[#allocation3 + $0x48] sm:$0xff]
        %v4174 = vld [vmem:[#allocation3 + $0x50] sm:$0xff]
        %v4175 = vld [vmem:[#allocation3 + $0x58] sm:$0xff]
        %v4176 = vld [vmem:[#allocation3 + $0x60] sm:$0xff]
        %v4177 = vld [vmem:[#allocation3 + $0x68] sm:$0xff]
        %v4178 = vld [vmem:[#allocation3 + $0x70] sm:$0xff]
        %v4179 = vld [vmem:[#allocation3 + $0x78] sm:$0xff]
        %v4180 = vrcp.pop %v4164
        %v4181 = vrcp.pop %v4165
        %v4182 = vrcp.pop %v4166
        %v4183 = vrcp.pop %v4167
        %v4184 = vrcp.pop %v4168
        %v4185 = vrcp.pop %v4169
        %v4186 = vrcp.pop %v4170
        %v4187 = vrcp.pop %v4171
        %v4188 = vrcp.pop %v4172
        %v4189 = vrcp.pop %v4173
        %v4190 = vrcp.pop %v4174
        %v4191 = vrcp.pop %v4175
        %v4192 = vrcp.pop %v4176
        %v4193 = vrcp.pop %v4177
        %v4194 = vrcp.pop %v4178
        %v4195 = vrcp.pop %v4179
        %v4196 = vld [vmem:[#allocation4] sm:$0xff]
        %v4197 = vld [vmem:[#allocation4 + $0x8] sm:$0xff]
        %v4198 = vld [vmem:[#allocation4 + $0x10] sm:$0xff]
        %v4199 = vld [vmem:[#allocation4 + $0x18] sm:$0xff]
        %v4200 = vld [vmem:[#allocation4 + $0x20] sm:$0xff]
        %v4201 = vld [vmem:[#allocation4 + $0x28] sm:$0xff]
        %v4202 = vld [vmem:[#allocation4 + $0x30] sm:$0xff]
        %v4203 = vld [vmem:[#allocation4 + $0x38] sm:$0xff]
        %v4204 = vld [vmem:[#allocation4 + $0x40] sm:$0xff]
        %v4205 = vld [vmem:[#allocation4 + $0x48] sm:$0xff]
        %v4206 = vld [vmem:[#allocation4 + $0x50] sm:$0xff]
        %v4207 = vld [vmem:[#allocation4 + $0x58] sm:$0xff]
        %v4208 = vld [vmem:[#allocation4 + $0x60] sm:$0xff]
        %v4209 = vld [vmem:[#allocation4 + $0x68] sm:$0xff]
        %v4210 = vld [vmem:[#allocation4 + $0x70] sm:$0xff]
        %v4211 = vld [vmem:[#allocation4 + $0x78] sm:$0xff]
        %4213 = vset.pattern.permute.xlu0 0
        %4214 = vperm.xlu0 %4213, %v4180
        %v4215 = vpop.permute.xlu0 %4214
        %4218 = vset.pattern.permute.xlu0 0
        %4219 = vperm.xlu0 %4218, %v4181
        %v4220 = vpop.permute.xlu0 %4219
        %4223 = vset.pattern.permute.xlu0 0
        %4224 = vperm.xlu0 %4223, %v4182
        %v4225 = vpop.permute.xlu0 %4224
        %4228 = vset.pattern.permute.xlu0 0
        %4229 = vperm.xlu0 %4228, %v4183
        %v4230 = vpop.permute.xlu0 %4229
        %4233 = vset.pattern.permute.xlu0 0
        %4234 = vperm.xlu0 %4233, %v4184
        %v4235 = vpop.permute.xlu0 %4234
        %4238 = vset.pattern.permute.xlu0 0
        %4239 = vperm.xlu0 %4238, %v4185
        %v4240 = vpop.permute.xlu0 %4239
        %4243 = vset.pattern.permute.xlu0 0
        %4244 = vperm.xlu0 %4243, %v4186
        %v4245 = vpop.permute.xlu0 %4244
        %4248 = vset.pattern.permute.xlu0 0
        %4249 = vperm.xlu0 %4248, %v4187
        %v4250 = vpop.permute.xlu0 %4249
        %4253 = vset.pattern.permute.xlu0 0
        %4254 = vperm.xlu0 %4253, %v4188
        %v4255 = vpop.permute.xlu0 %4254
        %4258 = vset.pattern.permute.xlu0 0
        %4259 = vperm.xlu0 %4258, %v4189
        %v4260 = vpop.permute.xlu0 %4259
        %4263 = vset.pattern.permute.xlu0 0
        %4264 = vperm.xlu0 %4263, %v4190
        %v4265 = vpop.permute.xlu0 %4264
        %4268 = vset.pattern.permute.xlu0 0
        %4269 = vperm.xlu0 %4268, %v4191
        %v4270 = vpop.permute.xlu0 %4269
        %4273 = vset.pattern.permute.xlu0 0
        %4274 = vperm.xlu0 %4273, %v4192
        %v4275 = vpop.permute.xlu0 %4274
        %4278 = vset.pattern.permute.xlu0 0
        %4279 = vperm.xlu0 %4278, %v4193
        %v4280 = vpop.permute.xlu0 %4279
        %4283 = vset.pattern.permute.xlu0 0
        %4284 = vperm.xlu0 %4283, %v4194
        %v4285 = vpop.permute.xlu0 %4284
        %4288 = vset.pattern.permute.xlu0 0
        %4289 = vperm.xlu0 %4288, %v4195
        %v4290 = vpop.permute.xlu0 %4289
        %v4292 = vmul.f32 %v4196, %v4215
        %v4293 = vmul.f32 %v4197, %v4220
        %v4294 = vmul.f32 %v4198, %v4225
        %v4295 = vmul.f32 %v4199, %v4230
        %v4296 = vmul.f32 %v4200, %v4235
        %v4297 = vmul.f32 %v4201, %v4240
        %v4298 = vmul.f32 %v4202, %v4245
        %v4299 = vmul.f32 %v4203, %v4250
        %v4300 = vmul.f32 %v4204, %v4255
        %v4301 = vmul.f32 %v4205, %v4260
        %v4302 = vmul.f32 %v4206, %v4265
        %v4303 = vmul.f32 %v4207, %v4270
        %v4304 = vmul.f32 %v4208, %v4275
        %v4305 = vmul.f32 %v4209, %v4280
        %v4306 = vmul.f32 %v4210, %v4285
        %v4307 = vmul.f32 %v4211, %v4290
        %s4308 = scalar_lea.vmem [#allocation3], 128
        %v4309 = vld [vmem:[%s4308] sm:$0xff]
        %v4310 = vld [vmem:[%s4308 + $0x8] sm:$0xff]
        %v4311 = vld [vmem:[%s4308 + $0x10] sm:$0xff]
        %v4312 = vld [vmem:[%s4308 + $0x18] sm:$0xff]
        %v4313 = vld [vmem:[%s4308 + $0x20] sm:$0xff]
        %v4314 = vld [vmem:[%s4308 + $0x28] sm:$0xff]
        %v4315 = vld [vmem:[%s4308 + $0x30] sm:$0xff]
        %v4316 = vld [vmem:[%s4308 + $0x38] sm:$0xff]
        %v4317 = vld [vmem:[%s4308 + $0x40] sm:$0xff]
        %v4318 = vld [vmem:[%s4308 + $0x48] sm:$0xff]
        %v4319 = vld [vmem:[%s4308 + $0x50] sm:$0xff]
        %v4320 = vld [vmem:[%s4308 + $0x58] sm:$0xff]
        %v4321 = vld [vmem:[%s4308 + $0x60] sm:$0xff]
        %v4322 = vld [vmem:[%s4308 + $0x68] sm:$0xff]
        %v4323 = vld [vmem:[%s4308 + $0x70] sm:$0xff]
        %v4324 = vld [vmem:[%s4308 + $0x78] sm:$0xff]
        %v4325 = vrcp.pop %v4309
        %v4326 = vrcp.pop %v4310
        %v4327 = vrcp.pop %v4311
        %v4328 = vrcp.pop %v4312
        %v4329 = vrcp.pop %v4313
        %v4330 = vrcp.pop %v4314
        %v4331 = vrcp.pop %v4315
        %v4332 = vrcp.pop %v4316
        %v4333 = vrcp.pop %v4317
        %v4334 = vrcp.pop %v4318
        %v4335 = vrcp.pop %v4319
        %v4336 = vrcp.pop %v4320
        %v4337 = vrcp.pop %v4321
        %v4338 = vrcp.pop %v4322
        %v4339 = vrcp.pop %v4323
        %v4340 = vrcp.pop %v4324
        %4342 = vset.pattern.permute.xlu0 0
        %4343 = vperm.xlu0 %4342, %v4325
        %v4344 = vpop.permute.xlu0 %4343
        %4347 = vset.pattern.permute.xlu0 0
        %4348 = vperm.xlu0 %4347, %v4326
        %v4349 = vpop.permute.xlu0 %4348
        %4352 = vset.pattern.permute.xlu0 0
        %4353 = vperm.xlu0 %4352, %v4327
        %v4354 = vpop.permute.xlu0 %4353
        %4357 = vset.pattern.permute.xlu0 0
        %4358 = vperm.xlu0 %4357, %v4328
        %v4359 = vpop.permute.xlu0 %4358
        %4362 = vset.pattern.permute.xlu0 0
        %4363 = vperm.xlu0 %4362, %v4329
        %v4364 = vpop.permute.xlu0 %4363
        %4367 = vset.pattern.permute.xlu0 0
        %4368 = vperm.xlu0 %4367, %v4330
        %v4369 = vpop.permute.xlu0 %4368
        %4372 = vset.pattern.permute.xlu0 0
        %4373 = vperm.xlu0 %4372, %v4331
        %v4374 = vpop.permute.xlu0 %4373
        %4377 = vset.pattern.permute.xlu0 0
        %4378 = vperm.xlu0 %4377, %v4332
        %v4379 = vpop.permute.xlu0 %4378
        %4382 = vset.pattern.permute.xlu0 0
        %4383 = vperm.xlu0 %4382, %v4333
        %v4384 = vpop.permute.xlu0 %4383
        %4387 = vset.pattern.permute.xlu0 0
        %4388 = vperm.xlu0 %4387, %v4334
        %v4389 = vpop.permute.xlu0 %4388
        %4392 = vset.pattern.permute.xlu0 0
        %4393 = vperm.xlu0 %4392, %v4335
        %v4394 = vpop.permute.xlu0 %4393
        %4397 = vset.pattern.permute.xlu0 0
        %4398 = vperm.xlu0 %4397, %v4336
        %v4399 = vpop.permute.xlu0 %4398
        %4402 = vset.pattern.permute.xlu0 0
        %4403 = vperm.xlu0 %4402, %v4337
        %v4404 = vpop.permute.xlu0 %4403
        %4407 = vset.pattern.permute.xlu0 0
        %4408 = vperm.xlu0 %4407, %v4338
        %v4409 = vpop.permute.xlu0 %4408
        %4412 = vset.pattern.permute.xlu0 0
        %4413 = vperm.xlu0 %4412, %v4339
        %v4414 = vpop.permute.xlu0 %4413
        %4417 = vset.pattern.permute.xlu0 0
        %4418 = vperm.xlu0 %4417, %v4340
        %v4419 = vpop.permute.xlu0 %4418
        %v4421 = vmul.f32 %v4196, %v4344
        %v4422 = vmul.f32 %v4197, %v4349
        %v4423 = vmul.f32 %v4198, %v4354
        %v4424 = vmul.f32 %v4199, %v4359
        %v4425 = vmul.f32 %v4200, %v4364
        %v4426 = vmul.f32 %v4201, %v4369
        %v4427 = vmul.f32 %v4202, %v4374
        %v4428 = vmul.f32 %v4203, %v4379
        %v4429 = vmul.f32 %v4204, %v4384
        %v4430 = vmul.f32 %v4205, %v4389
        %v4431 = vmul.f32 %v4206, %v4394
        %v4432 = vmul.f32 %v4207, %v4399
        %v4433 = vmul.f32 %v4208, %v4404
        %v4434 = vmul.f32 %v4209, %v4409
        %v4435 = vmul.f32 %v4210, %v4414
        %v4436 = vmul.f32 %v4211, %v4419
        %s4437 = scalar_lea.vmem [#allocation3], 256
        %v4438 = vld [vmem:[%s4437] sm:$0xff]
        %v4439 = vld [vmem:[%s4437 + $0x8] sm:$0xff]
        %v4440 = vld [vmem:[%s4437 + $0x10] sm:$0xff]
        %v4441 = vld [vmem:[%s4437 + $0x18] sm:$0xff]
        %v4442 = vld [vmem:[%s4437 + $0x20] sm:$0xff]
        %v4443 = vld [vmem:[%s4437 + $0x28] sm:$0xff]
        %v4444 = vld [vmem:[%s4437 + $0x30] sm:$0xff]
        %v4445 = vld [vmem:[%s4437 + $0x38] sm:$0xff]
        %v4446 = vld [vmem:[%s4437 + $0x40] sm:$0xff]
        %v4447 = vld [vmem:[%s4437 + $0x48] sm:$0xff]
        %v4448 = vld [vmem:[%s4437 + $0x50] sm:$0xff]
        %v4449 = vld [vmem:[%s4437 + $0x58] sm:$0xff]
        %v4450 = vld [vmem:[%s4437 + $0x60] sm:$0xff]
        %v4451 = vld [vmem:[%s4437 + $0x68] sm:$0xff]
        %v4452 = vld [vmem:[%s4437 + $0x70] sm:$0xff]
        %v4453 = vld [vmem:[%s4437 + $0x78] sm:$0xff]
        %v4454 = vrcp.pop %v4438
        %v4455 = vrcp.pop %v4439
        %v4456 = vrcp.pop %v4440
        %v4457 = vrcp.pop %v4441
        %v4458 = vrcp.pop %v4442
        %v4459 = vrcp.pop %v4443
        %v4460 = vrcp.pop %v4444
        %v4461 = vrcp.pop %v4445
        %v4462 = vrcp.pop %v4446
        %v4463 = vrcp.pop %v4447
        %v4464 = vrcp.pop %v4448
        %v4465 = vrcp.pop %v4449
        %v4466 = vrcp.pop %v4450
        %v4467 = vrcp.pop %v4451
        %v4468 = vrcp.pop %v4452
        %v4469 = vrcp.pop %v4453
        %4471 = vset.pattern.permute.xlu0 0
        %4472 = vperm.xlu0 %4471, %v4454
        %v4473 = vpop.permute.xlu0 %4472
        %4476 = vset.pattern.permute.xlu0 0
        %4477 = vperm.xlu0 %4476, %v4455
        %v4478 = vpop.permute.xlu0 %4477
        %4481 = vset.pattern.permute.xlu0 0
        %4482 = vperm.xlu0 %4481, %v4456
        %v4483 = vpop.permute.xlu0 %4482
        %4486 = vset.pattern.permute.xlu0 0
        %4487 = vperm.xlu0 %4486, %v4457
        %v4488 = vpop.permute.xlu0 %4487
        %4491 = vset.pattern.permute.xlu0 0
        %4492 = vperm.xlu0 %4491, %v4458
        %v4493 = vpop.permute.xlu0 %4492
        %4496 = vset.pattern.permute.xlu0 0
        %4497 = vperm.xlu0 %4496, %v4459
        %v4498 = vpop.permute.xlu0 %4497
        %4501 = vset.pattern.permute.xlu0 0
        %4502 = vperm.xlu0 %4501, %v4460
        %v4503 = vpop.permute.xlu0 %4502
        %4506 = vset.pattern.permute.xlu0 0
        %4507 = vperm.xlu0 %4506, %v4461
        %v4508 = vpop.permute.xlu0 %4507
        %4511 = vset.pattern.permute.xlu0 0
        %4512 = vperm.xlu0 %4511, %v4462
        %v4513 = vpop.permute.xlu0 %4512
        %4516 = vset.pattern.permute.xlu0 0
        %4517 = vperm.xlu0 %4516, %v4463
        %v4518 = vpop.permute.xlu0 %4517
        %4521 = vset.pattern.permute.xlu0 0
        %4522 = vperm.xlu0 %4521, %v4464
        %v4523 = vpop.permute.xlu0 %4522
        %4526 = vset.pattern.permute.xlu0 0
        %4527 = vperm.xlu0 %4526, %v4465
        %v4528 = vpop.permute.xlu0 %4527
        %4531 = vset.pattern.permute.xlu0 0
        %4532 = vperm.xlu0 %4531, %v4466
        %v4533 = vpop.permute.xlu0 %4532
        %4536 = vset.pattern.permute.xlu0 0
        %4537 = vperm.xlu0 %4536, %v4467
        %v4538 = vpop.permute.xlu0 %4537
        %4541 = vset.pattern.permute.xlu0 0
        %4542 = vperm.xlu0 %4541, %v4468
        %v4543 = vpop.permute.xlu0 %4542
        %4546 = vset.pattern.permute.xlu0 0
        %4547 = vperm.xlu0 %4546, %v4469
        %v4548 = vpop.permute.xlu0 %4547
        %v4550 = vmul.f32 %v4196, %v4473
        %v4551 = vmul.f32 %v4197, %v4478
        %v4552 = vmul.f32 %v4198, %v4483
        %v4553 = vmul.f32 %v4199, %v4488
        %v4554 = vmul.f32 %v4200, %v4493
        %v4555 = vmul.f32 %v4201, %v4498
        %v4556 = vmul.f32 %v4202, %v4503
        %v4557 = vmul.f32 %v4203, %v4508
        %v4558 = vmul.f32 %v4204, %v4513
        %v4559 = vmul.f32 %v4205, %v4518
        %v4560 = vmul.f32 %v4206, %v4523
        %v4561 = vmul.f32 %v4207, %v4528
        %v4562 = vmul.f32 %v4208, %v4533
        %v4563 = vmul.f32 %v4209, %v4538
        %v4564 = vmul.f32 %v4210, %v4543
        %v4565 = vmul.f32 %v4211, %v4548
        %s4566 = scalar_lea.vmem [#allocation3], 384
        %v4567 = vld [vmem:[%s4566] sm:$0xff]
        %v4568 = vld [vmem:[%s4566 + $0x8] sm:$0xff]
        %v4569 = vld [vmem:[%s4566 + $0x10] sm:$0xff]
        %v4570 = vld [vmem:[%s4566 + $0x18] sm:$0xff]
        %v4571 = vld [vmem:[%s4566 + $0x20] sm:$0xff]
        %v4572 = vld [vmem:[%s4566 + $0x28] sm:$0xff]
        %v4573 = vld [vmem:[%s4566 + $0x30] sm:$0xff]
        %v4574 = vld [vmem:[%s4566 + $0x38] sm:$0xff]
        %v4575 = vld [vmem:[%s4566 + $0x40] sm:$0xff]
        %v4576 = vld [vmem:[%s4566 + $0x48] sm:$0xff]
        %v4577 = vld [vmem:[%s4566 + $0x50] sm:$0xff]
        %v4578 = vld [vmem:[%s4566 + $0x58] sm:$0xff]
        %v4579 = vld [vmem:[%s4566 + $0x60] sm:$0xff]
        %v4580 = vld [vmem:[%s4566 + $0x68] sm:$0xff]
        %v4581 = vld [vmem:[%s4566 + $0x70] sm:$0xff]
        %v4582 = vld [vmem:[%s4566 + $0x78] sm:$0xff]
        %v4583 = vrcp.pop %v4567
        %v4584 = vrcp.pop %v4568
        %v4585 = vrcp.pop %v4569
        %v4586 = vrcp.pop %v4570
        %v4587 = vrcp.pop %v4571
        %v4588 = vrcp.pop %v4572
        %v4589 = vrcp.pop %v4573
        %v4590 = vrcp.pop %v4574
        %v4591 = vrcp.pop %v4575
        %v4592 = vrcp.pop %v4576
        %v4593 = vrcp.pop %v4577
        %v4594 = vrcp.pop %v4578
        %v4595 = vrcp.pop %v4579
        %v4596 = vrcp.pop %v4580
        %v4597 = vrcp.pop %v4581
        %v4598 = vrcp.pop %v4582
        %4600 = vset.pattern.permute.xlu0 0
        %4601 = vperm.xlu0 %4600, %v4583
        %v4602 = vpop.permute.xlu0 %4601
        %4605 = vset.pattern.permute.xlu0 0
        %4606 = vperm.xlu0 %4605, %v4584
        %v4607 = vpop.permute.xlu0 %4606
        %4610 = vset.pattern.permute.xlu0 0
        %4611 = vperm.xlu0 %4610, %v4585
        %v4612 = vpop.permute.xlu0 %4611
        %4615 = vset.pattern.permute.xlu0 0
        %4616 = vperm.xlu0 %4615, %v4586
        %v4617 = vpop.permute.xlu0 %4616
        %4620 = vset.pattern.permute.xlu0 0
        %4621 = vperm.xlu0 %4620, %v4587
        %v4622 = vpop.permute.xlu0 %4621
        %4625 = vset.pattern.permute.xlu0 0
        %4626 = vperm.xlu0 %4625, %v4588
        %v4627 = vpop.permute.xlu0 %4626
        %4630 = vset.pattern.permute.xlu0 0
        %4631 = vperm.xlu0 %4630, %v4589
        %v4632 = vpop.permute.xlu0 %4631
        %4635 = vset.pattern.permute.xlu0 0
        %4636 = vperm.xlu0 %4635, %v4590
        %v4637 = vpop.permute.xlu0 %4636
        %4640 = vset.pattern.permute.xlu0 0
        %4641 = vperm.xlu0 %4640, %v4591
        %v4642 = vpop.permute.xlu0 %4641
        %4645 = vset.pattern.permute.xlu0 0
        %4646 = vperm.xlu0 %4645, %v4592
        %v4647 = vpop.permute.xlu0 %4646
        %4650 = vset.pattern.permute.xlu0 0
        %4651 = vperm.xlu0 %4650, %v4593
        %v4652 = vpop.permute.xlu0 %4651
        %4655 = vset.pattern.permute.xlu0 0
        %4656 = vperm.xlu0 %4655, %v4594
        %v4657 = vpop.permute.xlu0 %4656
        %4660 = vset.pattern.permute.xlu0 0
        %4661 = vperm.xlu0 %4660, %v4595
        %v4662 = vpop.permute.xlu0 %4661
        %4665 = vset.pattern.permute.xlu0 0
        %4666 = vperm.xlu0 %4665, %v4596
        %v4667 = vpop.permute.xlu0 %4666
        %4670 = vset.pattern.permute.xlu0 0
        %4671 = vperm.xlu0 %4670, %v4597
        %v4672 = vpop.permute.xlu0 %4671
        %4675 = vset.pattern.permute.xlu0 0
        %4676 = vperm.xlu0 %4675, %v4598
        %v4677 = vpop.permute.xlu0 %4676
        %v4679 = vmul.f32 %v4196, %v4602
        %v4680 = vmul.f32 %v4197, %v4607
        %v4681 = vmul.f32 %v4198, %v4612
        %v4682 = vmul.f32 %v4199, %v4617
        %v4683 = vmul.f32 %v4200, %v4622
        %v4684 = vmul.f32 %v4201, %v4627
        %v4685 = vmul.f32 %v4202, %v4632
        %v4686 = vmul.f32 %v4203, %v4637
        %v4687 = vmul.f32 %v4204, %v4642
        %v4688 = vmul.f32 %v4205, %v4647
        %v4689 = vmul.f32 %v4206, %v4652
        %v4690 = vmul.f32 %v4207, %v4657
        %v4691 = vmul.f32 %v4208, %v4662
        %v4692 = vmul.f32 %v4209, %v4667
        %v4693 = vmul.f32 %v4210, %v4672
        %v4694 = vmul.f32 %v4211, %v4677
        %vm4695 = vcmask 64512
        %v4696 = vsel %vm4695, %v4292, %v4421
        %v4697 = vsel %vm4695, %v4293, %v4422
        %v4698 = vsel %vm4695, %v4294, %v4423
        %v4699 = vsel %vm4695, %v4295, %v4424
        %v4700 = vsel %vm4695, %v4296, %v4425
        %v4701 = vsel %vm4695, %v4297, %v4426
        %v4702 = vsel %vm4695, %v4298, %v4427
        %v4703 = vsel %vm4695, %v4299, %v4428
        %v4704 = vsel %vm4695, %v4300, %v4429
        %v4705 = vsel %vm4695, %v4301, %v4430
        %v4706 = vsel %vm4695, %v4302, %v4431
        %v4707 = vsel %vm4695, %v4303, %v4432
        %v4708 = vsel %vm4695, %v4304, %v4433
        %v4709 = vsel %vm4695, %v4305, %v4434
        %v4710 = vsel %vm4695, %v4306, %v4435
        %v4711 = vsel %vm4695, %v4307, %v4436
        %vm4712 = vcmask 130048
        %v4713 = vsel %vm4712, %v4696, %v4550
        %v4714 = vsel %vm4712, %v4697, %v4551
        %v4715 = vsel %vm4712, %v4698, %v4552
        %v4716 = vsel %vm4712, %v4699, %v4553
        %v4717 = vsel %vm4712, %v4700, %v4554
        %v4718 = vsel %vm4712, %v4701, %v4555
        %v4719 = vsel %vm4712, %v4702, %v4556
        %v4720 = vsel %vm4712, %v4703, %v4557
        %v4721 = vsel %vm4712, %v4704, %v4558
        %v4722 = vsel %vm4712, %v4705, %v4559
        %v4723 = vsel %vm4712, %v4706, %v4560
        %v4724 = vsel %vm4712, %v4707, %v4561
        %v4725 = vsel %vm4712, %v4708, %v4562
        %v4726 = vsel %vm4712, %v4709, %v4563
        %v4727 = vsel %vm4712, %v4710, %v4564
        %v4728 = vsel %vm4712, %v4711, %v4565
        %vm4729 = vcmask 195584
        %v4730 = vsel %vm4729, %v4713, %v4679
        %v4731 = vsel %vm4729, %v4714, %v4680
        %v4732 = vsel %vm4729, %v4715, %v4681
        %v4733 = vsel %vm4729, %v4716, %v4682
        %v4734 = vsel %vm4729, %v4717, %v4683
        %v4735 = vsel %vm4729, %v4718, %v4684
        %v4736 = vsel %vm4729, %v4719, %v4685
        %v4737 = vsel %vm4729, %v4720, %v4686
        %v4738 = vsel %vm4729, %v4721, %v4687
        %v4739 = vsel %vm4729, %v4722, %v4688
        %v4740 = vsel %vm4729, %v4723, %v4689
        %v4741 = vsel %vm4729, %v4724, %v4690
        %v4742 = vsel %vm4729, %v4725, %v4691
        %v4743 = vsel %vm4729, %v4726, %v4692
        %v4744 = vsel %vm4729, %v4727, %v4693
        %v4745 = vsel %vm4729, %v4728, %v4694
        %v4746 = vpack.c.bf16 %v4731, %v4730
        %v4747 = vpack.c.bf16 %v4733, %v4732
        %v4748 = vpack.c.bf16 %v4735, %v4734
        %v4749 = vpack.c.bf16 %v4737, %v4736
        %v4750 = vpack.c.bf16 %v4739, %v4738
        %v4751 = vpack.c.bf16 %v4741, %v4740
        %v4752 = vpack.c.bf16 %v4743, %v4742
        %v4753 = vpack.c.bf16 %v4745, %v4744
        %v4762 = vunpack.c.l.b16 %v4746
        %v4763 = vunpack.c.h.b16 %v4746
        %v4764 = vunpack.c.l.b16 %v4747
        %v4765 = vunpack.c.h.b16 %v4747
        %v4766 = vunpack.c.l.b16 %v4748
        %v4767 = vunpack.c.h.b16 %v4748
        %v4768 = vunpack.c.l.b16 %v4749
        %v4769 = vunpack.c.h.b16 %v4749
        %v4770 = vunpack.c.l.b16 %v4750
        %v4771 = vunpack.c.h.b16 %v4750
        %v4772 = vunpack.c.l.b16 %v4751
        %v4773 = vunpack.c.h.b16 %v4751
        %v4774 = vunpack.c.l.b16 %v4752
        %v4775 = vunpack.c.h.b16 %v4752
        %v4776 = vunpack.c.l.b16 %v4753
        %v4777 = vunpack.c.h.b16 %v4753
        %v4778 = vpack.c.b16 %v4762, %v4762
        %v4779 = vpack.c.b16 %v4763, %v4763
        %v4780 = vpack.c.b16 %v4764, %v4764
        %v4781 = vpack.c.b16 %v4765, %v4765
        %v4782 = vpack.c.b16 %v4766, %v4766
        %v4783 = vpack.c.b16 %v4767, %v4767
        %v4784 = vpack.c.b16 %v4768, %v4768
        %v4785 = vpack.c.b16 %v4769, %v4769
        %v4786 = vpack.c.b16 %v4770, %v4770
        %v4787 = vpack.c.b16 %v4771, %v4771
        %v4788 = vpack.c.b16 %v4772, %v4772
        %v4789 = vpack.c.b16 %v4773, %v4773
        %v4790 = vpack.c.b16 %v4774, %v4774
        %v4791 = vpack.c.b16 %v4775, %v4775
        %v4792 = vpack.c.b16 %v4776, %v4776
        %v4793 = vpack.c.b16 %v4777, %v4777
        %vm4810 = vcmask 257024
        %4811 = vst.msk [vmem:[%s288] sm:$0xf] %vm4810, %v4778
        %4812 = vst.msk [vmem:[%s288 + $0x4] sm:$0xf] %vm4810, %v4779
        %4813 = vst.msk [vmem:[%s288 + $0x8] sm:$0xf] %vm4810, %v4780
        %4814 = vst.msk [vmem:[%s288 + $0xc] sm:$0xf] %vm4810, %v4781
        %4815 = vst.msk [vmem:[%s288 + $0x10] sm:$0xf] %vm4810, %v4782
        %4816 = vst.msk [vmem:[%s288 + $0x14] sm:$0xf] %vm4810, %v4783
        %4817 = vst.msk [vmem:[%s288 + $0x18] sm:$0xf] %vm4810, %v4784
        %4818 = vst.msk [vmem:[%s288 + $0x1c] sm:$0xf] %vm4810, %v4785
        %4819 = vst.msk [vmem:[%s288 + $0x20] sm:$0xf] %vm4810, %v4786
        %4820 = vst.msk [vmem:[%s288 + $0x24] sm:$0xf] %vm4810, %v4787
        %4821 = vst.msk [vmem:[%s288 + $0x28] sm:$0xf] %vm4810, %v4788
        %4822 = vst.msk [vmem:[%s288 + $0x2c] sm:$0xf] %vm4810, %v4789
        %4823 = vst.msk [vmem:[%s288 + $0x30] sm:$0xf] %vm4810, %v4790
        %4824 = vst.msk [vmem:[%s288 + $0x34] sm:$0xf] %vm4810, %v4791
        %4825 = vst.msk [vmem:[%s288 + $0x38] sm:$0xf] %vm4810, %v4792
        %4826 = vst.msk [vmem:[%s288 + $0x3c] sm:$0xf] %vm4810, %v4793
      $region44: #{attention_forward.4} parent=31 // pred_fallthru
        _
      %s4827 = sadd.s32 %s19, %s20
      %s4828 = smul.u32 16, %s4827
      %p4829 = scmp.lt.s32.totalorder %s4828, 31
      %s4830 = scalar_select %p4829, %s4828, 31
      %s4831 = smul.addr %s4830, 4
      %s4832 = scalar_lea.vmem %s3, %s4831
      // Predicated region
      $region45: #{attention_forward.4} parent=31 // pred_check
        %p4833 = pneg %p145
      $region46: #{attention_forward.4} parent=31 // pred_check_branch
        %4835 = sbr.rel (%p4833) target = $region48
      $region47: #{attention_forward.4} parent=31 // pred_region
        %s4836 = sadd.s32 %s19, %s20
        %s4837 = smul.u32 16, %s4836
      $region48: #{attention_forward.4} parent=31 // pred_fallthru
        _
    $region32: #{attention_forward.4} parent=5 // pred_fallthru
      _
    %p4838 = scmp.le.s32.totalorder 2, %s9
    // Predicated region
    $region49: #{attention_forward.4} parent=5 // pred_check
      %p4839 = pneg %p4838
    $region50: #{attention_forward.4} parent=5 // pred_check_branch
      %4841 = sbr.rel (%p4839) target = $region52
    $region51: #{attention_forward.4} parent=5 // pred_region
      %s4842 = ssub.s32 %s9, 2
      // Predicated region
      $region53: #{attention_forward.4} parent=51 // pred_check
        %p4843 = pneg %p151
      $region54: #{attention_forward.4} parent=51 // pred_check_branch
        %4845 = sbr.rel (%p4843) target = $region56
      $region55: #{attention_forward.4} parent=51 // pred_region
        %s4846 = sadd.s32 %s22, %s23
        %s4847 = smul.u32 16, %s4846
        %p4848 = scmp.lt.s32.totalorder %s4847, 31
        %s4849 = scalar_select %p4848, %s4847, 31
        %s4850 = smul.addr %s4849, 4
        %s4851 = scalar_lea.vmem %s3, %s4850
      $region56: #{attention_forward.4} parent=51 // pred_fallthru
        _
    $region52: #{attention_forward.4} parent=5 // pred_fallthru
      _
  $region6: #{attention_forward.4} parent=0 // loop_footer
    %s13 = sadd.s32 1, %s9
  $region7: #{attention_forward.4} parent=0 // loop_footer_branch
    %8 = sbr.rel target = $region3
  $region8: #{attention_forward.4} parent=0 // loop_exit
    _

</llo_original>
